<compile_context>
chip_gen: v7x
topology: tpu7x:2x2x1
jax: 0.10.0
libtpu: 0.0.40
codegen_flags: <defaults>
</compile_context>

<pallas_src>
import functools
import math

import jax
import jax.numpy as jnp
from jax import lax
from jax.experimental import pallas as pl
from jax.experimental.pallas import tpu as pltpu

# ------------------------- model hyperparameters (small) ---------------------
N_EMBD = 48            # embedding dim (stand-in for 600 in the original)
N_HEAD = 4             # number of heads (stand-in for 12)
HEAD_SIZE = N_EMBD // N_HEAD
HIDDEN = 4 * N_EMBD    # feed-forward hidden dim
BLOCK_SIZE = 128       # max sequence length; T <= BLOCK_SIZE
LN_EPS = 1e-5          # PyTorch nn.LayerNorm default eps

# ---- lane-dense padded dims (last dims are multiples of 128) -----------------
_LANE = 128


def _round_up(v, m):
    return (v + m - 1) // m * m


# per-head padded width chosen so that N_HEAD * HEAD_PAD is a multiple of 128
HEAD_PAD = _round_up(HEAD_SIZE, _LANE // math.gcd(N_HEAD, _LANE))
C_PAD = N_HEAD * HEAD_PAD          # padded embedding dim (48 -> 128)
H_PAD = _round_up(HIDDEN, _LANE)   # padded FFN hidden dim (192 -> 256)
assert C_PAD % _LANE == 0 and H_PAD % _LANE == 0 and HEAD_PAD >= HEAD_SIZE


# ------------------------------- Pallas kernel -------------------------------
def block_kernel(x_ref,                           # (M, C_PAD)   bf16
                 wqkv_ref,                        # (C_PAD, 3*C_PAD) bf16 (fused Q|K|V)
                 wproj_ref, bproj_ref,            # (C_PAD, C_PAD) bf16, (1, C_PAD) f32
                 g1_ref, b1_ref,                  # (1, C_PAD) f32
                 wff1_ref, bff1_ref,              # (C_PAD, H_PAD) bf16, (1, H_PAD) f32
                 wff2_ref, bff2_ref,              # (H_PAD, C_PAD) bf16, (1, C_PAD) f32
                 g2_ref, b2_ref,                  # (1, C_PAD) f32
                 o_ref,                           # (M, C_PAD)   f32 (lane-dense stores)
                 att_ref,                         # (M, C_PAD)   bf16 VMEM scratch
                 *, batch_block, seq_len):
    """One grid step = `batch_block` sequences, fully fused in VMEM."""
    bf16, f32 = jnp.bfloat16, jnp.float32
    BB, T, HP = batch_block, seq_len, HEAD_PAD
    M, CP = x_ref.shape                           # M = BB * T, CP = C_PAD

    xb = x_ref[...]                               # bf16; single live copy of x

    # ---- fused QKV projection: one lane-dense MXU matmul ---------------------
    qkv = jnp.dot(xb, wqkv_ref[...], preferred_element_type=f32)   # (M, 3*CP) f32

    # Additive causal mask, built and broadcast once, shared by all heads.
    row = lax.broadcasted_iota(jnp.int32, (T, T), 0)
    col = lax.broadcasted_iota(jnp.int32, (T, T), 1)
    causal = jnp.where(row >= col, 0.0, -1e30).astype(f32)
    causal = jnp.broadcast_to(causal[None], (BB, T, T))             # hoisted
    scale = jnp.float32(HEAD_SIZE ** -0.5)        # true head size (padded dims are 0)

    # ---- multi-head self-attention -------------------------------------------
    # Per head: batched-over-BB einsums; the head output is written into the
    # `att_ref` scratch at its lane offset (no concatenate), so the output
    # projection below is a single K = C_PAD contraction.
    for h in range(N_HEAD):                       # static unroll over few heads
        q = qkv[:, h * HP:(h + 1) * HP].astype(bf16).reshape(BB, T, HP)
        k = qkv[:, CP + h * HP:CP + (h + 1) * HP].astype(bf16).reshape(BB, T, HP)
        v = qkv[:, 2 * CP + h * HP:2 * CP + (h + 1) * HP].astype(bf16).reshape(BB, T, HP)

        s = jnp.einsum("bqd,bkd->bqk", q, k, preferred_element_type=f32)
        s = s * scale + causal
        s = s - jnp.max(s, axis=-1, keepdims=True)
        p = jnp.exp(s)
        p = p * pl.reciprocal(jnp.sum(p, axis=-1, keepdims=True), approx=True)
        # attention-dropout: identity in eval mode
        o_h = jnp.einsum("bqk,bkd->bqd", p.astype(bf16), v,
                         preferred_element_type=f32)                # (BB, T, HP)
        att_ref[:, h * HP:(h + 1) * HP] = o_h.reshape(M, HP).astype(bf16)

    # ---- fused output projection (single K = C_PAD matmul) -------------------
    sa = jnp.dot(att_ref[...], wproj_ref[...],
                 preferred_element_type=f32) + bproj_ref[...]       # (M, CP) f32
    # proj-dropout: identity in eval mode

    inv_c = jnp.float32(1.0 / N_EMBD)             # LayerNorm over the TRUE C

    def layer_norm(val, gamma, beta):
        # Padded lanes of `val` are exactly zero, so plain lane-sums give the
        # true-C statistics; gamma/beta are zero-padded so padded lanes stay 0.
        mu = jnp.sum(val, axis=-1, keepdims=True) * inv_c
        var = jnp.sum(val * val, axis=-1, keepdims=True) * inv_c - mu * mu
        return (val - mu) * lax.rsqrt(var + LN_EPS) * gamma + beta

    # ---- residual + LayerNorm 1 -----------------------------------------------
    h1 = layer_norm(xb.astype(f32) + sa, g1_ref[...], b1_ref[...])  # (M, CP) f32

    # ---- feed-forward ----------------------------------------------------------
    ff = jnp.dot(h1.astype(bf16), wff1_ref[...],
                 preferred_element_type=f32) + bff1_ref[...]        # (M, H_PAD)
    ff = jnp.maximum(ff, 0.0)
    ff = jnp.dot(ff.astype(bf16), wff2_ref[...],
                 preferred_element_type=f32) + bff2_ref[...]        # (M, CP)
    # ffwd-dropout: identity in eval mode

    # ---- residual + LayerNorm 2 (lane-dense f32 store) -------------------------
    o_ref[...] = layer_norm(h1 + ff, g2_ref[...], b2_ref[...])


# --------------------------------- wrapper -----------------------------------
def _grid_steps_default(B):
    """>1 grid step only on 2-TensorCore chips (v7x). On v5e/v6e (1 TC) the grid is
    a serial loop, so splitting just halves M per MXU pass and doubles per-step
    overhead for zero parallelism."""
    try:
        kind = jax.devices()[0].device_kind.lower().replace(" ", "")
    except Exception:
        return 1
    two_tc = ("v7" in kind) or ("tpu7" in kind)
    return 2 if (two_tc and B >= 2 and B % 2 == 0) else 1


def _pad_to(a, shape):
    return jnp.pad(a, [(0, s - d) for d, s in zip(a.shape, shape)])


def _prepare_weights(params):
    """Zero-pad to lane-dense shapes and pack head-major fused QKV / proj weights."""
    bf16 = jnp.bfloat16
    C, HS, HP = N_EMBD, HEAD_SIZE, HEAD_PAD

    def pack_qkv(w):                                   # (C, C) -> (C_PAD, C_PAD)
        w3 = w.reshape(C, N_HEAD, HS)                  # head-major columns
        w3 = jnp.pad(w3, ((0, C_PAD - C), (0, 0), (0, HP - HS)))
        return w3.reshape(C_PAD, C_PAD)

    wqkv = jnp.concatenate(
        [pack_qkv(params["wq"]), pack_qkv(params["wk"]), pack_qkv(params["wv"])],
        axis=1).astype(bf16)                           # (C_PAD, 3*C_PAD)

    wp3 = params["wproj"].reshape(N_HEAD, HS, C)       # rows in head-concat order
    wp3 = jnp.pad(wp3, ((0, 0), (0, HP - HS), (0, C_PAD - C)))
    wproj = wp3.reshape(C_PAD, C_PAD).astype(bf16)

    return dict(
        wqkv=wqkv,
        wproj=wproj,
        bproj=_pad_to(params["bproj"], (1, C_PAD)),
        g1=_pad_to(params["g1"], (1, C_PAD)),          # zero-padded gamma/beta keep
        b1=_pad_to(params["b1"], (1, C_PAD)),          # padded lanes at exactly 0
        wff1=_pad_to(params["wff1"], (C_PAD, H_PAD)).astype(bf16),
        bff1=_pad_to(params["bff1"], (1, H_PAD)),
        wff2=_pad_to(params["wff2"], (H_PAD, C_PAD)).astype(bf16),
        bff2=_pad_to(params["bff2"], (1, C_PAD)),
        g2=_pad_to(params["g2"], (1, C_PAD)),
        b2=_pad_to(params["b2"], (1, C_PAD)),
    )


def transformer_block(x, params, *, grid_steps=None):
    """x: (B, T, C) float32. params: dict of f32 weights (see init_params)."""
    B, T, C = x.shape
    assert C == N_EMBD and T <= BLOCK_SIZE and T % 8 == 0

    if grid_steps is None:
        grid_steps = _grid_steps_default(B)
    assert B % grid_steps == 0
    batch_block = B // grid_steps
    M = batch_block * T

    w = _prepare_weights(params)

    # Pad x lanes C -> C_PAD with zeros, flatten (B,T) -> rows, cast to bf16 so the
    # only per-step activation DMA is half width and no (M,C) cast runs in-kernel.
    x2 = jnp.pad(x, ((0, 0), (0, 0), (0, C_PAD - C))).reshape(B * T, C_PAD)
    x2 = x2.astype(jnp.bfloat16)

    kernel = functools.partial(block_kernel, batch_block=batch_block, seq_len=T)

    def run(weights_single_buffered):
        def wspec(shape):
            # Grid-invariant weights/biases: constant index_map; single-buffered
            # when supported (halves their VMEM footprint -- matters on v7x 64 MiB).
            if weights_single_buffered:
                return pl.BlockSpec(shape, lambda g: (0,) * len(shape),
                                    pipeline_mode=pl.Buffered(1))
            return pl.BlockSpec(shape, lambda g: (0,) * len(shape))

        in_specs = [
            pl.BlockSpec((M, C_PAD), lambda g: (g, 0)),       # x rows for this step
            wspec((C_PAD, 3 * C_PAD)),                        # fused W_qkv
            wspec((C_PAD, C_PAD)),                            # W_proj
            wspec((1, C_PAD)),                                # b_proj
            wspec((1, C_PAD)), wspec((1, C_PAD)),             # ln1 gamma / beta
            wspec((C_PAD, H_PAD)), wspec((1, H_PAD)),         # ffn1 W / b
            wspec((H_PAD, C_PAD)), wspec((1, C_PAD)),         # ffn2 W / b
            wspec((1, C_PAD)), wspec((1, C_PAD)),             # ln2 gamma / beta
        ]
        out_spec = pl.BlockSpec((M, C_PAD), lambda g: (g, 0))  # lane-dense stores

        return pl.pallas_call(
            kernel,
            out_shape=jax.ShapeDtypeStruct((B * T, C_PAD), jnp.float32),
            grid_spec=pltpu.PrefetchScalarGridSpec(
                num_scalar_prefetch=0,
                grid=(grid_steps,),
                in_specs=in_specs,
                out_specs=out_spec,
                scratch_shapes=[pltpu.VMEM((M, C_PAD), jnp.bfloat16)],
            ),
            compiler_params=pltpu.CompilerParams(
                dimension_semantics=("parallel",),
                vmem_limit_bytes=32 * 1024 * 1024,
            ),
        )(x2, w["wqkv"], w["wproj"], w["bproj"], w["g1"], w["b1"],
          w["wff1"], w["bff1"], w["wff2"], w["bff2"], w["g2"], w["b2"])

    try:
        y = run(weights_single_buffered=True)
    except Exception:
        # pipeline_mode=pl.Buffered(1) not plumbed through pallas_call on this
        # backend/version: fall back to default (double-buffered) weight specs.
        y = run(weights_single_buffered=False)

    return y[:, :C].reshape(B, T, C)


# --------------------------- deterministic parameters -------------------------
def init_params(key):
    C, H = N_EMBD, HIDDEN
    ks = jax.random.split(key, 8)
    s = 0.02
    return dict(
        wq=jax.random.normal(ks[0], (C, C), jnp.float32) * s,
        wk=jax.random.normal(ks[1], (C, C), jnp.float32) * s,
        wv=jax.random.normal(ks[2], (C, C), jnp.float32) * s,
        wproj=jax.random.normal(ks[3], (C, C), jnp.float32) * s,
        bproj=jax.random.normal(ks[4], (1, C), jnp.float32) * s,
        g1=jnp.ones((1, C), jnp.float32),
        b1=jnp.zeros((1, C), jnp.float32),
        wff1=jax.random.normal(ks[5], (C, H), jnp.float32) * s,
        bff1=jax.random.normal(ks[6], (1, H), jnp.float32) * s,
        wff2=jax.random.normal(ks[7], (H, C), jnp.float32) * s,
        bff2=jnp.zeros((1, C), jnp.float32),
        g2=jnp.ones((1, C), jnp.float32),
        b2=jnp.zeros((1, C), jnp.float32),
    )


# ------------------------------- pure-JAX reference ---------------------------
def block_reference(x, p):
    B, T, C = x.shape
    q = x @ p["wq"]
    k = x @ p["wk"]
    v = x @ p["wv"]
    qh = q.reshape(B, T, N_HEAD, HEAD_SIZE).transpose(0, 2, 1, 3)
    kh = k.reshape(B, T, N_HEAD, HEAD_SIZE).transpose(0, 2, 1, 3)
    vh = v.reshape(B, T, N_HEAD, HEAD_SIZE).transpose(0, 2, 1, 3)
    wei = jnp.einsum("bhqd,bhkd->bhqk", qh, kh) * (HEAD_SIZE ** -0.5)
    mask = jnp.tril(jnp.ones((T, T), bool))
    wei = jnp.where(mask, wei, -jnp.inf)
    wei = jax.nn.softmax(wei, axis=-1)
    out = jnp.einsum("bhqk,bhkd->bhqd", wei, vh)
    out = out.transpose(0, 2, 1, 3).reshape(B, T, C)
    sa = out @ p["wproj"] + p["bproj"]

    def ln(h, g, b):
        mu = jnp.mean(h, -1, keepdims=True)
        var = jnp.mean((h - mu) ** 2, -1, keepdims=True)
        return (h - mu) * lax.rsqrt(var + LN_EPS) * g + b

    h1 = ln(x + sa, p["g1"], p["b1"])
    ff = jnp.maximum(h1 @ p["wff1"] + p["bff1"], 0.0) @ p["wff2"] + p["bff2"]
    return ln(h1 + ff, p["g2"], p["b2"])


# ------------------------------------ main ------------------------------------
if __name__ == "__main__":
    key = jax.random.PRNGKey(0)
    kx, kp = jax.random.split(key)

    B, T = 4, 32                      # T <= BLOCK_SIZE (128)
    x = jax.random.normal(kx, (B, T, N_EMBD), jnp.float32)
    params = init_params(kp)

    out = transformer_block(x, params)
    out = jax.block_until_ready(out)

    ref = block_reference(x, params)
    assert out.shape == (B, T, N_EMBD)
    # bf16 MXU operands / bf16 x vs. full-f32 reference -> loosened tolerance
    assert jnp.allclose(out, ref, atol=3e-2, rtol=3e-2), "mismatch vs reference"

    print("KERNEL_OK")
</pallas_src>

<mosaic_0001>
module attributes {stable_mosaic.version = 11 : i64} {
  func.func @block_kernel(%arg0: i32, %arg1: memref<128x128xbf16, #tpu.memory_space<vmem>>, %arg2: memref<128x384xbf16, #tpu.memory_space<vmem>>, %arg3: memref<128x128xbf16, #tpu.memory_space<vmem>>, %arg4: memref<1x128xf32, #tpu.memory_space<vmem>>, %arg5: memref<1x128xf32, #tpu.memory_space<vmem>>, %arg6: memref<1x128xf32, #tpu.memory_space<vmem>>, %arg7: memref<128x256xbf16, #tpu.memory_space<vmem>>, %arg8: memref<1x256xf32, #tpu.memory_space<vmem>>, %arg9: memref<256x128xbf16, #tpu.memory_space<vmem>>, %arg10: memref<1x128xf32, #tpu.memory_space<vmem>>, %arg11: memref<1x128xf32, #tpu.memory_space<vmem>>, %arg12: memref<1x128xf32, #tpu.memory_space<vmem>>, %arg13: memref<128x128xf32, #tpu.memory_space<vmem>>, %arg14: memref<128x128xbf16, #tpu.memory_space<vmem>>) attributes {dimension_semantics = [#tpu.dimension_semantics<parallel>], iteration_bounds = array<i64: 1>, scalar_prefetch = 0 : i64, scratch_operands = 1 : i64, tpu.core_type = #tpu.core_type<tc>, window_params = [{transform_indices = @transform_0, window_bounds = array<i64: 128, 128>}, {pipeline_mode = #tpu.pipeline_mode<synchronous>, transform_indices = @transform_1, window_bounds = array<i64: 128, 384>}, {pipeline_mode = #tpu.pipeline_mode<synchronous>, transform_indices = @transform_2, window_bounds = array<i64: 128, 128>}, {pipeline_mode = #tpu.pipeline_mode<synchronous>, transform_indices = @transform_3, window_bounds = array<i64: 1, 128>}, {pipeline_mode = #tpu.pipeline_mode<synchronous>, transform_indices = @transform_4, window_bounds = array<i64: 1, 128>}, {pipeline_mode = #tpu.pipeline_mode<synchronous>, transform_indices = @transform_5, window_bounds = array<i64: 1, 128>}, {pipeline_mode = #tpu.pipeline_mode<synchronous>, transform_indices = @transform_6, window_bounds = array<i64: 128, 256>}, {pipeline_mode = #tpu.pipeline_mode<synchronous>, transform_indices = @transform_7, window_bounds = array<i64: 1, 256>}, {pipeline_mode = #tpu.pipeline_mode<synchronous>, transform_indices = @transform_8, window_bounds = array<i64: 256, 128>}, {pipeline_mode = #tpu.pipeline_mode<synchronous>, transform_indices = @transform_9, window_bounds = array<i64: 1, 128>}, {pipeline_mode = #tpu.pipeline_mode<synchronous>, transform_indices = @transform_10, window_bounds = array<i64: 1, 128>}, {pipeline_mode = #tpu.pipeline_mode<synchronous>, transform_indices = @transform_11, window_bounds = array<i64: 1, 128>}, {transform_indices = @transform_12, window_bounds = array<i64: 128, 128>}]} {
    %c0 = arith.constant 0 : index
    %c0_0 = arith.constant 0 : index
    %0 = vector.load %arg1[%c0, %c0_0] : memref<128x128xbf16, #tpu.memory_space<vmem>>, vector<128x128xbf16>
    %c0_1 = arith.constant 0 : index
    %c0_2 = arith.constant 0 : index
    %1 = vector.load %arg2[%c0_1, %c0_2] : memref<128x384xbf16, #tpu.memory_space<vmem>>, vector<128x384xbf16>
    %cst = arith.constant dense<0.000000e+00> : vector<128x384xf32>
    %2 = tpu.matmul %0, %1, %cst {dimension_numbers = #tpu.dot_dimension_numbers<[1], [0], [0], [1], [0, 0, 1, 1], [], []>} : vector<128x128xbf16>, vector<128x384xbf16>, vector<128x384xf32> -> vector<128x384xf32>
    %3 = tpu.iota {dimensions = array<i32: 0>} : vector<32x32xi32>
    %4 = tpu.iota {dimensions = array<i32: 1>} : vector<32x32xi32>
    %5 = arith.cmpi sge, %3, %4 : vector<32x32xi32>
    %cst_3 = arith.constant 0.000000e+00 : f32
    %cst_4 = arith.constant -1.000000e+30 : f32
    %6 = vector.broadcast %cst_3 : f32 to vector<32x32xf32>
    %7 = vector.broadcast %cst_4 : f32 to vector<32x32xf32>
    %8 = arith.select %5, %6, %7 : vector<32x32xi1>, vector<32x32xf32>
    %9 = vector.shape_cast %8 : vector<32x32xf32> to vector<1x32x32xf32>
    %10 = vector.shape_cast %9 : vector<1x32x32xf32> to vector<1x32x32xf32>
    %11 = vector.broadcast %10 : vector<1x32x32xf32> to vector<4x32x32xf32>
    %12 = vector.extract_strided_slice %2 {offsets = [0, 0], sizes = [128, 32], strides = [1, 1]} : vector<128x384xf32> to vector<128x32xf32>
    %13 = arith.truncf %12 : vector<128x32xf32> to vector<128x32xbf16>
    %14 = vector.shape_cast %13 : vector<128x32xbf16> to vector<4x32x32xbf16>
    %15 = vector.extract_strided_slice %2 {offsets = [0, 128], sizes = [128, 32], strides = [1, 1]} : vector<128x384xf32> to vector<128x32xf32>
    %16 = arith.truncf %15 : vector<128x32xf32> to vector<128x32xbf16>
    %17 = vector.shape_cast %16 : vector<128x32xbf16> to vector<4x32x32xbf16>
    %18 = vector.extract_strided_slice %2 {offsets = [0, 256], sizes = [128, 32], strides = [1, 1]} : vector<128x384xf32> to vector<128x32xf32>
    %19 = arith.truncf %18 : vector<128x32xf32> to vector<128x32xbf16>
    %20 = vector.shape_cast %19 : vector<128x32xbf16> to vector<4x32x32xbf16>
    "tpu.trace_start"() <{level = 10 : i32, message = "bqd,bkd->bqk"}> : () -> ()
    %cst_5 = arith.constant dense<0.000000e+00> : vector<4x32x32xf32>
    %21 = tpu.matmul %14, %17, %cst_5 {dimension_numbers = #tpu.dot_dimension_numbers<[2], [2], [1], [1], [0, 0, 0, 1, 1, 1], [0], [0]>} : vector<4x32x32xbf16>, vector<4x32x32xbf16>, vector<4x32x32xf32> -> vector<4x32x32xf32>
    "tpu.trace_stop"() : () -> ()
    %cst_6 = arith.constant 0.288675129 : f32
    %22 = vector.broadcast %cst_6 : f32 to vector<4x32x32xf32>
    %23 = arith.mulf %21, %22 : vector<4x32x32xf32>
    %24 = arith.addf %23, %11 : vector<4x32x32xf32>
    %cst_7 = arith.constant dense<0xFF800000> : vector<4x32xf32>
    %25 = vector.multi_reduction <maximumf>, %24, %cst_7 [2] : vector<4x32x32xf32> to vector<4x32xf32>
    %26 = vector.shape_cast %25 : vector<4x32xf32> to vector<4x32x1xf32>
    %27 = vector.broadcast %26 : vector<4x32x1xf32> to vector<4x32x32xf32>
    %28 = arith.subf %24, %27 : vector<4x32x32xf32>
    %29 = math.exp %28 : vector<4x32x32xf32>
    %cst_8 = arith.constant dense<0.000000e+00> : vector<4x32xf32>
    %30 = vector.multi_reduction <add>, %29, %cst_8 [2] : vector<4x32x32xf32> to vector<4x32xf32>
    %31 = vector.shape_cast %30 : vector<4x32xf32> to vector<4x32x1xf32>
    %32 = tpu.reciprocal %31 {approx = true} : vector<4x32x1xf32> -> vector<4x32x1xf32>
    %33 = vector.broadcast %32 : vector<4x32x1xf32> to vector<4x32x32xf32>
    %34 = arith.mulf %29, %33 : vector<4x32x32xf32>
    %35 = arith.truncf %34 : vector<4x32x32xf32> to vector<4x32x32xbf16>
    "tpu.trace_start"() <{level = 10 : i32, message = "bqk,bkd->bqd"}> : () -> ()
    %cst_9 = arith.constant dense<0.000000e+00> : vector<4x32x32xf32>
    %36 = tpu.matmul %35, %20, %cst_9 {dimension_numbers = #tpu.dot_dimension_numbers<[2], [1], [1], [2], [0, 0, 0, 1, 1, 2], [0], [0]>} : vector<4x32x32xbf16>, vector<4x32x32xbf16>, vector<4x32x32xf32> -> vector<4x32x32xf32>
    "tpu.trace_stop"() : () -> ()
    %37 = vector.shape_cast %36 : vector<4x32x32xf32> to vector<128x32xf32>
    %38 = arith.truncf %37 : vector<128x32xf32> to vector<128x32xbf16>
    %c0_10 = arith.constant 0 : index
    %c0_11 = arith.constant 0 : index
    %39 = vector.load %arg14[%c0_10, %c0_11] : memref<128x128xbf16, #tpu.memory_space<vmem>>, vector<128x32xbf16>
    tpu.vector_store %arg14[%c0_10, %c0_11], %38 {strides = array<i32>} : memref<128x128xbf16, #tpu.memory_space<vmem>>, vector<128x32xbf16>,
    %40 = vector.extract_strided_slice %2 {offsets = [0, 32], sizes = [128, 32], strides = [1, 1]} : vector<128x384xf32> to vector<128x32xf32>
    %41 = arith.truncf %40 : vector<128x32xf32> to vector<128x32xbf16>
    %42 = vector.shape_cast %41 : vector<128x32xbf16> to vector<4x32x32xbf16>
    %43 = vector.extract_strided_slice %2 {offsets = [0, 160], sizes = [128, 32], strides = [1, 1]} : vector<128x384xf32> to vector<128x32xf32>
    %44 = arith.truncf %43 : vector<128x32xf32> to vector<128x32xbf16>
    %45 = vector.shape_cast %44 : vector<128x32xbf16> to vector<4x32x32xbf16>
    %46 = vector.extract_strided_slice %2 {offsets = [0, 288], sizes = [128, 32], strides = [1, 1]} : vector<128x384xf32> to vector<128x32xf32>
    %47 = arith.truncf %46 : vector<128x32xf32> to vector<128x32xbf16>
    %48 = vector.shape_cast %47 : vector<128x32xbf16> to vector<4x32x32xbf16>
    "tpu.trace_start"() <{level = 10 : i32, message = "bqd,bkd->bqk"}> : () -> ()
    %cst_12 = arith.constant dense<0.000000e+00> : vector<4x32x32xf32>
    %49 = tpu.matmul %42, %45, %cst_12 {dimension_numbers = #tpu.dot_dimension_numbers<[2], [2], [1], [1], [0, 0, 0, 1, 1, 1], [0], [0]>} : vector<4x32x32xbf16>, vector<4x32x32xbf16>, vector<4x32x32xf32> -> vector<4x32x32xf32>
    "tpu.trace_stop"() : () -> ()
    %cst_13 = arith.constant 0.288675129 : f32
    %50 = vector.broadcast %cst_13 : f32 to vector<4x32x32xf32>
    %51 = arith.mulf %49, %50 : vector<4x32x32xf32>
    %52 = arith.addf %51, %11 : vector<4x32x32xf32>
    %cst_14 = arith.constant dense<0xFF800000> : vector<4x32xf32>
    %53 = vector.multi_reduction <maximumf>, %52, %cst_14 [2] : vector<4x32x32xf32> to vector<4x32xf32>
    %54 = vector.shape_cast %53 : vector<4x32xf32> to vector<4x32x1xf32>
    %55 = vector.broadcast %54 : vector<4x32x1xf32> to vector<4x32x32xf32>
    %56 = arith.subf %52, %55 : vector<4x32x32xf32>
    %57 = math.exp %56 : vector<4x32x32xf32>
    %cst_15 = arith.constant dense<0.000000e+00> : vector<4x32xf32>
    %58 = vector.multi_reduction <add>, %57, %cst_15 [2] : vector<4x32x32xf32> to vector<4x32xf32>
    %59 = vector.shape_cast %58 : vector<4x32xf32> to vector<4x32x1xf32>
    %60 = tpu.reciprocal %59 {approx = true} : vector<4x32x1xf32> -> vector<4x32x1xf32>
    %61 = vector.broadcast %60 : vector<4x32x1xf32> to vector<4x32x32xf32>
    %62 = arith.mulf %57, %61 : vector<4x32x32xf32>
    %63 = arith.truncf %62 : vector<4x32x32xf32> to vector<4x32x32xbf16>
    "tpu.trace_start"() <{level = 10 : i32, message = "bqk,bkd->bqd"}> : () -> ()
    %cst_16 = arith.constant dense<0.000000e+00> : vector<4x32x32xf32>
    %64 = tpu.matmul %63, %48, %cst_16 {dimension_numbers = #tpu.dot_dimension_numbers<[2], [1], [1], [2], [0, 0, 0, 1, 1, 2], [0], [0]>} : vector<4x32x32xbf16>, vector<4x32x32xbf16>, vector<4x32x32xf32> -> vector<4x32x32xf32>
    "tpu.trace_stop"() : () -> ()
    %65 = vector.shape_cast %64 : vector<4x32x32xf32> to vector<128x32xf32>
    %66 = arith.truncf %65 : vector<128x32xf32> to vector<128x32xbf16>
    %c0_17 = arith.constant 0 : index
    %c32 = arith.constant 32 : index
    %67 = vector.load %arg14[%c0_17, %c32] : memref<128x128xbf16, #tpu.memory_space<vmem>>, vector<128x32xbf16>
    tpu.vector_store %arg14[%c0_17, %c32], %66 {strides = array<i32>} : memref<128x128xbf16, #tpu.memory_space<vmem>>, vector<128x32xbf16>,
    %68 = vector.extract_strided_slice %2 {offsets = [0, 64], sizes = [128, 32], strides = [1, 1]} : vector<128x384xf32> to vector<128x32xf32>
    %69 = arith.truncf %68 : vector<128x32xf32> to vector<128x32xbf16>
    %70 = vector.shape_cast %69 : vector<128x32xbf16> to vector<4x32x32xbf16>
    %71 = vector.extract_strided_slice %2 {offsets = [0, 192], sizes = [128, 32], strides = [1, 1]} : vector<128x384xf32> to vector<128x32xf32>
    %72 = arith.truncf %71 : vector<128x32xf32> to vector<128x32xbf16>
    %73 = vector.shape_cast %72 : vector<128x32xbf16> to vector<4x32x32xbf16>
    %74 = vector.extract_strided_slice %2 {offsets = [0, 320], sizes = [128, 32], strides = [1, 1]} : vector<128x384xf32> to vector<128x32xf32>
    %75 = arith.truncf %74 : vector<128x32xf32> to vector<128x32xbf16>
    %76 = vector.shape_cast %75 : vector<128x32xbf16> to vector<4x32x32xbf16>
    "tpu.trace_start"() <{level = 10 : i32, message = "bqd,bkd->bqk"}> : () -> ()
    %cst_18 = arith.constant dense<0.000000e+00> : vector<4x32x32xf32>
    %77 = tpu.matmul %70, %73, %cst_18 {dimension_numbers = #tpu.dot_dimension_numbers<[2], [2], [1], [1], [0, 0, 0, 1, 1, 1], [0], [0]>} : vector<4x32x32xbf16>, vector<4x32x32xbf16>, vector<4x32x32xf32> -> vector<4x32x32xf32>
    "tpu.trace_stop"() : () -> ()
    %cst_19 = arith.constant 0.288675129 : f32
    %78 = vector.broadcast %cst_19 : f32 to vector<4x32x32xf32>
    %79 = arith.mulf %77, %78 : vector<4x32x32xf32>
    %80 = arith.addf %79, %11 : vector<4x32x32xf32>
    %cst_20 = arith.constant dense<0xFF800000> : vector<4x32xf32>
    %81 = vector.multi_reduction <maximumf>, %80, %cst_20 [2] : vector<4x32x32xf32> to vector<4x32xf32>
    %82 = vector.shape_cast %81 : vector<4x32xf32> to vector<4x32x1xf32>
    %83 = vector.broadcast %82 : vector<4x32x1xf32> to vector<4x32x32xf32>
    %84 = arith.subf %80, %83 : vector<4x32x32xf32>
    %85 = math.exp %84 : vector<4x32x32xf32>
    %cst_21 = arith.constant dense<0.000000e+00> : vector<4x32xf32>
    %86 = vector.multi_reduction <add>, %85, %cst_21 [2] : vector<4x32x32xf32> to vector<4x32xf32>
    %87 = vector.shape_cast %86 : vector<4x32xf32> to vector<4x32x1xf32>
    %88 = tpu.reciprocal %87 {approx = true} : vector<4x32x1xf32> -> vector<4x32x1xf32>
    %89 = vector.broadcast %88 : vector<4x32x1xf32> to vector<4x32x32xf32>
    %90 = arith.mulf %85, %89 : vector<4x32x32xf32>
    %91 = arith.truncf %90 : vector<4x32x32xf32> to vector<4x32x32xbf16>
    "tpu.trace_start"() <{level = 10 : i32, message = "bqk,bkd->bqd"}> : () -> ()
    %cst_22 = arith.constant dense<0.000000e+00> : vector<4x32x32xf32>
    %92 = tpu.matmul %91, %76, %cst_22 {dimension_numbers = #tpu.dot_dimension_numbers<[2], [1], [1], [2], [0, 0, 0, 1, 1, 2], [0], [0]>} : vector<4x32x32xbf16>, vector<4x32x32xbf16>, vector<4x32x32xf32> -> vector<4x32x32xf32>
    "tpu.trace_stop"() : () -> ()
    %93 = vector.shape_cast %92 : vector<4x32x32xf32> to vector<128x32xf32>
    %94 = arith.truncf %93 : vector<128x32xf32> to vector<128x32xbf16>
    %c0_23 = arith.constant 0 : index
    %c64 = arith.constant 64 : index
    %95 = vector.load %arg14[%c0_23, %c64] : memref<128x128xbf16, #tpu.memory_space<vmem>>, vector<128x32xbf16>
    tpu.vector_store %arg14[%c0_23, %c64], %94 {strides = array<i32>} : memref<128x128xbf16, #tpu.memory_space<vmem>>, vector<128x32xbf16>,
    %96 = vector.extract_strided_slice %2 {offsets = [0, 96], sizes = [128, 32], strides = [1, 1]} : vector<128x384xf32> to vector<128x32xf32>
    %97 = arith.truncf %96 : vector<128x32xf32> to vector<128x32xbf16>
    %98 = vector.shape_cast %97 : vector<128x32xbf16> to vector<4x32x32xbf16>
    %99 = vector.extract_strided_slice %2 {offsets = [0, 224], sizes = [128, 32], strides = [1, 1]} : vector<128x384xf32> to vector<128x32xf32>
    %100 = arith.truncf %99 : vector<128x32xf32> to vector<128x32xbf16>
    %101 = vector.shape_cast %100 : vector<128x32xbf16> to vector<4x32x32xbf16>
    %102 = vector.extract_strided_slice %2 {offsets = [0, 352], sizes = [128, 32], strides = [1, 1]} : vector<128x384xf32> to vector<128x32xf32>
    %103 = arith.truncf %102 : vector<128x32xf32> to vector<128x32xbf16>
    %104 = vector.shape_cast %103 : vector<128x32xbf16> to vector<4x32x32xbf16>
    "tpu.trace_start"() <{level = 10 : i32, message = "bqd,bkd->bqk"}> : () -> ()
    %cst_24 = arith.constant dense<0.000000e+00> : vector<4x32x32xf32>
    %105 = tpu.matmul %98, %101, %cst_24 {dimension_numbers = #tpu.dot_dimension_numbers<[2], [2], [1], [1], [0, 0, 0, 1, 1, 1], [0], [0]>} : vector<4x32x32xbf16>, vector<4x32x32xbf16>, vector<4x32x32xf32> -> vector<4x32x32xf32>
    "tpu.trace_stop"() : () -> ()
    %cst_25 = arith.constant 0.288675129 : f32
    %106 = vector.broadcast %cst_25 : f32 to vector<4x32x32xf32>
    %107 = arith.mulf %105, %106 : vector<4x32x32xf32>
    %108 = arith.addf %107, %11 : vector<4x32x32xf32>
    %cst_26 = arith.constant dense<0xFF800000> : vector<4x32xf32>
    %109 = vector.multi_reduction <maximumf>, %108, %cst_26 [2] : vector<4x32x32xf32> to vector<4x32xf32>
    %110 = vector.shape_cast %109 : vector<4x32xf32> to vector<4x32x1xf32>
    %111 = vector.broadcast %110 : vector<4x32x1xf32> to vector<4x32x32xf32>
    %112 = arith.subf %108, %111 : vector<4x32x32xf32>
    %113 = math.exp %112 : vector<4x32x32xf32>
    %cst_27 = arith.constant dense<0.000000e+00> : vector<4x32xf32>
    %114 = vector.multi_reduction <add>, %113, %cst_27 [2] : vector<4x32x32xf32> to vector<4x32xf32>
    %115 = vector.shape_cast %114 : vector<4x32xf32> to vector<4x32x1xf32>
    %116 = tpu.reciprocal %115 {approx = true} : vector<4x32x1xf32> -> vector<4x32x1xf32>
    %117 = vector.broadcast %116 : vector<4x32x1xf32> to vector<4x32x32xf32>
    %118 = arith.mulf %113, %117 : vector<4x32x32xf32>
    %119 = arith.truncf %118 : vector<4x32x32xf32> to vector<4x32x32xbf16>
    "tpu.trace_start"() <{level = 10 : i32, message = "bqk,bkd->bqd"}> : () -> ()
    %cst_28 = arith.constant dense<0.000000e+00> : vector<4x32x32xf32>
    %120 = tpu.matmul %119, %104, %cst_28 {dimension_numbers = #tpu.dot_dimension_numbers<[2], [1], [1], [2], [0, 0, 0, 1, 1, 2], [0], [0]>} : vector<4x32x32xbf16>, vector<4x32x32xbf16>, vector<4x32x32xf32> -> vector<4x32x32xf32>
    "tpu.trace_stop"() : () -> ()
    %121 = vector.shape_cast %120 : vector<4x32x32xf32> to vector<128x32xf32>
    %122 = arith.truncf %121 : vector<128x32xf32> to vector<128x32xbf16>
    %c0_29 = arith.constant 0 : index
    %c96 = arith.constant 96 : index
    %123 = vector.load %arg14[%c0_29, %c96] : memref<128x128xbf16, #tpu.memory_space<vmem>>, vector<128x32xbf16>
    tpu.vector_store %arg14[%c0_29, %c96], %122 {strides = array<i32>} : memref<128x128xbf16, #tpu.memory_space<vmem>>, vector<128x32xbf16>,
    %c0_30 = arith.constant 0 : index
    %c0_31 = arith.constant 0 : index
    %124 = vector.load %arg14[%c0_30, %c0_31] : memref<128x128xbf16, #tpu.memory_space<vmem>>, vector<128x128xbf16>
    %c0_32 = arith.constant 0 : index
    %c0_33 = arith.constant 0 : index
    %125 = vector.load %arg3[%c0_32, %c0_33] : memref<128x128xbf16, #tpu.memory_space<vmem>>, vector<128x128xbf16>
    %cst_34 = arith.constant dense<0.000000e+00> : vector<128x128xf32>
    %126 = tpu.matmul %124, %125, %cst_34 {dimension_numbers = #tpu.dot_dimension_numbers<[1], [0], [0], [1], [0, 0, 1, 1], [], []>} : vector<128x128xbf16>, vector<128x128xbf16>, vector<128x128xf32> -> vector<128x128xf32>
    %c0_35 = arith.constant 0 : index
    %c0_36 = arith.constant 0 : index
    %127 = vector.load %arg4[%c0_35, %c0_36] : memref<1x128xf32, #tpu.memory_space<vmem>>, vector<1x128xf32>
    %128 = vector.broadcast %127 : vector<1x128xf32> to vector<128x128xf32>
    %129 = arith.addf %126, %128 : vector<128x128xf32>
    %130 = arith.extf %0 : vector<128x128xbf16> to vector<128x128xf32>
    %131 = arith.addf %130, %129 : vector<128x128xf32>
    %c0_37 = arith.constant 0 : index
    %c0_38 = arith.constant 0 : index
    %132 = vector.load %arg5[%c0_37, %c0_38] : memref<1x128xf32, #tpu.memory_space<vmem>>, vector<1x128xf32>
    %c0_39 = arith.constant 0 : index
    %c0_40 = arith.constant 0 : index
    %133 = vector.load %arg6[%c0_39, %c0_40] : memref<1x128xf32, #tpu.memory_space<vmem>>, vector<1x128xf32>
    %cst_41 = arith.constant dense<0.000000e+00> : vector<128xf32>
    %134 = vector.multi_reduction <add>, %131, %cst_41 [1] : vector<128x128xf32> to vector<128xf32>
    %135 = vector.shape_cast %134 : vector<128xf32> to vector<128x1xf32>
    %cst_42 = arith.constant 0.020833334 : f32
    %136 = vector.broadcast %cst_42 : f32 to vector<128x1xf32>
    %137 = arith.mulf %135, %136 : vector<128x1xf32>
    %138 = arith.mulf %131, %131 : vector<128x128xf32>
    %cst_43 = arith.constant dense<0.000000e+00> : vector<128xf32>
    %139 = vector.multi_reduction <add>, %138, %cst_43 [1] : vector<128x128xf32> to vector<128xf32>
    %140 = vector.shape_cast %139 : vector<128xf32> to vector<128x1xf32>
    %cst_44 = arith.constant 0.020833334 : f32
    %141 = vector.broadcast %cst_44 : f32 to vector<128x1xf32>
    %142 = arith.mulf %140, %141 : vector<128x1xf32>
    %143 = arith.mulf %137, %137 : vector<128x1xf32>
    %144 = arith.subf %142, %143 : vector<128x1xf32>
    %145 = vector.broadcast %137 : vector<128x1xf32> to vector<128x128xf32>
    %146 = arith.subf %131, %145 : vector<128x128xf32>
    %cst_45 = arith.constant 9.99999974E-6 : f32
    %147 = vector.broadcast %cst_45 : f32 to vector<128x1xf32>
    %148 = arith.addf %144, %147 : vector<128x1xf32>
    %149 = math.rsqrt %148 : vector<128x1xf32>
    %150 = vector.broadcast %149 : vector<128x1xf32> to vector<128x128xf32>
    %151 = arith.mulf %146, %150 : vector<128x128xf32>
    %152 = vector.broadcast %132 : vector<1x128xf32> to vector<128x128xf32>
    %153 = arith.mulf %151, %152 : vector<128x128xf32>
    %154 = vector.broadcast %133 : vector<1x128xf32> to vector<128x128xf32>
    %155 = arith.addf %153, %154 : vector<128x128xf32>
    %156 = arith.truncf %155 : vector<128x128xf32> to vector<128x128xbf16>
    %c0_46 = arith.constant 0 : index
    %c0_47 = arith.constant 0 : index
    %157 = vector.load %arg7[%c0_46, %c0_47] : memref<128x256xbf16, #tpu.memory_space<vmem>>, vector<128x256xbf16>
    %cst_48 = arith.constant dense<0.000000e+00> : vector<128x256xf32>
    %158 = tpu.matmul %156, %157, %cst_48 {dimension_numbers = #tpu.dot_dimension_numbers<[1], [0], [0], [1], [0, 0, 1, 1], [], []>} : vector<128x128xbf16>, vector<128x256xbf16>, vector<128x256xf32> -> vector<128x256xf32>
    %c0_49 = arith.constant 0 : index
    %c0_50 = arith.constant 0 : index
    %159 = vector.load %arg8[%c0_49, %c0_50] : memref<1x256xf32, #tpu.memory_space<vmem>>, vector<1x256xf32>
    %160 = vector.broadcast %159 : vector<1x256xf32> to vector<128x256xf32>
    %161 = arith.addf %158, %160 : vector<128x256xf32>
    %cst_51 = arith.constant 0.000000e+00 : f32
    %162 = vector.broadcast %cst_51 : f32 to vector<128x256xf32>
    %163 = arith.maximumf %161, %162 : vector<128x256xf32>
    %164 = arith.truncf %163 : vector<128x256xf32> to vector<128x256xbf16>
    %c0_52 = arith.constant 0 : index
    %c0_53 = arith.constant 0 : index
    %165 = vector.load %arg9[%c0_52, %c0_53] : memref<256x128xbf16, #tpu.memory_space<vmem>>, vector<256x128xbf16>
    %cst_54 = arith.constant dense<0.000000e+00> : vector<128x128xf32>
    %166 = tpu.matmul %164, %165, %cst_54 {dimension_numbers = #tpu.dot_dimension_numbers<[1], [0], [0], [1], [0, 0, 1, 1], [], []>} : vector<128x256xbf16>, vector<256x128xbf16>, vector<128x128xf32> -> vector<128x128xf32>
    %c0_55 = arith.constant 0 : index
    %c0_56 = arith.constant 0 : index
    %167 = vector.load %arg10[%c0_55, %c0_56] : memref<1x128xf32, #tpu.memory_space<vmem>>, vector<1x128xf32>
    %168 = vector.broadcast %167 : vector<1x128xf32> to vector<128x128xf32>
    %169 = arith.addf %166, %168 : vector<128x128xf32>
    %170 = arith.addf %155, %169 : vector<128x128xf32>
    %c0_57 = arith.constant 0 : index
    %c0_58 = arith.constant 0 : index
    %171 = vector.load %arg11[%c0_57, %c0_58] : memref<1x128xf32, #tpu.memory_space<vmem>>, vector<1x128xf32>
    %c0_59 = arith.constant 0 : index
    %c0_60 = arith.constant 0 : index
    %172 = vector.load %arg12[%c0_59, %c0_60] : memref<1x128xf32, #tpu.memory_space<vmem>>, vector<1x128xf32>
    %cst_61 = arith.constant dense<0.000000e+00> : vector<128xf32>
    %173 = vector.multi_reduction <add>, %170, %cst_61 [1] : vector<128x128xf32> to vector<128xf32>
    %174 = vector.shape_cast %173 : vector<128xf32> to vector<128x1xf32>
    %cst_62 = arith.constant 0.020833334 : f32
    %175 = vector.broadcast %cst_62 : f32 to vector<128x1xf32>
    %176 = arith.mulf %174, %175 : vector<128x1xf32>
    %177 = arith.mulf %170, %170 : vector<128x128xf32>
    %cst_63 = arith.constant dense<0.000000e+00> : vector<128xf32>
    %178 = vector.multi_reduction <add>, %177, %cst_63 [1] : vector<128x128xf32> to vector<128xf32>
    %179 = vector.shape_cast %178 : vector<128xf32> to vector<128x1xf32>
    %cst_64 = arith.constant 0.020833334 : f32
    %180 = vector.broadcast %cst_64 : f32 to vector<128x1xf32>
    %181 = arith.mulf %179, %180 : vector<128x1xf32>
    %182 = arith.mulf %176, %176 : vector<128x1xf32>
    %183 = arith.subf %181, %182 : vector<128x1xf32>
    %184 = vector.broadcast %176 : vector<128x1xf32> to vector<128x128xf32>
    %185 = arith.subf %170, %184 : vector<128x128xf32>
    %cst_65 = arith.constant 9.99999974E-6 : f32
    %186 = vector.broadcast %cst_65 : f32 to vector<128x1xf32>
    %187 = arith.addf %183, %186 : vector<128x1xf32>
    %188 = math.rsqrt %187 : vector<128x1xf32>
    %189 = vector.broadcast %188 : vector<128x1xf32> to vector<128x128xf32>
    %190 = arith.mulf %185, %189 : vector<128x128xf32>
    %191 = vector.broadcast %171 : vector<1x128xf32> to vector<128x128xf32>
    %192 = arith.mulf %190, %191 : vector<128x128xf32>
    %193 = vector.broadcast %172 : vector<1x128xf32> to vector<128x128xf32>
    %194 = arith.addf %192, %193 : vector<128x128xf32>
    %c0_66 = arith.constant 0 : index
    %c0_67 = arith.constant 0 : index
    %195 = vector.load %arg13[%c0_66, %c0_67] : memref<128x128xf32, #tpu.memory_space<vmem>>, vector<128x128xf32>
    tpu.vector_store %arg13[%c0_66, %c0_67], %194 {strides = array<i32>} : memref<128x128xf32, #tpu.memory_space<vmem>>, vector<128x128xf32>,
    return
  }
  func.func @transform_0(%arg0: i32) -> (i32, i32) {
    %c0_i32 = arith.constant 0 : i32
    %c0_i32_0 = arith.constant 0 : i32
    return %arg0, %c0_i32 : i32, i32
  }
  func.func @transform_1(%arg0: i32) -> (i32, i32) {
    %c0_i32 = arith.constant 0 : i32
    %c0_i32_0 = arith.constant 0 : i32
    %c0_i32_1 = arith.constant 0 : i32
    return %c0_i32, %c0_i32_0 : i32, i32
  }
  func.func @transform_2(%arg0: i32) -> (i32, i32) {
    %c0_i32 = arith.constant 0 : i32
    %c0_i32_0 = arith.constant 0 : i32
    %c0_i32_1 = arith.constant 0 : i32
    return %c0_i32, %c0_i32_0 : i32, i32
  }
  func.func @transform_3(%arg0: i32) -> (i32, i32) {
    %c0_i32 = arith.constant 0 : i32
    %c0_i32_0 = arith.constant 0 : i32
    %c0_i32_1 = arith.constant 0 : i32
    return %c0_i32, %c0_i32_0 : i32, i32
  }
  func.func @transform_4(%arg0: i32) -> (i32, i32) {
    %c0_i32 = arith.constant 0 : i32
    %c0_i32_0 = arith.constant 0 : i32
    %c0_i32_1 = arith.constant 0 : i32
    return %c0_i32, %c0_i32_0 : i32, i32
  }
  func.func @transform_5(%arg0: i32) -> (i32, i32) {
    %c0_i32 = arith.constant 0 : i32
    %c0_i32_0 = arith.constant 0 : i32
    %c0_i32_1 = arith.constant 0 : i32
    return %c0_i32, %c0_i32_0 : i32, i32
  }
  func.func @transform_6(%arg0: i32) -> (i32, i32) {
    %c0_i32 = arith.constant 0 : i32
    %c0_i32_0 = arith.constant 0 : i32
    %c0_i32_1 = arith.constant 0 : i32
    return %c0_i32, %c0_i32_0 : i32, i32
  }
  func.func @transform_7(%arg0: i32) -> (i32, i32) {
    %c0_i32 = arith.constant 0 : i32
    %c0_i32_0 = arith.constant 0 : i32
    %c0_i32_1 = arith.constant 0 : i32
    return %c0_i32, %c0_i32_0 : i32, i32
  }
  func.func @transform_8(%arg0: i32) -> (i32, i32) {
    %c0_i32 = arith.constant 0 : i32
    %c0_i32_0 = arith.constant 0 : i32
    %c0_i32_1 = arith.constant 0 : i32
    return %c0_i32, %c0_i32_0 : i32, i32
  }
  func.func @transform_9(%arg0: i32) -> (i32, i32) {
    %c0_i32 = arith.constant 0 : i32
    %c0_i32_0 = arith.constant 0 : i32
    %c0_i32_1 = arith.constant 0 : i32
    return %c0_i32, %c0_i32_0 : i32, i32
  }
  func.func @transform_10(%arg0: i32) -> (i32, i32) {
    %c0_i32 = arith.constant 0 : i32
    %c0_i32_0 = arith.constant 0 : i32
    %c0_i32_1 = arith.constant 0 : i32
    return %c0_i32, %c0_i32_0 : i32, i32
  }
  func.func @transform_11(%arg0: i32) -> (i32, i32) {
    %c0_i32 = arith.constant 0 : i32
    %c0_i32_0 = arith.constant 0 : i32
    %c0_i32_1 = arith.constant 0 : i32
    return %c0_i32, %c0_i32_0 : i32, i32
  }
  func.func @transform_12(%arg0: i32) -> (i32, i32) {
    %c0_i32 = arith.constant 0 : i32
    %c0_i32_0 = arith.constant 0 : i32
    return %arg0, %c0_i32 : i32, i32
  }
}

module attributes {stable_mosaic.version = 11 : i64} {
  func.func @block_kernel(%arg0: i32, %arg1: memref<128x128xbf16, #tpu.memory_space<vmem>>, %arg2: memref<128x384xbf16, #tpu.memory_space<vmem>>, %arg3: memref<128x128xbf16, #tpu.memory_space<vmem>>, %arg4: memref<1x128xf32, #tpu.memory_space<vmem>>, %arg5: memref<1x128xf32, #tpu.memory_space<vmem>>, %arg6: memref<1x128xf32, #tpu.memory_space<vmem>>, %arg7: memref<128x256xbf16, #tpu.memory_space<vmem>>, %arg8: memref<1x256xf32, #tpu.memory_space<vmem>>, %arg9: memref<256x128xbf16, #tpu.memory_space<vmem>>, %arg10: memref<1x128xf32, #tpu.memory_space<vmem>>, %arg11: memref<1x128xf32, #tpu.memory_space<vmem>>, %arg12: memref<1x128xf32, #tpu.memory_space<vmem>>, %arg13: memref<128x128xf32, #tpu.memory_space<vmem>>, %arg14: memref<128x128xbf16, #tpu.memory_space<vmem>>) attributes {dimension_semantics = [#tpu.dimension_semantics<parallel>], iteration_bounds = array<i64: 1>, scalar_prefetch = 0 : i64, scratch_operands = 1 : i64, tpu.core_type = #tpu.core_type<tc>, window_params = [{transform_indices = @transform_0, window_bounds = array<i64: 128, 128>}, {pipeline_mode = #tpu.pipeline_mode<synchronous>, transform_indices = @transform_1, window_bounds = array<i64: 128, 384>}, {pipeline_mode = #tpu.pipeline_mode<synchronous>, transform_indices = @transform_2, window_bounds = array<i64: 128, 128>}, {pipeline_mode = #tpu.pipeline_mode<synchronous>, transform_indices = @transform_3, window_bounds = array<i64: 1, 128>}, {pipeline_mode = #tpu.pipeline_mode<synchronous>, transform_indices = @transform_4, window_bounds = array<i64: 1, 128>}, {pipeline_mode = #tpu.pipeline_mode<synchronous>, transform_indices = @transform_5, window_bounds = array<i64: 1, 128>}, {pipeline_mode = #tpu.pipeline_mode<synchronous>, transform_indices = @transform_6, window_bounds = array<i64: 128, 256>}, {pipeline_mode = #tpu.pipeline_mode<synchronous>, transform_indices = @transform_7, window_bounds = array<i64: 1, 256>}, {pipeline_mode = #tpu.pipeline_mode<synchronous>, transform_indices = @transform_8, window_bounds = array<i64: 256, 128>}, {pipeline_mode = #tpu.pipeline_mode<synchronous>, transform_indices = @transform_9, window_bounds = array<i64: 1, 128>}, {pipeline_mode = #tpu.pipeline_mode<synchronous>, transform_indices = @transform_10, window_bounds = array<i64: 1, 128>}, {pipeline_mode = #tpu.pipeline_mode<synchronous>, transform_indices = @transform_11, window_bounds = array<i64: 1, 128>}, {transform_indices = @transform_12, window_bounds = array<i64: 128, 128>}]} {
    %c0 = arith.constant 0 : index
    %c0_0 = arith.constant 0 : index
    %0 = vector.load %arg1[%c0, %c0_0] : memref<128x128xbf16, #tpu.memory_space<vmem>>, vector<128x128xbf16>
    %c0_1 = arith.constant 0 : index
    %c0_2 = arith.constant 0 : index
    %1 = vector.load %arg2[%c0_1, %c0_2] : memref<128x384xbf16, #tpu.memory_space<vmem>>, vector<128x384xbf16>
    %cst = arith.constant dense<0.000000e+00> : vector<128x384xf32>
    %2 = tpu.matmul %0, %1, %cst {dimension_numbers = #tpu.dot_dimension_numbers<[1], [0], [0], [1], [0, 0, 1, 1], [], []>} : vector<128x128xbf16>, vector<128x384xbf16>, vector<128x384xf32> -> vector<128x384xf32>
    %3 = tpu.iota {dimensions = array<i32: 0>} : vector<32x32xi32>
    %4 = tpu.iota {dimensions = array<i32: 1>} : vector<32x32xi32>
    %5 = arith.cmpi sge, %3, %4 : vector<32x32xi32>
    %cst_3 = arith.constant 0.000000e+00 : f32
    %cst_4 = arith.constant -1.000000e+30 : f32
    %6 = vector.broadcast %cst_3 : f32 to vector<32x32xf32>
    %7 = vector.broadcast %cst_4 : f32 to vector<32x32xf32>
    %8 = arith.select %5, %6, %7 : vector<32x32xi1>, vector<32x32xf32>
    %9 = vector.shape_cast %8 : vector<32x32xf32> to vector<1x32x32xf32>
    %10 = vector.shape_cast %9 : vector<1x32x32xf32> to vector<1x32x32xf32>
    %11 = vector.broadcast %10 : vector<1x32x32xf32> to vector<4x32x32xf32>
    %12 = vector.extract_strided_slice %2 {offsets = [0, 0], sizes = [128, 32], strides = [1, 1]} : vector<128x384xf32> to vector<128x32xf32>
    %13 = arith.truncf %12 : vector<128x32xf32> to vector<128x32xbf16>
    %14 = vector.shape_cast %13 : vector<128x32xbf16> to vector<4x32x32xbf16>
    %15 = vector.extract_strided_slice %2 {offsets = [0, 128], sizes = [128, 32], strides = [1, 1]} : vector<128x384xf32> to vector<128x32xf32>
    %16 = arith.truncf %15 : vector<128x32xf32> to vector<128x32xbf16>
    %17 = vector.shape_cast %16 : vector<128x32xbf16> to vector<4x32x32xbf16>
    %18 = vector.extract_strided_slice %2 {offsets = [0, 256], sizes = [128, 32], strides = [1, 1]} : vector<128x384xf32> to vector<128x32xf32>
    %19 = arith.truncf %18 : vector<128x32xf32> to vector<128x32xbf16>
    %20 = vector.shape_cast %19 : vector<128x32xbf16> to vector<4x32x32xbf16>
    "tpu.trace_start"() <{level = 10 : i32, message = "bqd,bkd->bqk"}> : () -> ()
    %cst_5 = arith.constant dense<0.000000e+00> : vector<4x32x32xf32>
    %21 = tpu.matmul %14, %17, %cst_5 {dimension_numbers = #tpu.dot_dimension_numbers<[2], [2], [1], [1], [0, 0, 0, 1, 1, 1], [0], [0]>} : vector<4x32x32xbf16>, vector<4x32x32xbf16>, vector<4x32x32xf32> -> vector<4x32x32xf32>
    "tpu.trace_stop"() : () -> ()
    %cst_6 = arith.constant 0.288675129 : f32
    %22 = vector.broadcast %cst_6 : f32 to vector<4x32x32xf32>
    %23 = arith.mulf %21, %22 : vector<4x32x32xf32>
    %24 = arith.addf %23, %11 : vector<4x32x32xf32>
    %cst_7 = arith.constant dense<0xFF800000> : vector<4x32xf32>
    %25 = vector.multi_reduction <maximumf>, %24, %cst_7 [2] : vector<4x32x32xf32> to vector<4x32xf32>
    %26 = vector.shape_cast %25 : vector<4x32xf32> to vector<4x32x1xf32>
    %27 = vector.broadcast %26 : vector<4x32x1xf32> to vector<4x32x32xf32>
    %28 = arith.subf %24, %27 : vector<4x32x32xf32>
    %29 = math.exp %28 : vector<4x32x32xf32>
    %cst_8 = arith.constant dense<0.000000e+00> : vector<4x32xf32>
    %30 = vector.multi_reduction <add>, %29, %cst_8 [2] : vector<4x32x32xf32> to vector<4x32xf32>
    %31 = vector.shape_cast %30 : vector<4x32xf32> to vector<4x32x1xf32>
    %32 = tpu.reciprocal %31 {approx = true} : vector<4x32x1xf32> -> vector<4x32x1xf32>
    %33 = vector.broadcast %32 : vector<4x32x1xf32> to vector<4x32x32xf32>
    %34 = arith.mulf %29, %33 : vector<4x32x32xf32>
    %35 = arith.truncf %34 : vector<4x32x32xf32> to vector<4x32x32xbf16>
    "tpu.trace_start"() <{level = 10 : i32, message = "bqk,bkd->bqd"}> : () -> ()
    %cst_9 = arith.constant dense<0.000000e+00> : vector<4x32x32xf32>
    %36 = tpu.matmul %35, %20, %cst_9 {dimension_numbers = #tpu.dot_dimension_numbers<[2], [1], [1], [2], [0, 0, 0, 1, 1, 2], [0], [0]>} : vector<4x32x32xbf16>, vector<4x32x32xbf16>, vector<4x32x32xf32> -> vector<4x32x32xf32>
    "tpu.trace_stop"() : () -> ()
    %37 = vector.shape_cast %36 : vector<4x32x32xf32> to vector<128x32xf32>
    %38 = arith.truncf %37 : vector<128x32xf32> to vector<128x32xbf16>
    %c0_10 = arith.constant 0 : index
    %c0_11 = arith.constant 0 : index
    %39 = vector.load %arg14[%c0_10, %c0_11] : memref<128x128xbf16, #tpu.memory_space<vmem>>, vector<128x32xbf16>
    tpu.vector_store %arg14[%c0_10, %c0_11], %38 {strides = array<i32>} : memref<128x128xbf16, #tpu.memory_space<vmem>>, vector<128x32xbf16>,
    %40 = vector.extract_strided_slice %2 {offsets = [0, 32], sizes = [128, 32], strides = [1, 1]} : vector<128x384xf32> to vector<128x32xf32>
    %41 = arith.truncf %40 : vector<128x32xf32> to vector<128x32xbf16>
    %42 = vector.shape_cast %41 : vector<128x32xbf16> to vector<4x32x32xbf16>
    %43 = vector.extract_strided_slice %2 {offsets = [0, 160], sizes = [128, 32], strides = [1, 1]} : vector<128x384xf32> to vector<128x32xf32>
    %44 = arith.truncf %43 : vector<128x32xf32> to vector<128x32xbf16>
    %45 = vector.shape_cast %44 : vector<128x32xbf16> to vector<4x32x32xbf16>
    %46 = vector.extract_strided_slice %2 {offsets = [0, 288], sizes = [128, 32], strides = [1, 1]} : vector<128x384xf32> to vector<128x32xf32>
    %47 = arith.truncf %46 : vector<128x32xf32> to vector<128x32xbf16>
    %48 = vector.shape_cast %47 : vector<128x32xbf16> to vector<4x32x32xbf16>
    "tpu.trace_start"() <{level = 10 : i32, message = "bqd,bkd->bqk"}> : () -> ()
    %cst_12 = arith.constant dense<0.000000e+00> : vector<4x32x32xf32>
    %49 = tpu.matmul %42, %45, %cst_12 {dimension_numbers = #tpu.dot_dimension_numbers<[2], [2], [1], [1], [0, 0, 0, 1, 1, 1], [0], [0]>} : vector<4x32x32xbf16>, vector<4x32x32xbf16>, vector<4x32x32xf32> -> vector<4x32x32xf32>
    "tpu.trace_stop"() : () -> ()
    %cst_13 = arith.constant 0.288675129 : f32
    %50 = vector.broadcast %cst_13 : f32 to vector<4x32x32xf32>
    %51 = arith.mulf %49, %50 : vector<4x32x32xf32>
    %52 = arith.addf %51, %11 : vector<4x32x32xf32>
    %cst_14 = arith.constant dense<0xFF800000> : vector<4x32xf32>
    %53 = vector.multi_reduction <maximumf>, %52, %cst_14 [2] : vector<4x32x32xf32> to vector<4x32xf32>
    %54 = vector.shape_cast %53 : vector<4x32xf32> to vector<4x32x1xf32>
    %55 = vector.broadcast %54 : vector<4x32x1xf32> to vector<4x32x32xf32>
    %56 = arith.subf %52, %55 : vector<4x32x32xf32>
    %57 = math.exp %56 : vector<4x32x32xf32>
    %cst_15 = arith.constant dense<0.000000e+00> : vector<4x32xf32>
    %58 = vector.multi_reduction <add>, %57, %cst_15 [2] : vector<4x32x32xf32> to vector<4x32xf32>
    %59 = vector.shape_cast %58 : vector<4x32xf32> to vector<4x32x1xf32>
    %60 = tpu.reciprocal %59 {approx = true} : vector<4x32x1xf32> -> vector<4x32x1xf32>
    %61 = vector.broadcast %60 : vector<4x32x1xf32> to vector<4x32x32xf32>
    %62 = arith.mulf %57, %61 : vector<4x32x32xf32>
    %63 = arith.truncf %62 : vector<4x32x32xf32> to vector<4x32x32xbf16>
    "tpu.trace_start"() <{level = 10 : i32, message = "bqk,bkd->bqd"}> : () -> ()
    %cst_16 = arith.constant dense<0.000000e+00> : vector<4x32x32xf32>
    %64 = tpu.matmul %63, %48, %cst_16 {dimension_numbers = #tpu.dot_dimension_numbers<[2], [1], [1], [2], [0, 0, 0, 1, 1, 2], [0], [0]>} : vector<4x32x32xbf16>, vector<4x32x32xbf16>, vector<4x32x32xf32> -> vector<4x32x32xf32>
    "tpu.trace_stop"() : () -> ()
    %65 = vector.shape_cast %64 : vector<4x32x32xf32> to vector<128x32xf32>
    %66 = arith.truncf %65 : vector<128x32xf32> to vector<128x32xbf16>
    %c0_17 = arith.constant 0 : index
    %c32 = arith.constant 32 : index
    %67 = vector.load %arg14[%c0_17, %c32] : memref<128x128xbf16, #tpu.memory_space<vmem>>, vector<128x32xbf16>
    tpu.vector_store %arg14[%c0_17, %c32], %66 {strides = array<i32>} : memref<128x128xbf16, #tpu.memory_space<vmem>>, vector<128x32xbf16>,
    %68 = vector.extract_strided_slice %2 {offsets = [0, 64], sizes = [128, 32], strides = [1, 1]} : vector<128x384xf32> to vector<128x32xf32>
    %69 = arith.truncf %68 : vector<128x32xf32> to vector<128x32xbf16>
    %70 = vector.shape_cast %69 : vector<128x32xbf16> to vector<4x32x32xbf16>
    %71 = vector.extract_strided_slice %2 {offsets = [0, 192], sizes = [128, 32], strides = [1, 1]} : vector<128x384xf32> to vector<128x32xf32>
    %72 = arith.truncf %71 : vector<128x32xf32> to vector<128x32xbf16>
    %73 = vector.shape_cast %72 : vector<128x32xbf16> to vector<4x32x32xbf16>
    %74 = vector.extract_strided_slice %2 {offsets = [0, 320], sizes = [128, 32], strides = [1, 1]} : vector<128x384xf32> to vector<128x32xf32>
    %75 = arith.truncf %74 : vector<128x32xf32> to vector<128x32xbf16>
    %76 = vector.shape_cast %75 : vector<128x32xbf16> to vector<4x32x32xbf16>
    "tpu.trace_start"() <{level = 10 : i32, message = "bqd,bkd->bqk"}> : () -> ()
    %cst_18 = arith.constant dense<0.000000e+00> : vector<4x32x32xf32>
    %77 = tpu.matmul %70, %73, %cst_18 {dimension_numbers = #tpu.dot_dimension_numbers<[2], [2], [1], [1], [0, 0, 0, 1, 1, 1], [0], [0]>} : vector<4x32x32xbf16>, vector<4x32x32xbf16>, vector<4x32x32xf32> -> vector<4x32x32xf32>
    "tpu.trace_stop"() : () -> ()
    %cst_19 = arith.constant 0.288675129 : f32
    %78 = vector.broadcast %cst_19 : f32 to vector<4x32x32xf32>
    %79 = arith.mulf %77, %78 : vector<4x32x32xf32>
    %80 = arith.addf %79, %11 : vector<4x32x32xf32>
    %cst_20 = arith.constant dense<0xFF800000> : vector<4x32xf32>
    %81 = vector.multi_reduction <maximumf>, %80, %cst_20 [2] : vector<4x32x32xf32> to vector<4x32xf32>
    %82 = vector.shape_cast %81 : vector<4x32xf32> to vector<4x32x1xf32>
    %83 = vector.broadcast %82 : vector<4x32x1xf32> to vector<4x32x32xf32>
    %84 = arith.subf %80, %83 : vector<4x32x32xf32>
    %85 = math.exp %84 : vector<4x32x32xf32>
    %cst_21 = arith.constant dense<0.000000e+00> : vector<4x32xf32>
    %86 = vector.multi_reduction <add>, %85, %cst_21 [2] : vector<4x32x32xf32> to vector<4x32xf32>
    %87 = vector.shape_cast %86 : vector<4x32xf32> to vector<4x32x1xf32>
    %88 = tpu.reciprocal %87 {approx = true} : vector<4x32x1xf32> -> vector<4x32x1xf32>
    %89 = vector.broadcast %88 : vector<4x32x1xf32> to vector<4x32x32xf32>
    %90 = arith.mulf %85, %89 : vector<4x32x32xf32>
    %91 = arith.truncf %90 : vector<4x32x32xf32> to vector<4x32x32xbf16>
    "tpu.trace_start"() <{level = 10 : i32, message = "bqk,bkd->bqd"}> : () -> ()
    %cst_22 = arith.constant dense<0.000000e+00> : vector<4x32x32xf32>
    %92 = tpu.matmul %91, %76, %cst_22 {dimension_numbers = #tpu.dot_dimension_numbers<[2], [1], [1], [2], [0, 0, 0, 1, 1, 2], [0], [0]>} : vector<4x32x32xbf16>, vector<4x32x32xbf16>, vector<4x32x32xf32> -> vector<4x32x32xf32>
    "tpu.trace_stop"() : () -> ()
    %93 = vector.shape_cast %92 : vector<4x32x32xf32> to vector<128x32xf32>
    %94 = arith.truncf %93 : vector<128x32xf32> to vector<128x32xbf16>
    %c0_23 = arith.constant 0 : index
    %c64 = arith.constant 64 : index
    %95 = vector.load %arg14[%c0_23, %c64] : memref<128x128xbf16, #tpu.memory_space<vmem>>, vector<128x32xbf16>
    tpu.vector_store %arg14[%c0_23, %c64], %94 {strides = array<i32>} : memref<128x128xbf16, #tpu.memory_space<vmem>>, vector<128x32xbf16>,
    %96 = vector.extract_strided_slice %2 {offsets = [0, 96], sizes = [128, 32], strides = [1, 1]} : vector<128x384xf32> to vector<128x32xf32>
    %97 = arith.truncf %96 : vector<128x32xf32> to vector<128x32xbf16>
    %98 = vector.shape_cast %97 : vector<128x32xbf16> to vector<4x32x32xbf16>
    %99 = vector.extract_strided_slice %2 {offsets = [0, 224], sizes = [128, 32], strides = [1, 1]} : vector<128x384xf32> to vector<128x32xf32>
    %100 = arith.truncf %99 : vector<128x32xf32> to vector<128x32xbf16>
    %101 = vector.shape_cast %100 : vector<128x32xbf16> to vector<4x32x32xbf16>
    %102 = vector.extract_strided_slice %2 {offsets = [0, 352], sizes = [128, 32], strides = [1, 1]} : vector<128x384xf32> to vector<128x32xf32>
    %103 = arith.truncf %102 : vector<128x32xf32> to vector<128x32xbf16>
    %104 = vector.shape_cast %103 : vector<128x32xbf16> to vector<4x32x32xbf16>
    "tpu.trace_start"() <{level = 10 : i32, message = "bqd,bkd->bqk"}> : () -> ()
    %cst_24 = arith.constant dense<0.000000e+00> : vector<4x32x32xf32>
    %105 = tpu.matmul %98, %101, %cst_24 {dimension_numbers = #tpu.dot_dimension_numbers<[2], [2], [1], [1], [0, 0, 0, 1, 1, 1], [0], [0]>} : vector<4x32x32xbf16>, vector<4x32x32xbf16>, vector<4x32x32xf32> -> vector<4x32x32xf32>
    "tpu.trace_stop"() : () -> ()
    %cst_25 = arith.constant 0.288675129 : f32
    %106 = vector.broadcast %cst_25 : f32 to vector<4x32x32xf32>
    %107 = arith.mulf %105, %106 : vector<4x32x32xf32>
    %108 = arith.addf %107, %11 : vector<4x32x32xf32>
    %cst_26 = arith.constant dense<0xFF800000> : vector<4x32xf32>
    %109 = vector.multi_reduction <maximumf>, %108, %cst_26 [2] : vector<4x32x32xf32> to vector<4x32xf32>
    %110 = vector.shape_cast %109 : vector<4x32xf32> to vector<4x32x1xf32>
    %111 = vector.broadcast %110 : vector<4x32x1xf32> to vector<4x32x32xf32>
    %112 = arith.subf %108, %111 : vector<4x32x32xf32>
    %113 = math.exp %112 : vector<4x32x32xf32>
    %cst_27 = arith.constant dense<0.000000e+00> : vector<4x32xf32>
    %114 = vector.multi_reduction <add>, %113, %cst_27 [2] : vector<4x32x32xf32> to vector<4x32xf32>
    %115 = vector.shape_cast %114 : vector<4x32xf32> to vector<4x32x1xf32>
    %116 = tpu.reciprocal %115 {approx = true} : vector<4x32x1xf32> -> vector<4x32x1xf32>
    %117 = vector.broadcast %116 : vector<4x32x1xf32> to vector<4x32x32xf32>
    %118 = arith.mulf %113, %117 : vector<4x32x32xf32>
    %119 = arith.truncf %118 : vector<4x32x32xf32> to vector<4x32x32xbf16>
    "tpu.trace_start"() <{level = 10 : i32, message = "bqk,bkd->bqd"}> : () -> ()
    %cst_28 = arith.constant dense<0.000000e+00> : vector<4x32x32xf32>
    %120 = tpu.matmul %119, %104, %cst_28 {dimension_numbers = #tpu.dot_dimension_numbers<[2], [1], [1], [2], [0, 0, 0, 1, 1, 2], [0], [0]>} : vector<4x32x32xbf16>, vector<4x32x32xbf16>, vector<4x32x32xf32> -> vector<4x32x32xf32>
    "tpu.trace_stop"() : () -> ()
    %121 = vector.shape_cast %120 : vector<4x32x32xf32> to vector<128x32xf32>
    %122 = arith.truncf %121 : vector<128x32xf32> to vector<128x32xbf16>
    %c0_29 = arith.constant 0 : index
    %c96 = arith.constant 96 : index
    %123 = vector.load %arg14[%c0_29, %c96] : memref<128x128xbf16, #tpu.memory_space<vmem>>, vector<128x32xbf16>
    tpu.vector_store %arg14[%c0_29, %c96], %122 {strides = array<i32>} : memref<128x128xbf16, #tpu.memory_space<vmem>>, vector<128x32xbf16>,
    %c0_30 = arith.constant 0 : index
    %c0_31 = arith.constant 0 : index
    %124 = vector.load %arg14[%c0_30, %c0_31] : memref<128x128xbf16, #tpu.memory_space<vmem>>, vector<128x128xbf16>
    %c0_32 = arith.constant 0 : index
    %c0_33 = arith.constant 0 : index
    %125 = vector.load %arg3[%c0_32, %c0_33] : memref<128x128xbf16, #tpu.memory_space<vmem>>, vector<128x128xbf16>
    %cst_34 = arith.constant dense<0.000000e+00> : vector<128x128xf32>
    %126 = tpu.matmul %124, %125, %cst_34 {dimension_numbers = #tpu.dot_dimension_numbers<[1], [0], [0], [1], [0, 0, 1, 1], [], []>} : vector<128x128xbf16>, vector<128x128xbf16>, vector<128x128xf32> -> vector<128x128xf32>
    %c0_35 = arith.constant 0 : index
    %c0_36 = arith.constant 0 : index
    %127 = vector.load %arg4[%c0_35, %c0_36] : memref<1x128xf32, #tpu.memory_space<vmem>>, vector<1x128xf32>
    %128 = vector.broadcast %127 : vector<1x128xf32> to vector<128x128xf32>
    %129 = arith.addf %126, %128 : vector<128x128xf32>
    %130 = arith.extf %0 : vector<128x128xbf16> to vector<128x128xf32>
    %131 = arith.addf %130, %129 : vector<128x128xf32>
    %c0_37 = arith.constant 0 : index
    %c0_38 = arith.constant 0 : index
    %132 = vector.load %arg5[%c0_37, %c0_38] : memref<1x128xf32, #tpu.memory_space<vmem>>, vector<1x128xf32>
    %c0_39 = arith.constant 0 : index
    %c0_40 = arith.constant 0 : index
    %133 = vector.load %arg6[%c0_39, %c0_40] : memref<1x128xf32, #tpu.memory_space<vmem>>, vector<1x128xf32>
    %cst_41 = arith.constant dense<0.000000e+00> : vector<128xf32>
    %134 = vector.multi_reduction <add>, %131, %cst_41 [1] : vector<128x128xf32> to vector<128xf32>
    %135 = vector.shape_cast %134 : vector<128xf32> to vector<128x1xf32>
    %cst_42 = arith.constant 0.020833334 : f32
    %136 = vector.broadcast %cst_42 : f32 to vector<128x1xf32>
    %137 = arith.mulf %135, %136 : vector<128x1xf32>
    %138 = arith.mulf %131, %131 : vector<128x128xf32>
    %cst_43 = arith.constant dense<0.000000e+00> : vector<128xf32>
    %139 = vector.multi_reduction <add>, %138, %cst_43 [1] : vector<128x128xf32> to vector<128xf32>
    %140 = vector.shape_cast %139 : vector<128xf32> to vector<128x1xf32>
    %cst_44 = arith.constant 0.020833334 : f32
    %141 = vector.broadcast %cst_44 : f32 to vector<128x1xf32>
    %142 = arith.mulf %140, %141 : vector<128x1xf32>
    %143 = arith.mulf %137, %137 : vector<128x1xf32>
    %144 = arith.subf %142, %143 : vector<128x1xf32>
    %145 = vector.broadcast %137 : vector<128x1xf32> to vector<128x128xf32>
    %146 = arith.subf %131, %145 : vector<128x128xf32>
    %cst_45 = arith.constant 9.99999974E-6 : f32
    %147 = vector.broadcast %cst_45 : f32 to vector<128x1xf32>
    %148 = arith.addf %144, %147 : vector<128x1xf32>
    %149 = math.rsqrt %148 : vector<128x1xf32>
    %150 = vector.broadcast %149 : vector<128x1xf32> to vector<128x128xf32>
    %151 = arith.mulf %146, %150 : vector<128x128xf32>
    %152 = vector.broadcast %132 : vector<1x128xf32> to vector<128x128xf32>
    %153 = arith.mulf %151, %152 : vector<128x128xf32>
    %154 = vector.broadcast %133 : vector<1x128xf32> to vector<128x128xf32>
    %155 = arith.addf %153, %154 : vector<128x128xf32>
    %156 = arith.truncf %155 : vector<128x128xf32> to vector<128x128xbf16>
    %c0_46 = arith.constant 0 : index
    %c0_47 = arith.constant 0 : index
    %157 = vector.load %arg7[%c0_46, %c0_47] : memref<128x256xbf16, #tpu.memory_space<vmem>>, vector<128x256xbf16>
    %cst_48 = arith.constant dense<0.000000e+00> : vector<128x256xf32>
    %158 = tpu.matmul %156, %157, %cst_48 {dimension_numbers = #tpu.dot_dimension_numbers<[1], [0], [0], [1], [0, 0, 1, 1], [], []>} : vector<128x128xbf16>, vector<128x256xbf16>, vector<128x256xf32> -> vector<128x256xf32>
    %c0_49 = arith.constant 0 : index
    %c0_50 = arith.constant 0 : index
    %159 = vector.load %arg8[%c0_49, %c0_50] : memref<1x256xf32, #tpu.memory_space<vmem>>, vector<1x256xf32>
    %160 = vector.broadcast %159 : vector<1x256xf32> to vector<128x256xf32>
    %161 = arith.addf %158, %160 : vector<128x256xf32>
    %cst_51 = arith.constant 0.000000e+00 : f32
    %162 = vector.broadcast %cst_51 : f32 to vector<128x256xf32>
    %163 = arith.maximumf %161, %162 : vector<128x256xf32>
    %164 = arith.truncf %163 : vector<128x256xf32> to vector<128x256xbf16>
    %c0_52 = arith.constant 0 : index
    %c0_53 = arith.constant 0 : index
    %165 = vector.load %arg9[%c0_52, %c0_53] : memref<256x128xbf16, #tpu.memory_space<vmem>>, vector<256x128xbf16>
    %cst_54 = arith.constant dense<0.000000e+00> : vector<128x128xf32>
    %166 = tpu.matmul %164, %165, %cst_54 {dimension_numbers = #tpu.dot_dimension_numbers<[1], [0], [0], [1], [0, 0, 1, 1], [], []>} : vector<128x256xbf16>, vector<256x128xbf16>, vector<128x128xf32> -> vector<128x128xf32>
    %c0_55 = arith.constant 0 : index
    %c0_56 = arith.constant 0 : index
    %167 = vector.load %arg10[%c0_55, %c0_56] : memref<1x128xf32, #tpu.memory_space<vmem>>, vector<1x128xf32>
    %168 = vector.broadcast %167 : vector<1x128xf32> to vector<128x128xf32>
    %169 = arith.addf %166, %168 : vector<128x128xf32>
    %170 = arith.addf %155, %169 : vector<128x128xf32>
    %c0_57 = arith.constant 0 : index
    %c0_58 = arith.constant 0 : index
    %171 = vector.load %arg11[%c0_57, %c0_58] : memref<1x128xf32, #tpu.memory_space<vmem>>, vector<1x128xf32>
    %c0_59 = arith.constant 0 : index
    %c0_60 = arith.constant 0 : index
    %172 = vector.load %arg12[%c0_59, %c0_60] : memref<1x128xf32, #tpu.memory_space<vmem>>, vector<1x128xf32>
    %cst_61 = arith.constant dense<0.000000e+00> : vector<128xf32>
    %173 = vector.multi_reduction <add>, %170, %cst_61 [1] : vector<128x128xf32> to vector<128xf32>
    %174 = vector.shape_cast %173 : vector<128xf32> to vector<128x1xf32>
    %cst_62 = arith.constant 0.020833334 : f32
    %175 = vector.broadcast %cst_62 : f32 to vector<128x1xf32>
    %176 = arith.mulf %174, %175 : vector<128x1xf32>
    %177 = arith.mulf %170, %170 : vector<128x128xf32>
    %cst_63 = arith.constant dense<0.000000e+00> : vector<128xf32>
    %178 = vector.multi_reduction <add>, %177, %cst_63 [1] : vector<128x128xf32> to vector<128xf32>
    %179 = vector.shape_cast %178 : vector<128xf32> to vector<128x1xf32>
    %cst_64 = arith.constant 0.020833334 : f32
    %180 = vector.broadcast %cst_64 : f32 to vector<128x1xf32>
    %181 = arith.mulf %179, %180 : vector<128x1xf32>
    %182 = arith.mulf %176, %176 : vector<128x1xf32>
    %183 = arith.subf %181, %182 : vector<128x1xf32>
    %184 = vector.broadcast %176 : vector<128x1xf32> to vector<128x128xf32>
    %185 = arith.subf %170, %184 : vector<128x128xf32>
    %cst_65 = arith.constant 9.99999974E-6 : f32
    %186 = vector.broadcast %cst_65 : f32 to vector<128x1xf32>
    %187 = arith.addf %183, %186 : vector<128x1xf32>
    %188 = math.rsqrt %187 : vector<128x1xf32>
    %189 = vector.broadcast %188 : vector<128x1xf32> to vector<128x128xf32>
    %190 = arith.mulf %185, %189 : vector<128x128xf32>
    %191 = vector.broadcast %171 : vector<1x128xf32> to vector<128x128xf32>
    %192 = arith.mulf %190, %191 : vector<128x128xf32>
    %193 = vector.broadcast %172 : vector<1x128xf32> to vector<128x128xf32>
    %194 = arith.addf %192, %193 : vector<128x128xf32>
    %c0_66 = arith.constant 0 : index
    %c0_67 = arith.constant 0 : index
    %195 = vector.load %arg13[%c0_66, %c0_67] : memref<128x128xf32, #tpu.memory_space<vmem>>, vector<128x128xf32>
    tpu.vector_store %arg13[%c0_66, %c0_67], %194 {strides = array<i32>} : memref<128x128xf32, #tpu.memory_space<vmem>>, vector<128x128xf32>,
    return
  }
  func.func @transform_0(%arg0: i32) -> (i32, i32) {
    %c0_i32 = arith.constant 0 : i32
    %c0_i32_0 = arith.constant 0 : i32
    return %arg0, %c0_i32 : i32, i32
  }
  func.func @transform_1(%arg0: i32) -> (i32, i32) {
    %c0_i32 = arith.constant 0 : i32
    %c0_i32_0 = arith.constant 0 : i32
    %c0_i32_1 = arith.constant 0 : i32
    return %c0_i32, %c0_i32_0 : i32, i32
  }
  func.func @transform_2(%arg0: i32) -> (i32, i32) {
    %c0_i32 = arith.constant 0 : i32
    %c0_i32_0 = arith.constant 0 : i32
    %c0_i32_1 = arith.constant 0 : i32
    return %c0_i32, %c0_i32_0 : i32, i32
  }
  func.func @transform_3(%arg0: i32) -> (i32, i32) {
    %c0_i32 = arith.constant 0 : i32
    %c0_i32_0 = arith.constant 0 : i32
    %c0_i32_1 = arith.constant 0 : i32
    return %c0_i32, %c0_i32_0 : i32, i32
  }
  func.func @transform_4(%arg0: i32) -> (i32, i32) {
    %c0_i32 = arith.constant 0 : i32
    %c0_i32_0 = arith.constant 0 : i32
    %c0_i32_1 = arith.constant 0 : i32
    return %c0_i32, %c0_i32_0 : i32, i32
  }
  func.func @transform_5(%arg0: i32) -> (i32, i32) {
    %c0_i32 = arith.constant 0 : i32
    %c0_i32_0 = arith.constant 0 : i32
    %c0_i32_1 = arith.constant 0 : i32
    return %c0_i32, %c0_i32_0 : i32, i32
  }
  func.func @transform_6(%arg0: i32) -> (i32, i32) {
    %c0_i32 = arith.constant 0 : i32
    %c0_i32_0 = arith.constant 0 : i32
    %c0_i32_1 = arith.constant 0 : i32
    return %c0_i32, %c0_i32_0 : i32, i32
  }
  func.func @transform_7(%arg0: i32) -> (i32, i32) {
    %c0_i32 = arith.constant 0 : i32
    %c0_i32_0 = arith.constant 0 : i32
    %c0_i32_1 = arith.constant 0 : i32
    return %c0_i32, %c0_i32_0 : i32, i32
  }
  func.func @transform_8(%arg0: i32) -> (i32, i32) {
    %c0_i32 = arith.constant 0 : i32
    %c0_i32_0 = arith.constant 0 : i32
    %c0_i32_1 = arith.constant 0 : i32
    return %c0_i32, %c0_i32_0 : i32, i32
  }
  func.func @transform_9(%arg0: i32) -> (i32, i32) {
    %c0_i32 = arith.constant 0 : i32
    %c0_i32_0 = arith.constant 0 : i32
    %c0_i32_1 = arith.constant 0 : i32
    return %c0_i32, %c0_i32_0 : i32, i32
  }
  func.func @transform_10(%arg0: i32) -> (i32, i32) {
    %c0_i32 = arith.constant 0 : i32
    %c0_i32_0 = arith.constant 0 : i32
    %c0_i32_1 = arith.constant 0 : i32
    return %c0_i32, %c0_i32_0 : i32, i32
  }
  func.func @transform_11(%arg0: i32) -> (i32, i32) {
    %c0_i32 = arith.constant 0 : i32
    %c0_i32_0 = arith.constant 0 : i32
    %c0_i32_1 = arith.constant 0 : i32
    return %c0_i32, %c0_i32_0 : i32, i32
  }
  func.func @transform_12(%arg0: i32) -> (i32, i32) {
    %c0_i32 = arith.constant 0 : i32
    %c0_i32_0 = arith.constant 0 : i32
    return %arg0, %c0_i32 : i32, i32
  }
}

</mosaic_0001>

<llo_original>
// kernel: tpu_custom_call.1
$region0: #{tpu_custom_call.1}
  #allocation0 [shape = 'u32[]', space=smem, size = 0x4, offset = 0x4, fixed_abs, tag = 'smem constant byte address 0x4 - core index']
  #allocation1 [shape = 'u32[144,128]{1,0:T(1,128)}', space=vmem, size = 0x12000, scoped, tag = 'internal scratch']
  #allocation2 [shape = 'bf16[128,128]{1,0:T(16,128)(2,1)}', space=vmem, size = 0x8000, scoped, tag = 'scratch operand']
  %s0 = inlined_call_operand.hbm [shape: bf16[128,128], index: 0, kind: input, shape index: {}]
  %s1 = inlined_call_operand.hbm [shape: bf16[128,384], index: 1, kind: input, shape index: {}]
  %s2 = inlined_call_operand.hbm [shape: bf16[128,128], index: 2, kind: input, shape index: {}]
  %s3 = inlined_call_operand.vmem [shape: f32[1,128], index: 3, kind: input, shape index: {}]
  %s4 = inlined_call_operand.vmem [shape: f32[1,128], index: 4, kind: input, shape index: {}]
  %s5 = inlined_call_operand.vmem [shape: f32[1,128], index: 5, kind: input, shape index: {}]
  %s6 = inlined_call_operand.hbm [shape: bf16[128,256], index: 6, kind: input, shape index: {}]
  %s7 = inlined_call_operand.vmem [shape: f32[1,256], index: 7, kind: input, shape index: {}]
  %s8 = inlined_call_operand.hbm [shape: bf16[256,128], index: 8, kind: input, shape index: {}]
  %s9 = inlined_call_operand.vmem [shape: f32[1,128], index: 9, kind: input, shape index: {}]
  %s10 = inlined_call_operand.vmem [shape: f32[1,128], index: 10, kind: input, shape index: {}]
  %s11 = inlined_call_operand.vmem [shape: f32[1,128], index: 11, kind: input, shape index: {}]
  %s12 = inlined_call_operand.hbm [shape: f32[128,128], index: 12, kind: output, shape index: {}]
  %s13 = sld [smem:[#allocation0]]
  $region78: #{tpu_custom_call.1} parent=0
    _
  %s15 = ssub.s32 1, %s13
  %s16 = scalar_select 0, %s15, %s13
  $region1: #{tpu_custom_call.1} parent=0
    #allocation3 [shape = 'u8[32768]{0}', space=vmem, size = 0x8000, scoped, tag = 'input window, operand 0, single buffered']
    #allocation4 [shape = 's32[1]{0}', space=sflag, size = 0x4, scoped, tag = 'scoped memory for tpu_custom_call.1']
    #allocation5 [shape = 's32[1]{0}', space=sflag, size = 0x4, scoped, tag = 'scoped memory for tpu_custom_call.1']
    #allocation6 [shape = 'u8[98304]{0}', space=vmem, size = 0x18000, scoped, tag = 'input window, operand 1, single buffered']
    #allocation7 [shape = 's32[1]{0}', space=sflag, size = 0x4, scoped, tag = 'scoped memory for tpu_custom_call.1']
    #allocation8 [shape = 'u8[32768]{0}', space=vmem, size = 0x8000, scoped, tag = 'input window, operand 2, single buffered']
    #allocation9 [shape = 'u8[65536]{0}', space=vmem, size = 0x10000, scoped, tag = 'input window, operand 6, single buffered']
    #allocation10 [shape = 's32[1]{0}', space=sflag, size = 0x4, scoped, tag = 'scoped memory for tpu_custom_call.1']
    #allocation11 [shape = 'u8[65536]{0}', space=vmem, size = 0x10000, scoped, tag = 'input window, operand 8, single buffered']
    #allocation12 [shape = 'u8[65536]{0}', space=vmem, size = 0x10000, scoped, tag = 'output window, operand 0, single buffered']
    %17 = vsyncpa [#allocation4], 0
    %18 = vsyncpa [#allocation7], 0
    %19 = vsyncpa [#allocation10], 0
    %20 = vsyncpa [#allocation5], 0
    // Predicated region
    $region2: #{tpu_custom_call.1} parent=1 // pred_check
      _
    $region3: #{tpu_custom_call.1} parent=1 // pred_check_branch
      %22 = sbr.rel (0) target = $region5
    $region4: #{tpu_custom_call.1} parent=1 // pred_region
      %s24 = ssub.s32 1024, 1024
      %25 = vsyncadd [#allocation4], %s24
      %s26 = sshll.u32 [#allocation3], 4
      %s27 = int_to_ptr.vmem [resolvable:$true] %s26
      %32 = dma.hbm_to_vmem [thread:$0]  %s0, 1024, %s27, [#allocation4], 64, 64, 4
    $region5: #{tpu_custom_call.1} parent=1 // pred_fallthru
      _
    // Predicated region
    $region6: #{tpu_custom_call.1} parent=1 // pred_check
      _
    $region7: #{tpu_custom_call.1} parent=1 // pred_check_branch
      %34 = sbr.rel (0) target = $region9
    $region8: #{tpu_custom_call.1} parent=1 // pred_region
      %s36 = ssub.s32 3072, 3072
      %37 = vsyncadd [#allocation7], %s36
      %s38 = sshll.u32 [#allocation6], 4
      %s39 = int_to_ptr.vmem [resolvable:$true] %s38
      %44 = dma.hbm_to_vmem [thread:$0]  %s1, 3072, %s39, [#allocation7], 192, 192, 12
    $region9: #{tpu_custom_call.1} parent=1 // pred_fallthru
      _
    // Predicated region
    $region10: #{tpu_custom_call.1} parent=1 // pred_check
      _
    $region11: #{tpu_custom_call.1} parent=1 // pred_check_branch
      %46 = sbr.rel (0) target = $region13
    $region12: #{tpu_custom_call.1} parent=1 // pred_region
      %s48 = ssub.s32 1024, 1024
      %49 = vsyncadd [#allocation7], %s48
      %s50 = sshll.u32 [#allocation8], 4
      %s51 = int_to_ptr.vmem [resolvable:$true] %s50
      %56 = dma.hbm_to_vmem [thread:$0]  %s2, 1024, %s51, [#allocation7], 64, 64, 4
    $region13: #{tpu_custom_call.1} parent=1 // pred_fallthru
      _
    // Predicated region
    $region14: #{tpu_custom_call.1} parent=1 // pred_check
      _
    $region15: #{tpu_custom_call.1} parent=1 // pred_check_branch
      %58 = sbr.rel (0) target = $region17
    $region16: #{tpu_custom_call.1} parent=1 // pred_region
      _
    $region17: #{tpu_custom_call.1} parent=1 // pred_fallthru
      _
    // Predicated region
    $region18: #{tpu_custom_call.1} parent=1 // pred_check
      _
    $region19: #{tpu_custom_call.1} parent=1 // pred_check_branch
      %60 = sbr.rel (0) target = $region21
    $region20: #{tpu_custom_call.1} parent=1 // pred_region
      _
    $region21: #{tpu_custom_call.1} parent=1 // pred_fallthru
      _
    // Predicated region
    $region22: #{tpu_custom_call.1} parent=1 // pred_check
      _
    $region23: #{tpu_custom_call.1} parent=1 // pred_check_branch
      %62 = sbr.rel (0) target = $region25
    $region24: #{tpu_custom_call.1} parent=1 // pred_region
      _
    $region25: #{tpu_custom_call.1} parent=1 // pred_fallthru
      _
    // Predicated region
    $region26: #{tpu_custom_call.1} parent=1 // pred_check
      _
    $region27: #{tpu_custom_call.1} parent=1 // pred_check_branch
      %64 = sbr.rel (0) target = $region29
    $region28: #{tpu_custom_call.1} parent=1 // pred_region
      %s66 = ssub.s32 2048, 2048
      %67 = vsyncadd [#allocation10], %s66
      %s68 = sshll.u32 [#allocation9], 4
      %s69 = int_to_ptr.vmem [resolvable:$true] %s68
      %74 = dma.hbm_to_vmem [thread:$0]  %s6, 2048, %s69, [#allocation10], 128, 128, 8
    $region29: #{tpu_custom_call.1} parent=1 // pred_fallthru
      _
    // Predicated region
    $region30: #{tpu_custom_call.1} parent=1 // pred_check
      _
    $region31: #{tpu_custom_call.1} parent=1 // pred_check_branch
      %76 = sbr.rel (0) target = $region33
    $region32: #{tpu_custom_call.1} parent=1 // pred_region
      _
    $region33: #{tpu_custom_call.1} parent=1 // pred_fallthru
      _
    // Predicated region
    $region34: #{tpu_custom_call.1} parent=1 // pred_check
      _
    $region35: #{tpu_custom_call.1} parent=1 // pred_check_branch
      %78 = sbr.rel (0) target = $region37
    $region36: #{tpu_custom_call.1} parent=1 // pred_region
      %s80 = ssub.s32 2048, 2048
      %81 = vsyncadd [#allocation10], %s80
      %s82 = sshll.u32 [#allocation11], 4
      %s83 = int_to_ptr.vmem [resolvable:$true] %s82
      %88 = dma.hbm_to_vmem [thread:$0]  %s8, 2048, %s83, [#allocation10], 64, 64, 4
    $region37: #{tpu_custom_call.1} parent=1 // pred_fallthru
      _
    // Predicated region
    $region38: #{tpu_custom_call.1} parent=1 // pred_check
      _
    $region39: #{tpu_custom_call.1} parent=1 // pred_check_branch
      %90 = sbr.rel (0) target = $region41
    $region40: #{tpu_custom_call.1} parent=1 // pred_region
      _
    $region41: #{tpu_custom_call.1} parent=1 // pred_fallthru
      _
    // Predicated region
    $region42: #{tpu_custom_call.1} parent=1 // pred_check
      _
    $region43: #{tpu_custom_call.1} parent=1 // pred_check_branch
      %92 = sbr.rel (0) target = $region45
    $region44: #{tpu_custom_call.1} parent=1 // pred_region
      _
    $region45: #{tpu_custom_call.1} parent=1 // pred_fallthru
      _
    // Predicated region
    $region46: #{tpu_custom_call.1} parent=1 // pred_check
      _
    $region47: #{tpu_custom_call.1} parent=1 // pred_check_branch
      %94 = sbr.rel (0) target = $region49
    $region48: #{tpu_custom_call.1} parent=1 // pred_region
      _
    $region49: #{tpu_custom_call.1} parent=1 // pred_fallthru
      _
    // Predicated region
    $region50: #{tpu_custom_call.1} parent=1 // pred_check
      _
    $region51: #{tpu_custom_call.1} parent=1 // pred_check_branch
      %96 = sbr.rel (0) target = $region53
    $region52: #{tpu_custom_call.1} parent=1 // pred_region
      %97 = dma.done [#allocation4], 1024
    $region53: #{tpu_custom_call.1} parent=1 // pred_fallthru
      _
    // Predicated region
    $region54: #{tpu_custom_call.1} parent=1 // pred_check
      _
    $region55: #{tpu_custom_call.1} parent=1 // pred_check_branch
      %99 = sbr.rel (0) target = $region57
    $region56: #{tpu_custom_call.1} parent=1 // pred_region
      %100 = dma.done [#allocation7], 3072
    $region57: #{tpu_custom_call.1} parent=1 // pred_fallthru
      _
    // Predicated region
    $region58: #{tpu_custom_call.1} parent=1 // pred_check
      _
    $region59: #{tpu_custom_call.1} parent=1 // pred_check_branch
      %102 = sbr.rel (0) target = $region61
    $region60: #{tpu_custom_call.1} parent=1 // pred_region
      %103 = dma.done [#allocation7], 1024
    $region61: #{tpu_custom_call.1} parent=1 // pred_fallthru
      _
    // Predicated region
    $region62: #{tpu_custom_call.1} parent=1 // pred_check
      _
    $region63: #{tpu_custom_call.1} parent=1 // pred_check_branch
      %105 = sbr.rel (0) target = $region65
    $region64: #{tpu_custom_call.1} parent=1 // pred_region
      %106 = dma.done [#allocation10], 2048
    $region65: #{tpu_custom_call.1} parent=1 // pred_fallthru
      _
    // Predicated region
    $region66: #{tpu_custom_call.1} parent=1 // pred_check
      _
    $region67: #{tpu_custom_call.1} parent=1 // pred_check_branch
      %108 = sbr.rel (0) target = $region69
    $region68: #{tpu_custom_call.1} parent=1 // pred_region
      %109 = dma.done [#allocation10], 2048
    $region69: #{tpu_custom_call.1} parent=1 // pred_fallthru
      _
    %v111 = vld [vmem:[#allocation3] sm:$0xf]
    %v112 = vld [vmem:[#allocation3 + $0x4] sm:$0xf]
    %v113 = vld [vmem:[#allocation3 + $0x8] sm:$0xf]
    %v114 = vld [vmem:[#allocation3 + $0xc] sm:$0xf]
    %v115 = vld [vmem:[#allocation3 + $0x10] sm:$0xf]
    %v116 = vld [vmem:[#allocation3 + $0x14] sm:$0xf]
    %v117 = vld [vmem:[#allocation3 + $0x18] sm:$0xf]
    %v118 = vld [vmem:[#allocation3 + $0x1c] sm:$0xf]
    %v119 = vld [vmem:[#allocation3 + $0x20] sm:$0xf]
    %v120 = vld [vmem:[#allocation3 + $0x24] sm:$0xf]
    %v121 = vld [vmem:[#allocation3 + $0x28] sm:$0xf]
    %v122 = vld [vmem:[#allocation3 + $0x2c] sm:$0xf]
    %v123 = vld [vmem:[#allocation3 + $0x30] sm:$0xf]
    %v124 = vld [vmem:[#allocation3 + $0x34] sm:$0xf]
    %v125 = vld [vmem:[#allocation3 + $0x38] sm:$0xf]
    %v126 = vld [vmem:[#allocation3 + $0x3c] sm:$0xf]
    %v127 = vld [vmem:[#allocation6] sm:$0xff]
    %v128 = vld [vmem:[#allocation6 + $0x8] sm:$0xf]
    %v129 = vld [vmem:[#allocation6 + $0xc] sm:$0xff]
    %v130 = vld [vmem:[#allocation6 + $0x14] sm:$0xf]
    %v131 = vld [vmem:[#allocation6 + $0x18] sm:$0xff]
    %v132 = vld [vmem:[#allocation6 + $0x20] sm:$0xf]
    %v133 = vld [vmem:[#allocation6 + $0x24] sm:$0xff]
    %v134 = vld [vmem:[#allocation6 + $0x2c] sm:$0xf]
    %v135 = vld [vmem:[#allocation6 + $0x30] sm:$0xff]
    %v136 = vld [vmem:[#allocation6 + $0x38] sm:$0xf]
    %v137 = vld [vmem:[#allocation6 + $0x3c] sm:$0xff]
    %v138 = vld [vmem:[#allocation6 + $0x44] sm:$0xf]
    %v139 = vld [vmem:[#allocation6 + $0x48] sm:$0xff]
    %v140 = vld [vmem:[#allocation6 + $0x50] sm:$0xf]
    %v141 = vld [vmem:[#allocation6 + $0x54] sm:$0xff]
    %v142 = vld [vmem:[#allocation6 + $0x5c] sm:$0xf]
    %v143 = vld [vmem:[#allocation6 + $0x60] sm:$0xff]
    %v144 = vld [vmem:[#allocation6 + $0x68] sm:$0xf]
    %v145 = vld [vmem:[#allocation6 + $0x6c] sm:$0xff]
    %v146 = vld [vmem:[#allocation6 + $0x74] sm:$0xf]
    %v147 = vld [vmem:[#allocation6 + $0x78] sm:$0xff]
    %v148 = vld [vmem:[#allocation6 + $0x80] sm:$0xf]
    %v149 = vld [vmem:[#allocation6 + $0x84] sm:$0xff]
    %v150 = vld [vmem:[#allocation6 + $0x8c] sm:$0xf]
    %v151 = vld [vmem:[#allocation6 + $0x90] sm:$0xff]
    %v152 = vld [vmem:[#allocation6 + $0x98] sm:$0xf]
    %v153 = vld [vmem:[#allocation6 + $0x9c] sm:$0xff]
    %v154 = vld [vmem:[#allocation6 + $0xa4] sm:$0xf]
    %v155 = vld [vmem:[#allocation6 + $0xa8] sm:$0xff]
    %v156 = vld [vmem:[#allocation6 + $0xb0] sm:$0xf]
    %v157 = vld [vmem:[#allocation6 + $0xb4] sm:$0xff]
    %v158 = vld [vmem:[#allocation6 + $0xbc] sm:$0xf]
    %v175 = vunpack.c.l.b16 %v111
    %v176 = vunpack.c.l.b16 %v112
    %v177 = vunpack.c.l.b16 %v113
    %v178 = vunpack.c.l.b16 %v114
    %v179 = vunpack.c.l.b16 %v115
    %v180 = vunpack.c.l.b16 %v116
    %v181 = vunpack.c.l.b16 %v117
    %v182 = vunpack.c.l.b16 %v118
    %v183 = vunpack.c.l.b16 %v119
    %v184 = vunpack.c.l.b16 %v120
    %v185 = vunpack.c.l.b16 %v121
    %v186 = vunpack.c.l.b16 %v122
    %v187 = vunpack.c.l.b16 %v123
    %v188 = vunpack.c.l.b16 %v124
    %v189 = vunpack.c.l.b16 %v125
    %v190 = vunpack.c.l.b16 %v126
    %v191 = vpack.c.b16 %v176, %v175
    %v192 = vpack.c.b16 %v178, %v177
    %v193 = vpack.c.b16 %v180, %v179
    %v194 = vpack.c.b16 %v182, %v181
    %v195 = vpack.c.b16 %v184, %v183
    %v196 = vpack.c.b16 %v186, %v185
    %v197 = vpack.c.b16 %v188, %v187
    %v198 = vpack.c.b16 %v190, %v189
    %v239 = vunpack.c.l.b16 %v127
    %v240 = vunpack.c.h.b16 %v127
    %v241 = vunpack.c.l.b16 %v128
    %v242 = vunpack.c.l.b16 %v129
    %v243 = vunpack.c.h.b16 %v129
    %v244 = vunpack.c.l.b16 %v130
    %v245 = vunpack.c.l.b16 %v131
    %v246 = vunpack.c.h.b16 %v131
    %v247 = vunpack.c.l.b16 %v132
    %v248 = vunpack.c.l.b16 %v133
    %v249 = vunpack.c.h.b16 %v133
    %v250 = vunpack.c.l.b16 %v134
    %v251 = vunpack.c.l.b16 %v135
    %v252 = vunpack.c.h.b16 %v135
    %v253 = vunpack.c.l.b16 %v136
    %v254 = vunpack.c.l.b16 %v137
    %v255 = vunpack.c.h.b16 %v137
    %v256 = vunpack.c.l.b16 %v138
    %v257 = vunpack.c.l.b16 %v139
    %v258 = vunpack.c.h.b16 %v139
    %v259 = vunpack.c.l.b16 %v140
    %v260 = vunpack.c.l.b16 %v141
    %v261 = vunpack.c.h.b16 %v141
    %v262 = vunpack.c.l.b16 %v142
    %v263 = vunpack.c.l.b16 %v143
    %v264 = vunpack.c.h.b16 %v143
    %v265 = vunpack.c.l.b16 %v144
    %v266 = vunpack.c.l.b16 %v145
    %v267 = vunpack.c.h.b16 %v145
    %v268 = vunpack.c.l.b16 %v146
    %v269 = vunpack.c.l.b16 %v147
    %v270 = vunpack.c.h.b16 %v147
    %v271 = vunpack.c.l.b16 %v148
    %v272 = vunpack.c.l.b16 %v149
    %v273 = vunpack.c.h.b16 %v149
    %v274 = vunpack.c.l.b16 %v150
    %v275 = vunpack.c.l.b16 %v151
    %v276 = vunpack.c.h.b16 %v151
    %v277 = vunpack.c.l.b16 %v152
    %v278 = vunpack.c.l.b16 %v153
    %v279 = vunpack.c.h.b16 %v153
    %v280 = vunpack.c.l.b16 %v154
    %v281 = vunpack.c.l.b16 %v155
    %v282 = vunpack.c.h.b16 %v155
    %v283 = vunpack.c.l.b16 %v156
    %v284 = vunpack.c.l.b16 %v157
    %v285 = vunpack.c.h.b16 %v157
    %v286 = vunpack.c.l.b16 %v158
    %v287 = vpack.c.b16 %v242, %v239
    %v288 = vpack.c.b16 %v243, %v240
    %v289 = vpack.c.b16 %v244, %v241
    %v290 = vpack.c.b16 %v248, %v245
    %v291 = vpack.c.b16 %v249, %v246
    %v292 = vpack.c.b16 %v250, %v247
    %v293 = vpack.c.b16 %v254, %v251
    %v294 = vpack.c.b16 %v255, %v252
    %v295 = vpack.c.b16 %v256, %v253
    %v296 = vpack.c.b16 %v260, %v257
    %v297 = vpack.c.b16 %v261, %v258
    %v298 = vpack.c.b16 %v262, %v259
    %v299 = vpack.c.b16 %v266, %v263
    %v300 = vpack.c.b16 %v267, %v264
    %v301 = vpack.c.b16 %v268, %v265
    %v302 = vpack.c.b16 %v272, %v269
    %v303 = vpack.c.b16 %v273, %v270
    %v304 = vpack.c.b16 %v274, %v271
    %v305 = vpack.c.b16 %v278, %v275
    %v306 = vpack.c.b16 %v279, %v276
    %v307 = vpack.c.b16 %v280, %v277
    %v308 = vpack.c.b16 %v284, %v281
    %v309 = vpack.c.b16 %v285, %v282
    %v310 = vpack.c.b16 %v286, %v283
    %335 = vmatprep.subr.bf16.mxu0 %v288
    %336 = vmatpush1.bf16.msra.mxu0 %v287
    %337 = vmatprep.subr.bf16.mxu0 %v291
    %338 = vmatpush1.bf16.msra.mxu0 %v290
    %339 = vmatprep.subr.bf16.mxu0 %v294
    %340 = vmatpush1.bf16.msra.mxu0 %v293
    %341 = vmatprep.subr.bf16.mxu0 %v297
    %342 = vmatpush1.bf16.msra.mxu0 %v296
    %343 = vmatprep.subr.bf16.mxu0 %v300
    %344 = vmatpush1.bf16.msra.mxu0 %v299
    %345 = vmatprep.subr.bf16.mxu0 %v303
    %346 = vmatpush1.bf16.msra.mxu0 %v302
    %347 = vmatprep.subr.bf16.mxu0 %v306
    %348 = vmatpush1.bf16.msra.mxu0 %v305
    %349 = vmatprep.subr.bf16.mxu0 %v309
    %350 = vmatpush1.bf16.msra.mxu0 %v308
    %351 = vmatprep.subr.bf16.mxu0 0
    %352 = vmatpush1.bf16.msra.mxu0 0
    %353 = vmatprep.subr.bf16.mxu0 0
    %354 = vmatpush1.bf16.msra.mxu0 0
    %355 = vmatprep.subr.bf16.mxu0 0
    %356 = vmatpush1.bf16.msra.mxu0 0
    %357 = vmatprep.subr.bf16.mxu0 0
    %358 = vmatpush1.bf16.msra.mxu0 0
    %359 = vmatprep.subr.bf16.mxu0 0
    %360 = vmatpush1.bf16.msra.mxu0 0
    %361 = vmatprep.subr.bf16.mxu0 0
    %362 = vmatpush1.bf16.msra.mxu0 0
    %363 = vmatprep.subr.bf16.mxu0 0
    %364 = vmatpush1.bf16.msra.mxu0 0
    %365 = vmatprep.subr.bf16.mxu0 0
    %366 = vmatpush1.bf16.msra.mxu0 0
    %367 = vmatprep.mubr.bf16.mxu0 0
    %368 = vmatmul.mubr.bf16.gmra.mrb[0].mxu0 %v191
    %v369 = vpop.f32.mrb[0].mxu0
    %v370 = vadd.f32 0.0, %v369
    %v371 = vpop.f32.mrb[0].mxu0
    %v372 = vadd.f32 0.0, %v371
    %v373 = vpop.f32.mrb[0].mxu0
    %v374 = vadd.f32 0.0, %v373
    %v375 = vpop.f32.mrb[0].mxu0
    %v376 = vadd.f32 0.0, %v375
    %377 = vmatprep.mubr.bf16.mxu0 0
    %378 = vmatmul.mubr.bf16.gmra.mrb[0].mxu0 %v192
    %v379 = vpop.f32.mrb[0].mxu0
    %v380 = vadd.f32 0.0, %v379
    %v381 = vpop.f32.mrb[0].mxu0
    %v382 = vadd.f32 0.0, %v381
    %v383 = vpop.f32.mrb[0].mxu0
    %v384 = vadd.f32 0.0, %v383
    %v385 = vpop.f32.mrb[0].mxu0
    %v386 = vadd.f32 0.0, %v385
    %387 = vmatprep.mubr.bf16.mxu0 0
    %388 = vmatmul.mubr.bf16.gmra.mrb[0].mxu0 %v193
    %v389 = vpop.f32.mrb[0].mxu0
    %v390 = vadd.f32 0.0, %v389
    %v391 = vpop.f32.mrb[0].mxu0
    %v392 = vadd.f32 0.0, %v391
    %v393 = vpop.f32.mrb[0].mxu0
    %v394 = vadd.f32 0.0, %v393
    %v395 = vpop.f32.mrb[0].mxu0
    %v396 = vadd.f32 0.0, %v395
    %397 = vmatprep.mubr.bf16.mxu0 0
    %398 = vmatmul.mubr.bf16.gmra.mrb[0].mxu0 %v194
    %v399 = vpop.f32.mrb[0].mxu0
    %v400 = vadd.f32 0.0, %v399
    %v401 = vpop.f32.mrb[0].mxu0
    %v402 = vadd.f32 0.0, %v401
    %v403 = vpop.f32.mrb[0].mxu0
    %v404 = vadd.f32 0.0, %v403
    %v405 = vpop.f32.mrb[0].mxu0
    %v406 = vadd.f32 0.0, %v405
    %407 = vmatprep.mubr.bf16.mxu0 0
    %408 = vmatmul.mubr.bf16.gmra.mrb[0].mxu0 %v195
    %v409 = vpop.f32.mrb[0].mxu0
    %v410 = vadd.f32 0.0, %v409
    %v411 = vpop.f32.mrb[0].mxu0
    %v412 = vadd.f32 0.0, %v411
    %v413 = vpop.f32.mrb[0].mxu0
    %v414 = vadd.f32 0.0, %v413
    %v415 = vpop.f32.mrb[0].mxu0
    %v416 = vadd.f32 0.0, %v415
    %417 = vmatprep.mubr.bf16.mxu0 0
    %418 = vmatmul.mubr.bf16.gmra.mrb[0].mxu0 %v196
    %v419 = vpop.f32.mrb[0].mxu0
    %v420 = vadd.f32 0.0, %v419
    %v421 = vpop.f32.mrb[0].mxu0
    %v422 = vadd.f32 0.0, %v421
    %v423 = vpop.f32.mrb[0].mxu0
    %v424 = vadd.f32 0.0, %v423
    %v425 = vpop.f32.mrb[0].mxu0
    %v426 = vadd.f32 0.0, %v425
    %427 = vmatprep.mubr.bf16.mxu0 0
    %428 = vmatmul.mubr.bf16.gmra.mrb[0].mxu0 %v197
    %v429 = vpop.f32.mrb[0].mxu0
    %v430 = vadd.f32 0.0, %v429
    %v431 = vpop.f32.mrb[0].mxu0
    %v432 = vadd.f32 0.0, %v431
    %v433 = vpop.f32.mrb[0].mxu0
    %v434 = vadd.f32 0.0, %v433
    %v435 = vpop.f32.mrb[0].mxu0
    %v436 = vadd.f32 0.0, %v435
    %437 = vmatprep.mubr.bf16.mxu0 0
    %438 = vmatmul.mubr.bf16.gmra.mrb[0].mxu0 %v198
    %v439 = vpop.f32.mrb[0].mxu0
    %v440 = vadd.f32 0.0, %v439
    %v441 = vpop.f32.mrb[0].mxu0
    %v442 = vadd.f32 0.0, %v441
    %v443 = vpop.f32.mrb[0].mxu0
    %v444 = vadd.f32 0.0, %v443
    %v445 = vpop.f32.mrb[0].mxu0
    %v446 = vadd.f32 0.0, %v445
    %447 = vdwg.mxu0
    %448 = vmatprep.subr.bf16.mxu0 0
    %449 = vmatpush1.bf16.msra.mxu0 %v289
    %450 = vmatprep.subr.bf16.mxu0 0
    %451 = vmatpush1.bf16.msra.mxu0 %v292
    %452 = vmatprep.subr.bf16.mxu0 0
    %453 = vmatpush1.bf16.msra.mxu0 %v295
    %454 = vmatprep.subr.bf16.mxu0 0
    %455 = vmatpush1.bf16.msra.mxu0 %v298
    %456 = vmatprep.subr.bf16.mxu0 0
    %457 = vmatpush1.bf16.msra.mxu0 %v301
    %458 = vmatprep.subr.bf16.mxu0 0
    %459 = vmatpush1.bf16.msra.mxu0 %v304
    %460 = vmatprep.subr.bf16.mxu0 0
    %461 = vmatpush1.bf16.msra.mxu0 %v307
    %462 = vmatprep.subr.bf16.mxu0 0
    %463 = vmatpush1.bf16.msra.mxu0 %v310
    %464 = vmatprep.subr.bf16.mxu0 0
    %465 = vmatpush1.bf16.msra.mxu0 0
    %466 = vmatprep.subr.bf16.mxu0 0
    %467 = vmatpush1.bf16.msra.mxu0 0
    %468 = vmatprep.subr.bf16.mxu0 0
    %469 = vmatpush1.bf16.msra.mxu0 0
    %470 = vmatprep.subr.bf16.mxu0 0
    %471 = vmatpush1.bf16.msra.mxu0 0
    %472 = vmatprep.subr.bf16.mxu0 0
    %473 = vmatpush1.bf16.msra.mxu0 0
    %474 = vmatprep.subr.bf16.mxu0 0
    %475 = vmatpush1.bf16.msra.mxu0 0
    %476 = vmatprep.subr.bf16.mxu0 0
    %477 = vmatpush1.bf16.msra.mxu0 0
    %478 = vmatprep.subr.bf16.mxu0 0
    %479 = vmatpush1.bf16.msra.mxu0 0
    %480 = vmatprep.mubr.bf16.mxu0 0
    %481 = vmatmul.mubr.bf16.gmra.mrb[0].mxu0 %v191
    %v482 = vpop.f32.mrb[0].mxu0
    %v483 = vadd.f32 0.0, %v482
    %v484 = vpop.f32.mrb[0].mxu0
    %v485 = vpop.f32.mrb[0].mxu0
    %v486 = vadd.f32 0.0, %v485
    %v487 = vpop.f32.mrb[0].mxu0
    %488 = vmatprep.mubr.bf16.mxu0 0
    %489 = vmatmul.mubr.bf16.gmra.mrb[0].mxu0 %v192
    %v490 = vpop.f32.mrb[0].mxu0
    %v491 = vadd.f32 0.0, %v490
    %v492 = vpop.f32.mrb[0].mxu0
    %v493 = vpop.f32.mrb[0].mxu0
    %v494 = vadd.f32 0.0, %v493
    %v495 = vpop.f32.mrb[0].mxu0
    %496 = vmatprep.mubr.bf16.mxu0 0
    %497 = vmatmul.mubr.bf16.gmra.mrb[0].mxu0 %v193
    %v498 = vpop.f32.mrb[0].mxu0
    %v499 = vadd.f32 0.0, %v498
    %v500 = vpop.f32.mrb[0].mxu0
    %v501 = vpop.f32.mrb[0].mxu0
    %v502 = vadd.f32 0.0, %v501
    %v503 = vpop.f32.mrb[0].mxu0
    %504 = vmatprep.mubr.bf16.mxu0 0
    %505 = vmatmul.mubr.bf16.gmra.mrb[0].mxu0 %v194
    %v506 = vpop.f32.mrb[0].mxu0
    %v507 = vadd.f32 0.0, %v506
    %v508 = vpop.f32.mrb[0].mxu0
    %v509 = vpop.f32.mrb[0].mxu0
    %v510 = vadd.f32 0.0, %v509
    %v511 = vpop.f32.mrb[0].mxu0
    %512 = vmatprep.mubr.bf16.mxu0 0
    %513 = vmatmul.mubr.bf16.gmra.mrb[0].mxu0 %v195
    %v514 = vpop.f32.mrb[0].mxu0
    %v515 = vadd.f32 0.0, %v514
    %v516 = vpop.f32.mrb[0].mxu0
    %v517 = vpop.f32.mrb[0].mxu0
    %v518 = vadd.f32 0.0, %v517
    %v519 = vpop.f32.mrb[0].mxu0
    %520 = vmatprep.mubr.bf16.mxu0 0
    %521 = vmatmul.mubr.bf16.gmra.mrb[0].mxu0 %v196
    %v522 = vpop.f32.mrb[0].mxu0
    %v523 = vadd.f32 0.0, %v522
    %v524 = vpop.f32.mrb[0].mxu0
    %v525 = vpop.f32.mrb[0].mxu0
    %v526 = vadd.f32 0.0, %v525
    %v527 = vpop.f32.mrb[0].mxu0
    %528 = vmatprep.mubr.bf16.mxu0 0
    %529 = vmatmul.mubr.bf16.gmra.mrb[0].mxu0 %v197
    %v530 = vpop.f32.mrb[0].mxu0
    %v531 = vadd.f32 0.0, %v530
    %v532 = vpop.f32.mrb[0].mxu0
    %v533 = vpop.f32.mrb[0].mxu0
    %v534 = vadd.f32 0.0, %v533
    %v535 = vpop.f32.mrb[0].mxu0
    %536 = vmatprep.mubr.bf16.mxu0 0
    %537 = vmatmul.mubr.bf16.gmra.mrb[0].mxu0 %v198
    %v538 = vpop.f32.mrb[0].mxu0
    %v539 = vadd.f32 0.0, %v538
    %v540 = vpop.f32.mrb[0].mxu0
    %v541 = vpop.f32.mrb[0].mxu0
    %v542 = vadd.f32 0.0, %v541
    %v543 = vpop.f32.mrb[0].mxu0
    %544 = vdwg.mxu0
    %v545 = vlaneseq
    %v546 = vshrl.u32 %v545, 7
    %v547 = vadd.s32 %v546, 8
    %v548 = vadd.s32 %v546, 16
    %v549 = vadd.s32 %v546, 24
    %v550 = vlaneseq
    %v551 = vand.u32 %v550, 127
    %vm552 = vcmp.ge.s32.totalorder %v546, %v551
    %vm553 = vcmp.ge.s32.totalorder %v547, %v551
    %vm554 = vcmp.ge.s32.totalorder %v548, %v551
    %vm555 = vcmp.ge.s32.totalorder %v549, %v551
    %v556 = vsel %vm552, 0.0, -1e+30
    %v557 = vsel %vm553, 0.0, -1e+30
    %v558 = vsel %vm554, 0.0, -1e+30
    %v559 = vsel %vm555, 0.0, -1e+30
    %v560 = vpack.c.bf16 %v374, %v370
    %v561 = vpack.c.bf16 %v384, %v380
    %v562 = vpack.c.bf16 %v394, %v390
    %v563 = vpack.c.bf16 %v404, %v400
    %v564 = vpack.c.bf16 %v414, %v410
    %v565 = vpack.c.bf16 %v424, %v420
    %v566 = vpack.c.bf16 %v434, %v430
    %v567 = vpack.c.bf16 %v444, %v440
    %v568 = vpack.c.bf16 %v376, %v372
    %v569 = vpack.c.bf16 %v386, %v382
    %v570 = vpack.c.bf16 %v396, %v392
    %v571 = vpack.c.bf16 %v406, %v402
    %v572 = vpack.c.bf16 %v416, %v412
    %v573 = vpack.c.bf16 %v426, %v422
    %v574 = vpack.c.bf16 %v436, %v432
    %v575 = vpack.c.bf16 %v446, %v442
    %v576 = vpack.c.bf16 %v486, %v483
    %v577 = vpack.c.bf16 %v494, %v491
    %v578 = vpack.c.bf16 %v502, %v499
    %v579 = vpack.c.bf16 %v510, %v507
    %v580 = vpack.c.bf16 %v518, %v515
    %v581 = vpack.c.bf16 %v526, %v523
    %v582 = vpack.c.bf16 %v534, %v531
    %v583 = vpack.c.bf16 %v542, %v539
    %vm584 = vcmask 261120
    %v586 = vsel %vm584, %v560, 0
    %v589 = vsel %vm584, %v561, 0
    %v592 = vsel %vm584, %v568, 0
    %v595 = vsel %vm584, %v569, 0
    %597 = vmatprep.subr.bf16.mxu0 0
    %598 = vmatpush1.bf16.xpose.msra.mxu0 %v592
    %599 = vmatprep.subr.bf16.mxu0 0
    %600 = vmatpush1.bf16.xpose.msra.mxu0 %v595
    %601 = vmatprep.subr.bf16.mxu0 0
    %602 = vmatpush1.bf16.xpose.msra.mxu0 0
    %603 = vmatprep.subr.bf16.mxu0 0
    %604 = vmatpush1.bf16.xpose.msra.mxu0 0
    %605 = vmatprep.subr.bf16.mxu0 0
    %606 = vmatpush1.bf16.xpose.msra.mxu0 0
    %607 = vmatprep.subr.bf16.mxu0 0
    %608 = vmatpush1.bf16.xpose.msra.mxu0 0
    %609 = vmatprep.subr.bf16.mxu0 0
    %610 = vmatpush1.bf16.xpose.msra.mxu0 0
    %611 = vmatprep.subr.bf16.mxu0 0
    %612 = vmatpush1.bf16.xpose.msra.mxu0 0
    %613 = vmatprep.subr.bf16.mxu0 0
    %614 = vmatpush1.bf16.xpose.msra.mxu0 0
    %615 = vmatprep.subr.bf16.mxu0 0
    %616 = vmatpush1.bf16.xpose.msra.mxu0 0
    %617 = vmatprep.subr.bf16.mxu0 0
    %618 = vmatpush1.bf16.xpose.msra.mxu0 0
    %619 = vmatprep.subr.bf16.mxu0 0
    %620 = vmatpush1.bf16.xpose.msra.mxu0 0
    %621 = vmatprep.subr.bf16.mxu0 0
    %622 = vmatpush1.bf16.xpose.msra.mxu0 0
    %623 = vmatprep.subr.bf16.mxu0 0
    %624 = vmatpush1.bf16.xpose.msra.mxu0 0
    %625 = vmatprep.subr.bf16.mxu0 0
    %626 = vmatpush1.bf16.xpose.msra.mxu0 0
    %627 = vmatprep.subr.bf16.mxu0 0
    %628 = vmatpush1.bf16.xpose.msra.mxu0 0
    %629 = vmatprep.mubr.bf16.mxu0 0
    %630 = vmatmul.mubr.bf16.gmra.mrb[0].mxu0 %v586
    %v631 = vpop.f32.mrb[0].mxu0
    %v632 = vadd.f32 0.0, %v631
    %v633 = vpop.f32.mrb[0].mxu0
    %v634 = vpop.f32.mrb[0].mxu0
    %v635 = vadd.f32 0.0, %v634
    %v636 = vpop.f32.mrb[0].mxu0
    %637 = vmatprep.mubr.bf16.mxu0 0
    %638 = vmatmul.mubr.bf16.gmra.mrb[0].mxu0 %v589
    %v639 = vpop.f32.mrb[0].mxu0
    %v640 = vadd.f32 0.0, %v639
    %v641 = vpop.f32.mrb[0].mxu0
    %v642 = vpop.f32.mrb[0].mxu0
    %v643 = vadd.f32 0.0, %v642
    %v644 = vpop.f32.mrb[0].mxu0
    %645 = vdwg.mxu0
    %v647 = vsel %vm584, %v562, 0
    %v650 = vsel %vm584, %v563, 0
    %v653 = vsel %vm584, %v570, 0
    %v656 = vsel %vm584, %v571, 0
    %658 = vmatprep.subr.bf16.mxu0 0
    %659 = vmatpush1.bf16.xpose.msra.mxu0 %v653
    %660 = vmatprep.subr.bf16.mxu0 0
    %661 = vmatpush1.bf16.xpose.msra.mxu0 %v656
    %662 = vmatprep.subr.bf16.mxu0 0
    %663 = vmatpush1.bf16.xpose.msra.mxu0 0
    %664 = vmatprep.subr.bf16.mxu0 0
    %665 = vmatpush1.bf16.xpose.msra.mxu0 0
    %666 = vmatprep.subr.bf16.mxu0 0
    %667 = vmatpush1.bf16.xpose.msra.mxu0 0
    %668 = vmatprep.subr.bf16.mxu0 0
    %669 = vmatpush1.bf16.xpose.msra.mxu0 0
    %670 = vmatprep.subr.bf16.mxu0 0
    %671 = vmatpush1.bf16.xpose.msra.mxu0 0
    %672 = vmatprep.subr.bf16.mxu0 0
    %673 = vmatpush1.bf16.xpose.msra.mxu0 0
    %674 = vmatprep.subr.bf16.mxu0 0
    %675 = vmatpush1.bf16.xpose.msra.mxu0 0
    %676 = vmatprep.subr.bf16.mxu0 0
    %677 = vmatpush1.bf16.xpose.msra.mxu0 0
    %678 = vmatprep.subr.bf16.mxu0 0
    %679 = vmatpush1.bf16.xpose.msra.mxu0 0
    %680 = vmatprep.subr.bf16.mxu0 0
    %681 = vmatpush1.bf16.xpose.msra.mxu0 0
    %682 = vmatprep.subr.bf16.mxu0 0
    %683 = vmatpush1.bf16.xpose.msra.mxu0 0
    %684 = vmatprep.subr.bf16.mxu0 0
    %685 = vmatpush1.bf16.xpose.msra.mxu0 0
    %686 = vmatprep.subr.bf16.mxu0 0
    %687 = vmatpush1.bf16.xpose.msra.mxu0 0
    %688 = vmatprep.subr.bf16.mxu0 0
    %689 = vmatpush1.bf16.xpose.msra.mxu0 0
    %690 = vmatprep.mubr.bf16.mxu0 0
    %691 = vmatmul.mubr.bf16.gmra.mrb[0].mxu0 %v647
    %v692 = vpop.f32.mrb[0].mxu0
    %v693 = vadd.f32 0.0, %v692
    %v694 = vpop.f32.mrb[0].mxu0
    %v695 = vpop.f32.mrb[0].mxu0
    %v696 = vadd.f32 0.0, %v695
    %v697 = vpop.f32.mrb[0].mxu0
    %698 = vmatprep.mubr.bf16.mxu0 0
    %699 = vmatmul.mubr.bf16.gmra.mrb[0].mxu0 %v650
    %v700 = vpop.f32.mrb[0].mxu0
    %v701 = vadd.f32 0.0, %v700
    %v702 = vpop.f32.mrb[0].mxu0
    %v703 = vpop.f32.mrb[0].mxu0
    %v704 = vadd.f32 0.0, %v703
    %v705 = vpop.f32.mrb[0].mxu0
    %706 = vdwg.mxu0
    %v708 = vsel %vm584, %v564, 0
    %v711 = vsel %vm584, %v565, 0
    %v714 = vsel %vm584, %v572, 0
    %v717 = vsel %vm584, %v573, 0
    %719 = vmatprep.subr.bf16.mxu0 0
    %720 = vmatpush1.bf16.xpose.msra.mxu0 %v714
    %721 = vmatprep.subr.bf16.mxu0 0
    %722 = vmatpush1.bf16.xpose.msra.mxu0 %v717
    %723 = vmatprep.subr.bf16.mxu0 0
    %724 = vmatpush1.bf16.xpose.msra.mxu0 0
    %725 = vmatprep.subr.bf16.mxu0 0
    %726 = vmatpush1.bf16.xpose.msra.mxu0 0
    %727 = vmatprep.subr.bf16.mxu0 0
    %728 = vmatpush1.bf16.xpose.msra.mxu0 0
    %729 = vmatprep.subr.bf16.mxu0 0
    %730 = vmatpush1.bf16.xpose.msra.mxu0 0
    %731 = vmatprep.subr.bf16.mxu0 0
    %732 = vmatpush1.bf16.xpose.msra.mxu0 0
    %733 = vmatprep.subr.bf16.mxu0 0
    %734 = vmatpush1.bf16.xpose.msra.mxu0 0
    %735 = vmatprep.subr.bf16.mxu0 0
    %736 = vmatpush1.bf16.xpose.msra.mxu0 0
    %737 = vmatprep.subr.bf16.mxu0 0
    %738 = vmatpush1.bf16.xpose.msra.mxu0 0
    %739 = vmatprep.subr.bf16.mxu0 0
    %740 = vmatpush1.bf16.xpose.msra.mxu0 0
    %741 = vmatprep.subr.bf16.mxu0 0
    %742 = vmatpush1.bf16.xpose.msra.mxu0 0
    %743 = vmatprep.subr.bf16.mxu0 0
    %744 = vmatpush1.bf16.xpose.msra.mxu0 0
    %745 = vmatprep.subr.bf16.mxu0 0
    %746 = vmatpush1.bf16.xpose.msra.mxu0 0
    %747 = vmatprep.subr.bf16.mxu0 0
    %748 = vmatpush1.bf16.xpose.msra.mxu0 0
    %749 = vmatprep.subr.bf16.mxu0 0
    %750 = vmatpush1.bf16.xpose.msra.mxu0 0
    %751 = vmatprep.mubr.bf16.mxu0 0
    %752 = vmatmul.mubr.bf16.gmra.mrb[0].mxu0 %v708
    %v753 = vpop.f32.mrb[0].mxu0
    %v754 = vadd.f32 0.0, %v753
    %v755 = vpop.f32.mrb[0].mxu0
    %v756 = vpop.f32.mrb[0].mxu0
    %v757 = vadd.f32 0.0, %v756
    %v758 = vpop.f32.mrb[0].mxu0
    %759 = vmatprep.mubr.bf16.mxu0 0
    %760 = vmatmul.mubr.bf16.gmra.mrb[0].mxu0 %v711
    %v761 = vpop.f32.mrb[0].mxu0
    %v762 = vadd.f32 0.0, %v761
    %v763 = vpop.f32.mrb[0].mxu0
    %v764 = vpop.f32.mrb[0].mxu0
    %v765 = vadd.f32 0.0, %v764
    %v766 = vpop.f32.mrb[0].mxu0
    %767 = vdwg.mxu0
    %v769 = vsel %vm584, %v566, 0
    %v772 = vsel %vm584, %v567, 0
    %v775 = vsel %vm584, %v574, 0
    %v778 = vsel %vm584, %v575, 0
    %780 = vmatprep.subr.bf16.mxu0 0
    %781 = vmatpush1.bf16.xpose.msra.mxu0 %v775
    %782 = vmatprep.subr.bf16.mxu0 0
    %783 = vmatpush1.bf16.xpose.msra.mxu0 %v778
    %784 = vmatprep.subr.bf16.mxu0 0
    %785 = vmatpush1.bf16.xpose.msra.mxu0 0
    %786 = vmatprep.subr.bf16.mxu0 0
    %787 = vmatpush1.bf16.xpose.msra.mxu0 0
    %788 = vmatprep.subr.bf16.mxu0 0
    %789 = vmatpush1.bf16.xpose.msra.mxu0 0
    %790 = vmatprep.subr.bf16.mxu0 0
    %791 = vmatpush1.bf16.xpose.msra.mxu0 0
    %792 = vmatprep.subr.bf16.mxu0 0
    %793 = vmatpush1.bf16.xpose.msra.mxu0 0
    %794 = vmatprep.subr.bf16.mxu0 0
    %795 = vmatpush1.bf16.xpose.msra.mxu0 0
    %796 = vmatprep.subr.bf16.mxu0 0
    %797 = vmatpush1.bf16.xpose.msra.mxu0 0
    %798 = vmatprep.subr.bf16.mxu0 0
    %799 = vmatpush1.bf16.xpose.msra.mxu0 0
    %800 = vmatprep.subr.bf16.mxu0 0
    %801 = vmatpush1.bf16.xpose.msra.mxu0 0
    %802 = vmatprep.subr.bf16.mxu0 0
    %803 = vmatpush1.bf16.xpose.msra.mxu0 0
    %804 = vmatprep.subr.bf16.mxu0 0
    %805 = vmatpush1.bf16.xpose.msra.mxu0 0
    %806 = vmatprep.subr.bf16.mxu0 0
    %807 = vmatpush1.bf16.xpose.msra.mxu0 0
    %808 = vmatprep.subr.bf16.mxu0 0
    %809 = vmatpush1.bf16.xpose.msra.mxu0 0
    %810 = vmatprep.subr.bf16.mxu0 0
    %811 = vmatpush1.bf16.xpose.msra.mxu0 0
    %812 = vmatprep.mubr.bf16.mxu0 0
    %813 = vmatmul.mubr.bf16.gmra.mrb[0].mxu0 %v769
    %v814 = vpop.f32.mrb[0].mxu0
    %v815 = vadd.f32 0.0, %v814
    %v816 = vpop.f32.mrb[0].mxu0
    %v817 = vpop.f32.mrb[0].mxu0
    %v818 = vadd.f32 0.0, %v817
    %v819 = vpop.f32.mrb[0].mxu0
    %820 = vmatprep.mubr.bf16.mxu0 0
    %821 = vmatmul.mubr.bf16.gmra.mrb[0].mxu0 %v772
    %v822 = vpop.f32.mrb[0].mxu0
    %v823 = vadd.f32 0.0, %v822
    %v824 = vpop.f32.mrb[0].mxu0
    %v825 = vpop.f32.mrb[0].mxu0
    %v826 = vadd.f32 0.0, %v825
    %v827 = vpop.f32.mrb[0].mxu0
    %828 = vdwg.mxu0
    %v829 = vmul.f32 %v632, 0.28867513
    %v830 = vmul.f32 %v635, 0.28867513
    %v831 = vmul.f32 %v640, 0.28867513
    %v832 = vmul.f32 %v643, 0.28867513
    %v833 = vmul.f32 %v693, 0.28867513
    %v834 = vmul.f32 %v696, 0.28867513
    %v835 = vmul.f32 %v701, 0.28867513
    %v836 = vmul.f32 %v704, 0.28867513
    %v837 = vmul.f32 %v754, 0.28867513
    %v838 = vmul.f32 %v757, 0.28867513
    %v839 = vmul.f32 %v762, 0.28867513
    %v840 = vmul.f32 %v765, 0.28867513
    %v841 = vmul.f32 %v815, 0.28867513
    %v842 = vmul.f32 %v818, 0.28867513
    %v843 = vmul.f32 %v823, 0.28867513
    %v844 = vmul.f32 %v826, 0.28867513
    %v845 = vadd.f32 %v829, %v556
    %v846 = vadd.f32 %v830, %v557
    %v847 = vadd.f32 %v831, %v558
    %v848 = vadd.f32 %v832, %v559
    %v849 = vadd.f32 %v833, %v556
    %v850 = vadd.f32 %v834, %v557
    %v851 = vadd.f32 %v835, %v558
    %v852 = vadd.f32 %v836, %v559
    %v853 = vadd.f32 %v837, %v556
    %v854 = vadd.f32 %v838, %v557
    %v855 = vadd.f32 %v839, %v558
    %v856 = vadd.f32 %v840, %v559
    %v857 = vadd.f32 %v841, %v556
    %v858 = vadd.f32 %v842, %v557
    %v859 = vadd.f32 %v843, %v558
    %v860 = vadd.f32 %v844, %v559
    %v861 = vsel %vm584, %v845, -inf
    %862 = vmax.xlane.f32.xlu0 %v861
    %v863 = vpop.xlane.xlu0 %862
    %v864 = vsel %vm584, %v846, -inf
    %865 = vmax.xlane.f32.xlu0 %v864
    %v866 = vpop.xlane.xlu0 %865
    %v867 = vsel %vm584, %v847, -inf
    %868 = vmax.xlane.f32.xlu0 %v867
    %v869 = vpop.xlane.xlu0 %868
    %v870 = vsel %vm584, %v848, -inf
    %871 = vmax.xlane.f32.xlu0 %v870
    %v872 = vpop.xlane.xlu0 %871
    %v873 = vsel %vm584, %v849, -inf
    %874 = vmax.xlane.f32.xlu0 %v873
    %v875 = vpop.xlane.xlu0 %874
    %v876 = vsel %vm584, %v850, -inf
    %877 = vmax.xlane.f32.xlu0 %v876
    %v878 = vpop.xlane.xlu0 %877
    %v879 = vsel %vm584, %v851, -inf
    %880 = vmax.xlane.f32.xlu0 %v879
    %v881 = vpop.xlane.xlu0 %880
    %v882 = vsel %vm584, %v852, -inf
    %883 = vmax.xlane.f32.xlu0 %v882
    %v884 = vpop.xlane.xlu0 %883
    %v885 = vsel %vm584, %v853, -inf
    %886 = vmax.xlane.f32.xlu0 %v885
    %v887 = vpop.xlane.xlu0 %886
    %v888 = vsel %vm584, %v854, -inf
    %889 = vmax.xlane.f32.xlu0 %v888
    %v890 = vpop.xlane.xlu0 %889
    %v891 = vsel %vm584, %v855, -inf
    %892 = vmax.xlane.f32.xlu0 %v891
    %v893 = vpop.xlane.xlu0 %892
    %v894 = vsel %vm584, %v856, -inf
    %895 = vmax.xlane.f32.xlu0 %v894
    %v896 = vpop.xlane.xlu0 %895
    %v897 = vsel %vm584, %v857, -inf
    %898 = vmax.xlane.f32.xlu0 %v897
    %v899 = vpop.xlane.xlu0 %898
    %v900 = vsel %vm584, %v858, -inf
    %901 = vmax.xlane.f32.xlu0 %v900
    %v902 = vpop.xlane.xlu0 %901
    %v903 = vsel %vm584, %v859, -inf
    %904 = vmax.xlane.f32.xlu0 %v903
    %v905 = vpop.xlane.xlu0 %904
    %v906 = vsel %vm584, %v860, -inf
    %907 = vmax.xlane.f32.xlu0 %v906
    %v908 = vpop.xlane.xlu0 %907
    %v909 = vsub.f32 %v845, %v863
    %v910 = vsub.f32 %v846, %v866
    %v911 = vsub.f32 %v847, %v869
    %v912 = vsub.f32 %v848, %v872
    %v913 = vsub.f32 %v849, %v875
    %v914 = vsub.f32 %v850, %v878
    %v915 = vsub.f32 %v851, %v881
    %v916 = vsub.f32 %v852, %v884
    %v917 = vsub.f32 %v853, %v887
    %v918 = vsub.f32 %v854, %v890
    %v919 = vsub.f32 %v855, %v893
    %v920 = vsub.f32 %v856, %v896
    %v921 = vsub.f32 %v857, %v899
    %v922 = vsub.f32 %v858, %v902
    %v923 = vsub.f32 %v859, %v905
    %v924 = vsub.f32 %v860, %v908
    %v925 = vmul.f32 %v909, 1.442695
    %v926 = vpow.pop %v925
    %v927 = vmul.f32 %v910, 1.442695
    %v928 = vpow.pop %v927
    %v929 = vmul.f32 %v911, 1.442695
    %v930 = vpow.pop %v929
    %v931 = vmul.f32 %v912, 1.442695
    %v932 = vpow.pop %v931
    %v933 = vmul.f32 %v913, 1.442695
    %v934 = vpow.pop %v933
    %v935 = vmul.f32 %v914, 1.442695
    %v936 = vpow.pop %v935
    %v937 = vmul.f32 %v915, 1.442695
    %v938 = vpow.pop %v937
    %v939 = vmul.f32 %v916, 1.442695
    %v940 = vpow.pop %v939
    %v941 = vmul.f32 %v917, 1.442695
    %v942 = vpow.pop %v941
    %v943 = vmul.f32 %v918, 1.442695
    %v944 = vpow.pop %v943
    %v945 = vmul.f32 %v919, 1.442695
    %v946 = vpow.pop %v945
    %v947 = vmul.f32 %v920, 1.442695
    %v948 = vpow.pop %v947
    %v949 = vmul.f32 %v921, 1.442695
    %v950 = vpow.pop %v949
    %v951 = vmul.f32 %v922, 1.442695
    %v952 = vpow.pop %v951
    %v953 = vmul.f32 %v923, 1.442695
    %v954 = vpow.pop %v953
    %v955 = vmul.f32 %v924, 1.442695
    %v956 = vpow.pop %v955
    %v957 = vsel %vm584, %v926, 0.0
    %958 = vadd.xlane.f32.xlu0 %v957
    %v959 = vpop.xlane.xlu0 %958
    %v960 = vsel %vm584, %v928, 0.0
    %961 = vadd.xlane.f32.xlu0 %v960
    %v962 = vpop.xlane.xlu0 %961
    %v963 = vsel %vm584, %v930, 0.0
    %964 = vadd.xlane.f32.xlu0 %v963
    %v965 = vpop.xlane.xlu0 %964
    %v966 = vsel %vm584, %v932, 0.0
    %967 = vadd.xlane.f32.xlu0 %v966
    %v968 = vpop.xlane.xlu0 %967
    %v969 = vsel %vm584, %v934, 0.0
    %970 = vadd.xlane.f32.xlu0 %v969
    %v971 = vpop.xlane.xlu0 %970
    %v972 = vsel %vm584, %v936, 0.0
    %973 = vadd.xlane.f32.xlu0 %v972
    %v974 = vpop.xlane.xlu0 %973
    %v975 = vsel %vm584, %v938, 0.0
    %976 = vadd.xlane.f32.xlu0 %v975
    %v977 = vpop.xlane.xlu0 %976
    %v978 = vsel %vm584, %v940, 0.0
    %979 = vadd.xlane.f32.xlu0 %v978
    %v980 = vpop.xlane.xlu0 %979
    %v981 = vsel %vm584, %v942, 0.0
    %982 = vadd.xlane.f32.xlu0 %v981
    %v983 = vpop.xlane.xlu0 %982
    %v984 = vsel %vm584, %v944, 0.0
    %985 = vadd.xlane.f32.xlu0 %v984
    %v986 = vpop.xlane.xlu0 %985
    %v987 = vsel %vm584, %v946, 0.0
    %988 = vadd.xlane.f32.xlu0 %v987
    %v989 = vpop.xlane.xlu0 %988
    %v990 = vsel %vm584, %v948, 0.0
    %991 = vadd.xlane.f32.xlu0 %v990
    %v992 = vpop.xlane.xlu0 %991
    %v993 = vsel %vm584, %v950, 0.0
    %994 = vadd.xlane.f32.xlu0 %v993
    %v995 = vpop.xlane.xlu0 %994
    %v996 = vsel %vm584, %v952, 0.0
    %997 = vadd.xlane.f32.xlu0 %v996
    %v998 = vpop.xlane.xlu0 %997
    %v999 = vsel %vm584, %v954, 0.0
    %1000 = vadd.xlane.f32.xlu0 %v999
    %v1001 = vpop.xlane.xlu0 %1000
    %v1002 = vsel %vm584, %v956, 0.0
    %1003 = vadd.xlane.f32.xlu0 %v1002
    %v1004 = vpop.xlane.xlu0 %1003
    %v1005 = vrcp.pop %v959
    %v1006 = vrcp.pop %v962
    %v1007 = vrcp.pop %v965
    %v1008 = vrcp.pop %v968
    %v1009 = vrcp.pop %v971
    %v1010 = vrcp.pop %v974
    %v1011 = vrcp.pop %v977
    %v1012 = vrcp.pop %v980
    %v1013 = vrcp.pop %v983
    %v1014 = vrcp.pop %v986
    %v1015 = vrcp.pop %v989
    %v1016 = vrcp.pop %v992
    %v1017 = vrcp.pop %v995
    %v1018 = vrcp.pop %v998
    %v1019 = vrcp.pop %v1001
    %v1020 = vrcp.pop %v1004
    %v1021 = vmul.f32 %v926, %v1005
    %v1022 = vmul.f32 %v928, %v1006
    %v1023 = vmul.f32 %v930, %v1007
    %v1024 = vmul.f32 %v932, %v1008
    %v1025 = vmul.f32 %v934, %v1009
    %v1026 = vmul.f32 %v936, %v1010
    %v1027 = vmul.f32 %v938, %v1011
    %v1028 = vmul.f32 %v940, %v1012
    %v1029 = vmul.f32 %v942, %v1013
    %v1030 = vmul.f32 %v944, %v1014
    %v1031 = vmul.f32 %v946, %v1015
    %v1032 = vmul.f32 %v948, %v1016
    %v1033 = vmul.f32 %v950, %v1017
    %v1034 = vmul.f32 %v952, %v1018
    %v1035 = vmul.f32 %v954, %v1019
    %v1036 = vmul.f32 %v956, %v1020
    %v1037 = vpack.c.bf16 %v1022, %v1021
    %v1038 = vpack.c.bf16 %v1024, %v1023
    %v1039 = vpack.c.bf16 %v1026, %v1025
    %v1040 = vpack.c.bf16 %v1028, %v1027
    %v1041 = vpack.c.bf16 %v1030, %v1029
    %v1042 = vpack.c.bf16 %v1032, %v1031
    %v1043 = vpack.c.bf16 %v1034, %v1033
    %v1044 = vpack.c.bf16 %v1036, %v1035
    %v1046 = vsel %vm584, %v1037, 0
    %v1049 = vsel %vm584, %v1038, 0
    %1051 = vmatprep.subr.bf16.mxu0 0
    %1052 = vmatpush1.bf16.msra.mxu0 %v576
    %1053 = vmatprep.subr.bf16.mxu0 0
    %1054 = vmatpush1.bf16.msra.mxu0 %v577
    %1055 = vmatprep.subr.bf16.mxu0 0
    %1056 = vmatpush1.bf16.msra.mxu0 0
    %1057 = vmatprep.subr.bf16.mxu0 0
    %1058 = vmatpush1.bf16.msra.mxu0 0
    %1059 = vmatprep.subr.bf16.mxu0 0
    %1060 = vmatpush1.bf16.msra.mxu0 0
    %1061 = vmatprep.subr.bf16.mxu0 0
    %1062 = vmatpush1.bf16.msra.mxu0 0
    %1063 = vmatprep.subr.bf16.mxu0 0
    %1064 = vmatpush1.bf16.msra.mxu0 0
    %1065 = vmatprep.subr.bf16.mxu0 0
    %1066 = vmatpush1.bf16.msra.mxu0 0
    %1067 = vmatprep.subr.bf16.mxu0 0
    %1068 = vmatpush1.bf16.msra.mxu0 0
    %1069 = vmatprep.subr.bf16.mxu0 0
    %1070 = vmatpush1.bf16.msra.mxu0 0
    %1071 = vmatprep.subr.bf16.mxu0 0
    %1072 = vmatpush1.bf16.msra.mxu0 0
    %1073 = vmatprep.subr.bf16.mxu0 0
    %1074 = vmatpush1.bf16.msra.mxu0 0
    %1075 = vmatprep.subr.bf16.mxu0 0
    %1076 = vmatpush1.bf16.msra.mxu0 0
    %1077 = vmatprep.subr.bf16.mxu0 0
    %1078 = vmatpush1.bf16.msra.mxu0 0
    %1079 = vmatprep.subr.bf16.mxu0 0
    %1080 = vmatpush1.bf16.msra.mxu0 0
    %1081 = vmatprep.subr.bf16.mxu0 0
    %1082 = vmatpush1.bf16.msra.mxu0 0
    %1083 = vmatprep.mubr.bf16.mxu0 0
    %1084 = vmatmul.mubr.bf16.gmra.mrb[0].mxu0 %v1046
    %v1085 = vpop.f32.mrb[0].mxu0
    %v1086 = vadd.f32 0.0, %v1085
    %v1087 = vpop.f32.mrb[0].mxu0
    %v1088 = vpop.f32.mrb[0].mxu0
    %v1089 = vadd.f32 0.0, %v1088
    %v1090 = vpop.f32.mrb[0].mxu0
    %1091 = vmatprep.mubr.bf16.mxu0 0
    %1092 = vmatmul.mubr.bf16.gmra.mrb[0].mxu0 %v1049
    %v1093 = vpop.f32.mrb[0].mxu0
    %v1094 = vadd.f32 0.0, %v1093
    %v1095 = vpop.f32.mrb[0].mxu0
    %v1096 = vpop.f32.mrb[0].mxu0
    %v1097 = vadd.f32 0.0, %v1096
    %v1098 = vpop.f32.mrb[0].mxu0
    %1099 = vdwg.mxu0
    %v1101 = vsel %vm584, %v1039, 0
    %v1104 = vsel %vm584, %v1040, 0
    %1106 = vmatprep.subr.bf16.mxu0 0
    %1107 = vmatpush1.bf16.msra.mxu0 %v578
    %1108 = vmatprep.subr.bf16.mxu0 0
    %1109 = vmatpush1.bf16.msra.mxu0 %v579
    %1110 = vmatprep.subr.bf16.mxu0 0
    %1111 = vmatpush1.bf16.msra.mxu0 0
    %1112 = vmatprep.subr.bf16.mxu0 0
    %1113 = vmatpush1.bf16.msra.mxu0 0
    %1114 = vmatprep.subr.bf16.mxu0 0
    %1115 = vmatpush1.bf16.msra.mxu0 0
    %1116 = vmatprep.subr.bf16.mxu0 0
    %1117 = vmatpush1.bf16.msra.mxu0 0
    %1118 = vmatprep.subr.bf16.mxu0 0
    %1119 = vmatpush1.bf16.msra.mxu0 0
    %1120 = vmatprep.subr.bf16.mxu0 0
    %1121 = vmatpush1.bf16.msra.mxu0 0
    %1122 = vmatprep.subr.bf16.mxu0 0
    %1123 = vmatpush1.bf16.msra.mxu0 0
    %1124 = vmatprep.subr.bf16.mxu0 0
    %1125 = vmatpush1.bf16.msra.mxu0 0
    %1126 = vmatprep.subr.bf16.mxu0 0
    %1127 = vmatpush1.bf16.msra.mxu0 0
    %1128 = vmatprep.subr.bf16.mxu0 0
    %1129 = vmatpush1.bf16.msra.mxu0 0
    %1130 = vmatprep.subr.bf16.mxu0 0
    %1131 = vmatpush1.bf16.msra.mxu0 0
    %1132 = vmatprep.subr.bf16.mxu0 0
    %1133 = vmatpush1.bf16.msra.mxu0 0
    %1134 = vmatprep.subr.bf16.mxu0 0
    %1135 = vmatpush1.bf16.msra.mxu0 0
    %1136 = vmatprep.subr.bf16.mxu0 0
    %1137 = vmatpush1.bf16.msra.mxu0 0
    %1138 = vmatprep.mubr.bf16.mxu0 0
    %1139 = vmatmul.mubr.bf16.gmra.mrb[0].mxu0 %v1101
    %v1140 = vpop.f32.mrb[0].mxu0
    %v1141 = vadd.f32 0.0, %v1140
    %v1142 = vpop.f32.mrb[0].mxu0
    %v1143 = vpop.f32.mrb[0].mxu0
    %v1144 = vadd.f32 0.0, %v1143
    %v1145 = vpop.f32.mrb[0].mxu0
    %1146 = vmatprep.mubr.bf16.mxu0 0
    %1147 = vmatmul.mubr.bf16.gmra.mrb[0].mxu0 %v1104
    %v1148 = vpop.f32.mrb[0].mxu0
    %v1149 = vadd.f32 0.0, %v1148
    %v1150 = vpop.f32.mrb[0].mxu0
    %v1151 = vpop.f32.mrb[0].mxu0
    %v1152 = vadd.f32 0.0, %v1151
    %v1153 = vpop.f32.mrb[0].mxu0
    %1154 = vdwg.mxu0
    %v1156 = vsel %vm584, %v1041, 0
    %v1159 = vsel %vm584, %v1042, 0
    %1161 = vmatprep.subr.bf16.mxu0 0
    %1162 = vmatpush1.bf16.msra.mxu0 %v580
    %1163 = vmatprep.subr.bf16.mxu0 0
    %1164 = vmatpush1.bf16.msra.mxu0 %v581
    %1165 = vmatprep.subr.bf16.mxu0 0
    %1166 = vmatpush1.bf16.msra.mxu0 0
    %1167 = vmatprep.subr.bf16.mxu0 0
    %1168 = vmatpush1.bf16.msra.mxu0 0
    %1169 = vmatprep.subr.bf16.mxu0 0
    %1170 = vmatpush1.bf16.msra.mxu0 0
    %1171 = vmatprep.subr.bf16.mxu0 0
    %1172 = vmatpush1.bf16.msra.mxu0 0
    %1173 = vmatprep.subr.bf16.mxu0 0
    %1174 = vmatpush1.bf16.msra.mxu0 0
    %1175 = vmatprep.subr.bf16.mxu0 0
    %1176 = vmatpush1.bf16.msra.mxu0 0
    %1177 = vmatprep.subr.bf16.mxu0 0
    %1178 = vmatpush1.bf16.msra.mxu0 0
    %1179 = vmatprep.subr.bf16.mxu0 0
    %1180 = vmatpush1.bf16.msra.mxu0 0
    %1181 = vmatprep.subr.bf16.mxu0 0
    %1182 = vmatpush1.bf16.msra.mxu0 0
    %1183 = vmatprep.subr.bf16.mxu0 0
    %1184 = vmatpush1.bf16.msra.mxu0 0
    %1185 = vmatprep.subr.bf16.mxu0 0
    %1186 = vmatpush1.bf16.msra.mxu0 0
    %1187 = vmatprep.subr.bf16.mxu0 0
    %1188 = vmatpush1.bf16.msra.mxu0 0
    %1189 = vmatprep.subr.bf16.mxu0 0
    %1190 = vmatpush1.bf16.msra.mxu0 0
    %1191 = vmatprep.subr.bf16.mxu0 0
    %1192 = vmatpush1.bf16.msra.mxu0 0
    %1193 = vmatprep.mubr.bf16.mxu0 0
    %1194 = vmatmul.mubr.bf16.gmra.mrb[0].mxu0 %v1156
    %v1195 = vpop.f32.mrb[0].mxu0
    %v1196 = vadd.f32 0.0, %v1195
    %v1197 = vpop.f32.mrb[0].mxu0
    %v1198 = vpop.f32.mrb[0].mxu0
    %v1199 = vadd.f32 0.0, %v1198
    %v1200 = vpop.f32.mrb[0].mxu0
    %1201 = vmatprep.mubr.bf16.mxu0 0
    %1202 = vmatmul.mubr.bf16.gmra.mrb[0].mxu0 %v1159
    %v1203 = vpop.f32.mrb[0].mxu0
    %v1204 = vadd.f32 0.0, %v1203
    %v1205 = vpop.f32.mrb[0].mxu0
    %v1206 = vpop.f32.mrb[0].mxu0
    %v1207 = vadd.f32 0.0, %v1206
    %v1208 = vpop.f32.mrb[0].mxu0
    %1209 = vdwg.mxu0
    %v1211 = vsel %vm584, %v1043, 0
    %v1214 = vsel %vm584, %v1044, 0
    %1216 = vmatprep.subr.bf16.mxu0 0
    %1217 = vmatpush1.bf16.msra.mxu0 %v582
    %1218 = vmatprep.subr.bf16.mxu0 0
    %1219 = vmatpush1.bf16.msra.mxu0 %v583
    %1220 = vmatprep.subr.bf16.mxu0 0
    %1221 = vmatpush1.bf16.msra.mxu0 0
    %1222 = vmatprep.subr.bf16.mxu0 0
    %1223 = vmatpush1.bf16.msra.mxu0 0
    %1224 = vmatprep.subr.bf16.mxu0 0
    %1225 = vmatpush1.bf16.msra.mxu0 0
    %1226 = vmatprep.subr.bf16.mxu0 0
    %1227 = vmatpush1.bf16.msra.mxu0 0
    %1228 = vmatprep.subr.bf16.mxu0 0
    %1229 = vmatpush1.bf16.msra.mxu0 0
    %1230 = vmatprep.subr.bf16.mxu0 0
    %1231 = vmatpush1.bf16.msra.mxu0 0
    %1232 = vmatprep.subr.bf16.mxu0 0
    %1233 = vmatpush1.bf16.msra.mxu0 0
    %1234 = vmatprep.subr.bf16.mxu0 0
    %1235 = vmatpush1.bf16.msra.mxu0 0
    %1236 = vmatprep.subr.bf16.mxu0 0
    %1237 = vmatpush1.bf16.msra.mxu0 0
    %1238 = vmatprep.subr.bf16.mxu0 0
    %1239 = vmatpush1.bf16.msra.mxu0 0
    %1240 = vmatprep.subr.bf16.mxu0 0
    %1241 = vmatpush1.bf16.msra.mxu0 0
    %1242 = vmatprep.subr.bf16.mxu0 0
    %1243 = vmatpush1.bf16.msra.mxu0 0
    %1244 = vmatprep.subr.bf16.mxu0 0
    %1245 = vmatpush1.bf16.msra.mxu0 0
    %1246 = vmatprep.subr.bf16.mxu0 0
    %1247 = vmatpush1.bf16.msra.mxu0 0
    %1248 = vmatprep.mubr.bf16.mxu0 0
    %1249 = vmatmul.mubr.bf16.gmra.mrb[0].mxu0 %v1211
    %v1250 = vpop.f32.mrb[0].mxu0
    %v1251 = vadd.f32 0.0, %v1250
    %v1252 = vpop.f32.mrb[0].mxu0
    %v1253 = vpop.f32.mrb[0].mxu0
    %v1254 = vadd.f32 0.0, %v1253
    %v1255 = vpop.f32.mrb[0].mxu0
    %1256 = vmatprep.mubr.bf16.mxu0 0
    %1257 = vmatmul.mubr.bf16.gmra.mrb[0].mxu0 %v1214
    %v1258 = vpop.f32.mrb[0].mxu0
    %v1259 = vadd.f32 0.0, %v1258
    %v1260 = vpop.f32.mrb[0].mxu0
    %v1261 = vpop.f32.mrb[0].mxu0
    %v1262 = vadd.f32 0.0, %v1261
    %v1263 = vpop.f32.mrb[0].mxu0
    %1264 = vdwg.mxu0
    %v1265 = vpack.c.bf16 %v1089, %v1086
    %v1266 = vpack.c.bf16 %v1097, %v1094
    %v1267 = vpack.c.bf16 %v1144, %v1141
    %v1268 = vpack.c.bf16 %v1152, %v1149
    %v1269 = vpack.c.bf16 %v1199, %v1196
    %v1270 = vpack.c.bf16 %v1207, %v1204
    %v1271 = vpack.c.bf16 %v1254, %v1251
    %v1272 = vpack.c.bf16 %v1262, %v1259
    %1273 = vst.msk [vmem:[#allocation2] sm:$0xff] %vm584, %v1265
    %1274 = vst.msk [vmem:[#allocation2 + $0x8] sm:$0xff] %vm584, %v1266
    %1275 = vst.msk [vmem:[#allocation2 + $0x10] sm:$0xff] %vm584, %v1267
    %1276 = vst.msk [vmem:[#allocation2 + $0x18] sm:$0xff] %vm584, %v1268
    %1277 = vst.msk [vmem:[#allocation2 + $0x20] sm:$0xff] %vm584, %v1269
    %1278 = vst.msk [vmem:[#allocation2 + $0x28] sm:$0xff] %vm584, %v1270
    %1279 = vst.msk [vmem:[#allocation2 + $0x30] sm:$0xff] %vm584, %v1271
    %1280 = vst.msk [vmem:[#allocation2 + $0x38] sm:$0xff] %vm584, %v1272
    %1283 = vrot.lane.b32.xlu0 %v560, 96
    %v1284 = vpop.permute.xlu0 %1283
    %1285 = vrot.lane.b32.xlu0 %v561, 96
    %v1286 = vpop.permute.xlu0 %1285
    %1289 = vrot.lane.b32.xlu0 %v568, 96
    %v1290 = vpop.permute.xlu0 %1289
    %1291 = vrot.lane.b32.xlu0 %v569, 96
    %v1292 = vpop.permute.xlu0 %1291
    %v1294 = vsel %vm584, %v1284, 0
    %v1297 = vsel %vm584, %v1286, 0
    %v1300 = vsel %vm584, %v1290, 0
    %v1303 = vsel %vm584, %v1292, 0
    %1305 = vmatprep.subr.bf16.mxu0 0
    %1306 = vmatpush1.bf16.xpose.msra.mxu0 %v1300
    %1307 = vmatprep.subr.bf16.mxu0 0
    %1308 = vmatpush1.bf16.xpose.msra.mxu0 %v1303
    %1309 = vmatprep.subr.bf16.mxu0 0
    %1310 = vmatpush1.bf16.xpose.msra.mxu0 0
    %1311 = vmatprep.subr.bf16.mxu0 0
    %1312 = vmatpush1.bf16.xpose.msra.mxu0 0
    %1313 = vmatprep.subr.bf16.mxu0 0
    %1314 = vmatpush1.bf16.xpose.msra.mxu0 0
    %1315 = vmatprep.subr.bf16.mxu0 0
    %1316 = vmatpush1.bf16.xpose.msra.mxu0 0
    %1317 = vmatprep.subr.bf16.mxu0 0
    %1318 = vmatpush1.bf16.xpose.msra.mxu0 0
    %1319 = vmatprep.subr.bf16.mxu0 0
    %1320 = vmatpush1.bf16.xpose.msra.mxu0 0
    %1321 = vmatprep.subr.bf16.mxu0 0
    %1322 = vmatpush1.bf16.xpose.msra.mxu0 0
    %1323 = vmatprep.subr.bf16.mxu0 0
    %1324 = vmatpush1.bf16.xpose.msra.mxu0 0
    %1325 = vmatprep.subr.bf16.mxu0 0
    %1326 = vmatpush1.bf16.xpose.msra.mxu0 0
    %1327 = vmatprep.subr.bf16.mxu0 0
    %1328 = vmatpush1.bf16.xpose.msra.mxu0 0
    %1329 = vmatprep.subr.bf16.mxu0 0
    %1330 = vmatpush1.bf16.xpose.msra.mxu0 0
    %1331 = vmatprep.subr.bf16.mxu0 0
    %1332 = vmatpush1.bf16.xpose.msra.mxu0 0
    %1333 = vmatprep.subr.bf16.mxu0 0
    %1334 = vmatpush1.bf16.xpose.msra.mxu0 0
    %1335 = vmatprep.subr.bf16.mxu0 0
    %1336 = vmatpush1.bf16.xpose.msra.mxu0 0
    %1337 = vmatprep.mubr.bf16.mxu0 0
    %1338 = vmatmul.mubr.bf16.gmra.mrb[0].mxu0 %v1294
    %v1339 = vpop.f32.mrb[0].mxu0
    %v1340 = vadd.f32 0.0, %v1339
    %v1341 = vpop.f32.mrb[0].mxu0
    %v1342 = vpop.f32.mrb[0].mxu0
    %v1343 = vadd.f32 0.0, %v1342
    %v1344 = vpop.f32.mrb[0].mxu0
    %1345 = vmatprep.mubr.bf16.mxu0 0
    %1346 = vmatmul.mubr.bf16.gmra.mrb[0].mxu0 %v1297
    %v1347 = vpop.f32.mrb[0].mxu0
    %v1348 = vadd.f32 0.0, %v1347
    %v1349 = vpop.f32.mrb[0].mxu0
    %v1350 = vpop.f32.mrb[0].mxu0
    %v1351 = vadd.f32 0.0, %v1350
    %v1352 = vpop.f32.mrb[0].mxu0
    %1353 = vdwg.mxu0
    %1356 = vrot.lane.b32.xlu0 %v562, 96
    %v1357 = vpop.permute.xlu0 %1356
    %1358 = vrot.lane.b32.xlu0 %v563, 96
    %v1359 = vpop.permute.xlu0 %1358
    %1362 = vrot.lane.b32.xlu0 %v570, 96
    %v1363 = vpop.permute.xlu0 %1362
    %1364 = vrot.lane.b32.xlu0 %v571, 96
    %v1365 = vpop.permute.xlu0 %1364
    %v1367 = vsel %vm584, %v1357, 0
    %v1370 = vsel %vm584, %v1359, 0
    %v1373 = vsel %vm584, %v1363, 0
    %v1376 = vsel %vm584, %v1365, 0
    %1378 = vmatprep.subr.bf16.mxu0 0
    %1379 = vmatpush1.bf16.xpose.msra.mxu0 %v1373
    %1380 = vmatprep.subr.bf16.mxu0 0
    %1381 = vmatpush1.bf16.xpose.msra.mxu0 %v1376
    %1382 = vmatprep.subr.bf16.mxu0 0
    %1383 = vmatpush1.bf16.xpose.msra.mxu0 0
    %1384 = vmatprep.subr.bf16.mxu0 0
    %1385 = vmatpush1.bf16.xpose.msra.mxu0 0
    %1386 = vmatprep.subr.bf16.mxu0 0
    %1387 = vmatpush1.bf16.xpose.msra.mxu0 0
    %1388 = vmatprep.subr.bf16.mxu0 0
    %1389 = vmatpush1.bf16.xpose.msra.mxu0 0
    %1390 = vmatprep.subr.bf16.mxu0 0
    %1391 = vmatpush1.bf16.xpose.msra.mxu0 0
    %1392 = vmatprep.subr.bf16.mxu0 0
    %1393 = vmatpush1.bf16.xpose.msra.mxu0 0
    %1394 = vmatprep.subr.bf16.mxu0 0
    %1395 = vmatpush1.bf16.xpose.msra.mxu0 0
    %1396 = vmatprep.subr.bf16.mxu0 0
    %1397 = vmatpush1.bf16.xpose.msra.mxu0 0
    %1398 = vmatprep.subr.bf16.mxu0 0
    %1399 = vmatpush1.bf16.xpose.msra.mxu0 0
    %1400 = vmatprep.subr.bf16.mxu0 0
    %1401 = vmatpush1.bf16.xpose.msra.mxu0 0
    %1402 = vmatprep.subr.bf16.mxu0 0
    %1403 = vmatpush1.bf16.xpose.msra.mxu0 0
    %1404 = vmatprep.subr.bf16.mxu0 0
    %1405 = vmatpush1.bf16.xpose.msra.mxu0 0
    %1406 = vmatprep.subr.bf16.mxu0 0
    %1407 = vmatpush1.bf16.xpose.msra.mxu0 0
    %1408 = vmatprep.subr.bf16.mxu0 0
    %1409 = vmatpush1.bf16.xpose.msra.mxu0 0
    %1410 = vmatprep.mubr.bf16.mxu0 0
    %1411 = vmatmul.mubr.bf16.gmra.mrb[0].mxu0 %v1367
    %v1412 = vpop.f32.mrb[0].mxu0
    %v1413 = vadd.f32 0.0, %v1412
    %v1414 = vpop.f32.mrb[0].mxu0
    %v1415 = vpop.f32.mrb[0].mxu0
    %v1416 = vadd.f32 0.0, %v1415
    %v1417 = vpop.f32.mrb[0].mxu0
    %1418 = vmatprep.mubr.bf16.mxu0 0
    %1419 = vmatmul.mubr.bf16.gmra.mrb[0].mxu0 %v1370
    %v1420 = vpop.f32.mrb[0].mxu0
    %v1421 = vadd.f32 0.0, %v1420
    %v1422 = vpop.f32.mrb[0].mxu0
    %v1423 = vpop.f32.mrb[0].mxu0
    %v1424 = vadd.f32 0.0, %v1423
    %v1425 = vpop.f32.mrb[0].mxu0
    %1426 = vdwg.mxu0
    %1429 = vrot.lane.b32.xlu0 %v564, 96
    %v1430 = vpop.permute.xlu0 %1429
    %1431 = vrot.lane.b32.xlu0 %v565, 96
    %v1432 = vpop.permute.xlu0 %1431
    %1435 = vrot.lane.b32.xlu0 %v572, 96
    %v1436 = vpop.permute.xlu0 %1435
    %1437 = vrot.lane.b32.xlu0 %v573, 96
    %v1438 = vpop.permute.xlu0 %1437
    %v1440 = vsel %vm584, %v1430, 0
    %v1443 = vsel %vm584, %v1432, 0
    %v1446 = vsel %vm584, %v1436, 0
    %v1449 = vsel %vm584, %v1438, 0
    %1451 = vmatprep.subr.bf16.mxu0 0
    %1452 = vmatpush1.bf16.xpose.msra.mxu0 %v1446
    %1453 = vmatprep.subr.bf16.mxu0 0
    %1454 = vmatpush1.bf16.xpose.msra.mxu0 %v1449
    %1455 = vmatprep.subr.bf16.mxu0 0
    %1456 = vmatpush1.bf16.xpose.msra.mxu0 0
    %1457 = vmatprep.subr.bf16.mxu0 0
    %1458 = vmatpush1.bf16.xpose.msra.mxu0 0
    %1459 = vmatprep.subr.bf16.mxu0 0
    %1460 = vmatpush1.bf16.xpose.msra.mxu0 0
    %1461 = vmatprep.subr.bf16.mxu0 0
    %1462 = vmatpush1.bf16.xpose.msra.mxu0 0
    %1463 = vmatprep.subr.bf16.mxu0 0
    %1464 = vmatpush1.bf16.xpose.msra.mxu0 0
    %1465 = vmatprep.subr.bf16.mxu0 0
    %1466 = vmatpush1.bf16.xpose.msra.mxu0 0
    %1467 = vmatprep.subr.bf16.mxu0 0
    %1468 = vmatpush1.bf16.xpose.msra.mxu0 0
    %1469 = vmatprep.subr.bf16.mxu0 0
    %1470 = vmatpush1.bf16.xpose.msra.mxu0 0
    %1471 = vmatprep.subr.bf16.mxu0 0
    %1472 = vmatpush1.bf16.xpose.msra.mxu0 0
    %1473 = vmatprep.subr.bf16.mxu0 0
    %1474 = vmatpush1.bf16.xpose.msra.mxu0 0
    %1475 = vmatprep.subr.bf16.mxu0 0
    %1476 = vmatpush1.bf16.xpose.msra.mxu0 0
    %1477 = vmatprep.subr.bf16.mxu0 0
    %1478 = vmatpush1.bf16.xpose.msra.mxu0 0
    %1479 = vmatprep.subr.bf16.mxu0 0
    %1480 = vmatpush1.bf16.xpose.msra.mxu0 0
    %1481 = vmatprep.subr.bf16.mxu0 0
    %1482 = vmatpush1.bf16.xpose.msra.mxu0 0
    %1483 = vmatprep.mubr.bf16.mxu0 0
    %1484 = vmatmul.mubr.bf16.gmra.mrb[0].mxu0 %v1440
    %v1485 = vpop.f32.mrb[0].mxu0
    %v1486 = vadd.f32 0.0, %v1485
    %v1487 = vpop.f32.mrb[0].mxu0
    %v1488 = vpop.f32.mrb[0].mxu0
    %v1489 = vadd.f32 0.0, %v1488
    %v1490 = vpop.f32.mrb[0].mxu0
    %1491 = vmatprep.mubr.bf16.mxu0 0
    %1492 = vmatmul.mubr.bf16.gmra.mrb[0].mxu0 %v1443
    %v1493 = vpop.f32.mrb[0].mxu0
    %v1494 = vadd.f32 0.0, %v1493
    %v1495 = vpop.f32.mrb[0].mxu0
    %v1496 = vpop.f32.mrb[0].mxu0
    %v1497 = vadd.f32 0.0, %v1496
    %v1498 = vpop.f32.mrb[0].mxu0
    %1499 = vdwg.mxu0
    %1502 = vrot.lane.b32.xlu0 %v566, 96
    %v1503 = vpop.permute.xlu0 %1502
    %1504 = vrot.lane.b32.xlu0 %v567, 96
    %v1505 = vpop.permute.xlu0 %1504
    %1508 = vrot.lane.b32.xlu0 %v574, 96
    %v1509 = vpop.permute.xlu0 %1508
    %1510 = vrot.lane.b32.xlu0 %v575, 96
    %v1511 = vpop.permute.xlu0 %1510
    %v1513 = vsel %vm584, %v1503, 0
    %v1516 = vsel %vm584, %v1505, 0
    %v1519 = vsel %vm584, %v1509, 0
    %v1522 = vsel %vm584, %v1511, 0
    %1524 = vmatprep.subr.bf16.mxu0 0
    %1525 = vmatpush1.bf16.xpose.msra.mxu0 %v1519
    %1526 = vmatprep.subr.bf16.mxu0 0
    %1527 = vmatpush1.bf16.xpose.msra.mxu0 %v1522
    %1528 = vmatprep.subr.bf16.mxu0 0
    %1529 = vmatpush1.bf16.xpose.msra.mxu0 0
    %1530 = vmatprep.subr.bf16.mxu0 0
    %1531 = vmatpush1.bf16.xpose.msra.mxu0 0
    %1532 = vmatprep.subr.bf16.mxu0 0
    %1533 = vmatpush1.bf16.xpose.msra.mxu0 0
    %1534 = vmatprep.subr.bf16.mxu0 0
    %1535 = vmatpush1.bf16.xpose.msra.mxu0 0
    %1536 = vmatprep.subr.bf16.mxu0 0
    %1537 = vmatpush1.bf16.xpose.msra.mxu0 0
    %1538 = vmatprep.subr.bf16.mxu0 0
    %1539 = vmatpush1.bf16.xpose.msra.mxu0 0
    %1540 = vmatprep.subr.bf16.mxu0 0
    %1541 = vmatpush1.bf16.xpose.msra.mxu0 0
    %1542 = vmatprep.subr.bf16.mxu0 0
    %1543 = vmatpush1.bf16.xpose.msra.mxu0 0
    %1544 = vmatprep.subr.bf16.mxu0 0
    %1545 = vmatpush1.bf16.xpose.msra.mxu0 0
    %1546 = vmatprep.subr.bf16.mxu0 0
    %1547 = vmatpush1.bf16.xpose.msra.mxu0 0
    %1548 = vmatprep.subr.bf16.mxu0 0
    %1549 = vmatpush1.bf16.xpose.msra.mxu0 0
    %1550 = vmatprep.subr.bf16.mxu0 0
    %1551 = vmatpush1.bf16.xpose.msra.mxu0 0
    %1552 = vmatprep.subr.bf16.mxu0 0
    %1553 = vmatpush1.bf16.xpose.msra.mxu0 0
    %1554 = vmatprep.subr.bf16.mxu0 0
    %1555 = vmatpush1.bf16.xpose.msra.mxu0 0
    %1556 = vmatprep.mubr.bf16.mxu0 0
    %1557 = vmatmul.mubr.bf16.gmra.mrb[0].mxu0 %v1513
    %v1558 = vpop.f32.mrb[0].mxu0
    %v1559 = vadd.f32 0.0, %v1558
    %v1560 = vpop.f32.mrb[0].mxu0
    %v1561 = vpop.f32.mrb[0].mxu0
    %v1562 = vadd.f32 0.0, %v1561
    %v1563 = vpop.f32.mrb[0].mxu0
    %1564 = vmatprep.mubr.bf16.mxu0 0
    %1565 = vmatmul.mubr.bf16.gmra.mrb[0].mxu0 %v1516
    %v1566 = vpop.f32.mrb[0].mxu0
    %v1567 = vadd.f32 0.0, %v1566
    %v1568 = vpop.f32.mrb[0].mxu0
    %v1569 = vpop.f32.mrb[0].mxu0
    %v1570 = vadd.f32 0.0, %v1569
    %v1571 = vpop.f32.mrb[0].mxu0
    %1572 = vdwg.mxu0
    %v1573 = vmul.f32 %v1340, 0.28867513
    %v1574 = vmul.f32 %v1343, 0.28867513
    %v1575 = vmul.f32 %v1348, 0.28867513
    %v1576 = vmul.f32 %v1351, 0.28867513
    %v1577 = vmul.f32 %v1413, 0.28867513
    %v1578 = vmul.f32 %v1416, 0.28867513
    %v1579 = vmul.f32 %v1421, 0.28867513
    %v1580 = vmul.f32 %v1424, 0.28867513
    %v1581 = vmul.f32 %v1486, 0.28867513
    %v1582 = vmul.f32 %v1489, 0.28867513
    %v1583 = vmul.f32 %v1494, 0.28867513
    %v1584 = vmul.f32 %v1497, 0.28867513
    %v1585 = vmul.f32 %v1559, 0.28867513
    %v1586 = vmul.f32 %v1562, 0.28867513
    %v1587 = vmul.f32 %v1567, 0.28867513
    %v1588 = vmul.f32 %v1570, 0.28867513
    %v1589 = vadd.f32 %v1573, %v556
    %v1590 = vadd.f32 %v1574, %v557
    %v1591 = vadd.f32 %v1575, %v558
    %v1592 = vadd.f32 %v1576, %v559
    %v1593 = vadd.f32 %v1577, %v556
    %v1594 = vadd.f32 %v1578, %v557
    %v1595 = vadd.f32 %v1579, %v558
    %v1596 = vadd.f32 %v1580, %v559
    %v1597 = vadd.f32 %v1581, %v556
    %v1598 = vadd.f32 %v1582, %v557
    %v1599 = vadd.f32 %v1583, %v558
    %v1600 = vadd.f32 %v1584, %v559
    %v1601 = vadd.f32 %v1585, %v556
    %v1602 = vadd.f32 %v1586, %v557
    %v1603 = vadd.f32 %v1587, %v558
    %v1604 = vadd.f32 %v1588, %v559
    %v1605 = vsel %vm584, %v1589, -inf
    %1606 = vmax.xlane.f32.xlu0 %v1605
    %v1607 = vpop.xlane.xlu0 %1606
    %v1608 = vsel %vm584, %v1590, -inf
    %1609 = vmax.xlane.f32.xlu0 %v1608
    %v1610 = vpop.xlane.xlu0 %1609
    %v1611 = vsel %vm584, %v1591, -inf
    %1612 = vmax.xlane.f32.xlu0 %v1611
    %v1613 = vpop.xlane.xlu0 %1612
    %v1614 = vsel %vm584, %v1592, -inf
    %1615 = vmax.xlane.f32.xlu0 %v1614
    %v1616 = vpop.xlane.xlu0 %1615
    %v1617 = vsel %vm584, %v1593, -inf
    %1618 = vmax.xlane.f32.xlu0 %v1617
    %v1619 = vpop.xlane.xlu0 %1618
    %v1620 = vsel %vm584, %v1594, -inf
    %1621 = vmax.xlane.f32.xlu0 %v1620
    %v1622 = vpop.xlane.xlu0 %1621
    %v1623 = vsel %vm584, %v1595, -inf
    %1624 = vmax.xlane.f32.xlu0 %v1623
    %v1625 = vpop.xlane.xlu0 %1624
    %v1626 = vsel %vm584, %v1596, -inf
    %1627 = vmax.xlane.f32.xlu0 %v1626
    %v1628 = vpop.xlane.xlu0 %1627
    %v1629 = vsel %vm584, %v1597, -inf
    %1630 = vmax.xlane.f32.xlu0 %v1629
    %v1631 = vpop.xlane.xlu0 %1630
    %v1632 = vsel %vm584, %v1598, -inf
    %1633 = vmax.xlane.f32.xlu0 %v1632
    %v1634 = vpop.xlane.xlu0 %1633
    %v1635 = vsel %vm584, %v1599, -inf
    %1636 = vmax.xlane.f32.xlu0 %v1635
    %v1637 = vpop.xlane.xlu0 %1636
    %v1638 = vsel %vm584, %v1600, -inf
    %1639 = vmax.xlane.f32.xlu0 %v1638
    %v1640 = vpop.xlane.xlu0 %1639
    %v1641 = vsel %vm584, %v1601, -inf
    %1642 = vmax.xlane.f32.xlu0 %v1641
    %v1643 = vpop.xlane.xlu0 %1642
    %v1644 = vsel %vm584, %v1602, -inf
    %1645 = vmax.xlane.f32.xlu0 %v1644
    %v1646 = vpop.xlane.xlu0 %1645
    %v1647 = vsel %vm584, %v1603, -inf
    %1648 = vmax.xlane.f32.xlu0 %v1647
    %v1649 = vpop.xlane.xlu0 %1648
    %v1650 = vsel %vm584, %v1604, -inf
    %1651 = vmax.xlane.f32.xlu0 %v1650
    %v1652 = vpop.xlane.xlu0 %1651
    %v1653 = vsub.f32 %v1589, %v1607
    %v1654 = vsub.f32 %v1590, %v1610
    %v1655 = vsub.f32 %v1591, %v1613
    %v1656 = vsub.f32 %v1592, %v1616
    %v1657 = vsub.f32 %v1593, %v1619
    %v1658 = vsub.f32 %v1594, %v1622
    %v1659 = vsub.f32 %v1595, %v1625
    %v1660 = vsub.f32 %v1596, %v1628
    %v1661 = vsub.f32 %v1597, %v1631
    %v1662 = vsub.f32 %v1598, %v1634
    %v1663 = vsub.f32 %v1599, %v1637
    %v1664 = vsub.f32 %v1600, %v1640
    %v1665 = vsub.f32 %v1601, %v1643
    %v1666 = vsub.f32 %v1602, %v1646
    %v1667 = vsub.f32 %v1603, %v1649
    %v1668 = vsub.f32 %v1604, %v1652
    %v1669 = vmul.f32 %v1653, 1.442695
    %v1670 = vpow.pop %v1669
    %v1671 = vmul.f32 %v1654, 1.442695
    %v1672 = vpow.pop %v1671
    %v1673 = vmul.f32 %v1655, 1.442695
    %v1674 = vpow.pop %v1673
    %v1675 = vmul.f32 %v1656, 1.442695
    %v1676 = vpow.pop %v1675
    %v1677 = vmul.f32 %v1657, 1.442695
    %v1678 = vpow.pop %v1677
    %v1679 = vmul.f32 %v1658, 1.442695
    %v1680 = vpow.pop %v1679
    %v1681 = vmul.f32 %v1659, 1.442695
    %v1682 = vpow.pop %v1681
    %v1683 = vmul.f32 %v1660, 1.442695
    %v1684 = vpow.pop %v1683
    %v1685 = vmul.f32 %v1661, 1.442695
    %v1686 = vpow.pop %v1685
    %v1687 = vmul.f32 %v1662, 1.442695
    %v1688 = vpow.pop %v1687
    %v1689 = vmul.f32 %v1663, 1.442695
    %v1690 = vpow.pop %v1689
    %v1691 = vmul.f32 %v1664, 1.442695
    %v1692 = vpow.pop %v1691
    %v1693 = vmul.f32 %v1665, 1.442695
    %v1694 = vpow.pop %v1693
    %v1695 = vmul.f32 %v1666, 1.442695
    %v1696 = vpow.pop %v1695
    %v1697 = vmul.f32 %v1667, 1.442695
    %v1698 = vpow.pop %v1697
    %v1699 = vmul.f32 %v1668, 1.442695
    %v1700 = vpow.pop %v1699
    %v1701 = vsel %vm584, %v1670, 0.0
    %1702 = vadd.xlane.f32.xlu0 %v1701
    %v1703 = vpop.xlane.xlu0 %1702
    %v1704 = vsel %vm584, %v1672, 0.0
    %1705 = vadd.xlane.f32.xlu0 %v1704
    %v1706 = vpop.xlane.xlu0 %1705
    %v1707 = vsel %vm584, %v1674, 0.0
    %1708 = vadd.xlane.f32.xlu0 %v1707
    %v1709 = vpop.xlane.xlu0 %1708
    %v1710 = vsel %vm584, %v1676, 0.0
    %1711 = vadd.xlane.f32.xlu0 %v1710
    %v1712 = vpop.xlane.xlu0 %1711
    %v1713 = vsel %vm584, %v1678, 0.0
    %1714 = vadd.xlane.f32.xlu0 %v1713
    %v1715 = vpop.xlane.xlu0 %1714
    %v1716 = vsel %vm584, %v1680, 0.0
    %1717 = vadd.xlane.f32.xlu0 %v1716
    %v1718 = vpop.xlane.xlu0 %1717
    %v1719 = vsel %vm584, %v1682, 0.0
    %1720 = vadd.xlane.f32.xlu0 %v1719
    %v1721 = vpop.xlane.xlu0 %1720
    %v1722 = vsel %vm584, %v1684, 0.0
    %1723 = vadd.xlane.f32.xlu0 %v1722
    %v1724 = vpop.xlane.xlu0 %1723
    %v1725 = vsel %vm584, %v1686, 0.0
    %1726 = vadd.xlane.f32.xlu0 %v1725
    %v1727 = vpop.xlane.xlu0 %1726
    %v1728 = vsel %vm584, %v1688, 0.0
    %1729 = vadd.xlane.f32.xlu0 %v1728
    %v1730 = vpop.xlane.xlu0 %1729
    %v1731 = vsel %vm584, %v1690, 0.0
    %1732 = vadd.xlane.f32.xlu0 %v1731
    %v1733 = vpop.xlane.xlu0 %1732
    %v1734 = vsel %vm584, %v1692, 0.0
    %1735 = vadd.xlane.f32.xlu0 %v1734
    %v1736 = vpop.xlane.xlu0 %1735
    %v1737 = vsel %vm584, %v1694, 0.0
    %1738 = vadd.xlane.f32.xlu0 %v1737
    %v1739 = vpop.xlane.xlu0 %1738
    %v1740 = vsel %vm584, %v1696, 0.0
    %1741 = vadd.xlane.f32.xlu0 %v1740
    %v1742 = vpop.xlane.xlu0 %1741
    %v1743 = vsel %vm584, %v1698, 0.0
    %1744 = vadd.xlane.f32.xlu0 %v1743
    %v1745 = vpop.xlane.xlu0 %1744
    %v1746 = vsel %vm584, %v1700, 0.0
    %1747 = vadd.xlane.f32.xlu0 %v1746
    %v1748 = vpop.xlane.xlu0 %1747
    %v1749 = vrcp.pop %v1703
    %v1750 = vrcp.pop %v1706
    %v1751 = vrcp.pop %v1709
    %v1752 = vrcp.pop %v1712
    %v1753 = vrcp.pop %v1715
    %v1754 = vrcp.pop %v1718
    %v1755 = vrcp.pop %v1721
    %v1756 = vrcp.pop %v1724
    %v1757 = vrcp.pop %v1727
    %v1758 = vrcp.pop %v1730
    %v1759 = vrcp.pop %v1733
    %v1760 = vrcp.pop %v1736
    %v1761 = vrcp.pop %v1739
    %v1762 = vrcp.pop %v1742
    %v1763 = vrcp.pop %v1745
    %v1764 = vrcp.pop %v1748
    %v1765 = vmul.f32 %v1670, %v1749
    %v1766 = vmul.f32 %v1672, %v1750
    %v1767 = vmul.f32 %v1674, %v1751
    %v1768 = vmul.f32 %v1676, %v1752
    %v1769 = vmul.f32 %v1678, %v1753
    %v1770 = vmul.f32 %v1680, %v1754
    %v1771 = vmul.f32 %v1682, %v1755
    %v1772 = vmul.f32 %v1684, %v1756
    %v1773 = vmul.f32 %v1686, %v1757
    %v1774 = vmul.f32 %v1688, %v1758
    %v1775 = vmul.f32 %v1690, %v1759
    %v1776 = vmul.f32 %v1692, %v1760
    %v1777 = vmul.f32 %v1694, %v1761
    %v1778 = vmul.f32 %v1696, %v1762
    %v1779 = vmul.f32 %v1698, %v1763
    %v1780 = vmul.f32 %v1700, %v1764
    %v1781 = vpack.c.bf16 %v1766, %v1765
    %v1782 = vpack.c.bf16 %v1768, %v1767
    %v1783 = vpack.c.bf16 %v1770, %v1769
    %v1784 = vpack.c.bf16 %v1772, %v1771
    %v1785 = vpack.c.bf16 %v1774, %v1773
    %v1786 = vpack.c.bf16 %v1776, %v1775
    %v1787 = vpack.c.bf16 %v1778, %v1777
    %v1788 = vpack.c.bf16 %v1780, %v1779
    %1791 = vrot.lane.b32.xlu0 %v576, 96
    %v1792 = vpop.permute.xlu0 %1791
    %1793 = vrot.lane.b32.xlu0 %v577, 96
    %v1794 = vpop.permute.xlu0 %1793
    %v1798 = vsel %vm584, %v1781, 0
    %v1801 = vsel %vm584, %v1782, 0
    %1803 = vmatprep.subr.bf16.mxu0 0
    %1804 = vmatpush1.bf16.msra.mxu0 %v1792
    %1805 = vmatprep.subr.bf16.mxu0 0
    %1806 = vmatpush1.bf16.msra.mxu0 %v1794
    %1807 = vmatprep.subr.bf16.mxu0 0
    %1808 = vmatpush1.bf16.msra.mxu0 0
    %1809 = vmatprep.subr.bf16.mxu0 0
    %1810 = vmatpush1.bf16.msra.mxu0 0
    %1811 = vmatprep.subr.bf16.mxu0 0
    %1812 = vmatpush1.bf16.msra.mxu0 0
    %1813 = vmatprep.subr.bf16.mxu0 0
    %1814 = vmatpush1.bf16.msra.mxu0 0
    %1815 = vmatprep.subr.bf16.mxu0 0
    %1816 = vmatpush1.bf16.msra.mxu0 0
    %1817 = vmatprep.subr.bf16.mxu0 0
    %1818 = vmatpush1.bf16.msra.mxu0 0
    %1819 = vmatprep.subr.bf16.mxu0 0
    %1820 = vmatpush1.bf16.msra.mxu0 0
    %1821 = vmatprep.subr.bf16.mxu0 0
    %1822 = vmatpush1.bf16.msra.mxu0 0
    %1823 = vmatprep.subr.bf16.mxu0 0
    %1824 = vmatpush1.bf16.msra.mxu0 0
    %1825 = vmatprep.subr.bf16.mxu0 0
    %1826 = vmatpush1.bf16.msra.mxu0 0
    %1827 = vmatprep.subr.bf16.mxu0 0
    %1828 = vmatpush1.bf16.msra.mxu0 0
    %1829 = vmatprep.subr.bf16.mxu0 0
    %1830 = vmatpush1.bf16.msra.mxu0 0
    %1831 = vmatprep.subr.bf16.mxu0 0
    %1832 = vmatpush1.bf16.msra.mxu0 0
    %1833 = vmatprep.subr.bf16.mxu0 0
    %1834 = vmatpush1.bf16.msra.mxu0 0
    %1835 = vmatprep.mubr.bf16.mxu0 0
    %1836 = vmatmul.mubr.bf16.gmra.mrb[0].mxu0 %v1798
    %v1837 = vpop.f32.mrb[0].mxu0
    %v1838 = vadd.f32 0.0, %v1837
    %v1839 = vpop.f32.mrb[0].mxu0
    %v1840 = vpop.f32.mrb[0].mxu0
    %v1841 = vadd.f32 0.0, %v1840
    %v1842 = vpop.f32.mrb[0].mxu0
    %1843 = vmatprep.mubr.bf16.mxu0 0
    %1844 = vmatmul.mubr.bf16.gmra.mrb[0].mxu0 %v1801
    %v1845 = vpop.f32.mrb[0].mxu0
    %v1846 = vadd.f32 0.0, %v1845
    %v1847 = vpop.f32.mrb[0].mxu0
    %v1848 = vpop.f32.mrb[0].mxu0
    %v1849 = vadd.f32 0.0, %v1848
    %v1850 = vpop.f32.mrb[0].mxu0
    %1851 = vdwg.mxu0
    %1854 = vrot.lane.b32.xlu0 %v578, 96
    %v1855 = vpop.permute.xlu0 %1854
    %1856 = vrot.lane.b32.xlu0 %v579, 96
    %v1857 = vpop.permute.xlu0 %1856
    %v1861 = vsel %vm584, %v1783, 0
    %v1864 = vsel %vm584, %v1784, 0
    %1866 = vmatprep.subr.bf16.mxu0 0
    %1867 = vmatpush1.bf16.msra.mxu0 %v1855
    %1868 = vmatprep.subr.bf16.mxu0 0
    %1869 = vmatpush1.bf16.msra.mxu0 %v1857
    %1870 = vmatprep.subr.bf16.mxu0 0
    %1871 = vmatpush1.bf16.msra.mxu0 0
    %1872 = vmatprep.subr.bf16.mxu0 0
    %1873 = vmatpush1.bf16.msra.mxu0 0
    %1874 = vmatprep.subr.bf16.mxu0 0
    %1875 = vmatpush1.bf16.msra.mxu0 0
    %1876 = vmatprep.subr.bf16.mxu0 0
    %1877 = vmatpush1.bf16.msra.mxu0 0
    %1878 = vmatprep.subr.bf16.mxu0 0
    %1879 = vmatpush1.bf16.msra.mxu0 0
    %1880 = vmatprep.subr.bf16.mxu0 0
    %1881 = vmatpush1.bf16.msra.mxu0 0
    %1882 = vmatprep.subr.bf16.mxu0 0
    %1883 = vmatpush1.bf16.msra.mxu0 0
    %1884 = vmatprep.subr.bf16.mxu0 0
    %1885 = vmatpush1.bf16.msra.mxu0 0
    %1886 = vmatprep.subr.bf16.mxu0 0
    %1887 = vmatpush1.bf16.msra.mxu0 0
    %1888 = vmatprep.subr.bf16.mxu0 0
    %1889 = vmatpush1.bf16.msra.mxu0 0
    %1890 = vmatprep.subr.bf16.mxu0 0
    %1891 = vmatpush1.bf16.msra.mxu0 0
    %1892 = vmatprep.subr.bf16.mxu0 0
    %1893 = vmatpush1.bf16.msra.mxu0 0
    %1894 = vmatprep.subr.bf16.mxu0 0
    %1895 = vmatpush1.bf16.msra.mxu0 0
    %1896 = vmatprep.subr.bf16.mxu0 0
    %1897 = vmatpush1.bf16.msra.mxu0 0
    %1898 = vmatprep.mubr.bf16.mxu0 0
    %1899 = vmatmul.mubr.bf16.gmra.mrb[0].mxu0 %v1861
    %v1900 = vpop.f32.mrb[0].mxu0
    %v1901 = vadd.f32 0.0, %v1900
    %v1902 = vpop.f32.mrb[0].mxu0
    %v1903 = vpop.f32.mrb[0].mxu0
    %v1904 = vadd.f32 0.0, %v1903
    %v1905 = vpop.f32.mrb[0].mxu0
    %1906 = vmatprep.mubr.bf16.mxu0 0
    %1907 = vmatmul.mubr.bf16.gmra.mrb[0].mxu0 %v1864
    %v1908 = vpop.f32.mrb[0].mxu0
    %v1909 = vadd.f32 0.0, %v1908
    %v1910 = vpop.f32.mrb[0].mxu0
    %v1911 = vpop.f32.mrb[0].mxu0
    %v1912 = vadd.f32 0.0, %v1911
    %v1913 = vpop.f32.mrb[0].mxu0
    %1914 = vdwg.mxu0
    %1917 = vrot.lane.b32.xlu0 %v580, 96
    %v1918 = vpop.permute.xlu0 %1917
    %1919 = vrot.lane.b32.xlu0 %v581, 96
    %v1920 = vpop.permute.xlu0 %1919
    %v1924 = vsel %vm584, %v1785, 0
    %v1927 = vsel %vm584, %v1786, 0
    %1929 = vmatprep.subr.bf16.mxu0 0
    %1930 = vmatpush1.bf16.msra.mxu0 %v1918
    %1931 = vmatprep.subr.bf16.mxu0 0
    %1932 = vmatpush1.bf16.msra.mxu0 %v1920
    %1933 = vmatprep.subr.bf16.mxu0 0
    %1934 = vmatpush1.bf16.msra.mxu0 0
    %1935 = vmatprep.subr.bf16.mxu0 0
    %1936 = vmatpush1.bf16.msra.mxu0 0
    %1937 = vmatprep.subr.bf16.mxu0 0
    %1938 = vmatpush1.bf16.msra.mxu0 0
    %1939 = vmatprep.subr.bf16.mxu0 0
    %1940 = vmatpush1.bf16.msra.mxu0 0
    %1941 = vmatprep.subr.bf16.mxu0 0
    %1942 = vmatpush1.bf16.msra.mxu0 0
    %1943 = vmatprep.subr.bf16.mxu0 0
    %1944 = vmatpush1.bf16.msra.mxu0 0
    %1945 = vmatprep.subr.bf16.mxu0 0
    %1946 = vmatpush1.bf16.msra.mxu0 0
    %1947 = vmatprep.subr.bf16.mxu0 0
    %1948 = vmatpush1.bf16.msra.mxu0 0
    %1949 = vmatprep.subr.bf16.mxu0 0
    %1950 = vmatpush1.bf16.msra.mxu0 0
    %1951 = vmatprep.subr.bf16.mxu0 0
    %1952 = vmatpush1.bf16.msra.mxu0 0
    %1953 = vmatprep.subr.bf16.mxu0 0
    %1954 = vmatpush1.bf16.msra.mxu0 0
    %1955 = vmatprep.subr.bf16.mxu0 0
    %1956 = vmatpush1.bf16.msra.mxu0 0
    %1957 = vmatprep.subr.bf16.mxu0 0
    %1958 = vmatpush1.bf16.msra.mxu0 0
    %1959 = vmatprep.subr.bf16.mxu0 0
    %1960 = vmatpush1.bf16.msra.mxu0 0
    %1961 = vmatprep.mubr.bf16.mxu0 0
    %1962 = vmatmul.mubr.bf16.gmra.mrb[0].mxu0 %v1924
    %v1963 = vpop.f32.mrb[0].mxu0
    %v1964 = vadd.f32 0.0, %v1963
    %v1965 = vpop.f32.mrb[0].mxu0
    %v1966 = vpop.f32.mrb[0].mxu0
    %v1967 = vadd.f32 0.0, %v1966
    %v1968 = vpop.f32.mrb[0].mxu0
    %1969 = vmatprep.mubr.bf16.mxu0 0
    %1970 = vmatmul.mubr.bf16.gmra.mrb[0].mxu0 %v1927
    %v1971 = vpop.f32.mrb[0].mxu0
    %v1972 = vadd.f32 0.0, %v1971
    %v1973 = vpop.f32.mrb[0].mxu0
    %v1974 = vpop.f32.mrb[0].mxu0
    %v1975 = vadd.f32 0.0, %v1974
    %v1976 = vpop.f32.mrb[0].mxu0
    %1977 = vdwg.mxu0
    %1980 = vrot.lane.b32.xlu0 %v582, 96
    %v1981 = vpop.permute.xlu0 %1980
    %1982 = vrot.lane.b32.xlu0 %v583, 96
    %v1983 = vpop.permute.xlu0 %1982
    %v1987 = vsel %vm584, %v1787, 0
    %v1990 = vsel %vm584, %v1788, 0
    %1992 = vmatprep.subr.bf16.mxu0 0
    %1993 = vmatpush1.bf16.msra.mxu0 %v1981
    %1994 = vmatprep.subr.bf16.mxu0 0
    %1995 = vmatpush1.bf16.msra.mxu0 %v1983
    %1996 = vmatprep.subr.bf16.mxu0 0
    %1997 = vmatpush1.bf16.msra.mxu0 0
    %1998 = vmatprep.subr.bf16.mxu0 0
    %1999 = vmatpush1.bf16.msra.mxu0 0
    %2000 = vmatprep.subr.bf16.mxu0 0
    %2001 = vmatpush1.bf16.msra.mxu0 0
    %2002 = vmatprep.subr.bf16.mxu0 0
    %2003 = vmatpush1.bf16.msra.mxu0 0
    %2004 = vmatprep.subr.bf16.mxu0 0
    %2005 = vmatpush1.bf16.msra.mxu0 0
    %2006 = vmatprep.subr.bf16.mxu0 0
    %2007 = vmatpush1.bf16.msra.mxu0 0
    %2008 = vmatprep.subr.bf16.mxu0 0
    %2009 = vmatpush1.bf16.msra.mxu0 0
    %2010 = vmatprep.subr.bf16.mxu0 0
    %2011 = vmatpush1.bf16.msra.mxu0 0
    %2012 = vmatprep.subr.bf16.mxu0 0
    %2013 = vmatpush1.bf16.msra.mxu0 0
    %2014 = vmatprep.subr.bf16.mxu0 0
    %2015 = vmatpush1.bf16.msra.mxu0 0
    %2016 = vmatprep.subr.bf16.mxu0 0
    %2017 = vmatpush1.bf16.msra.mxu0 0
    %2018 = vmatprep.subr.bf16.mxu0 0
    %2019 = vmatpush1.bf16.msra.mxu0 0
    %2020 = vmatprep.subr.bf16.mxu0 0
    %2021 = vmatpush1.bf16.msra.mxu0 0
    %2022 = vmatprep.subr.bf16.mxu0 0
    %2023 = vmatpush1.bf16.msra.mxu0 0
    %2024 = vmatprep.mubr.bf16.mxu0 0
    %2025 = vmatmul.mubr.bf16.gmra.mrb[0].mxu0 %v1987
    %v2026 = vpop.f32.mrb[0].mxu0
    %v2027 = vadd.f32 0.0, %v2026
    %v2028 = vpop.f32.mrb[0].mxu0
    %v2029 = vpop.f32.mrb[0].mxu0
    %v2030 = vadd.f32 0.0, %v2029
    %v2031 = vpop.f32.mrb[0].mxu0
    %2032 = vmatprep.mubr.bf16.mxu0 0
    %2033 = vmatmul.mubr.bf16.gmra.mrb[0].mxu0 %v1990
    %v2034 = vpop.f32.mrb[0].mxu0
    %v2035 = vadd.f32 0.0, %v2034
    %v2036 = vpop.f32.mrb[0].mxu0
    %v2037 = vpop.f32.mrb[0].mxu0
    %v2038 = vadd.f32 0.0, %v2037
    %v2039 = vpop.f32.mrb[0].mxu0
    %2040 = vdwg.mxu0
    %v2041 = vpack.c.bf16 %v1841, %v1838
    %v2042 = vpack.c.bf16 %v1849, %v1846
    %v2043 = vpack.c.bf16 %v1904, %v1901
    %v2044 = vpack.c.bf16 %v1912, %v1909
    %v2045 = vpack.c.bf16 %v1967, %v1964
    %v2046 = vpack.c.bf16 %v1975, %v1972
    %v2047 = vpack.c.bf16 %v2030, %v2027
    %v2048 = vpack.c.bf16 %v2038, %v2035
    %2057 = vrot.lane.b32.xlu0 %v2041, 32
    %v2058 = vpop.permute.xlu0 %2057
    %2059 = vrot.lane.b32.xlu0 %v2042, 32
    %v2060 = vpop.permute.xlu0 %2059
    %2061 = vrot.lane.b32.xlu0 %v2043, 32
    %v2062 = vpop.permute.xlu0 %2061
    %2063 = vrot.lane.b32.xlu0 %v2044, 32
    %v2064 = vpop.permute.xlu0 %2063
    %2065 = vrot.lane.b32.xlu0 %v2045, 32
    %v2066 = vpop.permute.xlu0 %2065
    %2067 = vrot.lane.b32.xlu0 %v2046, 32
    %v2068 = vpop.permute.xlu0 %2067
    %2069 = vrot.lane.b32.xlu0 %v2047, 32
    %v2070 = vpop.permute.xlu0 %2069
    %2071 = vrot.lane.b32.xlu0 %v2048, 32
    %v2072 = vpop.permute.xlu0 %2071
    %vm2081 = vcmask 523520
    %2082 = vst.msk [vmem:[#allocation2] sm:$0xff] %vm2081, %v2058
    %2083 = vst.msk [vmem:[#allocation2 + $0x8] sm:$0xff] %vm2081, %v2060
    %2084 = vst.msk [vmem:[#allocation2 + $0x10] sm:$0xff] %vm2081, %v2062
    %2085 = vst.msk [vmem:[#allocation2 + $0x18] sm:$0xff] %vm2081, %v2064
    %2086 = vst.msk [vmem:[#allocation2 + $0x20] sm:$0xff] %vm2081, %v2066
    %2087 = vst.msk [vmem:[#allocation2 + $0x28] sm:$0xff] %vm2081, %v2068
    %2088 = vst.msk [vmem:[#allocation2 + $0x30] sm:$0xff] %vm2081, %v2070
    %2089 = vst.msk [vmem:[#allocation2 + $0x38] sm:$0xff] %vm2081, %v2072
    %2090 = vrot.lane.b32.xlu0 %v560, 64
    %v2091 = vpop.permute.xlu0 %2090
    %2092 = vrot.lane.b32.xlu0 %v561, 64
    %v2093 = vpop.permute.xlu0 %2092
    %2094 = vrot.lane.b32.xlu0 %v568, 64
    %v2095 = vpop.permute.xlu0 %2094
    %2096 = vrot.lane.b32.xlu0 %v569, 64
    %v2097 = vpop.permute.xlu0 %2096
    %v2099 = vsel %vm584, %v2091, 0
    %v2102 = vsel %vm584, %v2093, 0
    %v2105 = vsel %vm584, %v2095, 0
    %v2108 = vsel %vm584, %v2097, 0
    %2110 = vmatprep.subr.bf16.mxu0 0
    %2111 = vmatpush1.bf16.xpose.msra.mxu0 %v2105
    %2112 = vmatprep.subr.bf16.mxu0 0
    %2113 = vmatpush1.bf16.xpose.msra.mxu0 %v2108
    %2114 = vmatprep.subr.bf16.mxu0 0
    %2115 = vmatpush1.bf16.xpose.msra.mxu0 0
    %2116 = vmatprep.subr.bf16.mxu0 0
    %2117 = vmatpush1.bf16.xpose.msra.mxu0 0
    %2118 = vmatprep.subr.bf16.mxu0 0
    %2119 = vmatpush1.bf16.xpose.msra.mxu0 0
    %2120 = vmatprep.subr.bf16.mxu0 0
    %2121 = vmatpush1.bf16.xpose.msra.mxu0 0
    %2122 = vmatprep.subr.bf16.mxu0 0
    %2123 = vmatpush1.bf16.xpose.msra.mxu0 0
    %2124 = vmatprep.subr.bf16.mxu0 0
    %2125 = vmatpush1.bf16.xpose.msra.mxu0 0
    %2126 = vmatprep.subr.bf16.mxu0 0
    %2127 = vmatpush1.bf16.xpose.msra.mxu0 0
    %2128 = vmatprep.subr.bf16.mxu0 0
    %2129 = vmatpush1.bf16.xpose.msra.mxu0 0
    %2130 = vmatprep.subr.bf16.mxu0 0
    %2131 = vmatpush1.bf16.xpose.msra.mxu0 0
    %2132 = vmatprep.subr.bf16.mxu0 0
    %2133 = vmatpush1.bf16.xpose.msra.mxu0 0
    %2134 = vmatprep.subr.bf16.mxu0 0
    %2135 = vmatpush1.bf16.xpose.msra.mxu0 0
    %2136 = vmatprep.subr.bf16.mxu0 0
    %2137 = vmatpush1.bf16.xpose.msra.mxu0 0
    %2138 = vmatprep.subr.bf16.mxu0 0
    %2139 = vmatpush1.bf16.xpose.msra.mxu0 0
    %2140 = vmatprep.subr.bf16.mxu0 0
    %2141 = vmatpush1.bf16.xpose.msra.mxu0 0
    %2142 = vmatprep.mubr.bf16.mxu0 0
    %2143 = vmatmul.mubr.bf16.gmra.mrb[0].mxu0 %v2099
    %v2144 = vpop.f32.mrb[0].mxu0
    %v2145 = vadd.f32 0.0, %v2144
    %v2146 = vpop.f32.mrb[0].mxu0
    %v2147 = vpop.f32.mrb[0].mxu0
    %v2148 = vadd.f32 0.0, %v2147
    %v2149 = vpop.f32.mrb[0].mxu0
    %2150 = vmatprep.mubr.bf16.mxu0 0
    %2151 = vmatmul.mubr.bf16.gmra.mrb[0].mxu0 %v2102
    %v2152 = vpop.f32.mrb[0].mxu0
    %v2153 = vadd.f32 0.0, %v2152
    %v2154 = vpop.f32.mrb[0].mxu0
    %v2155 = vpop.f32.mrb[0].mxu0
    %v2156 = vadd.f32 0.0, %v2155
    %v2157 = vpop.f32.mrb[0].mxu0
    %2158 = vdwg.mxu0
    %2159 = vrot.lane.b32.xlu0 %v562, 64
    %v2160 = vpop.permute.xlu0 %2159
    %2161 = vrot.lane.b32.xlu0 %v563, 64
    %v2162 = vpop.permute.xlu0 %2161
    %2163 = vrot.lane.b32.xlu0 %v570, 64
    %v2164 = vpop.permute.xlu0 %2163
    %2165 = vrot.lane.b32.xlu0 %v571, 64
    %v2166 = vpop.permute.xlu0 %2165
    %v2168 = vsel %vm584, %v2160, 0
    %v2171 = vsel %vm584, %v2162, 0
    %v2174 = vsel %vm584, %v2164, 0
    %v2177 = vsel %vm584, %v2166, 0
    %2179 = vmatprep.subr.bf16.mxu0 0
    %2180 = vmatpush1.bf16.xpose.msra.mxu0 %v2174
    %2181 = vmatprep.subr.bf16.mxu0 0
    %2182 = vmatpush1.bf16.xpose.msra.mxu0 %v2177
    %2183 = vmatprep.subr.bf16.mxu0 0
    %2184 = vmatpush1.bf16.xpose.msra.mxu0 0
    %2185 = vmatprep.subr.bf16.mxu0 0
    %2186 = vmatpush1.bf16.xpose.msra.mxu0 0
    %2187 = vmatprep.subr.bf16.mxu0 0
    %2188 = vmatpush1.bf16.xpose.msra.mxu0 0
    %2189 = vmatprep.subr.bf16.mxu0 0
    %2190 = vmatpush1.bf16.xpose.msra.mxu0 0
    %2191 = vmatprep.subr.bf16.mxu0 0
    %2192 = vmatpush1.bf16.xpose.msra.mxu0 0
    %2193 = vmatprep.subr.bf16.mxu0 0
    %2194 = vmatpush1.bf16.xpose.msra.mxu0 0
    %2195 = vmatprep.subr.bf16.mxu0 0
    %2196 = vmatpush1.bf16.xpose.msra.mxu0 0
    %2197 = vmatprep.subr.bf16.mxu0 0
    %2198 = vmatpush1.bf16.xpose.msra.mxu0 0
    %2199 = vmatprep.subr.bf16.mxu0 0
    %2200 = vmatpush1.bf16.xpose.msra.mxu0 0
    %2201 = vmatprep.subr.bf16.mxu0 0
    %2202 = vmatpush1.bf16.xpose.msra.mxu0 0
    %2203 = vmatprep.subr.bf16.mxu0 0
    %2204 = vmatpush1.bf16.xpose.msra.mxu0 0
    %2205 = vmatprep.subr.bf16.mxu0 0
    %2206 = vmatpush1.bf16.xpose.msra.mxu0 0
    %2207 = vmatprep.subr.bf16.mxu0 0
    %2208 = vmatpush1.bf16.xpose.msra.mxu0 0
    %2209 = vmatprep.subr.bf16.mxu0 0
    %2210 = vmatpush1.bf16.xpose.msra.mxu0 0
    %2211 = vmatprep.mubr.bf16.mxu0 0
    %2212 = vmatmul.mubr.bf16.gmra.mrb[0].mxu0 %v2168
    %v2213 = vpop.f32.mrb[0].mxu0
    %v2214 = vadd.f32 0.0, %v2213
    %v2215 = vpop.f32.mrb[0].mxu0
    %v2216 = vpop.f32.mrb[0].mxu0
    %v2217 = vadd.f32 0.0, %v2216
    %v2218 = vpop.f32.mrb[0].mxu0
    %2219 = vmatprep.mubr.bf16.mxu0 0
    %2220 = vmatmul.mubr.bf16.gmra.mrb[0].mxu0 %v2171
    %v2221 = vpop.f32.mrb[0].mxu0
    %v2222 = vadd.f32 0.0, %v2221
    %v2223 = vpop.f32.mrb[0].mxu0
    %v2224 = vpop.f32.mrb[0].mxu0
    %v2225 = vadd.f32 0.0, %v2224
    %v2226 = vpop.f32.mrb[0].mxu0
    %2227 = vdwg.mxu0
    %2228 = vrot.lane.b32.xlu0 %v564, 64
    %v2229 = vpop.permute.xlu0 %2228
    %2230 = vrot.lane.b32.xlu0 %v565, 64
    %v2231 = vpop.permute.xlu0 %2230
    %2232 = vrot.lane.b32.xlu0 %v572, 64
    %v2233 = vpop.permute.xlu0 %2232
    %2234 = vrot.lane.b32.xlu0 %v573, 64
    %v2235 = vpop.permute.xlu0 %2234
    %v2237 = vsel %vm584, %v2229, 0
    %v2240 = vsel %vm584, %v2231, 0
    %v2243 = vsel %vm584, %v2233, 0
    %v2246 = vsel %vm584, %v2235, 0
    %2248 = vmatprep.subr.bf16.mxu0 0
    %2249 = vmatpush1.bf16.xpose.msra.mxu0 %v2243
    %2250 = vmatprep.subr.bf16.mxu0 0
    %2251 = vmatpush1.bf16.xpose.msra.mxu0 %v2246
    %2252 = vmatprep.subr.bf16.mxu0 0
    %2253 = vmatpush1.bf16.xpose.msra.mxu0 0
    %2254 = vmatprep.subr.bf16.mxu0 0
    %2255 = vmatpush1.bf16.xpose.msra.mxu0 0
    %2256 = vmatprep.subr.bf16.mxu0 0
    %2257 = vmatpush1.bf16.xpose.msra.mxu0 0
    %2258 = vmatprep.subr.bf16.mxu0 0
    %2259 = vmatpush1.bf16.xpose.msra.mxu0 0
    %2260 = vmatprep.subr.bf16.mxu0 0
    %2261 = vmatpush1.bf16.xpose.msra.mxu0 0
    %2262 = vmatprep.subr.bf16.mxu0 0
    %2263 = vmatpush1.bf16.xpose.msra.mxu0 0
    %2264 = vmatprep.subr.bf16.mxu0 0
    %2265 = vmatpush1.bf16.xpose.msra.mxu0 0
    %2266 = vmatprep.subr.bf16.mxu0 0
    %2267 = vmatpush1.bf16.xpose.msra.mxu0 0
    %2268 = vmatprep.subr.bf16.mxu0 0
    %2269 = vmatpush1.bf16.xpose.msra.mxu0 0
    %2270 = vmatprep.subr.bf16.mxu0 0
    %2271 = vmatpush1.bf16.xpose.msra.mxu0 0
    %2272 = vmatprep.subr.bf16.mxu0 0
    %2273 = vmatpush1.bf16.xpose.msra.mxu0 0
    %2274 = vmatprep.subr.bf16.mxu0 0
    %2275 = vmatpush1.bf16.xpose.msra.mxu0 0
    %2276 = vmatprep.subr.bf16.mxu0 0
    %2277 = vmatpush1.bf16.xpose.msra.mxu0 0
    %2278 = vmatprep.subr.bf16.mxu0 0
    %2279 = vmatpush1.bf16.xpose.msra.mxu0 0
    %2280 = vmatprep.mubr.bf16.mxu0 0
    %2281 = vmatmul.mubr.bf16.gmra.mrb[0].mxu0 %v2237
    %v2282 = vpop.f32.mrb[0].mxu0
    %v2283 = vadd.f32 0.0, %v2282
    %v2284 = vpop.f32.mrb[0].mxu0
    %v2285 = vpop.f32.mrb[0].mxu0
    %v2286 = vadd.f32 0.0, %v2285
    %v2287 = vpop.f32.mrb[0].mxu0
    %2288 = vmatprep.mubr.bf16.mxu0 0
    %2289 = vmatmul.mubr.bf16.gmra.mrb[0].mxu0 %v2240
    %v2290 = vpop.f32.mrb[0].mxu0
    %v2291 = vadd.f32 0.0, %v2290
    %v2292 = vpop.f32.mrb[0].mxu0
    %v2293 = vpop.f32.mrb[0].mxu0
    %v2294 = vadd.f32 0.0, %v2293
    %v2295 = vpop.f32.mrb[0].mxu0
    %2296 = vdwg.mxu0
    %2297 = vrot.lane.b32.xlu0 %v566, 64
    %v2298 = vpop.permute.xlu0 %2297
    %2299 = vrot.lane.b32.xlu0 %v567, 64
    %v2300 = vpop.permute.xlu0 %2299
    %2301 = vrot.lane.b32.xlu0 %v574, 64
    %v2302 = vpop.permute.xlu0 %2301
    %2303 = vrot.lane.b32.xlu0 %v575, 64
    %v2304 = vpop.permute.xlu0 %2303
    %v2306 = vsel %vm584, %v2298, 0
    %v2309 = vsel %vm584, %v2300, 0
    %v2312 = vsel %vm584, %v2302, 0
    %v2315 = vsel %vm584, %v2304, 0
    %2317 = vmatprep.subr.bf16.mxu0 0
    %2318 = vmatpush1.bf16.xpose.msra.mxu0 %v2312
    %2319 = vmatprep.subr.bf16.mxu0 0
    %2320 = vmatpush1.bf16.xpose.msra.mxu0 %v2315
    %2321 = vmatprep.subr.bf16.mxu0 0
    %2322 = vmatpush1.bf16.xpose.msra.mxu0 0
    %2323 = vmatprep.subr.bf16.mxu0 0
    %2324 = vmatpush1.bf16.xpose.msra.mxu0 0
    %2325 = vmatprep.subr.bf16.mxu0 0
    %2326 = vmatpush1.bf16.xpose.msra.mxu0 0
    %2327 = vmatprep.subr.bf16.mxu0 0
    %2328 = vmatpush1.bf16.xpose.msra.mxu0 0
    %2329 = vmatprep.subr.bf16.mxu0 0
    %2330 = vmatpush1.bf16.xpose.msra.mxu0 0
    %2331 = vmatprep.subr.bf16.mxu0 0
    %2332 = vmatpush1.bf16.xpose.msra.mxu0 0
    %2333 = vmatprep.subr.bf16.mxu0 0
    %2334 = vmatpush1.bf16.xpose.msra.mxu0 0
    %2335 = vmatprep.subr.bf16.mxu0 0
    %2336 = vmatpush1.bf16.xpose.msra.mxu0 0
    %2337 = vmatprep.subr.bf16.mxu0 0
    %2338 = vmatpush1.bf16.xpose.msra.mxu0 0
    %2339 = vmatprep.subr.bf16.mxu0 0
    %2340 = vmatpush1.bf16.xpose.msra.mxu0 0
    %2341 = vmatprep.subr.bf16.mxu0 0
    %2342 = vmatpush1.bf16.xpose.msra.mxu0 0
    %2343 = vmatprep.subr.bf16.mxu0 0
    %2344 = vmatpush1.bf16.xpose.msra.mxu0 0
    %2345 = vmatprep.subr.bf16.mxu0 0
    %2346 = vmatpush1.bf16.xpose.msra.mxu0 0
    %2347 = vmatprep.subr.bf16.mxu0 0
    %2348 = vmatpush1.bf16.xpose.msra.mxu0 0
    %2349 = vmatprep.mubr.bf16.mxu0 0
    %2350 = vmatmul.mubr.bf16.gmra.mrb[0].mxu0 %v2306
    %v2351 = vpop.f32.mrb[0].mxu0
    %v2352 = vadd.f32 0.0, %v2351
    %v2353 = vpop.f32.mrb[0].mxu0
    %v2354 = vpop.f32.mrb[0].mxu0
    %v2355 = vadd.f32 0.0, %v2354
    %v2356 = vpop.f32.mrb[0].mxu0
    %2357 = vmatprep.mubr.bf16.mxu0 0
    %2358 = vmatmul.mubr.bf16.gmra.mrb[0].mxu0 %v2309
    %v2359 = vpop.f32.mrb[0].mxu0
    %v2360 = vadd.f32 0.0, %v2359
    %v2361 = vpop.f32.mrb[0].mxu0
    %v2362 = vpop.f32.mrb[0].mxu0
    %v2363 = vadd.f32 0.0, %v2362
    %v2364 = vpop.f32.mrb[0].mxu0
    %2365 = vdwg.mxu0
    %v2366 = vmul.f32 %v2145, 0.28867513
    %v2367 = vmul.f32 %v2148, 0.28867513
    %v2368 = vmul.f32 %v2153, 0.28867513
    %v2369 = vmul.f32 %v2156, 0.28867513
    %v2370 = vmul.f32 %v2214, 0.28867513
    %v2371 = vmul.f32 %v2217, 0.28867513
    %v2372 = vmul.f32 %v2222, 0.28867513
    %v2373 = vmul.f32 %v2225, 0.28867513
    %v2374 = vmul.f32 %v2283, 0.28867513
    %v2375 = vmul.f32 %v2286, 0.28867513
    %v2376 = vmul.f32 %v2291, 0.28867513
    %v2377 = vmul.f32 %v2294, 0.28867513
    %v2378 = vmul.f32 %v2352, 0.28867513
    %v2379 = vmul.f32 %v2355, 0.28867513
    %v2380 = vmul.f32 %v2360, 0.28867513
    %v2381 = vmul.f32 %v2363, 0.28867513
    %v2382 = vadd.f32 %v2366, %v556
    %v2383 = vadd.f32 %v2367, %v557
    %v2384 = vadd.f32 %v2368, %v558
    %v2385 = vadd.f32 %v2369, %v559
    %v2386 = vadd.f32 %v2370, %v556
    %v2387 = vadd.f32 %v2371, %v557
    %v2388 = vadd.f32 %v2372, %v558
    %v2389 = vadd.f32 %v2373, %v559
    %v2390 = vadd.f32 %v2374, %v556
    %v2391 = vadd.f32 %v2375, %v557
    %v2392 = vadd.f32 %v2376, %v558
    %v2393 = vadd.f32 %v2377, %v559
    %v2394 = vadd.f32 %v2378, %v556
    %v2395 = vadd.f32 %v2379, %v557
    %v2396 = vadd.f32 %v2380, %v558
    %v2397 = vadd.f32 %v2381, %v559
    %v2398 = vsel %vm584, %v2382, -inf
    %2399 = vmax.xlane.f32.xlu0 %v2398
    %v2400 = vpop.xlane.xlu0 %2399
    %v2401 = vsel %vm584, %v2383, -inf
    %2402 = vmax.xlane.f32.xlu0 %v2401
    %v2403 = vpop.xlane.xlu0 %2402
    %v2404 = vsel %vm584, %v2384, -inf
    %2405 = vmax.xlane.f32.xlu0 %v2404
    %v2406 = vpop.xlane.xlu0 %2405
    %v2407 = vsel %vm584, %v2385, -inf
    %2408 = vmax.xlane.f32.xlu0 %v2407
    %v2409 = vpop.xlane.xlu0 %2408
    %v2410 = vsel %vm584, %v2386, -inf
    %2411 = vmax.xlane.f32.xlu0 %v2410
    %v2412 = vpop.xlane.xlu0 %2411
    %v2413 = vsel %vm584, %v2387, -inf
    %2414 = vmax.xlane.f32.xlu0 %v2413
    %v2415 = vpop.xlane.xlu0 %2414
    %v2416 = vsel %vm584, %v2388, -inf
    %2417 = vmax.xlane.f32.xlu0 %v2416
    %v2418 = vpop.xlane.xlu0 %2417
    %v2419 = vsel %vm584, %v2389, -inf
    %2420 = vmax.xlane.f32.xlu0 %v2419
    %v2421 = vpop.xlane.xlu0 %2420
    %v2422 = vsel %vm584, %v2390, -inf
    %2423 = vmax.xlane.f32.xlu0 %v2422
    %v2424 = vpop.xlane.xlu0 %2423
    %v2425 = vsel %vm584, %v2391, -inf
    %2426 = vmax.xlane.f32.xlu0 %v2425
    %v2427 = vpop.xlane.xlu0 %2426
    %v2428 = vsel %vm584, %v2392, -inf
    %2429 = vmax.xlane.f32.xlu0 %v2428
    %v2430 = vpop.xlane.xlu0 %2429
    %v2431 = vsel %vm584, %v2393, -inf
    %2432 = vmax.xlane.f32.xlu0 %v2431
    %v2433 = vpop.xlane.xlu0 %2432
    %v2434 = vsel %vm584, %v2394, -inf
    %2435 = vmax.xlane.f32.xlu0 %v2434
    %v2436 = vpop.xlane.xlu0 %2435
    %v2437 = vsel %vm584, %v2395, -inf
    %2438 = vmax.xlane.f32.xlu0 %v2437
    %v2439 = vpop.xlane.xlu0 %2438
    %v2440 = vsel %vm584, %v2396, -inf
    %2441 = vmax.xlane.f32.xlu0 %v2440
    %v2442 = vpop.xlane.xlu0 %2441
    %v2443 = vsel %vm584, %v2397, -inf
    %2444 = vmax.xlane.f32.xlu0 %v2443
    %v2445 = vpop.xlane.xlu0 %2444
    %v2446 = vsub.f32 %v2382, %v2400
    %v2447 = vsub.f32 %v2383, %v2403
    %v2448 = vsub.f32 %v2384, %v2406
    %v2449 = vsub.f32 %v2385, %v2409
    %v2450 = vsub.f32 %v2386, %v2412
    %v2451 = vsub.f32 %v2387, %v2415
    %v2452 = vsub.f32 %v2388, %v2418
    %v2453 = vsub.f32 %v2389, %v2421
    %v2454 = vsub.f32 %v2390, %v2424
    %v2455 = vsub.f32 %v2391, %v2427
    %v2456 = vsub.f32 %v2392, %v2430
    %v2457 = vsub.f32 %v2393, %v2433
    %v2458 = vsub.f32 %v2394, %v2436
    %v2459 = vsub.f32 %v2395, %v2439
    %v2460 = vsub.f32 %v2396, %v2442
    %v2461 = vsub.f32 %v2397, %v2445
    %v2462 = vmul.f32 %v2446, 1.442695
    %v2463 = vpow.pop %v2462
    %v2464 = vmul.f32 %v2447, 1.442695
    %v2465 = vpow.pop %v2464
    %v2466 = vmul.f32 %v2448, 1.442695
    %v2467 = vpow.pop %v2466
    %v2468 = vmul.f32 %v2449, 1.442695
    %v2469 = vpow.pop %v2468
    %v2470 = vmul.f32 %v2450, 1.442695
    %v2471 = vpow.pop %v2470
    %v2472 = vmul.f32 %v2451, 1.442695
    %v2473 = vpow.pop %v2472
    %v2474 = vmul.f32 %v2452, 1.442695
    %v2475 = vpow.pop %v2474
    %v2476 = vmul.f32 %v2453, 1.442695
    %v2477 = vpow.pop %v2476
    %v2478 = vmul.f32 %v2454, 1.442695
    %v2479 = vpow.pop %v2478
    %v2480 = vmul.f32 %v2455, 1.442695
    %v2481 = vpow.pop %v2480
    %v2482 = vmul.f32 %v2456, 1.442695
    %v2483 = vpow.pop %v2482
    %v2484 = vmul.f32 %v2457, 1.442695
    %v2485 = vpow.pop %v2484
    %v2486 = vmul.f32 %v2458, 1.442695
    %v2487 = vpow.pop %v2486
    %v2488 = vmul.f32 %v2459, 1.442695
    %v2489 = vpow.pop %v2488
    %v2490 = vmul.f32 %v2460, 1.442695
    %v2491 = vpow.pop %v2490
    %v2492 = vmul.f32 %v2461, 1.442695
    %v2493 = vpow.pop %v2492
    %v2494 = vsel %vm584, %v2463, 0.0
    %2495 = vadd.xlane.f32.xlu0 %v2494
    %v2496 = vpop.xlane.xlu0 %2495
    %v2497 = vsel %vm584, %v2465, 0.0
    %2498 = vadd.xlane.f32.xlu0 %v2497
    %v2499 = vpop.xlane.xlu0 %2498
    %v2500 = vsel %vm584, %v2467, 0.0
    %2501 = vadd.xlane.f32.xlu0 %v2500
    %v2502 = vpop.xlane.xlu0 %2501
    %v2503 = vsel %vm584, %v2469, 0.0
    %2504 = vadd.xlane.f32.xlu0 %v2503
    %v2505 = vpop.xlane.xlu0 %2504
    %v2506 = vsel %vm584, %v2471, 0.0
    %2507 = vadd.xlane.f32.xlu0 %v2506
    %v2508 = vpop.xlane.xlu0 %2507
    %v2509 = vsel %vm584, %v2473, 0.0
    %2510 = vadd.xlane.f32.xlu0 %v2509
    %v2511 = vpop.xlane.xlu0 %2510
    %v2512 = vsel %vm584, %v2475, 0.0
    %2513 = vadd.xlane.f32.xlu0 %v2512
    %v2514 = vpop.xlane.xlu0 %2513
    %v2515 = vsel %vm584, %v2477, 0.0
    %2516 = vadd.xlane.f32.xlu0 %v2515
    %v2517 = vpop.xlane.xlu0 %2516
    %v2518 = vsel %vm584, %v2479, 0.0
    %2519 = vadd.xlane.f32.xlu0 %v2518
    %v2520 = vpop.xlane.xlu0 %2519
    %v2521 = vsel %vm584, %v2481, 0.0
    %2522 = vadd.xlane.f32.xlu0 %v2521
    %v2523 = vpop.xlane.xlu0 %2522
    %v2524 = vsel %vm584, %v2483, 0.0
    %2525 = vadd.xlane.f32.xlu0 %v2524
    %v2526 = vpop.xlane.xlu0 %2525
    %v2527 = vsel %vm584, %v2485, 0.0
    %2528 = vadd.xlane.f32.xlu0 %v2527
    %v2529 = vpop.xlane.xlu0 %2528
    %v2530 = vsel %vm584, %v2487, 0.0
    %2531 = vadd.xlane.f32.xlu0 %v2530
    %v2532 = vpop.xlane.xlu0 %2531
    %v2533 = vsel %vm584, %v2489, 0.0
    %2534 = vadd.xlane.f32.xlu0 %v2533
    %v2535 = vpop.xlane.xlu0 %2534
    %v2536 = vsel %vm584, %v2491, 0.0
    %2537 = vadd.xlane.f32.xlu0 %v2536
    %v2538 = vpop.xlane.xlu0 %2537
    %v2539 = vsel %vm584, %v2493, 0.0
    %2540 = vadd.xlane.f32.xlu0 %v2539
    %v2541 = vpop.xlane.xlu0 %2540
    %v2542 = vrcp.pop %v2496
    %v2543 = vrcp.pop %v2499
    %v2544 = vrcp.pop %v2502
    %v2545 = vrcp.pop %v2505
    %v2546 = vrcp.pop %v2508
    %v2547 = vrcp.pop %v2511
    %v2548 = vrcp.pop %v2514
    %v2549 = vrcp.pop %v2517
    %v2550 = vrcp.pop %v2520
    %v2551 = vrcp.pop %v2523
    %v2552 = vrcp.pop %v2526
    %v2553 = vrcp.pop %v2529
    %v2554 = vrcp.pop %v2532
    %v2555 = vrcp.pop %v2535
    %v2556 = vrcp.pop %v2538
    %v2557 = vrcp.pop %v2541
    %v2558 = vmul.f32 %v2463, %v2542
    %v2559 = vmul.f32 %v2465, %v2543
    %v2560 = vmul.f32 %v2467, %v2544
    %v2561 = vmul.f32 %v2469, %v2545
    %v2562 = vmul.f32 %v2471, %v2546
    %v2563 = vmul.f32 %v2473, %v2547
    %v2564 = vmul.f32 %v2475, %v2548
    %v2565 = vmul.f32 %v2477, %v2549
    %v2566 = vmul.f32 %v2479, %v2550
    %v2567 = vmul.f32 %v2481, %v2551
    %v2568 = vmul.f32 %v2483, %v2552
    %v2569 = vmul.f32 %v2485, %v2553
    %v2570 = vmul.f32 %v2487, %v2554
    %v2571 = vmul.f32 %v2489, %v2555
    %v2572 = vmul.f32 %v2491, %v2556
    %v2573 = vmul.f32 %v2493, %v2557
    %v2574 = vpack.c.bf16 %v2559, %v2558
    %v2575 = vpack.c.bf16 %v2561, %v2560
    %v2576 = vpack.c.bf16 %v2563, %v2562
    %v2577 = vpack.c.bf16 %v2565, %v2564
    %v2578 = vpack.c.bf16 %v2567, %v2566
    %v2579 = vpack.c.bf16 %v2569, %v2568
    %v2580 = vpack.c.bf16 %v2571, %v2570
    %v2581 = vpack.c.bf16 %v2573, %v2572
    %2582 = vrot.lane.b32.xlu0 %v576, 64
    %v2583 = vpop.permute.xlu0 %2582
    %2584 = vrot.lane.b32.xlu0 %v577, 64
    %v2585 = vpop.permute.xlu0 %2584
    %v2589 = vsel %vm584, %v2574, 0
    %v2592 = vsel %vm584, %v2575, 0
    %2594 = vmatprep.subr.bf16.mxu0 0
    %2595 = vmatpush1.bf16.msra.mxu0 %v2583
    %2596 = vmatprep.subr.bf16.mxu0 0
    %2597 = vmatpush1.bf16.msra.mxu0 %v2585
    %2598 = vmatprep.subr.bf16.mxu0 0
    %2599 = vmatpush1.bf16.msra.mxu0 0
    %2600 = vmatprep.subr.bf16.mxu0 0
    %2601 = vmatpush1.bf16.msra.mxu0 0
    %2602 = vmatprep.subr.bf16.mxu0 0
    %2603 = vmatpush1.bf16.msra.mxu0 0
    %2604 = vmatprep.subr.bf16.mxu0 0
    %2605 = vmatpush1.bf16.msra.mxu0 0
    %2606 = vmatprep.subr.bf16.mxu0 0
    %2607 = vmatpush1.bf16.msra.mxu0 0
    %2608 = vmatprep.subr.bf16.mxu0 0
    %2609 = vmatpush1.bf16.msra.mxu0 0
    %2610 = vmatprep.subr.bf16.mxu0 0
    %2611 = vmatpush1.bf16.msra.mxu0 0
    %2612 = vmatprep.subr.bf16.mxu0 0
    %2613 = vmatpush1.bf16.msra.mxu0 0
    %2614 = vmatprep.subr.bf16.mxu0 0
    %2615 = vmatpush1.bf16.msra.mxu0 0
    %2616 = vmatprep.subr.bf16.mxu0 0
    %2617 = vmatpush1.bf16.msra.mxu0 0
    %2618 = vmatprep.subr.bf16.mxu0 0
    %2619 = vmatpush1.bf16.msra.mxu0 0
    %2620 = vmatprep.subr.bf16.mxu0 0
    %2621 = vmatpush1.bf16.msra.mxu0 0
    %2622 = vmatprep.subr.bf16.mxu0 0
    %2623 = vmatpush1.bf16.msra.mxu0 0
    %2624 = vmatprep.subr.bf16.mxu0 0
    %2625 = vmatpush1.bf16.msra.mxu0 0
    %2626 = vmatprep.mubr.bf16.mxu0 0
    %2627 = vmatmul.mubr.bf16.gmra.mrb[0].mxu0 %v2589
    %v2628 = vpop.f32.mrb[0].mxu0
    %v2629 = vadd.f32 0.0, %v2628
    %v2630 = vpop.f32.mrb[0].mxu0
    %v2631 = vpop.f32.mrb[0].mxu0
    %v2632 = vadd.f32 0.0, %v2631
    %v2633 = vpop.f32.mrb[0].mxu0
    %2634 = vmatprep.mubr.bf16.mxu0 0
    %2635 = vmatmul.mubr.bf16.gmra.mrb[0].mxu0 %v2592
    %v2636 = vpop.f32.mrb[0].mxu0
    %v2637 = vadd.f32 0.0, %v2636
    %v2638 = vpop.f32.mrb[0].mxu0
    %v2639 = vpop.f32.mrb[0].mxu0
    %v2640 = vadd.f32 0.0, %v2639
    %v2641 = vpop.f32.mrb[0].mxu0
    %2642 = vdwg.mxu0
    %2643 = vrot.lane.b32.xlu0 %v578, 64
    %v2644 = vpop.permute.xlu0 %2643
    %2645 = vrot.lane.b32.xlu0 %v579, 64
    %v2646 = vpop.permute.xlu0 %2645
    %v2650 = vsel %vm584, %v2576, 0
    %v2653 = vsel %vm584, %v2577, 0
    %2655 = vmatprep.subr.bf16.mxu0 0
    %2656 = vmatpush1.bf16.msra.mxu0 %v2644
    %2657 = vmatprep.subr.bf16.mxu0 0
    %2658 = vmatpush1.bf16.msra.mxu0 %v2646
    %2659 = vmatprep.subr.bf16.mxu0 0
    %2660 = vmatpush1.bf16.msra.mxu0 0
    %2661 = vmatprep.subr.bf16.mxu0 0
    %2662 = vmatpush1.bf16.msra.mxu0 0
    %2663 = vmatprep.subr.bf16.mxu0 0
    %2664 = vmatpush1.bf16.msra.mxu0 0
    %2665 = vmatprep.subr.bf16.mxu0 0
    %2666 = vmatpush1.bf16.msra.mxu0 0
    %2667 = vmatprep.subr.bf16.mxu0 0
    %2668 = vmatpush1.bf16.msra.mxu0 0
    %2669 = vmatprep.subr.bf16.mxu0 0
    %2670 = vmatpush1.bf16.msra.mxu0 0
    %2671 = vmatprep.subr.bf16.mxu0 0
    %2672 = vmatpush1.bf16.msra.mxu0 0
    %2673 = vmatprep.subr.bf16.mxu0 0
    %2674 = vmatpush1.bf16.msra.mxu0 0
    %2675 = vmatprep.subr.bf16.mxu0 0
    %2676 = vmatpush1.bf16.msra.mxu0 0
    %2677 = vmatprep.subr.bf16.mxu0 0
    %2678 = vmatpush1.bf16.msra.mxu0 0
    %2679 = vmatprep.subr.bf16.mxu0 0
    %2680 = vmatpush1.bf16.msra.mxu0 0
    %2681 = vmatprep.subr.bf16.mxu0 0
    %2682 = vmatpush1.bf16.msra.mxu0 0
    %2683 = vmatprep.subr.bf16.mxu0 0
    %2684 = vmatpush1.bf16.msra.mxu0 0
    %2685 = vmatprep.subr.bf16.mxu0 0
    %2686 = vmatpush1.bf16.msra.mxu0 0
    %2687 = vmatprep.mubr.bf16.mxu0 0
    %2688 = vmatmul.mubr.bf16.gmra.mrb[0].mxu0 %v2650
    %v2689 = vpop.f32.mrb[0].mxu0
    %v2690 = vadd.f32 0.0, %v2689
    %v2691 = vpop.f32.mrb[0].mxu0
    %v2692 = vpop.f32.mrb[0].mxu0
    %v2693 = vadd.f32 0.0, %v2692
    %v2694 = vpop.f32.mrb[0].mxu0
    %2695 = vmatprep.mubr.bf16.mxu0 0
    %2696 = vmatmul.mubr.bf16.gmra.mrb[0].mxu0 %v2653
    %v2697 = vpop.f32.mrb[0].mxu0
    %v2698 = vadd.f32 0.0, %v2697
    %v2699 = vpop.f32.mrb[0].mxu0
    %v2700 = vpop.f32.mrb[0].mxu0
    %v2701 = vadd.f32 0.0, %v2700
    %v2702 = vpop.f32.mrb[0].mxu0
    %2703 = vdwg.mxu0
    %2704 = vrot.lane.b32.xlu0 %v580, 64
    %v2705 = vpop.permute.xlu0 %2704
    %2706 = vrot.lane.b32.xlu0 %v581, 64
    %v2707 = vpop.permute.xlu0 %2706
    %v2711 = vsel %vm584, %v2578, 0
    %v2714 = vsel %vm584, %v2579, 0
    %2716 = vmatprep.subr.bf16.mxu0 0
    %2717 = vmatpush1.bf16.msra.mxu0 %v2705
    %2718 = vmatprep.subr.bf16.mxu0 0
    %2719 = vmatpush1.bf16.msra.mxu0 %v2707
    %2720 = vmatprep.subr.bf16.mxu0 0
    %2721 = vmatpush1.bf16.msra.mxu0 0
    %2722 = vmatprep.subr.bf16.mxu0 0
    %2723 = vmatpush1.bf16.msra.mxu0 0
    %2724 = vmatprep.subr.bf16.mxu0 0
    %2725 = vmatpush1.bf16.msra.mxu0 0
    %2726 = vmatprep.subr.bf16.mxu0 0
    %2727 = vmatpush1.bf16.msra.mxu0 0
    %2728 = vmatprep.subr.bf16.mxu0 0
    %2729 = vmatpush1.bf16.msra.mxu0 0
    %2730 = vmatprep.subr.bf16.mxu0 0
    %2731 = vmatpush1.bf16.msra.mxu0 0
    %2732 = vmatprep.subr.bf16.mxu0 0
    %2733 = vmatpush1.bf16.msra.mxu0 0
    %2734 = vmatprep.subr.bf16.mxu0 0
    %2735 = vmatpush1.bf16.msra.mxu0 0
    %2736 = vmatprep.subr.bf16.mxu0 0
    %2737 = vmatpush1.bf16.msra.mxu0 0
    %2738 = vmatprep.subr.bf16.mxu0 0
    %2739 = vmatpush1.bf16.msra.mxu0 0
    %2740 = vmatprep.subr.bf16.mxu0 0
    %2741 = vmatpush1.bf16.msra.mxu0 0
    %2742 = vmatprep.subr.bf16.mxu0 0
    %2743 = vmatpush1.bf16.msra.mxu0 0
    %2744 = vmatprep.subr.bf16.mxu0 0
    %2745 = vmatpush1.bf16.msra.mxu0 0
    %2746 = vmatprep.subr.bf16.mxu0 0
    %2747 = vmatpush1.bf16.msra.mxu0 0
    %2748 = vmatprep.mubr.bf16.mxu0 0
    %2749 = vmatmul.mubr.bf16.gmra.mrb[0].mxu0 %v2711
    %v2750 = vpop.f32.mrb[0].mxu0
    %v2751 = vadd.f32 0.0, %v2750
    %v2752 = vpop.f32.mrb[0].mxu0
    %v2753 = vpop.f32.mrb[0].mxu0
    %v2754 = vadd.f32 0.0, %v2753
    %v2755 = vpop.f32.mrb[0].mxu0
    %2756 = vmatprep.mubr.bf16.mxu0 0
    %2757 = vmatmul.mubr.bf16.gmra.mrb[0].mxu0 %v2714
    %v2758 = vpop.f32.mrb[0].mxu0
    %v2759 = vadd.f32 0.0, %v2758
    %v2760 = vpop.f32.mrb[0].mxu0
    %v2761 = vpop.f32.mrb[0].mxu0
    %v2762 = vadd.f32 0.0, %v2761
    %v2763 = vpop.f32.mrb[0].mxu0
    %2764 = vdwg.mxu0
    %2765 = vrot.lane.b32.xlu0 %v582, 64
    %v2766 = vpop.permute.xlu0 %2765
    %2767 = vrot.lane.b32.xlu0 %v583, 64
    %v2768 = vpop.permute.xlu0 %2767
    %v2772 = vsel %vm584, %v2580, 0
    %v2775 = vsel %vm584, %v2581, 0
    %2777 = vmatprep.subr.bf16.mxu0 0
    %2778 = vmatpush1.bf16.msra.mxu0 %v2766
    %2779 = vmatprep.subr.bf16.mxu0 0
    %2780 = vmatpush1.bf16.msra.mxu0 %v2768
    %2781 = vmatprep.subr.bf16.mxu0 0
    %2782 = vmatpush1.bf16.msra.mxu0 0
    %2783 = vmatprep.subr.bf16.mxu0 0
    %2784 = vmatpush1.bf16.msra.mxu0 0
    %2785 = vmatprep.subr.bf16.mxu0 0
    %2786 = vmatpush1.bf16.msra.mxu0 0
    %2787 = vmatprep.subr.bf16.mxu0 0
    %2788 = vmatpush1.bf16.msra.mxu0 0
    %2789 = vmatprep.subr.bf16.mxu0 0
    %2790 = vmatpush1.bf16.msra.mxu0 0
    %2791 = vmatprep.subr.bf16.mxu0 0
    %2792 = vmatpush1.bf16.msra.mxu0 0
    %2793 = vmatprep.subr.bf16.mxu0 0
    %2794 = vmatpush1.bf16.msra.mxu0 0
    %2795 = vmatprep.subr.bf16.mxu0 0
    %2796 = vmatpush1.bf16.msra.mxu0 0
    %2797 = vmatprep.subr.bf16.mxu0 0
    %2798 = vmatpush1.bf16.msra.mxu0 0
    %2799 = vmatprep.subr.bf16.mxu0 0
    %2800 = vmatpush1.bf16.msra.mxu0 0
    %2801 = vmatprep.subr.bf16.mxu0 0
    %2802 = vmatpush1.bf16.msra.mxu0 0
    %2803 = vmatprep.subr.bf16.mxu0 0
    %2804 = vmatpush1.bf16.msra.mxu0 0
    %2805 = vmatprep.subr.bf16.mxu0 0
    %2806 = vmatpush1.bf16.msra.mxu0 0
    %2807 = vmatprep.subr.bf16.mxu0 0
    %2808 = vmatpush1.bf16.msra.mxu0 0
    %2809 = vmatprep.mubr.bf16.mxu0 0
    %2810 = vmatmul.mubr.bf16.gmra.mrb[0].mxu0 %v2772
    %v2811 = vpop.f32.mrb[0].mxu0
    %v2812 = vadd.f32 0.0, %v2811
    %v2813 = vpop.f32.mrb[0].mxu0
    %v2814 = vpop.f32.mrb[0].mxu0
    %v2815 = vadd.f32 0.0, %v2814
    %v2816 = vpop.f32.mrb[0].mxu0
    %2817 = vmatprep.mubr.bf16.mxu0 0
    %2818 = vmatmul.mubr.bf16.gmra.mrb[0].mxu0 %v2775
    %v2819 = vpop.f32.mrb[0].mxu0
    %v2820 = vadd.f32 0.0, %v2819
    %v2821 = vpop.f32.mrb[0].mxu0
    %v2822 = vpop.f32.mrb[0].mxu0
    %v2823 = vadd.f32 0.0, %v2822
    %v2824 = vpop.f32.mrb[0].mxu0
    %2825 = vdwg.mxu0
    %v2826 = vpack.c.bf16 %v2632, %v2629
    %v2827 = vpack.c.bf16 %v2640, %v2637
    %v2828 = vpack.c.bf16 %v2693, %v2690
    %v2829 = vpack.c.bf16 %v2701, %v2698
    %v2830 = vpack.c.bf16 %v2754, %v2751
    %v2831 = vpack.c.bf16 %v2762, %v2759
    %v2832 = vpack.c.bf16 %v2815, %v2812
    %v2833 = vpack.c.bf16 %v2823, %v2820
    %2842 = vrot.lane.b32.xlu0 %v2826, 64
    %v2843 = vpop.permute.xlu0 %2842
    %2844 = vrot.lane.b32.xlu0 %v2827, 64
    %v2845 = vpop.permute.xlu0 %2844
    %2846 = vrot.lane.b32.xlu0 %v2828, 64
    %v2847 = vpop.permute.xlu0 %2846
    %2848 = vrot.lane.b32.xlu0 %v2829, 64
    %v2849 = vpop.permute.xlu0 %2848
    %2850 = vrot.lane.b32.xlu0 %v2830, 64
    %v2851 = vpop.permute.xlu0 %2850
    %2852 = vrot.lane.b32.xlu0 %v2831, 64
    %v2853 = vpop.permute.xlu0 %2852
    %2854 = vrot.lane.b32.xlu0 %v2832, 64
    %v2855 = vpop.permute.xlu0 %2854
    %2856 = vrot.lane.b32.xlu0 %v2833, 64
    %v2857 = vpop.permute.xlu0 %2856
    %vm2866 = vcmask 785920
    %2867 = vst.msk [vmem:[#allocation2] sm:$0xff] %vm2866, %v2843
    %2868 = vst.msk [vmem:[#allocation2 + $0x8] sm:$0xff] %vm2866, %v2845
    %2869 = vst.msk [vmem:[#allocation2 + $0x10] sm:$0xff] %vm2866, %v2847
    %2870 = vst.msk [vmem:[#allocation2 + $0x18] sm:$0xff] %vm2866, %v2849
    %2871 = vst.msk [vmem:[#allocation2 + $0x20] sm:$0xff] %vm2866, %v2851
    %2872 = vst.msk [vmem:[#allocation2 + $0x28] sm:$0xff] %vm2866, %v2853
    %2873 = vst.msk [vmem:[#allocation2 + $0x30] sm:$0xff] %vm2866, %v2855
    %2874 = vst.msk [vmem:[#allocation2 + $0x38] sm:$0xff] %vm2866, %v2857
    %2875 = vrot.lane.b32.xlu0 %v560, 32
    %v2876 = vpop.permute.xlu0 %2875
    %2877 = vrot.lane.b32.xlu0 %v561, 32
    %v2878 = vpop.permute.xlu0 %2877
    %2879 = vrot.lane.b32.xlu0 %v568, 32
    %v2880 = vpop.permute.xlu0 %2879
    %2881 = vrot.lane.b32.xlu0 %v569, 32
    %v2882 = vpop.permute.xlu0 %2881
    %v2884 = vsel %vm584, %v2876, 0
    %v2887 = vsel %vm584, %v2878, 0
    %v2890 = vsel %vm584, %v2880, 0
    %v2893 = vsel %vm584, %v2882, 0
    %2895 = vmatprep.subr.bf16.mxu0 0
    %2896 = vmatpush1.bf16.xpose.msra.mxu0 %v2890
    %2897 = vmatprep.subr.bf16.mxu0 0
    %2898 = vmatpush1.bf16.xpose.msra.mxu0 %v2893
    %2899 = vmatprep.subr.bf16.mxu0 0
    %2900 = vmatpush1.bf16.xpose.msra.mxu0 0
    %2901 = vmatprep.subr.bf16.mxu0 0
    %2902 = vmatpush1.bf16.xpose.msra.mxu0 0
    %2903 = vmatprep.subr.bf16.mxu0 0
    %2904 = vmatpush1.bf16.xpose.msra.mxu0 0
    %2905 = vmatprep.subr.bf16.mxu0 0
    %2906 = vmatpush1.bf16.xpose.msra.mxu0 0
    %2907 = vmatprep.subr.bf16.mxu0 0
    %2908 = vmatpush1.bf16.xpose.msra.mxu0 0
    %2909 = vmatprep.subr.bf16.mxu0 0
    %2910 = vmatpush1.bf16.xpose.msra.mxu0 0
    %2911 = vmatprep.subr.bf16.mxu0 0
    %2912 = vmatpush1.bf16.xpose.msra.mxu0 0
    %2913 = vmatprep.subr.bf16.mxu0 0
    %2914 = vmatpush1.bf16.xpose.msra.mxu0 0
    %2915 = vmatprep.subr.bf16.mxu0 0
    %2916 = vmatpush1.bf16.xpose.msra.mxu0 0
    %2917 = vmatprep.subr.bf16.mxu0 0
    %2918 = vmatpush1.bf16.xpose.msra.mxu0 0
    %2919 = vmatprep.subr.bf16.mxu0 0
    %2920 = vmatpush1.bf16.xpose.msra.mxu0 0
    %2921 = vmatprep.subr.bf16.mxu0 0
    %2922 = vmatpush1.bf16.xpose.msra.mxu0 0
    %2923 = vmatprep.subr.bf16.mxu0 0
    %2924 = vmatpush1.bf16.xpose.msra.mxu0 0
    %2925 = vmatprep.subr.bf16.mxu0 0
    %2926 = vmatpush1.bf16.xpose.msra.mxu0 0
    %2927 = vmatprep.mubr.bf16.mxu0 0
    %2928 = vmatmul.mubr.bf16.gmra.mrb[0].mxu0 %v2884
    %v2929 = vpop.f32.mrb[0].mxu0
    %v2930 = vadd.f32 0.0, %v2929
    %v2931 = vpop.f32.mrb[0].mxu0
    %v2932 = vpop.f32.mrb[0].mxu0
    %v2933 = vadd.f32 0.0, %v2932
    %v2934 = vpop.f32.mrb[0].mxu0
    %2935 = vmatprep.mubr.bf16.mxu0 0
    %2936 = vmatmul.mubr.bf16.gmra.mrb[0].mxu0 %v2887
    %v2937 = vpop.f32.mrb[0].mxu0
    %v2938 = vadd.f32 0.0, %v2937
    %v2939 = vpop.f32.mrb[0].mxu0
    %v2940 = vpop.f32.mrb[0].mxu0
    %v2941 = vadd.f32 0.0, %v2940
    %v2942 = vpop.f32.mrb[0].mxu0
    %2943 = vdwg.mxu0
    %2944 = vrot.lane.b32.xlu0 %v562, 32
    %v2945 = vpop.permute.xlu0 %2944
    %2946 = vrot.lane.b32.xlu0 %v563, 32
    %v2947 = vpop.permute.xlu0 %2946
    %2948 = vrot.lane.b32.xlu0 %v570, 32
    %v2949 = vpop.permute.xlu0 %2948
    %2950 = vrot.lane.b32.xlu0 %v571, 32
    %v2951 = vpop.permute.xlu0 %2950
    %v2953 = vsel %vm584, %v2945, 0
    %v2956 = vsel %vm584, %v2947, 0
    %v2959 = vsel %vm584, %v2949, 0
    %v2962 = vsel %vm584, %v2951, 0
    %2964 = vmatprep.subr.bf16.mxu0 0
    %2965 = vmatpush1.bf16.xpose.msra.mxu0 %v2959
    %2966 = vmatprep.subr.bf16.mxu0 0
    %2967 = vmatpush1.bf16.xpose.msra.mxu0 %v2962
    %2968 = vmatprep.subr.bf16.mxu0 0
    %2969 = vmatpush1.bf16.xpose.msra.mxu0 0
    %2970 = vmatprep.subr.bf16.mxu0 0
    %2971 = vmatpush1.bf16.xpose.msra.mxu0 0
    %2972 = vmatprep.subr.bf16.mxu0 0
    %2973 = vmatpush1.bf16.xpose.msra.mxu0 0
    %2974 = vmatprep.subr.bf16.mxu0 0
    %2975 = vmatpush1.bf16.xpose.msra.mxu0 0
    %2976 = vmatprep.subr.bf16.mxu0 0
    %2977 = vmatpush1.bf16.xpose.msra.mxu0 0
    %2978 = vmatprep.subr.bf16.mxu0 0
    %2979 = vmatpush1.bf16.xpose.msra.mxu0 0
    %2980 = vmatprep.subr.bf16.mxu0 0
    %2981 = vmatpush1.bf16.xpose.msra.mxu0 0
    %2982 = vmatprep.subr.bf16.mxu0 0
    %2983 = vmatpush1.bf16.xpose.msra.mxu0 0
    %2984 = vmatprep.subr.bf16.mxu0 0
    %2985 = vmatpush1.bf16.xpose.msra.mxu0 0
    %2986 = vmatprep.subr.bf16.mxu0 0
    %2987 = vmatpush1.bf16.xpose.msra.mxu0 0
    %2988 = vmatprep.subr.bf16.mxu0 0
    %2989 = vmatpush1.bf16.xpose.msra.mxu0 0
    %2990 = vmatprep.subr.bf16.mxu0 0
    %2991 = vmatpush1.bf16.xpose.msra.mxu0 0
    %2992 = vmatprep.subr.bf16.mxu0 0
    %2993 = vmatpush1.bf16.xpose.msra.mxu0 0
    %2994 = vmatprep.subr.bf16.mxu0 0
    %2995 = vmatpush1.bf16.xpose.msra.mxu0 0
    %2996 = vmatprep.mubr.bf16.mxu0 0
    %2997 = vmatmul.mubr.bf16.gmra.mrb[0].mxu0 %v2953
    %v2998 = vpop.f32.mrb[0].mxu0
    %v2999 = vadd.f32 0.0, %v2998
    %v3000 = vpop.f32.mrb[0].mxu0
    %v3001 = vpop.f32.mrb[0].mxu0
    %v3002 = vadd.f32 0.0, %v3001
    %v3003 = vpop.f32.mrb[0].mxu0
    %3004 = vmatprep.mubr.bf16.mxu0 0
    %3005 = vmatmul.mubr.bf16.gmra.mrb[0].mxu0 %v2956
    %v3006 = vpop.f32.mrb[0].mxu0
    %v3007 = vadd.f32 0.0, %v3006
    %v3008 = vpop.f32.mrb[0].mxu0
    %v3009 = vpop.f32.mrb[0].mxu0
    %v3010 = vadd.f32 0.0, %v3009
    %v3011 = vpop.f32.mrb[0].mxu0
    %3012 = vdwg.mxu0
    %3013 = vrot.lane.b32.xlu0 %v564, 32
    %v3014 = vpop.permute.xlu0 %3013
    %3015 = vrot.lane.b32.xlu0 %v565, 32
    %v3016 = vpop.permute.xlu0 %3015
    %3017 = vrot.lane.b32.xlu0 %v572, 32
    %v3018 = vpop.permute.xlu0 %3017
    %3019 = vrot.lane.b32.xlu0 %v573, 32
    %v3020 = vpop.permute.xlu0 %3019
    %v3022 = vsel %vm584, %v3014, 0
    %v3025 = vsel %vm584, %v3016, 0
    %v3028 = vsel %vm584, %v3018, 0
    %v3031 = vsel %vm584, %v3020, 0
    %3033 = vmatprep.subr.bf16.mxu0 0
    %3034 = vmatpush1.bf16.xpose.msra.mxu0 %v3028
    %3035 = vmatprep.subr.bf16.mxu0 0
    %3036 = vmatpush1.bf16.xpose.msra.mxu0 %v3031
    %3037 = vmatprep.subr.bf16.mxu0 0
    %3038 = vmatpush1.bf16.xpose.msra.mxu0 0
    %3039 = vmatprep.subr.bf16.mxu0 0
    %3040 = vmatpush1.bf16.xpose.msra.mxu0 0
    %3041 = vmatprep.subr.bf16.mxu0 0
    %3042 = vmatpush1.bf16.xpose.msra.mxu0 0
    %3043 = vmatprep.subr.bf16.mxu0 0
    %3044 = vmatpush1.bf16.xpose.msra.mxu0 0
    %3045 = vmatprep.subr.bf16.mxu0 0
    %3046 = vmatpush1.bf16.xpose.msra.mxu0 0
    %3047 = vmatprep.subr.bf16.mxu0 0
    %3048 = vmatpush1.bf16.xpose.msra.mxu0 0
    %3049 = vmatprep.subr.bf16.mxu0 0
    %3050 = vmatpush1.bf16.xpose.msra.mxu0 0
    %3051 = vmatprep.subr.bf16.mxu0 0
    %3052 = vmatpush1.bf16.xpose.msra.mxu0 0
    %3053 = vmatprep.subr.bf16.mxu0 0
    %3054 = vmatpush1.bf16.xpose.msra.mxu0 0
    %3055 = vmatprep.subr.bf16.mxu0 0
    %3056 = vmatpush1.bf16.xpose.msra.mxu0 0
    %3057 = vmatprep.subr.bf16.mxu0 0
    %3058 = vmatpush1.bf16.xpose.msra.mxu0 0
    %3059 = vmatprep.subr.bf16.mxu0 0
    %3060 = vmatpush1.bf16.xpose.msra.mxu0 0
    %3061 = vmatprep.subr.bf16.mxu0 0
    %3062 = vmatpush1.bf16.xpose.msra.mxu0 0
    %3063 = vmatprep.subr.bf16.mxu0 0
    %3064 = vmatpush1.bf16.xpose.msra.mxu0 0
    %3065 = vmatprep.mubr.bf16.mxu0 0
    %3066 = vmatmul.mubr.bf16.gmra.mrb[0].mxu0 %v3022
    %v3067 = vpop.f32.mrb[0].mxu0
    %v3068 = vadd.f32 0.0, %v3067
    %v3069 = vpop.f32.mrb[0].mxu0
    %v3070 = vpop.f32.mrb[0].mxu0
    %v3071 = vadd.f32 0.0, %v3070
    %v3072 = vpop.f32.mrb[0].mxu0
    %3073 = vmatprep.mubr.bf16.mxu0 0
    %3074 = vmatmul.mubr.bf16.gmra.mrb[0].mxu0 %v3025
    %v3075 = vpop.f32.mrb[0].mxu0
    %v3076 = vadd.f32 0.0, %v3075
    %v3077 = vpop.f32.mrb[0].mxu0
    %v3078 = vpop.f32.mrb[0].mxu0
    %v3079 = vadd.f32 0.0, %v3078
    %v3080 = vpop.f32.mrb[0].mxu0
    %3081 = vdwg.mxu0
    %3082 = vrot.lane.b32.xlu0 %v566, 32
    %v3083 = vpop.permute.xlu0 %3082
    %3084 = vrot.lane.b32.xlu0 %v567, 32
    %v3085 = vpop.permute.xlu0 %3084
    %3086 = vrot.lane.b32.xlu0 %v574, 32
    %v3087 = vpop.permute.xlu0 %3086
    %3088 = vrot.lane.b32.xlu0 %v575, 32
    %v3089 = vpop.permute.xlu0 %3088
    %v3091 = vsel %vm584, %v3083, 0
    %v3094 = vsel %vm584, %v3085, 0
    %v3097 = vsel %vm584, %v3087, 0
    %v3100 = vsel %vm584, %v3089, 0
    %3102 = vmatprep.subr.bf16.mxu0 0
    %3103 = vmatpush1.bf16.xpose.msra.mxu0 %v3097
    %3104 = vmatprep.subr.bf16.mxu0 0
    %3105 = vmatpush1.bf16.xpose.msra.mxu0 %v3100
    %3106 = vmatprep.subr.bf16.mxu0 0
    %3107 = vmatpush1.bf16.xpose.msra.mxu0 0
    %3108 = vmatprep.subr.bf16.mxu0 0
    %3109 = vmatpush1.bf16.xpose.msra.mxu0 0
    %3110 = vmatprep.subr.bf16.mxu0 0
    %3111 = vmatpush1.bf16.xpose.msra.mxu0 0
    %3112 = vmatprep.subr.bf16.mxu0 0
    %3113 = vmatpush1.bf16.xpose.msra.mxu0 0
    %3114 = vmatprep.subr.bf16.mxu0 0
    %3115 = vmatpush1.bf16.xpose.msra.mxu0 0
    %3116 = vmatprep.subr.bf16.mxu0 0
    %3117 = vmatpush1.bf16.xpose.msra.mxu0 0
    %3118 = vmatprep.subr.bf16.mxu0 0
    %3119 = vmatpush1.bf16.xpose.msra.mxu0 0
    %3120 = vmatprep.subr.bf16.mxu0 0
    %3121 = vmatpush1.bf16.xpose.msra.mxu0 0
    %3122 = vmatprep.subr.bf16.mxu0 0
    %3123 = vmatpush1.bf16.xpose.msra.mxu0 0
    %3124 = vmatprep.subr.bf16.mxu0 0
    %3125 = vmatpush1.bf16.xpose.msra.mxu0 0
    %3126 = vmatprep.subr.bf16.mxu0 0
    %3127 = vmatpush1.bf16.xpose.msra.mxu0 0
    %3128 = vmatprep.subr.bf16.mxu0 0
    %3129 = vmatpush1.bf16.xpose.msra.mxu0 0
    %3130 = vmatprep.subr.bf16.mxu0 0
    %3131 = vmatpush1.bf16.xpose.msra.mxu0 0
    %3132 = vmatprep.subr.bf16.mxu0 0
    %3133 = vmatpush1.bf16.xpose.msra.mxu0 0
    %3134 = vmatprep.mubr.bf16.mxu0 0
    %3135 = vmatmul.mubr.bf16.gmra.mrb[0].mxu0 %v3091
    %v3136 = vpop.f32.mrb[0].mxu0
    %v3137 = vadd.f32 0.0, %v3136
    %v3138 = vpop.f32.mrb[0].mxu0
    %v3139 = vpop.f32.mrb[0].mxu0
    %v3140 = vadd.f32 0.0, %v3139
    %v3141 = vpop.f32.mrb[0].mxu0
    %3142 = vmatprep.mubr.bf16.mxu0 0
    %3143 = vmatmul.mubr.bf16.gmra.mrb[0].mxu0 %v3094
    %v3144 = vpop.f32.mrb[0].mxu0
    %v3145 = vadd.f32 0.0, %v3144
    %v3146 = vpop.f32.mrb[0].mxu0
    %v3147 = vpop.f32.mrb[0].mxu0
    %v3148 = vadd.f32 0.0, %v3147
    %v3149 = vpop.f32.mrb[0].mxu0
    %3150 = vdwg.mxu0
    %v3151 = vmul.f32 %v2930, 0.28867513
    %v3152 = vmul.f32 %v2933, 0.28867513
    %v3153 = vmul.f32 %v2938, 0.28867513
    %v3154 = vmul.f32 %v2941, 0.28867513
    %v3155 = vmul.f32 %v2999, 0.28867513
    %v3156 = vmul.f32 %v3002, 0.28867513
    %v3157 = vmul.f32 %v3007, 0.28867513
    %v3158 = vmul.f32 %v3010, 0.28867513
    %v3159 = vmul.f32 %v3068, 0.28867513
    %v3160 = vmul.f32 %v3071, 0.28867513
    %v3161 = vmul.f32 %v3076, 0.28867513
    %v3162 = vmul.f32 %v3079, 0.28867513
    %v3163 = vmul.f32 %v3137, 0.28867513
    %v3164 = vmul.f32 %v3140, 0.28867513
    %v3165 = vmul.f32 %v3145, 0.28867513
    %v3166 = vmul.f32 %v3148, 0.28867513
    %v3167 = vadd.f32 %v3151, %v556
    %v3168 = vadd.f32 %v3152, %v557
    %v3169 = vadd.f32 %v3153, %v558
    %v3170 = vadd.f32 %v3154, %v559
    %v3171 = vadd.f32 %v3155, %v556
    %v3172 = vadd.f32 %v3156, %v557
    %v3173 = vadd.f32 %v3157, %v558
    %v3174 = vadd.f32 %v3158, %v559
    %v3175 = vadd.f32 %v3159, %v556
    %v3176 = vadd.f32 %v3160, %v557
    %v3177 = vadd.f32 %v3161, %v558
    %v3178 = vadd.f32 %v3162, %v559
    %v3179 = vadd.f32 %v3163, %v556
    %v3180 = vadd.f32 %v3164, %v557
    %v3181 = vadd.f32 %v3165, %v558
    %v3182 = vadd.f32 %v3166, %v559
    %v3183 = vsel %vm584, %v3167, -inf
    %3184 = vmax.xlane.f32.xlu0 %v3183
    %v3185 = vpop.xlane.xlu0 %3184
    %v3186 = vsel %vm584, %v3168, -inf
    %3187 = vmax.xlane.f32.xlu0 %v3186
    %v3188 = vpop.xlane.xlu0 %3187
    %v3189 = vsel %vm584, %v3169, -inf
    %3190 = vmax.xlane.f32.xlu0 %v3189
    %v3191 = vpop.xlane.xlu0 %3190
    %v3192 = vsel %vm584, %v3170, -inf
    %3193 = vmax.xlane.f32.xlu0 %v3192
    %v3194 = vpop.xlane.xlu0 %3193
    %v3195 = vsel %vm584, %v3171, -inf
    %3196 = vmax.xlane.f32.xlu0 %v3195
    %v3197 = vpop.xlane.xlu0 %3196
    %v3198 = vsel %vm584, %v3172, -inf
    %3199 = vmax.xlane.f32.xlu0 %v3198
    %v3200 = vpop.xlane.xlu0 %3199
    %v3201 = vsel %vm584, %v3173, -inf
    %3202 = vmax.xlane.f32.xlu0 %v3201
    %v3203 = vpop.xlane.xlu0 %3202
    %v3204 = vsel %vm584, %v3174, -inf
    %3205 = vmax.xlane.f32.xlu0 %v3204
    %v3206 = vpop.xlane.xlu0 %3205
    %v3207 = vsel %vm584, %v3175, -inf
    %3208 = vmax.xlane.f32.xlu0 %v3207
    %v3209 = vpop.xlane.xlu0 %3208
    %v3210 = vsel %vm584, %v3176, -inf
    %3211 = vmax.xlane.f32.xlu0 %v3210
    %v3212 = vpop.xlane.xlu0 %3211
    %v3213 = vsel %vm584, %v3177, -inf
    %3214 = vmax.xlane.f32.xlu0 %v3213
    %v3215 = vpop.xlane.xlu0 %3214
    %v3216 = vsel %vm584, %v3178, -inf
    %3217 = vmax.xlane.f32.xlu0 %v3216
    %v3218 = vpop.xlane.xlu0 %3217
    %v3219 = vsel %vm584, %v3179, -inf
    %3220 = vmax.xlane.f32.xlu0 %v3219
    %v3221 = vpop.xlane.xlu0 %3220
    %v3222 = vsel %vm584, %v3180, -inf
    %3223 = vmax.xlane.f32.xlu0 %v3222
    %v3224 = vpop.xlane.xlu0 %3223
    %v3225 = vsel %vm584, %v3181, -inf
    %3226 = vmax.xlane.f32.xlu0 %v3225
    %v3227 = vpop.xlane.xlu0 %3226
    %v3228 = vsel %vm584, %v3182, -inf
    %3229 = vmax.xlane.f32.xlu0 %v3228
    %v3230 = vpop.xlane.xlu0 %3229
    %v3231 = vsub.f32 %v3167, %v3185
    %v3232 = vsub.f32 %v3168, %v3188
    %v3233 = vsub.f32 %v3169, %v3191
    %v3234 = vsub.f32 %v3170, %v3194
    %v3235 = vsub.f32 %v3171, %v3197
    %v3236 = vsub.f32 %v3172, %v3200
    %v3237 = vsub.f32 %v3173, %v3203
    %v3238 = vsub.f32 %v3174, %v3206
    %v3239 = vsub.f32 %v3175, %v3209
    %v3240 = vsub.f32 %v3176, %v3212
    %v3241 = vsub.f32 %v3177, %v3215
    %v3242 = vsub.f32 %v3178, %v3218
    %v3243 = vsub.f32 %v3179, %v3221
    %v3244 = vsub.f32 %v3180, %v3224
    %v3245 = vsub.f32 %v3181, %v3227
    %v3246 = vsub.f32 %v3182, %v3230
    %v3247 = vmul.f32 %v3231, 1.442695
    %v3248 = vpow.pop %v3247
    %v3249 = vmul.f32 %v3232, 1.442695
    %v3250 = vpow.pop %v3249
    %v3251 = vmul.f32 %v3233, 1.442695
    %v3252 = vpow.pop %v3251
    %v3253 = vmul.f32 %v3234, 1.442695
    %v3254 = vpow.pop %v3253
    %v3255 = vmul.f32 %v3235, 1.442695
    %v3256 = vpow.pop %v3255
    %v3257 = vmul.f32 %v3236, 1.442695
    %v3258 = vpow.pop %v3257
    %v3259 = vmul.f32 %v3237, 1.442695
    %v3260 = vpow.pop %v3259
    %v3261 = vmul.f32 %v3238, 1.442695
    %v3262 = vpow.pop %v3261
    %v3263 = vmul.f32 %v3239, 1.442695
    %v3264 = vpow.pop %v3263
    %v3265 = vmul.f32 %v3240, 1.442695
    %v3266 = vpow.pop %v3265
    %v3267 = vmul.f32 %v3241, 1.442695
    %v3268 = vpow.pop %v3267
    %v3269 = vmul.f32 %v3242, 1.442695
    %v3270 = vpow.pop %v3269
    %v3271 = vmul.f32 %v3243, 1.442695
    %v3272 = vpow.pop %v3271
    %v3273 = vmul.f32 %v3244, 1.442695
    %v3274 = vpow.pop %v3273
    %v3275 = vmul.f32 %v3245, 1.442695
    %v3276 = vpow.pop %v3275
    %v3277 = vmul.f32 %v3246, 1.442695
    %v3278 = vpow.pop %v3277
    %v3279 = vsel %vm584, %v3248, 0.0
    %3280 = vadd.xlane.f32.xlu0 %v3279
    %v3281 = vpop.xlane.xlu0 %3280
    %v3282 = vsel %vm584, %v3250, 0.0
    %3283 = vadd.xlane.f32.xlu0 %v3282
    %v3284 = vpop.xlane.xlu0 %3283
    %v3285 = vsel %vm584, %v3252, 0.0
    %3286 = vadd.xlane.f32.xlu0 %v3285
    %v3287 = vpop.xlane.xlu0 %3286
    %v3288 = vsel %vm584, %v3254, 0.0
    %3289 = vadd.xlane.f32.xlu0 %v3288
    %v3290 = vpop.xlane.xlu0 %3289
    %v3291 = vsel %vm584, %v3256, 0.0
    %3292 = vadd.xlane.f32.xlu0 %v3291
    %v3293 = vpop.xlane.xlu0 %3292
    %v3294 = vsel %vm584, %v3258, 0.0
    %3295 = vadd.xlane.f32.xlu0 %v3294
    %v3296 = vpop.xlane.xlu0 %3295
    %v3297 = vsel %vm584, %v3260, 0.0
    %3298 = vadd.xlane.f32.xlu0 %v3297
    %v3299 = vpop.xlane.xlu0 %3298
    %v3300 = vsel %vm584, %v3262, 0.0
    %3301 = vadd.xlane.f32.xlu0 %v3300
    %v3302 = vpop.xlane.xlu0 %3301
    %v3303 = vsel %vm584, %v3264, 0.0
    %3304 = vadd.xlane.f32.xlu0 %v3303
    %v3305 = vpop.xlane.xlu0 %3304
    %v3306 = vsel %vm584, %v3266, 0.0
    %3307 = vadd.xlane.f32.xlu0 %v3306
    %v3308 = vpop.xlane.xlu0 %3307
    %v3309 = vsel %vm584, %v3268, 0.0
    %3310 = vadd.xlane.f32.xlu0 %v3309
    %v3311 = vpop.xlane.xlu0 %3310
    %v3312 = vsel %vm584, %v3270, 0.0
    %3313 = vadd.xlane.f32.xlu0 %v3312
    %v3314 = vpop.xlane.xlu0 %3313
    %v3315 = vsel %vm584, %v3272, 0.0
    %3316 = vadd.xlane.f32.xlu0 %v3315
    %v3317 = vpop.xlane.xlu0 %3316
    %v3318 = vsel %vm584, %v3274, 0.0
    %3319 = vadd.xlane.f32.xlu0 %v3318
    %v3320 = vpop.xlane.xlu0 %3319
    %v3321 = vsel %vm584, %v3276, 0.0
    %3322 = vadd.xlane.f32.xlu0 %v3321
    %v3323 = vpop.xlane.xlu0 %3322
    %v3324 = vsel %vm584, %v3278, 0.0
    %3325 = vadd.xlane.f32.xlu0 %v3324
    %v3326 = vpop.xlane.xlu0 %3325
    %v3327 = vrcp.pop %v3281
    %v3328 = vrcp.pop %v3284
    %v3329 = vrcp.pop %v3287
    %v3330 = vrcp.pop %v3290
    %v3331 = vrcp.pop %v3293
    %v3332 = vrcp.pop %v3296
    %v3333 = vrcp.pop %v3299
    %v3334 = vrcp.pop %v3302
    %v3335 = vrcp.pop %v3305
    %v3336 = vrcp.pop %v3308
    %v3337 = vrcp.pop %v3311
    %v3338 = vrcp.pop %v3314
    %v3339 = vrcp.pop %v3317
    %v3340 = vrcp.pop %v3320
    %v3341 = vrcp.pop %v3323
    %v3342 = vrcp.pop %v3326
    %v3343 = vmul.f32 %v3248, %v3327
    %v3344 = vmul.f32 %v3250, %v3328
    %v3345 = vmul.f32 %v3252, %v3329
    %v3346 = vmul.f32 %v3254, %v3330
    %v3347 = vmul.f32 %v3256, %v3331
    %v3348 = vmul.f32 %v3258, %v3332
    %v3349 = vmul.f32 %v3260, %v3333
    %v3350 = vmul.f32 %v3262, %v3334
    %v3351 = vmul.f32 %v3264, %v3335
    %v3352 = vmul.f32 %v3266, %v3336
    %v3353 = vmul.f32 %v3268, %v3337
    %v3354 = vmul.f32 %v3270, %v3338
    %v3355 = vmul.f32 %v3272, %v3339
    %v3356 = vmul.f32 %v3274, %v3340
    %v3357 = vmul.f32 %v3276, %v3341
    %v3358 = vmul.f32 %v3278, %v3342
    %v3359 = vpack.c.bf16 %v3344, %v3343
    %v3360 = vpack.c.bf16 %v3346, %v3345
    %v3361 = vpack.c.bf16 %v3348, %v3347
    %v3362 = vpack.c.bf16 %v3350, %v3349
    %v3363 = vpack.c.bf16 %v3352, %v3351
    %v3364 = vpack.c.bf16 %v3354, %v3353
    %v3365 = vpack.c.bf16 %v3356, %v3355
    %v3366 = vpack.c.bf16 %v3358, %v3357
    %3367 = vrot.lane.b32.xlu0 %v576, 32
    %v3368 = vpop.permute.xlu0 %3367
    %3369 = vrot.lane.b32.xlu0 %v577, 32
    %v3370 = vpop.permute.xlu0 %3369
    %v3374 = vsel %vm584, %v3359, 0
    %v3377 = vsel %vm584, %v3360, 0
    %3379 = vmatprep.subr.bf16.mxu0 0
    %3380 = vmatpush1.bf16.msra.mxu0 %v3368
    %3381 = vmatprep.subr.bf16.mxu0 0
    %3382 = vmatpush1.bf16.msra.mxu0 %v3370
    %3383 = vmatprep.subr.bf16.mxu0 0
    %3384 = vmatpush1.bf16.msra.mxu0 0
    %3385 = vmatprep.subr.bf16.mxu0 0
    %3386 = vmatpush1.bf16.msra.mxu0 0
    %3387 = vmatprep.subr.bf16.mxu0 0
    %3388 = vmatpush1.bf16.msra.mxu0 0
    %3389 = vmatprep.subr.bf16.mxu0 0
    %3390 = vmatpush1.bf16.msra.mxu0 0
    %3391 = vmatprep.subr.bf16.mxu0 0
    %3392 = vmatpush1.bf16.msra.mxu0 0
    %3393 = vmatprep.subr.bf16.mxu0 0
    %3394 = vmatpush1.bf16.msra.mxu0 0
    %3395 = vmatprep.subr.bf16.mxu0 0
    %3396 = vmatpush1.bf16.msra.mxu0 0
    %3397 = vmatprep.subr.bf16.mxu0 0
    %3398 = vmatpush1.bf16.msra.mxu0 0
    %3399 = vmatprep.subr.bf16.mxu0 0
    %3400 = vmatpush1.bf16.msra.mxu0 0
    %3401 = vmatprep.subr.bf16.mxu0 0
    %3402 = vmatpush1.bf16.msra.mxu0 0
    %3403 = vmatprep.subr.bf16.mxu0 0
    %3404 = vmatpush1.bf16.msra.mxu0 0
    %3405 = vmatprep.subr.bf16.mxu0 0
    %3406 = vmatpush1.bf16.msra.mxu0 0
    %3407 = vmatprep.subr.bf16.mxu0 0
    %3408 = vmatpush1.bf16.msra.mxu0 0
    %3409 = vmatprep.subr.bf16.mxu0 0
    %3410 = vmatpush1.bf16.msra.mxu0 0
    %3411 = vmatprep.mubr.bf16.mxu0 0
    %3412 = vmatmul.mubr.bf16.gmra.mrb[0].mxu0 %v3374
    %v3413 = vpop.f32.mrb[0].mxu0
    %v3414 = vadd.f32 0.0, %v3413
    %v3415 = vpop.f32.mrb[0].mxu0
    %v3416 = vpop.f32.mrb[0].mxu0
    %v3417 = vadd.f32 0.0, %v3416
    %v3418 = vpop.f32.mrb[0].mxu0
    %3419 = vmatprep.mubr.bf16.mxu0 0
    %3420 = vmatmul.mubr.bf16.gmra.mrb[0].mxu0 %v3377
    %v3421 = vpop.f32.mrb[0].mxu0
    %v3422 = vadd.f32 0.0, %v3421
    %v3423 = vpop.f32.mrb[0].mxu0
    %v3424 = vpop.f32.mrb[0].mxu0
    %v3425 = vadd.f32 0.0, %v3424
    %v3426 = vpop.f32.mrb[0].mxu0
    %3427 = vdwg.mxu0
    %3428 = vrot.lane.b32.xlu0 %v578, 32
    %v3429 = vpop.permute.xlu0 %3428
    %3430 = vrot.lane.b32.xlu0 %v579, 32
    %v3431 = vpop.permute.xlu0 %3430
    %v3435 = vsel %vm584, %v3361, 0
    %v3438 = vsel %vm584, %v3362, 0
    %3440 = vmatprep.subr.bf16.mxu0 0
    %3441 = vmatpush1.bf16.msra.mxu0 %v3429
    %3442 = vmatprep.subr.bf16.mxu0 0
    %3443 = vmatpush1.bf16.msra.mxu0 %v3431
    %3444 = vmatprep.subr.bf16.mxu0 0
    %3445 = vmatpush1.bf16.msra.mxu0 0
    %3446 = vmatprep.subr.bf16.mxu0 0
    %3447 = vmatpush1.bf16.msra.mxu0 0
    %3448 = vmatprep.subr.bf16.mxu0 0
    %3449 = vmatpush1.bf16.msra.mxu0 0
    %3450 = vmatprep.subr.bf16.mxu0 0
    %3451 = vmatpush1.bf16.msra.mxu0 0
    %3452 = vmatprep.subr.bf16.mxu0 0
    %3453 = vmatpush1.bf16.msra.mxu0 0
    %3454 = vmatprep.subr.bf16.mxu0 0
    %3455 = vmatpush1.bf16.msra.mxu0 0
    %3456 = vmatprep.subr.bf16.mxu0 0
    %3457 = vmatpush1.bf16.msra.mxu0 0
    %3458 = vmatprep.subr.bf16.mxu0 0
    %3459 = vmatpush1.bf16.msra.mxu0 0
    %3460 = vmatprep.subr.bf16.mxu0 0
    %3461 = vmatpush1.bf16.msra.mxu0 0
    %3462 = vmatprep.subr.bf16.mxu0 0
    %3463 = vmatpush1.bf16.msra.mxu0 0
    %3464 = vmatprep.subr.bf16.mxu0 0
    %3465 = vmatpush1.bf16.msra.mxu0 0
    %3466 = vmatprep.subr.bf16.mxu0 0
    %3467 = vmatpush1.bf16.msra.mxu0 0
    %3468 = vmatprep.subr.bf16.mxu0 0
    %3469 = vmatpush1.bf16.msra.mxu0 0
    %3470 = vmatprep.subr.bf16.mxu0 0
    %3471 = vmatpush1.bf16.msra.mxu0 0
    %3472 = vmatprep.mubr.bf16.mxu0 0
    %3473 = vmatmul.mubr.bf16.gmra.mrb[0].mxu0 %v3435
    %v3474 = vpop.f32.mrb[0].mxu0
    %v3475 = vadd.f32 0.0, %v3474
    %v3476 = vpop.f32.mrb[0].mxu0
    %v3477 = vpop.f32.mrb[0].mxu0
    %v3478 = vadd.f32 0.0, %v3477
    %v3479 = vpop.f32.mrb[0].mxu0
    %3480 = vmatprep.mubr.bf16.mxu0 0
    %3481 = vmatmul.mubr.bf16.gmra.mrb[0].mxu0 %v3438
    %v3482 = vpop.f32.mrb[0].mxu0
    %v3483 = vadd.f32 0.0, %v3482
    %v3484 = vpop.f32.mrb[0].mxu0
    %v3485 = vpop.f32.mrb[0].mxu0
    %v3486 = vadd.f32 0.0, %v3485
    %v3487 = vpop.f32.mrb[0].mxu0
    %3488 = vdwg.mxu0
    %3489 = vrot.lane.b32.xlu0 %v580, 32
    %v3490 = vpop.permute.xlu0 %3489
    %3491 = vrot.lane.b32.xlu0 %v581, 32
    %v3492 = vpop.permute.xlu0 %3491
    %v3496 = vsel %vm584, %v3363, 0
    %v3499 = vsel %vm584, %v3364, 0
    %3501 = vmatprep.subr.bf16.mxu0 0
    %3502 = vmatpush1.bf16.msra.mxu0 %v3490
    %3503 = vmatprep.subr.bf16.mxu0 0
    %3504 = vmatpush1.bf16.msra.mxu0 %v3492
    %3505 = vmatprep.subr.bf16.mxu0 0
    %3506 = vmatpush1.bf16.msra.mxu0 0
    %3507 = vmatprep.subr.bf16.mxu0 0
    %3508 = vmatpush1.bf16.msra.mxu0 0
    %3509 = vmatprep.subr.bf16.mxu0 0
    %3510 = vmatpush1.bf16.msra.mxu0 0
    %3511 = vmatprep.subr.bf16.mxu0 0
    %3512 = vmatpush1.bf16.msra.mxu0 0
    %3513 = vmatprep.subr.bf16.mxu0 0
    %3514 = vmatpush1.bf16.msra.mxu0 0
    %3515 = vmatprep.subr.bf16.mxu0 0
    %3516 = vmatpush1.bf16.msra.mxu0 0
    %3517 = vmatprep.subr.bf16.mxu0 0
    %3518 = vmatpush1.bf16.msra.mxu0 0
    %3519 = vmatprep.subr.bf16.mxu0 0
    %3520 = vmatpush1.bf16.msra.mxu0 0
    %3521 = vmatprep.subr.bf16.mxu0 0
    %3522 = vmatpush1.bf16.msra.mxu0 0
    %3523 = vmatprep.subr.bf16.mxu0 0
    %3524 = vmatpush1.bf16.msra.mxu0 0
    %3525 = vmatprep.subr.bf16.mxu0 0
    %3526 = vmatpush1.bf16.msra.mxu0 0
    %3527 = vmatprep.subr.bf16.mxu0 0
    %3528 = vmatpush1.bf16.msra.mxu0 0
    %3529 = vmatprep.subr.bf16.mxu0 0
    %3530 = vmatpush1.bf16.msra.mxu0 0
    %3531 = vmatprep.subr.bf16.mxu0 0
    %3532 = vmatpush1.bf16.msra.mxu0 0
    %3533 = vmatprep.mubr.bf16.mxu0 0
    %3534 = vmatmul.mubr.bf16.gmra.mrb[0].mxu0 %v3496
    %v3535 = vpop.f32.mrb[0].mxu0
    %v3536 = vadd.f32 0.0, %v3535
    %v3537 = vpop.f32.mrb[0].mxu0
    %v3538 = vpop.f32.mrb[0].mxu0
    %v3539 = vadd.f32 0.0, %v3538
    %v3540 = vpop.f32.mrb[0].mxu0
    %3541 = vmatprep.mubr.bf16.mxu0 0
    %3542 = vmatmul.mubr.bf16.gmra.mrb[0].mxu0 %v3499
    %v3543 = vpop.f32.mrb[0].mxu0
    %v3544 = vadd.f32 0.0, %v3543
    %v3545 = vpop.f32.mrb[0].mxu0
    %v3546 = vpop.f32.mrb[0].mxu0
    %v3547 = vadd.f32 0.0, %v3546
    %v3548 = vpop.f32.mrb[0].mxu0
    %3549 = vdwg.mxu0
    %3550 = vrot.lane.b32.xlu0 %v582, 32
    %v3551 = vpop.permute.xlu0 %3550
    %3552 = vrot.lane.b32.xlu0 %v583, 32
    %v3553 = vpop.permute.xlu0 %3552
    %v3557 = vsel %vm584, %v3365, 0
    %v3560 = vsel %vm584, %v3366, 0
    %3562 = vmatprep.subr.bf16.mxu0 0
    %3563 = vmatpush1.bf16.msra.mxu0 %v3551
    %3564 = vmatprep.subr.bf16.mxu0 0
    %3565 = vmatpush1.bf16.msra.mxu0 %v3553
    %3566 = vmatprep.subr.bf16.mxu0 0
    %3567 = vmatpush1.bf16.msra.mxu0 0
    %3568 = vmatprep.subr.bf16.mxu0 0
    %3569 = vmatpush1.bf16.msra.mxu0 0
    %3570 = vmatprep.subr.bf16.mxu0 0
    %3571 = vmatpush1.bf16.msra.mxu0 0
    %3572 = vmatprep.subr.bf16.mxu0 0
    %3573 = vmatpush1.bf16.msra.mxu0 0
    %3574 = vmatprep.subr.bf16.mxu0 0
    %3575 = vmatpush1.bf16.msra.mxu0 0
    %3576 = vmatprep.subr.bf16.mxu0 0
    %3577 = vmatpush1.bf16.msra.mxu0 0
    %3578 = vmatprep.subr.bf16.mxu0 0
    %3579 = vmatpush1.bf16.msra.mxu0 0
    %3580 = vmatprep.subr.bf16.mxu0 0
    %3581 = vmatpush1.bf16.msra.mxu0 0
    %3582 = vmatprep.subr.bf16.mxu0 0
    %3583 = vmatpush1.bf16.msra.mxu0 0
    %3584 = vmatprep.subr.bf16.mxu0 0
    %3585 = vmatpush1.bf16.msra.mxu0 0
    %3586 = vmatprep.subr.bf16.mxu0 0
    %3587 = vmatpush1.bf16.msra.mxu0 0
    %3588 = vmatprep.subr.bf16.mxu0 0
    %3589 = vmatpush1.bf16.msra.mxu0 0
    %3590 = vmatprep.subr.bf16.mxu0 0
    %3591 = vmatpush1.bf16.msra.mxu0 0
    %3592 = vmatprep.subr.bf16.mxu0 0
    %3593 = vmatpush1.bf16.msra.mxu0 0
    %3594 = vmatprep.mubr.bf16.mxu0 0
    %3595 = vmatmul.mubr.bf16.gmra.mrb[0].mxu0 %v3557
    %v3596 = vpop.f32.mrb[0].mxu0
    %v3597 = vadd.f32 0.0, %v3596
    %v3598 = vpop.f32.mrb[0].mxu0
    %v3599 = vpop.f32.mrb[0].mxu0
    %v3600 = vadd.f32 0.0, %v3599
    %v3601 = vpop.f32.mrb[0].mxu0
    %3602 = vmatprep.mubr.bf16.mxu0 0
    %3603 = vmatmul.mubr.bf16.gmra.mrb[0].mxu0 %v3560
    %v3604 = vpop.f32.mrb[0].mxu0
    %v3605 = vadd.f32 0.0, %v3604
    %v3606 = vpop.f32.mrb[0].mxu0
    %v3607 = vpop.f32.mrb[0].mxu0
    %v3608 = vadd.f32 0.0, %v3607
    %v3609 = vpop.f32.mrb[0].mxu0
    %3610 = vdwg.mxu0
    %v3611 = vpack.c.bf16 %v3417, %v3414
    %v3612 = vpack.c.bf16 %v3425, %v3422
    %v3613 = vpack.c.bf16 %v3478, %v3475
    %v3614 = vpack.c.bf16 %v3486, %v3483
    %v3615 = vpack.c.bf16 %v3539, %v3536
    %v3616 = vpack.c.bf16 %v3547, %v3544
    %v3617 = vpack.c.bf16 %v3600, %v3597
    %v3618 = vpack.c.bf16 %v3608, %v3605
    %3627 = vrot.lane.b32.xlu0 %v3611, 96
    %v3628 = vpop.permute.xlu0 %3627
    %3629 = vrot.lane.b32.xlu0 %v3612, 96
    %v3630 = vpop.permute.xlu0 %3629
    %3631 = vrot.lane.b32.xlu0 %v3613, 96
    %v3632 = vpop.permute.xlu0 %3631
    %3633 = vrot.lane.b32.xlu0 %v3614, 96
    %v3634 = vpop.permute.xlu0 %3633
    %3635 = vrot.lane.b32.xlu0 %v3615, 96
    %v3636 = vpop.permute.xlu0 %3635
    %3637 = vrot.lane.b32.xlu0 %v3616, 96
    %v3638 = vpop.permute.xlu0 %3637
    %3639 = vrot.lane.b32.xlu0 %v3617, 96
    %v3640 = vpop.permute.xlu0 %3639
    %3641 = vrot.lane.b32.xlu0 %v3618, 96
    %v3642 = vpop.permute.xlu0 %3641
    %vm3651 = vcmask 1048320
    %3652 = vst.msk [vmem:[#allocation2] sm:$0xff] %vm3651, %v3628
    %3653 = vst.msk [vmem:[#allocation2 + $0x8] sm:$0xff] %vm3651, %v3630
    %3654 = vst.msk [vmem:[#allocation2 + $0x10] sm:$0xff] %vm3651, %v3632
    %3655 = vst.msk [vmem:[#allocation2 + $0x18] sm:$0xff] %vm3651, %v3634
    %3656 = vst.msk [vmem:[#allocation2 + $0x20] sm:$0xff] %vm3651, %v3636
    %3657 = vst.msk [vmem:[#allocation2 + $0x28] sm:$0xff] %vm3651, %v3638
    %3658 = vst.msk [vmem:[#allocation2 + $0x30] sm:$0xff] %vm3651, %v3640
    %3659 = vst.msk [vmem:[#allocation2 + $0x38] sm:$0xff] %vm3651, %v3642
    %v3660 = vld [vmem:[#allocation2] sm:$0xff]
    %v3661 = vld [vmem:[#allocation2 + $0x8] sm:$0xff]
    %v3662 = vld [vmem:[#allocation2 + $0x10] sm:$0xff]
    %v3663 = vld [vmem:[#allocation2 + $0x18] sm:$0xff]
    %v3664 = vld [vmem:[#allocation2 + $0x20] sm:$0xff]
    %v3665 = vld [vmem:[#allocation2 + $0x28] sm:$0xff]
    %v3666 = vld [vmem:[#allocation2 + $0x30] sm:$0xff]
    %v3667 = vld [vmem:[#allocation2 + $0x38] sm:$0xff]
    %v3668 = vld [vmem:[#allocation8] sm:$0xf]
    %v3669 = vld [vmem:[#allocation8 + $0x4] sm:$0xf]
    %v3670 = vld [vmem:[#allocation8 + $0x8] sm:$0xf]
    %v3671 = vld [vmem:[#allocation8 + $0xc] sm:$0xf]
    %v3672 = vld [vmem:[#allocation8 + $0x10] sm:$0xf]
    %v3673 = vld [vmem:[#allocation8 + $0x14] sm:$0xf]
    %v3674 = vld [vmem:[#allocation8 + $0x18] sm:$0xf]
    %v3675 = vld [vmem:[#allocation8 + $0x1c] sm:$0xf]
    %v3676 = vld [vmem:[#allocation8 + $0x20] sm:$0xf]
    %v3677 = vld [vmem:[#allocation8 + $0x24] sm:$0xf]
    %v3678 = vld [vmem:[#allocation8 + $0x28] sm:$0xf]
    %v3679 = vld [vmem:[#allocation8 + $0x2c] sm:$0xf]
    %v3680 = vld [vmem:[#allocation8 + $0x30] sm:$0xf]
    %v3681 = vld [vmem:[#allocation8 + $0x34] sm:$0xf]
    %v3682 = vld [vmem:[#allocation8 + $0x38] sm:$0xf]
    %v3683 = vld [vmem:[#allocation8 + $0x3c] sm:$0xf]
    %v3684 = vld [vmem:[%s3] sm:$0x1]
    %v3686 = vlaneseq
    %v3687 = vshrl.u32 %v3686, 7
    %v3688 = vsub.s32 0, %v3687
    %v3689 = vrot.slane %v3684, %v3688
    %v3707 = vunpack.c.l.b16 %v3668
    %v3708 = vunpack.c.l.b16 %v3669
    %v3709 = vunpack.c.l.b16 %v3670
    %v3710 = vunpack.c.l.b16 %v3671
    %v3711 = vunpack.c.l.b16 %v3672
    %v3712 = vunpack.c.l.b16 %v3673
    %v3713 = vunpack.c.l.b16 %v3674
    %v3714 = vunpack.c.l.b16 %v3675
    %v3715 = vunpack.c.l.b16 %v3676
    %v3716 = vunpack.c.l.b16 %v3677
    %v3717 = vunpack.c.l.b16 %v3678
    %v3718 = vunpack.c.l.b16 %v3679
    %v3719 = vunpack.c.l.b16 %v3680
    %v3720 = vunpack.c.l.b16 %v3681
    %v3721 = vunpack.c.l.b16 %v3682
    %v3722 = vunpack.c.l.b16 %v3683
    %v3723 = vpack.c.b16 %v3708, %v3707
    %v3724 = vpack.c.b16 %v3710, %v3709
    %v3725 = vpack.c.b16 %v3712, %v3711
    %v3726 = vpack.c.b16 %v3714, %v3713
    %v3727 = vpack.c.b16 %v3716, %v3715
    %v3728 = vpack.c.b16 %v3718, %v3717
    %v3729 = vpack.c.b16 %v3720, %v3719
    %v3730 = vpack.c.b16 %v3722, %v3721
    %3739 = vmatprep.subr.bf16.mxu0 0
    %3740 = vmatpush1.bf16.msra.mxu0 %v3723
    %3741 = vmatprep.subr.bf16.mxu0 0
    %3742 = vmatpush1.bf16.msra.mxu0 %v3724
    %3743 = vmatprep.subr.bf16.mxu0 0
    %3744 = vmatpush1.bf16.msra.mxu0 %v3725
    %3745 = vmatprep.subr.bf16.mxu0 0
    %3746 = vmatpush1.bf16.msra.mxu0 %v3726
    %3747 = vmatprep.subr.bf16.mxu0 0
    %3748 = vmatpush1.bf16.msra.mxu0 %v3727
    %3749 = vmatprep.subr.bf16.mxu0 0
    %3750 = vmatpush1.bf16.msra.mxu0 %v3728
    %3751 = vmatprep.subr.bf16.mxu0 0
    %3752 = vmatpush1.bf16.msra.mxu0 %v3729
    %3753 = vmatprep.subr.bf16.mxu0 0
    %3754 = vmatpush1.bf16.msra.mxu0 %v3730
    %3755 = vmatprep.subr.bf16.mxu0 0
    %3756 = vmatpush1.bf16.msra.mxu0 0
    %3757 = vmatprep.subr.bf16.mxu0 0
    %3758 = vmatpush1.bf16.msra.mxu0 0
    %3759 = vmatprep.subr.bf16.mxu0 0
    %3760 = vmatpush1.bf16.msra.mxu0 0
    %3761 = vmatprep.subr.bf16.mxu0 0
    %3762 = vmatpush1.bf16.msra.mxu0 0
    %3763 = vmatprep.subr.bf16.mxu0 0
    %3764 = vmatpush1.bf16.msra.mxu0 0
    %3765 = vmatprep.subr.bf16.mxu0 0
    %3766 = vmatpush1.bf16.msra.mxu0 0
    %3767 = vmatprep.subr.bf16.mxu0 0
    %3768 = vmatpush1.bf16.msra.mxu0 0
    %3769 = vmatprep.subr.bf16.mxu0 0
    %3770 = vmatpush1.bf16.msra.mxu0 0
    %3771 = vmatprep.mubr.bf16.mxu0 0
    %3772 = vmatmul.mubr.bf16.gmra.mrb[0].mxu0 %v3660
    %v3773 = vpop.f32.mrb[0].mxu0
    %v3774 = vadd.f32 %v3689, %v3773
    %v3775 = vpop.f32.mrb[0].mxu0
    %v3776 = vpop.f32.mrb[0].mxu0
    %v3777 = vadd.f32 %v3689, %v3776
    %v3778 = vpop.f32.mrb[0].mxu0
    %3779 = vmatprep.mubr.bf16.mxu0 0
    %3780 = vmatmul.mubr.bf16.gmra.mrb[0].mxu0 %v3661
    %v3781 = vpop.f32.mrb[0].mxu0
    %v3782 = vadd.f32 %v3689, %v3781
    %v3783 = vpop.f32.mrb[0].mxu0
    %v3784 = vpop.f32.mrb[0].mxu0
    %v3785 = vadd.f32 %v3689, %v3784
    %v3786 = vpop.f32.mrb[0].mxu0
    %3787 = vmatprep.mubr.bf16.mxu0 0
    %3788 = vmatmul.mubr.bf16.gmra.mrb[0].mxu0 %v3662
    %v3789 = vpop.f32.mrb[0].mxu0
    %v3790 = vadd.f32 %v3689, %v3789
    %v3791 = vpop.f32.mrb[0].mxu0
    %v3792 = vpop.f32.mrb[0].mxu0
    %v3793 = vadd.f32 %v3689, %v3792
    %v3794 = vpop.f32.mrb[0].mxu0
    %3795 = vmatprep.mubr.bf16.mxu0 0
    %3796 = vmatmul.mubr.bf16.gmra.mrb[0].mxu0 %v3663
    %v3797 = vpop.f32.mrb[0].mxu0
    %v3798 = vadd.f32 %v3689, %v3797
    %v3799 = vpop.f32.mrb[0].mxu0
    %v3800 = vpop.f32.mrb[0].mxu0
    %v3801 = vadd.f32 %v3689, %v3800
    %v3802 = vpop.f32.mrb[0].mxu0
    %3803 = vmatprep.mubr.bf16.mxu0 0
    %3804 = vmatmul.mubr.bf16.gmra.mrb[0].mxu0 %v3664
    %v3805 = vpop.f32.mrb[0].mxu0
    %v3806 = vadd.f32 %v3689, %v3805
    %v3807 = vpop.f32.mrb[0].mxu0
    %v3808 = vpop.f32.mrb[0].mxu0
    %v3809 = vadd.f32 %v3689, %v3808
    %v3810 = vpop.f32.mrb[0].mxu0
    %3811 = vmatprep.mubr.bf16.mxu0 0
    %3812 = vmatmul.mubr.bf16.gmra.mrb[0].mxu0 %v3665
    %v3813 = vpop.f32.mrb[0].mxu0
    %v3814 = vadd.f32 %v3689, %v3813
    %v3815 = vpop.f32.mrb[0].mxu0
    %v3816 = vpop.f32.mrb[0].mxu0
    %v3817 = vadd.f32 %v3689, %v3816
    %v3818 = vpop.f32.mrb[0].mxu0
    %3819 = vmatprep.mubr.bf16.mxu0 0
    %3820 = vmatmul.mubr.bf16.gmra.mrb[0].mxu0 %v3666
    %v3821 = vpop.f32.mrb[0].mxu0
    %v3822 = vadd.f32 %v3689, %v3821
    %v3823 = vpop.f32.mrb[0].mxu0
    %v3824 = vpop.f32.mrb[0].mxu0
    %v3825 = vadd.f32 %v3689, %v3824
    %v3826 = vpop.f32.mrb[0].mxu0
    %3827 = vmatprep.mubr.bf16.mxu0 0
    %3828 = vmatmul.mubr.bf16.gmra.mrb[0].mxu0 %v3667
    %v3829 = vpop.f32.mrb[0].mxu0
    %v3830 = vadd.f32 %v3689, %v3829
    %v3831 = vpop.f32.mrb[0].mxu0
    %v3832 = vpop.f32.mrb[0].mxu0
    %v3833 = vadd.f32 %v3689, %v3832
    %v3834 = vpop.f32.mrb[0].mxu0
    %3835 = vdwg.mxu0
    %v3836 = vunpack.c.l.bf16 %v111
    %v3837 = vunpack.c.l.bf16 %v112
    %v3838 = vunpack.c.l.bf16 %v113
    %v3839 = vunpack.c.l.bf16 %v114
    %v3840 = vunpack.c.l.bf16 %v115
    %v3841 = vunpack.c.l.bf16 %v116
    %v3842 = vunpack.c.l.bf16 %v117
    %v3843 = vunpack.c.l.bf16 %v118
    %v3844 = vunpack.c.l.bf16 %v119
    %v3845 = vunpack.c.l.bf16 %v120
    %v3846 = vunpack.c.l.bf16 %v121
    %v3847 = vunpack.c.l.bf16 %v122
    %v3848 = vunpack.c.l.bf16 %v123
    %v3849 = vunpack.c.l.bf16 %v124
    %v3850 = vunpack.c.l.bf16 %v125
    %v3851 = vunpack.c.l.bf16 %v126
    %v3852 = vadd.f32 %v3836, %v3774
    %v3853 = vadd.f32 %v3837, %v3777
    %v3854 = vadd.f32 %v3838, %v3782
    %v3855 = vadd.f32 %v3839, %v3785
    %v3856 = vadd.f32 %v3840, %v3790
    %v3857 = vadd.f32 %v3841, %v3793
    %v3858 = vadd.f32 %v3842, %v3798
    %v3859 = vadd.f32 %v3843, %v3801
    %v3860 = vadd.f32 %v3844, %v3806
    %v3861 = vadd.f32 %v3845, %v3809
    %v3862 = vadd.f32 %v3846, %v3814
    %v3863 = vadd.f32 %v3847, %v3817
    %v3864 = vadd.f32 %v3848, %v3822
    %v3865 = vadd.f32 %v3849, %v3825
    %v3866 = vadd.f32 %v3850, %v3830
    %v3867 = vadd.f32 %v3851, %v3833
    %v3868 = vld [vmem:[%s4] sm:$0x1]
    %v3869 = vld [vmem:[%s5] sm:$0x1]
    %3870 = vadd.xlane.f32.xlu0 %v3852
    %v3871 = vpop.xlane.xlu0 %3870
    %3872 = vadd.xlane.f32.xlu0 %v3853
    %v3873 = vpop.xlane.xlu0 %3872
    %3874 = vadd.xlane.f32.xlu0 %v3854
    %v3875 = vpop.xlane.xlu0 %3874
    %3876 = vadd.xlane.f32.xlu0 %v3855
    %v3877 = vpop.xlane.xlu0 %3876
    %3878 = vadd.xlane.f32.xlu0 %v3856
    %v3879 = vpop.xlane.xlu0 %3878
    %3880 = vadd.xlane.f32.xlu0 %v3857
    %v3881 = vpop.xlane.xlu0 %3880
    %3882 = vadd.xlane.f32.xlu0 %v3858
    %v3883 = vpop.xlane.xlu0 %3882
    %3884 = vadd.xlane.f32.xlu0 %v3859
    %v3885 = vpop.xlane.xlu0 %3884
    %3886 = vadd.xlane.f32.xlu0 %v3860
    %v3887 = vpop.xlane.xlu0 %3886
    %3888 = vadd.xlane.f32.xlu0 %v3861
    %v3889 = vpop.xlane.xlu0 %3888
    %3890 = vadd.xlane.f32.xlu0 %v3862
    %v3891 = vpop.xlane.xlu0 %3890
    %3892 = vadd.xlane.f32.xlu0 %v3863
    %v3893 = vpop.xlane.xlu0 %3892
    %3894 = vadd.xlane.f32.xlu0 %v3864
    %v3895 = vpop.xlane.xlu0 %3894
    %3896 = vadd.xlane.f32.xlu0 %v3865
    %v3897 = vpop.xlane.xlu0 %3896
    %3898 = vadd.xlane.f32.xlu0 %v3866
    %v3899 = vpop.xlane.xlu0 %3898
    %3900 = vadd.xlane.f32.xlu0 %v3867
    %v3901 = vpop.xlane.xlu0 %3900
    %v3902 = vmul.f32 %v3871, 0.020833334
    %v3903 = vmul.f32 %v3873, 0.020833334
    %v3904 = vmul.f32 %v3875, 0.020833334
    %v3905 = vmul.f32 %v3877, 0.020833334
    %v3906 = vmul.f32 %v3879, 0.020833334
    %v3907 = vmul.f32 %v3881, 0.020833334
    %v3908 = vmul.f32 %v3883, 0.020833334
    %v3909 = vmul.f32 %v3885, 0.020833334
    %v3910 = vmul.f32 %v3887, 0.020833334
    %v3911 = vmul.f32 %v3889, 0.020833334
    %v3912 = vmul.f32 %v3891, 0.020833334
    %v3913 = vmul.f32 %v3893, 0.020833334
    %v3914 = vmul.f32 %v3895, 0.020833334
    %v3915 = vmul.f32 %v3897, 0.020833334
    %v3916 = vmul.f32 %v3899, 0.020833334
    %v3917 = vmul.f32 %v3901, 0.020833334
    %v3918 = vmul.f32 %v3852, %v3852
    %v3919 = vmul.f32 %v3853, %v3853
    %v3920 = vmul.f32 %v3854, %v3854
    %v3921 = vmul.f32 %v3855, %v3855
    %v3922 = vmul.f32 %v3856, %v3856
    %v3923 = vmul.f32 %v3857, %v3857
    %v3924 = vmul.f32 %v3858, %v3858
    %v3925 = vmul.f32 %v3859, %v3859
    %v3926 = vmul.f32 %v3860, %v3860
    %v3927 = vmul.f32 %v3861, %v3861
    %v3928 = vmul.f32 %v3862, %v3862
    %v3929 = vmul.f32 %v3863, %v3863
    %v3930 = vmul.f32 %v3864, %v3864
    %v3931 = vmul.f32 %v3865, %v3865
    %v3932 = vmul.f32 %v3866, %v3866
    %v3933 = vmul.f32 %v3867, %v3867
    %3934 = vadd.xlane.f32.xlu0 %v3918
    %v3935 = vpop.xlane.xlu0 %3934
    %3936 = vadd.xlane.f32.xlu0 %v3919
    %v3937 = vpop.xlane.xlu0 %3936
    %3938 = vadd.xlane.f32.xlu0 %v3920
    %v3939 = vpop.xlane.xlu0 %3938
    %3940 = vadd.xlane.f32.xlu0 %v3921
    %v3941 = vpop.xlane.xlu0 %3940
    %3942 = vadd.xlane.f32.xlu0 %v3922
    %v3943 = vpop.xlane.xlu0 %3942
    %3944 = vadd.xlane.f32.xlu0 %v3923
    %v3945 = vpop.xlane.xlu0 %3944
    %3946 = vadd.xlane.f32.xlu0 %v3924
    %v3947 = vpop.xlane.xlu0 %3946
    %3948 = vadd.xlane.f32.xlu0 %v3925
    %v3949 = vpop.xlane.xlu0 %3948
    %3950 = vadd.xlane.f32.xlu0 %v3926
    %v3951 = vpop.xlane.xlu0 %3950
    %3952 = vadd.xlane.f32.xlu0 %v3927
    %v3953 = vpop.xlane.xlu0 %3952
    %3954 = vadd.xlane.f32.xlu0 %v3928
    %v3955 = vpop.xlane.xlu0 %3954
    %3956 = vadd.xlane.f32.xlu0 %v3929
    %v3957 = vpop.xlane.xlu0 %3956
    %3958 = vadd.xlane.f32.xlu0 %v3930
    %v3959 = vpop.xlane.xlu0 %3958
    %3960 = vadd.xlane.f32.xlu0 %v3931
    %v3961 = vpop.xlane.xlu0 %3960
    %3962 = vadd.xlane.f32.xlu0 %v3932
    %v3963 = vpop.xlane.xlu0 %3962
    %3964 = vadd.xlane.f32.xlu0 %v3933
    %v3965 = vpop.xlane.xlu0 %3964
    %v3966 = vmul.f32 %v3935, 0.020833334
    %v3967 = vmul.f32 %v3937, 0.020833334
    %v3968 = vmul.f32 %v3939, 0.020833334
    %v3969 = vmul.f32 %v3941, 0.020833334
    %v3970 = vmul.f32 %v3943, 0.020833334
    %v3971 = vmul.f32 %v3945, 0.020833334
    %v3972 = vmul.f32 %v3947, 0.020833334
    %v3973 = vmul.f32 %v3949, 0.020833334
    %v3974 = vmul.f32 %v3951, 0.020833334
    %v3975 = vmul.f32 %v3953, 0.020833334
    %v3976 = vmul.f32 %v3955, 0.020833334
    %v3977 = vmul.f32 %v3957, 0.020833334
    %v3978 = vmul.f32 %v3959, 0.020833334
    %v3979 = vmul.f32 %v3961, 0.020833334
    %v3980 = vmul.f32 %v3963, 0.020833334
    %v3981 = vmul.f32 %v3965, 0.020833334
    %v3982 = vmul.f32 %v3902, %v3902
    %v3983 = vmul.f32 %v3903, %v3903
    %v3984 = vmul.f32 %v3904, %v3904
    %v3985 = vmul.f32 %v3905, %v3905
    %v3986 = vmul.f32 %v3906, %v3906
    %v3987 = vmul.f32 %v3907, %v3907
    %v3988 = vmul.f32 %v3908, %v3908
    %v3989 = vmul.f32 %v3909, %v3909
    %v3990 = vmul.f32 %v3910, %v3910
    %v3991 = vmul.f32 %v3911, %v3911
    %v3992 = vmul.f32 %v3912, %v3912
    %v3993 = vmul.f32 %v3913, %v3913
    %v3994 = vmul.f32 %v3914, %v3914
    %v3995 = vmul.f32 %v3915, %v3915
    %v3996 = vmul.f32 %v3916, %v3916
    %v3997 = vmul.f32 %v3917, %v3917
    %v3998 = vsub.f32 %v3966, %v3982
    %v3999 = vsub.f32 %v3967, %v3983
    %v4000 = vsub.f32 %v3968, %v3984
    %v4001 = vsub.f32 %v3969, %v3985
    %v4002 = vsub.f32 %v3970, %v3986
    %v4003 = vsub.f32 %v3971, %v3987
    %v4004 = vsub.f32 %v3972, %v3988
    %v4005 = vsub.f32 %v3973, %v3989
    %v4006 = vsub.f32 %v3974, %v3990
    %v4007 = vsub.f32 %v3975, %v3991
    %v4008 = vsub.f32 %v3976, %v3992
    %v4009 = vsub.f32 %v3977, %v3993
    %v4010 = vsub.f32 %v3978, %v3994
    %v4011 = vsub.f32 %v3979, %v3995
    %v4012 = vsub.f32 %v3980, %v3996
    %v4013 = vsub.f32 %v3981, %v3997
    %v4014 = vsub.f32 %v3852, %v3902
    %v4015 = vsub.f32 %v3853, %v3903
    %v4016 = vsub.f32 %v3854, %v3904
    %v4017 = vsub.f32 %v3855, %v3905
    %v4018 = vsub.f32 %v3856, %v3906
    %v4019 = vsub.f32 %v3857, %v3907
    %v4020 = vsub.f32 %v3858, %v3908
    %v4021 = vsub.f32 %v3859, %v3909
    %v4022 = vsub.f32 %v3860, %v3910
    %v4023 = vsub.f32 %v3861, %v3911
    %v4024 = vsub.f32 %v3862, %v3912
    %v4025 = vsub.f32 %v3863, %v3913
    %v4026 = vsub.f32 %v3864, %v3914
    %v4027 = vsub.f32 %v3865, %v3915
    %v4028 = vsub.f32 %v3866, %v3916
    %v4029 = vsub.f32 %v3867, %v3917
    %v4030 = vadd.f32 %v3998, 1e-05
    %v4031 = vadd.f32 %v3999, 1e-05
    %v4032 = vadd.f32 %v4000, 1e-05
    %v4033 = vadd.f32 %v4001, 1e-05
    %v4034 = vadd.f32 %v4002, 1e-05
    %v4035 = vadd.f32 %v4003, 1e-05
    %v4036 = vadd.f32 %v4004, 1e-05
    %v4037 = vadd.f32 %v4005, 1e-05
    %v4038 = vadd.f32 %v4006, 1e-05
    %v4039 = vadd.f32 %v4007, 1e-05
    %v4040 = vadd.f32 %v4008, 1e-05
    %v4041 = vadd.f32 %v4009, 1e-05
    %v4042 = vadd.f32 %v4010, 1e-05
    %v4043 = vadd.f32 %v4011, 1e-05
    %v4044 = vadd.f32 %v4012, 1e-05
    %v4045 = vadd.f32 %v4013, 1e-05
    %v4046 = vrsqrt.pop %v4030
    %v4047 = vrsqrt.pop %v4031
    %v4048 = vrsqrt.pop %v4032
    %v4049 = vrsqrt.pop %v4033
    %v4050 = vrsqrt.pop %v4034
    %v4051 = vrsqrt.pop %v4035
    %v4052 = vrsqrt.pop %v4036
    %v4053 = vrsqrt.pop %v4037
    %v4054 = vrsqrt.pop %v4038
    %v4055 = vrsqrt.pop %v4039
    %v4056 = vrsqrt.pop %v4040
    %v4057 = vrsqrt.pop %v4041
    %v4058 = vrsqrt.pop %v4042
    %v4059 = vrsqrt.pop %v4043
    %v4060 = vrsqrt.pop %v4044
    %v4061 = vrsqrt.pop %v4045
    %v4062 = vmul.f32 %v4014, %v4046
    %v4063 = vmul.f32 %v4015, %v4047
    %v4064 = vmul.f32 %v4016, %v4048
    %v4065 = vmul.f32 %v4017, %v4049
    %v4066 = vmul.f32 %v4018, %v4050
    %v4067 = vmul.f32 %v4019, %v4051
    %v4068 = vmul.f32 %v4020, %v4052
    %v4069 = vmul.f32 %v4021, %v4053
    %v4070 = vmul.f32 %v4022, %v4054
    %v4071 = vmul.f32 %v4023, %v4055
    %v4072 = vmul.f32 %v4024, %v4056
    %v4073 = vmul.f32 %v4025, %v4057
    %v4074 = vmul.f32 %v4026, %v4058
    %v4075 = vmul.f32 %v4027, %v4059
    %v4076 = vmul.f32 %v4028, %v4060
    %v4077 = vmul.f32 %v4029, %v4061
    %v4079 = vlaneseq
    %v4080 = vshrl.u32 %v4079, 7
    %v4081 = vsub.s32 0, %v4080
    %v4082 = vrot.slane %v3868, %v4081
    %v4084 = vmul.f32 %v4062, %v4082
    %v4085 = vmul.f32 %v4063, %v4082
    %v4086 = vmul.f32 %v4064, %v4082
    %v4087 = vmul.f32 %v4065, %v4082
    %v4088 = vmul.f32 %v4066, %v4082
    %v4089 = vmul.f32 %v4067, %v4082
    %v4090 = vmul.f32 %v4068, %v4082
    %v4091 = vmul.f32 %v4069, %v4082
    %v4092 = vmul.f32 %v4070, %v4082
    %v4093 = vmul.f32 %v4071, %v4082
    %v4094 = vmul.f32 %v4072, %v4082
    %v4095 = vmul.f32 %v4073, %v4082
    %v4096 = vmul.f32 %v4074, %v4082
    %v4097 = vmul.f32 %v4075, %v4082
    %v4098 = vmul.f32 %v4076, %v4082
    %v4099 = vmul.f32 %v4077, %v4082
    %v4101 = vlaneseq
    %v4102 = vshrl.u32 %v4101, 7
    %v4103 = vsub.s32 0, %v4102
    %v4104 = vrot.slane %v3869, %v4103
    %v4106 = vadd.f32 %v4084, %v4104
    %v4107 = vadd.f32 %v4085, %v4104
    %v4108 = vadd.f32 %v4086, %v4104
    %v4109 = vadd.f32 %v4087, %v4104
    %v4110 = vadd.f32 %v4088, %v4104
    %v4111 = vadd.f32 %v4089, %v4104
    %v4112 = vadd.f32 %v4090, %v4104
    %v4113 = vadd.f32 %v4091, %v4104
    %v4114 = vadd.f32 %v4092, %v4104
    %v4115 = vadd.f32 %v4093, %v4104
    %v4116 = vadd.f32 %v4094, %v4104
    %v4117 = vadd.f32 %v4095, %v4104
    %v4118 = vadd.f32 %v4096, %v4104
    %v4119 = vadd.f32 %v4097, %v4104
    %v4120 = vadd.f32 %v4098, %v4104
    %v4121 = vadd.f32 %v4099, %v4104
    %v4122 = vpack.c.bf16 %v4107, %v4106
    %v4123 = vpack.c.bf16 %v4109, %v4108
    %v4124 = vpack.c.bf16 %v4111, %v4110
    %v4125 = vpack.c.bf16 %v4113, %v4112
    %v4126 = vpack.c.bf16 %v4115, %v4114
    %v4127 = vpack.c.bf16 %v4117, %v4116
    %v4128 = vpack.c.bf16 %v4119, %v4118
    %v4129 = vpack.c.bf16 %v4121, %v4120
    %v4130 = vld [vmem:[#allocation9] sm:$0xff]
    %v4131 = vld [vmem:[#allocation9 + $0x8] sm:$0xff]
    %v4132 = vld [vmem:[#allocation9 + $0x10] sm:$0xff]
    %v4133 = vld [vmem:[#allocation9 + $0x18] sm:$0xff]
    %v4134 = vld [vmem:[#allocation9 + $0x20] sm:$0xff]
    %v4135 = vld [vmem:[#allocation9 + $0x28] sm:$0xff]
    %v4136 = vld [vmem:[#allocation9 + $0x30] sm:$0xff]
    %v4137 = vld [vmem:[#allocation9 + $0x38] sm:$0xff]
    %v4138 = vld [vmem:[#allocation9 + $0x40] sm:$0xff]
    %v4139 = vld [vmem:[#allocation9 + $0x48] sm:$0xff]
    %v4140 = vld [vmem:[#allocation9 + $0x50] sm:$0xff]
    %v4141 = vld [vmem:[#allocation9 + $0x58] sm:$0xff]
    %v4142 = vld [vmem:[#allocation9 + $0x60] sm:$0xff]
    %v4143 = vld [vmem:[#allocation9 + $0x68] sm:$0xff]
    %v4144 = vld [vmem:[#allocation9 + $0x70] sm:$0xff]
    %v4145 = vld [vmem:[#allocation9 + $0x78] sm:$0xff]
    %v4146 = vld [vmem:[%s7] sm:$0x3]
    %v4148 = vlaneseq
    %v4149 = vshrl.u32 %v4148, 7
    %v4150 = vsub.s32 0, %v4149
    %v4151 = vrot.slane %v4146, %v4150
    %v4152 = vlaneseq
    %v4153 = vshrl.u32 %v4152, 7
    %v4154 = vsub.s32 1, %v4153
    %v4155 = vrot.slane %v4146, %v4154
    %v4174 = vunpack.c.l.b16 %v4130
    %v4175 = vunpack.c.h.b16 %v4130
    %v4176 = vunpack.c.l.b16 %v4131
    %v4177 = vunpack.c.h.b16 %v4131
    %v4178 = vunpack.c.l.b16 %v4132
    %v4179 = vunpack.c.h.b16 %v4132
    %v4180 = vunpack.c.l.b16 %v4133
    %v4181 = vunpack.c.h.b16 %v4133
    %v4182 = vunpack.c.l.b16 %v4134
    %v4183 = vunpack.c.h.b16 %v4134
    %v4184 = vunpack.c.l.b16 %v4135
    %v4185 = vunpack.c.h.b16 %v4135
    %v4186 = vunpack.c.l.b16 %v4136
    %v4187 = vunpack.c.h.b16 %v4136
    %v4188 = vunpack.c.l.b16 %v4137
    %v4189 = vunpack.c.h.b16 %v4137
    %v4190 = vunpack.c.l.b16 %v4138
    %v4191 = vunpack.c.h.b16 %v4138
    %v4192 = vunpack.c.l.b16 %v4139
    %v4193 = vunpack.c.h.b16 %v4139
    %v4194 = vunpack.c.l.b16 %v4140
    %v4195 = vunpack.c.h.b16 %v4140
    %v4196 = vunpack.c.l.b16 %v4141
    %v4197 = vunpack.c.h.b16 %v4141
    %v4198 = vunpack.c.l.b16 %v4142
    %v4199 = vunpack.c.h.b16 %v4142
    %v4200 = vunpack.c.l.b16 %v4143
    %v4201 = vunpack.c.h.b16 %v4143
    %v4202 = vunpack.c.l.b16 %v4144
    %v4203 = vunpack.c.h.b16 %v4144
    %v4204 = vunpack.c.l.b16 %v4145
    %v4205 = vunpack.c.h.b16 %v4145
    %v4206 = vpack.c.b16 %v4176, %v4174
    %v4207 = vpack.c.b16 %v4177, %v4175
    %v4208 = vpack.c.b16 %v4180, %v4178
    %v4209 = vpack.c.b16 %v4181, %v4179
    %v4210 = vpack.c.b16 %v4184, %v4182
    %v4211 = vpack.c.b16 %v4185, %v4183
    %v4212 = vpack.c.b16 %v4188, %v4186
    %v4213 = vpack.c.b16 %v4189, %v4187
    %v4214 = vpack.c.b16 %v4192, %v4190
    %v4215 = vpack.c.b16 %v4193, %v4191
    %v4216 = vpack.c.b16 %v4196, %v4194
    %v4217 = vpack.c.b16 %v4197, %v4195
    %v4218 = vpack.c.b16 %v4200, %v4198
    %v4219 = vpack.c.b16 %v4201, %v4199
    %v4220 = vpack.c.b16 %v4204, %v4202
    %v4221 = vpack.c.b16 %v4205, %v4203
    %4238 = vmatprep.subr.bf16.mxu0 %v4207
    %4239 = vmatpush1.bf16.msra.mxu0 %v4206
    %4240 = vmatprep.subr.bf16.mxu0 %v4209
    %4241 = vmatpush1.bf16.msra.mxu0 %v4208
    %4242 = vmatprep.subr.bf16.mxu0 %v4211
    %4243 = vmatpush1.bf16.msra.mxu0 %v4210
    %4244 = vmatprep.subr.bf16.mxu0 %v4213
    %4245 = vmatpush1.bf16.msra.mxu0 %v4212
    %4246 = vmatprep.subr.bf16.mxu0 %v4215
    %4247 = vmatpush1.bf16.msra.mxu0 %v4214
    %4248 = vmatprep.subr.bf16.mxu0 %v4217
    %4249 = vmatpush1.bf16.msra.mxu0 %v4216
    %4250 = vmatprep.subr.bf16.mxu0 %v4219
    %4251 = vmatpush1.bf16.msra.mxu0 %v4218
    %4252 = vmatprep.subr.bf16.mxu0 %v4221
    %4253 = vmatpush1.bf16.msra.mxu0 %v4220
    %4254 = vmatprep.subr.bf16.mxu0 0
    %4255 = vmatpush1.bf16.msra.mxu0 0
    %4256 = vmatprep.subr.bf16.mxu0 0
    %4257 = vmatpush1.bf16.msra.mxu0 0
    %4258 = vmatprep.subr.bf16.mxu0 0
    %4259 = vmatpush1.bf16.msra.mxu0 0
    %4260 = vmatprep.subr.bf16.mxu0 0
    %4261 = vmatpush1.bf16.msra.mxu0 0
    %4262 = vmatprep.subr.bf16.mxu0 0
    %4263 = vmatpush1.bf16.msra.mxu0 0
    %4264 = vmatprep.subr.bf16.mxu0 0
    %4265 = vmatpush1.bf16.msra.mxu0 0
    %4266 = vmatprep.subr.bf16.mxu0 0
    %4267 = vmatpush1.bf16.msra.mxu0 0
    %4268 = vmatprep.subr.bf16.mxu0 0
    %4269 = vmatpush1.bf16.msra.mxu0 0
    %4270 = vmatprep.mubr.bf16.mxu0 0
    %4271 = vmatmul.mubr.bf16.gmra.mrb[0].mxu0 %v4122
    %v4272 = vpop.f32.mrb[0].mxu0
    %v4273 = vadd.f32 %v4151, %v4272
    %v4274 = vpop.f32.mrb[0].mxu0
    %v4275 = vadd.f32 %v4155, %v4274
    %v4276 = vpop.f32.mrb[0].mxu0
    %v4277 = vadd.f32 %v4151, %v4276
    %v4278 = vpop.f32.mrb[0].mxu0
    %v4279 = vadd.f32 %v4155, %v4278
    %4280 = vmatprep.mubr.bf16.mxu0 0
    %4281 = vmatmul.mubr.bf16.gmra.mrb[0].mxu0 %v4123
    %v4282 = vpop.f32.mrb[0].mxu0
    %v4283 = vadd.f32 %v4151, %v4282
    %v4284 = vpop.f32.mrb[0].mxu0
    %v4285 = vadd.f32 %v4155, %v4284
    %v4286 = vpop.f32.mrb[0].mxu0
    %v4287 = vadd.f32 %v4151, %v4286
    %v4288 = vpop.f32.mrb[0].mxu0
    %v4289 = vadd.f32 %v4155, %v4288
    %4290 = vmatprep.mubr.bf16.mxu0 0
    %4291 = vmatmul.mubr.bf16.gmra.mrb[0].mxu0 %v4124
    %v4292 = vpop.f32.mrb[0].mxu0
    %v4293 = vadd.f32 %v4151, %v4292
    %v4294 = vpop.f32.mrb[0].mxu0
    %v4295 = vadd.f32 %v4155, %v4294
    %v4296 = vpop.f32.mrb[0].mxu0
    %v4297 = vadd.f32 %v4151, %v4296
    %v4298 = vpop.f32.mrb[0].mxu0
    %v4299 = vadd.f32 %v4155, %v4298
    %4300 = vmatprep.mubr.bf16.mxu0 0
    %4301 = vmatmul.mubr.bf16.gmra.mrb[0].mxu0 %v4125
    %v4302 = vpop.f32.mrb[0].mxu0
    %v4303 = vadd.f32 %v4151, %v4302
    %v4304 = vpop.f32.mrb[0].mxu0
    %v4305 = vadd.f32 %v4155, %v4304
    %v4306 = vpop.f32.mrb[0].mxu0
    %v4307 = vadd.f32 %v4151, %v4306
    %v4308 = vpop.f32.mrb[0].mxu0
    %v4309 = vadd.f32 %v4155, %v4308
    %4310 = vmatprep.mubr.bf16.mxu0 0
    %4311 = vmatmul.mubr.bf16.gmra.mrb[0].mxu0 %v4126
    %v4312 = vpop.f32.mrb[0].mxu0
    %v4313 = vadd.f32 %v4151, %v4312
    %v4314 = vpop.f32.mrb[0].mxu0
    %v4315 = vadd.f32 %v4155, %v4314
    %v4316 = vpop.f32.mrb[0].mxu0
    %v4317 = vadd.f32 %v4151, %v4316
    %v4318 = vpop.f32.mrb[0].mxu0
    %v4319 = vadd.f32 %v4155, %v4318
    %4320 = vmatprep.mubr.bf16.mxu0 0
    %4321 = vmatmul.mubr.bf16.gmra.mrb[0].mxu0 %v4127
    %v4322 = vpop.f32.mrb[0].mxu0
    %v4323 = vadd.f32 %v4151, %v4322
    %v4324 = vpop.f32.mrb[0].mxu0
    %v4325 = vadd.f32 %v4155, %v4324
    %v4326 = vpop.f32.mrb[0].mxu0
    %v4327 = vadd.f32 %v4151, %v4326
    %v4328 = vpop.f32.mrb[0].mxu0
    %v4329 = vadd.f32 %v4155, %v4328
    %4330 = vmatprep.mubr.bf16.mxu0 0
    %4331 = vmatmul.mubr.bf16.gmra.mrb[0].mxu0 %v4128
    %v4332 = vpop.f32.mrb[0].mxu0
    %v4333 = vadd.f32 %v4151, %v4332
    %v4334 = vpop.f32.mrb[0].mxu0
    %v4335 = vadd.f32 %v4155, %v4334
    %v4336 = vpop.f32.mrb[0].mxu0
    %v4337 = vadd.f32 %v4151, %v4336
    %v4338 = vpop.f32.mrb[0].mxu0
    %v4339 = vadd.f32 %v4155, %v4338
    %4340 = vmatprep.mubr.bf16.mxu0 0
    %4341 = vmatmul.mubr.bf16.gmra.mrb[0].mxu0 %v4129
    %v4342 = vpop.f32.mrb[0].mxu0
    %v4343 = vadd.f32 %v4151, %v4342
    %v4344 = vpop.f32.mrb[0].mxu0
    %v4345 = vadd.f32 %v4155, %v4344
    %v4346 = vpop.f32.mrb[0].mxu0
    %v4347 = vadd.f32 %v4151, %v4346
    %v4348 = vpop.f32.mrb[0].mxu0
    %v4349 = vadd.f32 %v4155, %v4348
    %4350 = vdwg.mxu0
    %v4351 = vmax.f32 %v4273, 0.0
    %v4352 = vmax.f32 %v4275, 0.0
    %v4353 = vmax.f32 %v4277, 0.0
    %v4354 = vmax.f32 %v4279, 0.0
    %v4355 = vmax.f32 %v4283, 0.0
    %v4356 = vmax.f32 %v4285, 0.0
    %v4357 = vmax.f32 %v4287, 0.0
    %v4358 = vmax.f32 %v4289, 0.0
    %v4359 = vmax.f32 %v4293, 0.0
    %v4360 = vmax.f32 %v4295, 0.0
    %v4361 = vmax.f32 %v4297, 0.0
    %v4362 = vmax.f32 %v4299, 0.0
    %v4363 = vmax.f32 %v4303, 0.0
    %v4364 = vmax.f32 %v4305, 0.0
    %v4365 = vmax.f32 %v4307, 0.0
    %v4366 = vmax.f32 %v4309, 0.0
    %v4367 = vmax.f32 %v4313, 0.0
    %v4368 = vmax.f32 %v4315, 0.0
    %v4369 = vmax.f32 %v4317, 0.0
    %v4370 = vmax.f32 %v4319, 0.0
    %v4371 = vmax.f32 %v4323, 0.0
    %v4372 = vmax.f32 %v4325, 0.0
    %v4373 = vmax.f32 %v4327, 0.0
    %v4374 = vmax.f32 %v4329, 0.0
    %v4375 = vmax.f32 %v4333, 0.0
    %v4376 = vmax.f32 %v4335, 0.0
    %v4377 = vmax.f32 %v4337, 0.0
    %v4378 = vmax.f32 %v4339, 0.0
    %v4379 = vmax.f32 %v4343, 0.0
    %v4380 = vmax.f32 %v4345, 0.0
    %v4381 = vmax.f32 %v4347, 0.0
    %v4382 = vmax.f32 %v4349, 0.0
    %v4383 = vpack.c.bf16 %v4353, %v4351
    %v4384 = vpack.c.bf16 %v4354, %v4352
    %v4385 = vpack.c.bf16 %v4357, %v4355
    %v4386 = vpack.c.bf16 %v4358, %v4356
    %v4387 = vpack.c.bf16 %v4361, %v4359
    %v4388 = vpack.c.bf16 %v4362, %v4360
    %v4389 = vpack.c.bf16 %v4365, %v4363
    %v4390 = vpack.c.bf16 %v4366, %v4364
    %v4391 = vpack.c.bf16 %v4369, %v4367
    %v4392 = vpack.c.bf16 %v4370, %v4368
    %v4393 = vpack.c.bf16 %v4373, %v4371
    %v4394 = vpack.c.bf16 %v4374, %v4372
    %v4395 = vpack.c.bf16 %v4377, %v4375
    %v4396 = vpack.c.bf16 %v4378, %v4376
    %v4397 = vpack.c.bf16 %v4381, %v4379
    %v4398 = vpack.c.bf16 %v4382, %v4380
    %v4399 = vld [vmem:[#allocation11] sm:$0xf]
    %v4400 = vld [vmem:[#allocation11 + $0x4] sm:$0xf]
    %v4401 = vld [vmem:[#allocation11 + $0x8] sm:$0xf]
    %v4402 = vld [vmem:[#allocation11 + $0xc] sm:$0xf]
    %v4403 = vld [vmem:[#allocation11 + $0x10] sm:$0xf]
    %v4404 = vld [vmem:[#allocation11 + $0x14] sm:$0xf]
    %v4405 = vld [vmem:[#allocation11 + $0x18] sm:$0xf]
    %v4406 = vld [vmem:[#allocation11 + $0x1c] sm:$0xf]
    %v4407 = vld [vmem:[#allocation11 + $0x20] sm:$0xf]
    %v4408 = vld [vmem:[#allocation11 + $0x24] sm:$0xf]
    %v4409 = vld [vmem:[#allocation11 + $0x28] sm:$0xf]
    %v4410 = vld [vmem:[#allocation11 + $0x2c] sm:$0xf]
    %v4411 = vld [vmem:[#allocation11 + $0x30] sm:$0xf]
    %v4412 = vld [vmem:[#allocation11 + $0x34] sm:$0xf]
    %v4413 = vld [vmem:[#allocation11 + $0x38] sm:$0xf]
    %v4414 = vld [vmem:[#allocation11 + $0x3c] sm:$0xf]
    %v4415 = vld [vmem:[#allocation11 + $0x40] sm:$0xf]
    %v4416 = vld [vmem:[#allocation11 + $0x44] sm:$0xf]
    %v4417 = vld [vmem:[#allocation11 + $0x48] sm:$0xf]
    %v4418 = vld [vmem:[#allocation11 + $0x4c] sm:$0xf]
    %v4419 = vld [vmem:[#allocation11 + $0x50] sm:$0xf]
    %v4420 = vld [vmem:[#allocation11 + $0x54] sm:$0xf]
    %v4421 = vld [vmem:[#allocation11 + $0x58] sm:$0xf]
    %v4422 = vld [vmem:[#allocation11 + $0x5c] sm:$0xf]
    %v4423 = vld [vmem:[#allocation11 + $0x60] sm:$0xf]
    %v4424 = vld [vmem:[#allocation11 + $0x64] sm:$0xf]
    %v4425 = vld [vmem:[#allocation11 + $0x68] sm:$0xf]
    %v4426 = vld [vmem:[#allocation11 + $0x6c] sm:$0xf]
    %v4427 = vld [vmem:[#allocation11 + $0x70] sm:$0xf]
    %v4428 = vld [vmem:[#allocation11 + $0x74] sm:$0xf]
    %v4429 = vld [vmem:[#allocation11 + $0x78] sm:$0xf]
    %v4430 = vld [vmem:[#allocation11 + $0x7c] sm:$0xf]
    %v4431 = vld [vmem:[%s9] sm:$0x1]
    %v4433 = vlaneseq
    %v4434 = vshrl.u32 %v4433, 7
    %v4435 = vsub.s32 0, %v4434
    %v4436 = vrot.slane %v4431, %v4435
    %v4470 = vunpack.c.l.b16 %v4399
    %v4471 = vunpack.c.l.b16 %v4400
    %v4472 = vunpack.c.l.b16 %v4401
    %v4473 = vunpack.c.l.b16 %v4402
    %v4474 = vunpack.c.l.b16 %v4403
    %v4475 = vunpack.c.l.b16 %v4404
    %v4476 = vunpack.c.l.b16 %v4405
    %v4477 = vunpack.c.l.b16 %v4406
    %v4478 = vunpack.c.l.b16 %v4407
    %v4479 = vunpack.c.l.b16 %v4408
    %v4480 = vunpack.c.l.b16 %v4409
    %v4481 = vunpack.c.l.b16 %v4410
    %v4482 = vunpack.c.l.b16 %v4411
    %v4483 = vunpack.c.l.b16 %v4412
    %v4484 = vunpack.c.l.b16 %v4413
    %v4485 = vunpack.c.l.b16 %v4414
    %v4486 = vunpack.c.l.b16 %v4415
    %v4487 = vunpack.c.l.b16 %v4416
    %v4488 = vunpack.c.l.b16 %v4417
    %v4489 = vunpack.c.l.b16 %v4418
    %v4490 = vunpack.c.l.b16 %v4419
    %v4491 = vunpack.c.l.b16 %v4420
    %v4492 = vunpack.c.l.b16 %v4421
    %v4493 = vunpack.c.l.b16 %v4422
    %v4494 = vunpack.c.l.b16 %v4423
    %v4495 = vunpack.c.l.b16 %v4424
    %v4496 = vunpack.c.l.b16 %v4425
    %v4497 = vunpack.c.l.b16 %v4426
    %v4498 = vunpack.c.l.b16 %v4427
    %v4499 = vunpack.c.l.b16 %v4428
    %v4500 = vunpack.c.l.b16 %v4429
    %v4501 = vunpack.c.l.b16 %v4430
    %v4502 = vpack.c.b16 %v4471, %v4470
    %v4503 = vpack.c.b16 %v4473, %v4472
    %v4504 = vpack.c.b16 %v4475, %v4474
    %v4505 = vpack.c.b16 %v4477, %v4476
    %v4506 = vpack.c.b16 %v4479, %v4478
    %v4507 = vpack.c.b16 %v4481, %v4480
    %v4508 = vpack.c.b16 %v4483, %v4482
    %v4509 = vpack.c.b16 %v4485, %v4484
    %v4510 = vpack.c.b16 %v4487, %v4486
    %v4511 = vpack.c.b16 %v4489, %v4488
    %v4512 = vpack.c.b16 %v4491, %v4490
    %v4513 = vpack.c.b16 %v4493, %v4492
    %v4514 = vpack.c.b16 %v4495, %v4494
    %v4515 = vpack.c.b16 %v4497, %v4496
    %v4516 = vpack.c.b16 %v4499, %v4498
    %v4517 = vpack.c.b16 %v4501, %v4500
    %4534 = vmatprep.subr.bf16.mxu0 0
    %4535 = vmatpush1.bf16.msra.mxu0 %v4502
    %4536 = vmatprep.subr.bf16.mxu0 0
    %4537 = vmatpush1.bf16.msra.mxu0 %v4503
    %4538 = vmatprep.subr.bf16.mxu0 0
    %4539 = vmatpush1.bf16.msra.mxu0 %v4504
    %4540 = vmatprep.subr.bf16.mxu0 0
    %4541 = vmatpush1.bf16.msra.mxu0 %v4505
    %4542 = vmatprep.subr.bf16.mxu0 0
    %4543 = vmatpush1.bf16.msra.mxu0 %v4506
    %4544 = vmatprep.subr.bf16.mxu0 0
    %4545 = vmatpush1.bf16.msra.mxu0 %v4507
    %4546 = vmatprep.subr.bf16.mxu0 0
    %4547 = vmatpush1.bf16.msra.mxu0 %v4508
    %4548 = vmatprep.subr.bf16.mxu0 0
    %4549 = vmatpush1.bf16.msra.mxu0 %v4509
    %4550 = vmatprep.subr.bf16.mxu0 0
    %4551 = vmatpush1.bf16.msra.mxu0 %v4510
    %4552 = vmatprep.subr.bf16.mxu0 0
    %4553 = vmatpush1.bf16.msra.mxu0 %v4511
    %4554 = vmatprep.subr.bf16.mxu0 0
    %4555 = vmatpush1.bf16.msra.mxu0 %v4512
    %4556 = vmatprep.subr.bf16.mxu0 0
    %4557 = vmatpush1.bf16.msra.mxu0 %v4513
    %4558 = vmatprep.subr.bf16.mxu0 0
    %4559 = vmatpush1.bf16.msra.mxu0 %v4514
    %4560 = vmatprep.subr.bf16.mxu0 0
    %4561 = vmatpush1.bf16.msra.mxu0 %v4515
    %4562 = vmatprep.subr.bf16.mxu0 0
    %4563 = vmatpush1.bf16.msra.mxu0 %v4516
    %4564 = vmatprep.subr.bf16.mxu0 0
    %4565 = vmatpush1.bf16.msra.mxu0 %v4517
    %4566 = vmatprep.mubr.bf16.mxu0 %v4384
    %4567 = vmatmul.mubr.bf16.gmra.mrb[0].mxu0 %v4383
    %v4568 = vpop.f32.mrb[0].mxu0
    %v4569 = vadd.f32 %v4436, %v4568
    %v4570 = vpop.f32.mrb[0].mxu0
    %v4571 = vpop.f32.mrb[0].mxu0
    %v4572 = vadd.f32 %v4436, %v4571
    %v4573 = vpop.f32.mrb[0].mxu0
    %4574 = vmatprep.mubr.bf16.mxu0 %v4386
    %4575 = vmatmul.mubr.bf16.gmra.mrb[0].mxu0 %v4385
    %v4576 = vpop.f32.mrb[0].mxu0
    %v4577 = vadd.f32 %v4436, %v4576
    %v4578 = vpop.f32.mrb[0].mxu0
    %v4579 = vpop.f32.mrb[0].mxu0
    %v4580 = vadd.f32 %v4436, %v4579
    %v4581 = vpop.f32.mrb[0].mxu0
    %4582 = vmatprep.mubr.bf16.mxu0 %v4388
    %4583 = vmatmul.mubr.bf16.gmra.mrb[0].mxu0 %v4387
    %v4584 = vpop.f32.mrb[0].mxu0
    %v4585 = vadd.f32 %v4436, %v4584
    %v4586 = vpop.f32.mrb[0].mxu0
    %v4587 = vpop.f32.mrb[0].mxu0
    %v4588 = vadd.f32 %v4436, %v4587
    %v4589 = vpop.f32.mrb[0].mxu0
    %4590 = vmatprep.mubr.bf16.mxu0 %v4390
    %4591 = vmatmul.mubr.bf16.gmra.mrb[0].mxu0 %v4389
    %v4592 = vpop.f32.mrb[0].mxu0
    %v4593 = vadd.f32 %v4436, %v4592
    %v4594 = vpop.f32.mrb[0].mxu0
    %v4595 = vpop.f32.mrb[0].mxu0
    %v4596 = vadd.f32 %v4436, %v4595
    %v4597 = vpop.f32.mrb[0].mxu0
    %4598 = vmatprep.mubr.bf16.mxu0 %v4392
    %4599 = vmatmul.mubr.bf16.gmra.mrb[0].mxu0 %v4391
    %v4600 = vpop.f32.mrb[0].mxu0
    %v4601 = vadd.f32 %v4436, %v4600
    %v4602 = vpop.f32.mrb[0].mxu0
    %v4603 = vpop.f32.mrb[0].mxu0
    %v4604 = vadd.f32 %v4436, %v4603
    %v4605 = vpop.f32.mrb[0].mxu0
    %4606 = vmatprep.mubr.bf16.mxu0 %v4394
    %4607 = vmatmul.mubr.bf16.gmra.mrb[0].mxu0 %v4393
    %v4608 = vpop.f32.mrb[0].mxu0
    %v4609 = vadd.f32 %v4436, %v4608
    %v4610 = vpop.f32.mrb[0].mxu0
    %v4611 = vpop.f32.mrb[0].mxu0
    %v4612 = vadd.f32 %v4436, %v4611
    %v4613 = vpop.f32.mrb[0].mxu0
    %4614 = vmatprep.mubr.bf16.mxu0 %v4396
    %4615 = vmatmul.mubr.bf16.gmra.mrb[0].mxu0 %v4395
    %v4616 = vpop.f32.mrb[0].mxu0
    %v4617 = vadd.f32 %v4436, %v4616
    %v4618 = vpop.f32.mrb[0].mxu0
    %v4619 = vpop.f32.mrb[0].mxu0
    %v4620 = vadd.f32 %v4436, %v4619
    %v4621 = vpop.f32.mrb[0].mxu0
    %4622 = vmatprep.mubr.bf16.mxu0 %v4398
    %4623 = vmatmul.mubr.bf16.gmra.mrb[0].mxu0 %v4397
    %v4624 = vpop.f32.mrb[0].mxu0
    %v4625 = vadd.f32 %v4436, %v4624
    %v4626 = vpop.f32.mrb[0].mxu0
    %v4627 = vpop.f32.mrb[0].mxu0
    %v4628 = vadd.f32 %v4436, %v4627
    %v4629 = vpop.f32.mrb[0].mxu0
    %4630 = vdwg.mxu0
    %v4631 = vadd.f32 %v4106, %v4569
    %v4632 = vadd.f32 %v4107, %v4572
    %v4633 = vadd.f32 %v4108, %v4577
    %v4634 = vadd.f32 %v4109, %v4580
    %v4635 = vadd.f32 %v4110, %v4585
    %v4636 = vadd.f32 %v4111, %v4588
    %v4637 = vadd.f32 %v4112, %v4593
    %v4638 = vadd.f32 %v4113, %v4596
    %v4639 = vadd.f32 %v4114, %v4601
    %v4640 = vadd.f32 %v4115, %v4604
    %v4641 = vadd.f32 %v4116, %v4609
    %v4642 = vadd.f32 %v4117, %v4612
    %v4643 = vadd.f32 %v4118, %v4617
    %v4644 = vadd.f32 %v4119, %v4620
    %v4645 = vadd.f32 %v4120, %v4625
    %v4646 = vadd.f32 %v4121, %v4628
    %v4647 = vld [vmem:[%s10] sm:$0x1]
    %v4648 = vld [vmem:[%s11] sm:$0x1]
    %4649 = vadd.xlane.f32.xlu0 %v4631
    %v4650 = vpop.xlane.xlu0 %4649
    %4651 = vadd.xlane.f32.xlu0 %v4632
    %v4652 = vpop.xlane.xlu0 %4651
    %4653 = vadd.xlane.f32.xlu0 %v4633
    %v4654 = vpop.xlane.xlu0 %4653
    %4655 = vadd.xlane.f32.xlu0 %v4634
    %v4656 = vpop.xlane.xlu0 %4655
    %4657 = vadd.xlane.f32.xlu0 %v4635
    %v4658 = vpop.xlane.xlu0 %4657
    %4659 = vadd.xlane.f32.xlu0 %v4636
    %v4660 = vpop.xlane.xlu0 %4659
    %4661 = vadd.xlane.f32.xlu0 %v4637
    %v4662 = vpop.xlane.xlu0 %4661
    %4663 = vadd.xlane.f32.xlu0 %v4638
    %v4664 = vpop.xlane.xlu0 %4663
    %4665 = vadd.xlane.f32.xlu0 %v4639
    %v4666 = vpop.xlane.xlu0 %4665
    %4667 = vadd.xlane.f32.xlu0 %v4640
    %v4668 = vpop.xlane.xlu0 %4667
    %4669 = vadd.xlane.f32.xlu0 %v4641
    %v4670 = vpop.xlane.xlu0 %4669
    %4671 = vadd.xlane.f32.xlu0 %v4642
    %v4672 = vpop.xlane.xlu0 %4671
    %4673 = vadd.xlane.f32.xlu0 %v4643
    %v4674 = vpop.xlane.xlu0 %4673
    %4675 = vadd.xlane.f32.xlu0 %v4644
    %v4676 = vpop.xlane.xlu0 %4675
    %4677 = vadd.xlane.f32.xlu0 %v4645
    %v4678 = vpop.xlane.xlu0 %4677
    %4679 = vadd.xlane.f32.xlu0 %v4646
    %v4680 = vpop.xlane.xlu0 %4679
    %v4681 = vmul.f32 %v4650, 0.020833334
    %v4682 = vmul.f32 %v4652, 0.020833334
    %v4683 = vmul.f32 %v4654, 0.020833334
    %v4684 = vmul.f32 %v4656, 0.020833334
    %v4685 = vmul.f32 %v4658, 0.020833334
    %v4686 = vmul.f32 %v4660, 0.020833334
    %v4687 = vmul.f32 %v4662, 0.020833334
    %v4688 = vmul.f32 %v4664, 0.020833334
    %v4689 = vmul.f32 %v4666, 0.020833334
    %v4690 = vmul.f32 %v4668, 0.020833334
    %v4691 = vmul.f32 %v4670, 0.020833334
    %v4692 = vmul.f32 %v4672, 0.020833334
    %v4693 = vmul.f32 %v4674, 0.020833334
    %v4694 = vmul.f32 %v4676, 0.020833334
    %v4695 = vmul.f32 %v4678, 0.020833334
    %v4696 = vmul.f32 %v4680, 0.020833334
    %v4697 = vmul.f32 %v4631, %v4631
    %v4698 = vmul.f32 %v4632, %v4632
    %v4699 = vmul.f32 %v4633, %v4633
    %v4700 = vmul.f32 %v4634, %v4634
    %v4701 = vmul.f32 %v4635, %v4635
    %v4702 = vmul.f32 %v4636, %v4636
    %v4703 = vmul.f32 %v4637, %v4637
    %v4704 = vmul.f32 %v4638, %v4638
    %v4705 = vmul.f32 %v4639, %v4639
    %v4706 = vmul.f32 %v4640, %v4640
    %v4707 = vmul.f32 %v4641, %v4641
    %v4708 = vmul.f32 %v4642, %v4642
    %v4709 = vmul.f32 %v4643, %v4643
    %v4710 = vmul.f32 %v4644, %v4644
    %v4711 = vmul.f32 %v4645, %v4645
    %v4712 = vmul.f32 %v4646, %v4646
    %4713 = vadd.xlane.f32.xlu0 %v4697
    %v4714 = vpop.xlane.xlu0 %4713
    %4715 = vadd.xlane.f32.xlu0 %v4698
    %v4716 = vpop.xlane.xlu0 %4715
    %4717 = vadd.xlane.f32.xlu0 %v4699
    %v4718 = vpop.xlane.xlu0 %4717
    %4719 = vadd.xlane.f32.xlu0 %v4700
    %v4720 = vpop.xlane.xlu0 %4719
    %4721 = vadd.xlane.f32.xlu0 %v4701
    %v4722 = vpop.xlane.xlu0 %4721
    %4723 = vadd.xlane.f32.xlu0 %v4702
    %v4724 = vpop.xlane.xlu0 %4723
    %4725 = vadd.xlane.f32.xlu0 %v4703
    %v4726 = vpop.xlane.xlu0 %4725
    %4727 = vadd.xlane.f32.xlu0 %v4704
    %v4728 = vpop.xlane.xlu0 %4727
    %4729 = vadd.xlane.f32.xlu0 %v4705
    %v4730 = vpop.xlane.xlu0 %4729
    %4731 = vadd.xlane.f32.xlu0 %v4706
    %v4732 = vpop.xlane.xlu0 %4731
    %4733 = vadd.xlane.f32.xlu0 %v4707
    %v4734 = vpop.xlane.xlu0 %4733
    %4735 = vadd.xlane.f32.xlu0 %v4708
    %v4736 = vpop.xlane.xlu0 %4735
    %4737 = vadd.xlane.f32.xlu0 %v4709
    %v4738 = vpop.xlane.xlu0 %4737
    %4739 = vadd.xlane.f32.xlu0 %v4710
    %v4740 = vpop.xlane.xlu0 %4739
    %4741 = vadd.xlane.f32.xlu0 %v4711
    %v4742 = vpop.xlane.xlu0 %4741
    %4743 = vadd.xlane.f32.xlu0 %v4712
    %v4744 = vpop.xlane.xlu0 %4743
    %v4745 = vmul.f32 %v4714, 0.020833334
    %v4746 = vmul.f32 %v4716, 0.020833334
    %v4747 = vmul.f32 %v4718, 0.020833334
    %v4748 = vmul.f32 %v4720, 0.020833334
    %v4749 = vmul.f32 %v4722, 0.020833334
    %v4750 = vmul.f32 %v4724, 0.020833334
    %v4751 = vmul.f32 %v4726, 0.020833334
    %v4752 = vmul.f32 %v4728, 0.020833334
    %v4753 = vmul.f32 %v4730, 0.020833334
    %v4754 = vmul.f32 %v4732, 0.020833334
    %v4755 = vmul.f32 %v4734, 0.020833334
    %v4756 = vmul.f32 %v4736, 0.020833334
    %v4757 = vmul.f32 %v4738, 0.020833334
    %v4758 = vmul.f32 %v4740, 0.020833334
    %v4759 = vmul.f32 %v4742, 0.020833334
    %v4760 = vmul.f32 %v4744, 0.020833334
    %v4761 = vmul.f32 %v4681, %v4681
    %v4762 = vmul.f32 %v4682, %v4682
    %v4763 = vmul.f32 %v4683, %v4683
    %v4764 = vmul.f32 %v4684, %v4684
    %v4765 = vmul.f32 %v4685, %v4685
    %v4766 = vmul.f32 %v4686, %v4686
    %v4767 = vmul.f32 %v4687, %v4687
    %v4768 = vmul.f32 %v4688, %v4688
    %v4769 = vmul.f32 %v4689, %v4689
    %v4770 = vmul.f32 %v4690, %v4690
    %v4771 = vmul.f32 %v4691, %v4691
    %v4772 = vmul.f32 %v4692, %v4692
    %v4773 = vmul.f32 %v4693, %v4693
    %v4774 = vmul.f32 %v4694, %v4694
    %v4775 = vmul.f32 %v4695, %v4695
    %v4776 = vmul.f32 %v4696, %v4696
    %v4777 = vsub.f32 %v4745, %v4761
    %v4778 = vsub.f32 %v4746, %v4762
    %v4779 = vsub.f32 %v4747, %v4763
    %v4780 = vsub.f32 %v4748, %v4764
    %v4781 = vsub.f32 %v4749, %v4765
    %v4782 = vsub.f32 %v4750, %v4766
    %v4783 = vsub.f32 %v4751, %v4767
    %v4784 = vsub.f32 %v4752, %v4768
    %v4785 = vsub.f32 %v4753, %v4769
    %v4786 = vsub.f32 %v4754, %v4770
    %v4787 = vsub.f32 %v4755, %v4771
    %v4788 = vsub.f32 %v4756, %v4772
    %v4789 = vsub.f32 %v4757, %v4773
    %v4790 = vsub.f32 %v4758, %v4774
    %v4791 = vsub.f32 %v4759, %v4775
    %v4792 = vsub.f32 %v4760, %v4776
    %v4793 = vsub.f32 %v4631, %v4681
    %v4794 = vsub.f32 %v4632, %v4682
    %v4795 = vsub.f32 %v4633, %v4683
    %v4796 = vsub.f32 %v4634, %v4684
    %v4797 = vsub.f32 %v4635, %v4685
    %v4798 = vsub.f32 %v4636, %v4686
    %v4799 = vsub.f32 %v4637, %v4687
    %v4800 = vsub.f32 %v4638, %v4688
    %v4801 = vsub.f32 %v4639, %v4689
    %v4802 = vsub.f32 %v4640, %v4690
    %v4803 = vsub.f32 %v4641, %v4691
    %v4804 = vsub.f32 %v4642, %v4692
    %v4805 = vsub.f32 %v4643, %v4693
    %v4806 = vsub.f32 %v4644, %v4694
    %v4807 = vsub.f32 %v4645, %v4695
    %v4808 = vsub.f32 %v4646, %v4696
    %v4809 = vadd.f32 %v4777, 1e-05
    %v4810 = vadd.f32 %v4778, 1e-05
    %v4811 = vadd.f32 %v4779, 1e-05
    %v4812 = vadd.f32 %v4780, 1e-05
    %v4813 = vadd.f32 %v4781, 1e-05
    %v4814 = vadd.f32 %v4782, 1e-05
    %v4815 = vadd.f32 %v4783, 1e-05
    %v4816 = vadd.f32 %v4784, 1e-05
    %v4817 = vadd.f32 %v4785, 1e-05
    %v4818 = vadd.f32 %v4786, 1e-05
    %v4819 = vadd.f32 %v4787, 1e-05
    %v4820 = vadd.f32 %v4788, 1e-05
    %v4821 = vadd.f32 %v4789, 1e-05
    %v4822 = vadd.f32 %v4790, 1e-05
    %v4823 = vadd.f32 %v4791, 1e-05
    %v4824 = vadd.f32 %v4792, 1e-05
    %v4825 = vrsqrt.pop %v4809
    %v4826 = vrsqrt.pop %v4810
    %v4827 = vrsqrt.pop %v4811
    %v4828 = vrsqrt.pop %v4812
    %v4829 = vrsqrt.pop %v4813
    %v4830 = vrsqrt.pop %v4814
    %v4831 = vrsqrt.pop %v4815
    %v4832 = vrsqrt.pop %v4816
    %v4833 = vrsqrt.pop %v4817
    %v4834 = vrsqrt.pop %v4818
    %v4835 = vrsqrt.pop %v4819
    %v4836 = vrsqrt.pop %v4820
    %v4837 = vrsqrt.pop %v4821
    %v4838 = vrsqrt.pop %v4822
    %v4839 = vrsqrt.pop %v4823
    %v4840 = vrsqrt.pop %v4824
    %v4841 = vmul.f32 %v4793, %v4825
    %v4842 = vmul.f32 %v4794, %v4826
    %v4843 = vmul.f32 %v4795, %v4827
    %v4844 = vmul.f32 %v4796, %v4828
    %v4845 = vmul.f32 %v4797, %v4829
    %v4846 = vmul.f32 %v4798, %v4830
    %v4847 = vmul.f32 %v4799, %v4831
    %v4848 = vmul.f32 %v4800, %v4832
    %v4849 = vmul.f32 %v4801, %v4833
    %v4850 = vmul.f32 %v4802, %v4834
    %v4851 = vmul.f32 %v4803, %v4835
    %v4852 = vmul.f32 %v4804, %v4836
    %v4853 = vmul.f32 %v4805, %v4837
    %v4854 = vmul.f32 %v4806, %v4838
    %v4855 = vmul.f32 %v4807, %v4839
    %v4856 = vmul.f32 %v4808, %v4840
    %v4858 = vlaneseq
    %v4859 = vshrl.u32 %v4858, 7
    %v4860 = vsub.s32 0, %v4859
    %v4861 = vrot.slane %v4647, %v4860
    %v4863 = vmul.f32 %v4841, %v4861
    %v4864 = vmul.f32 %v4842, %v4861
    %v4865 = vmul.f32 %v4843, %v4861
    %v4866 = vmul.f32 %v4844, %v4861
    %v4867 = vmul.f32 %v4845, %v4861
    %v4868 = vmul.f32 %v4846, %v4861
    %v4869 = vmul.f32 %v4847, %v4861
    %v4870 = vmul.f32 %v4848, %v4861
    %v4871 = vmul.f32 %v4849, %v4861
    %v4872 = vmul.f32 %v4850, %v4861
    %v4873 = vmul.f32 %v4851, %v4861
    %v4874 = vmul.f32 %v4852, %v4861
    %v4875 = vmul.f32 %v4853, %v4861
    %v4876 = vmul.f32 %v4854, %v4861
    %v4877 = vmul.f32 %v4855, %v4861
    %v4878 = vmul.f32 %v4856, %v4861
    %v4880 = vlaneseq
    %v4881 = vshrl.u32 %v4880, 7
    %v4882 = vsub.s32 0, %v4881
    %v4883 = vrot.slane %v4648, %v4882
    %v4885 = vadd.f32 %v4863, %v4883
    %v4886 = vadd.f32 %v4864, %v4883
    %v4887 = vadd.f32 %v4865, %v4883
    %v4888 = vadd.f32 %v4866, %v4883
    %v4889 = vadd.f32 %v4867, %v4883
    %v4890 = vadd.f32 %v4868, %v4883
    %v4891 = vadd.f32 %v4869, %v4883
    %v4892 = vadd.f32 %v4870, %v4883
    %v4893 = vadd.f32 %v4871, %v4883
    %v4894 = vadd.f32 %v4872, %v4883
    %v4895 = vadd.f32 %v4873, %v4883
    %v4896 = vadd.f32 %v4874, %v4883
    %v4897 = vadd.f32 %v4875, %v4883
    %v4898 = vadd.f32 %v4876, %v4883
    %v4899 = vadd.f32 %v4877, %v4883
    %v4900 = vadd.f32 %v4878, %v4883
    %4901 = vst [vmem:[#allocation12] sm:$0xff] %v4885
    %4902 = vst [vmem:[#allocation12 + $0x8] sm:$0xff] %v4886
    %4903 = vst [vmem:[#allocation12 + $0x10] sm:$0xff] %v4887
    %4904 = vst [vmem:[#allocation12 + $0x18] sm:$0xff] %v4888
    %4905 = vst [vmem:[#allocation12 + $0x20] sm:$0xff] %v4889
    %4906 = vst [vmem:[#allocation12 + $0x28] sm:$0xff] %v4890
    %4907 = vst [vmem:[#allocation12 + $0x30] sm:$0xff] %v4891
    %4908 = vst [vmem:[#allocation12 + $0x38] sm:$0xff] %v4892
    %4909 = vst [vmem:[#allocation12 + $0x40] sm:$0xff] %v4893
    %4910 = vst [vmem:[#allocation12 + $0x48] sm:$0xff] %v4894
    %4911 = vst [vmem:[#allocation12 + $0x50] sm:$0xff] %v4895
    %4912 = vst [vmem:[#allocation12 + $0x58] sm:$0xff] %v4896
    %4913 = vst [vmem:[#allocation12 + $0x60] sm:$0xff] %v4897
    %4914 = vst [vmem:[#allocation12 + $0x68] sm:$0xff] %v4898
    %4915 = vst [vmem:[#allocation12 + $0x70] sm:$0xff] %v4899
    %4916 = vst [vmem:[#allocation12 + $0x78] sm:$0xff] %v4900
    // Predicated region
    $region70: #{tpu_custom_call.1} parent=1 // pred_check
      _
    $region71: #{tpu_custom_call.1} parent=1 // pred_check_branch
      %4918 = sbr.rel (0) target = $region73
    $region72: #{tpu_custom_call.1} parent=1 // pred_region
      %s4920 = ssub.s32 2048, 2048
      %4921 = vsyncadd [#allocation5], %s4920
      %s4922 = sshll.u32 [#allocation12], 4
      %s4923 = int_to_ptr.vmem [resolvable:$true] %s4922
      %4928 = dma.vmem_to_hbm [thread:$0]  %s4923, 2048, %s12, [#allocation5], 128, 128, 8
    $region73: #{tpu_custom_call.1} parent=1 // pred_fallthru
      _
    // Predicated region
    $region74: #{tpu_custom_call.1} parent=1 // pred_check
      _
    $region75: #{tpu_custom_call.1} parent=1 // pred_check_branch
      %4930 = sbr.rel (0) target = $region77
    $region76: #{tpu_custom_call.1} parent=1 // pred_region
      %4931 = dma.done [#allocation5], 2048
    $region77: #{tpu_custom_call.1} parent=1 // pred_fallthru
      _
    %4932 = vsyncpa [#allocation4], 1
    %4933 = vsyncpa [#allocation7], 1
    %4934 = vsyncpa [#allocation10], 1
    %4935 = vsyncpa [#allocation5], 1

// kernel: tpu_custom_call.1
$region0: #{tpu_custom_call.1}
  #allocation0 [shape = 'u32[]', space=smem, size = 0x4, offset = 0x4, fixed_abs, tag = 'smem constant byte address 0x4 - core index']
  #allocation1 [shape = 'u32[144,128]{1,0:T(1,128)}', space=vmem, size = 0x12000, scoped, tag = 'internal scratch']
  #allocation2 [shape = 'bf16[128,128]{1,0:T(16,128)(2,1)}', space=vmem, size = 0x8000, scoped, tag = 'scratch operand']
  %s0 = inlined_call_operand.hbm [shape: bf16[128,128], index: 0, kind: input, shape index: {}]
  %s1 = inlined_call_operand.hbm [shape: bf16[128,384], index: 1, kind: input, shape index: {}]
  %s2 = inlined_call_operand.hbm [shape: bf16[128,128], index: 2, kind: input, shape index: {}]
  %s3 = inlined_call_operand.vmem [shape: f32[1,128], index: 3, kind: input, shape index: {}]
  %s4 = inlined_call_operand.vmem [shape: f32[1,128], index: 4, kind: input, shape index: {}]
  %s5 = inlined_call_operand.vmem [shape: f32[1,128], index: 5, kind: input, shape index: {}]
  %s6 = inlined_call_operand.hbm [shape: bf16[128,256], index: 6, kind: input, shape index: {}]
  %s7 = inlined_call_operand.vmem [shape: f32[1,256], index: 7, kind: input, shape index: {}]
  %s8 = inlined_call_operand.hbm [shape: bf16[256,128], index: 8, kind: input, shape index: {}]
  %s9 = inlined_call_operand.vmem [shape: f32[1,128], index: 9, kind: input, shape index: {}]
  %s10 = inlined_call_operand.vmem [shape: f32[1,128], index: 10, kind: input, shape index: {}]
  %s11 = inlined_call_operand.vmem [shape: f32[1,128], index: 11, kind: input, shape index: {}]
  %s12 = inlined_call_operand.hbm [shape: f32[128,128], index: 12, kind: output, shape index: {}]
  %s13 = sld [smem:[#allocation0]]
  $region78: #{tpu_custom_call.1} parent=0
    _
  %s15 = ssub.s32 1, %s13
  %s16 = scalar_select 0, %s15, %s13
  $region1: #{tpu_custom_call.1} parent=0
    #allocation3 [shape = 'u8[32768]{0}', space=vmem, size = 0x8000, scoped, tag = 'input window, operand 0, single buffered']
    #allocation4 [shape = 's32[1]{0}', space=sflag, size = 0x4, scoped, tag = 'scoped memory for tpu_custom_call.1']
    #allocation5 [shape = 's32[1]{0}', space=sflag, size = 0x4, scoped, tag = 'scoped memory for tpu_custom_call.1']
    #allocation6 [shape = 'u8[98304]{0}', space=vmem, size = 0x18000, scoped, tag = 'input window, operand 1, single buffered']
    #allocation7 [shape = 's32[1]{0}', space=sflag, size = 0x4, scoped, tag = 'scoped memory for tpu_custom_call.1']
    #allocation8 [shape = 'u8[32768]{0}', space=vmem, size = 0x8000, scoped, tag = 'input window, operand 2, single buffered']
    #allocation9 [shape = 'u8[65536]{0}', space=vmem, size = 0x10000, scoped, tag = 'input window, operand 6, single buffered']
    #allocation10 [shape = 's32[1]{0}', space=sflag, size = 0x4, scoped, tag = 'scoped memory for tpu_custom_call.1']
    #allocation11 [shape = 'u8[65536]{0}', space=vmem, size = 0x10000, scoped, tag = 'input window, operand 8, single buffered']
    #allocation12 [shape = 'u8[65536]{0}', space=vmem, size = 0x10000, scoped, tag = 'output window, operand 0, single buffered']
    %17 = vsyncpa [#allocation4], 0
    %18 = vsyncpa [#allocation7], 0
    %19 = vsyncpa [#allocation10], 0
    %20 = vsyncpa [#allocation5], 0
    // Predicated region
    $region2: #{tpu_custom_call.1} parent=1 // pred_check
      _
    $region3: #{tpu_custom_call.1} parent=1 // pred_check_branch
      %22 = sbr.rel (0) target = $region5
    $region4: #{tpu_custom_call.1} parent=1 // pred_region
      %s24 = ssub.s32 1024, 1024
      %25 = vsyncadd [#allocation4], %s24
      %s26 = sshll.u32 [#allocation3], 4
      %s27 = int_to_ptr.vmem [resolvable:$true] %s26
      %32 = dma.hbm_to_vmem [thread:$0]  %s0, 1024, %s27, [#allocation4], 64, 64, 4
    $region5: #{tpu_custom_call.1} parent=1 // pred_fallthru
      _
    // Predicated region
    $region6: #{tpu_custom_call.1} parent=1 // pred_check
      _
    $region7: #{tpu_custom_call.1} parent=1 // pred_check_branch
      %34 = sbr.rel (0) target = $region9
    $region8: #{tpu_custom_call.1} parent=1 // pred_region
      %s36 = ssub.s32 3072, 3072
      %37 = vsyncadd [#allocation7], %s36
      %s38 = sshll.u32 [#allocation6], 4
      %s39 = int_to_ptr.vmem [resolvable:$true] %s38
      %44 = dma.hbm_to_vmem [thread:$0]  %s1, 3072, %s39, [#allocation7], 192, 192, 12
    $region9: #{tpu_custom_call.1} parent=1 // pred_fallthru
      _
    // Predicated region
    $region10: #{tpu_custom_call.1} parent=1 // pred_check
      _
    $region11: #{tpu_custom_call.1} parent=1 // pred_check_branch
      %46 = sbr.rel (0) target = $region13
    $region12: #{tpu_custom_call.1} parent=1 // pred_region
      %s48 = ssub.s32 1024, 1024
      %49 = vsyncadd [#allocation7], %s48
      %s50 = sshll.u32 [#allocation8], 4
      %s51 = int_to_ptr.vmem [resolvable:$true] %s50
      %56 = dma.hbm_to_vmem [thread:$0]  %s2, 1024, %s51, [#allocation7], 64, 64, 4
    $region13: #{tpu_custom_call.1} parent=1 // pred_fallthru
      _
    // Predicated region
    $region14: #{tpu_custom_call.1} parent=1 // pred_check
      _
    $region15: #{tpu_custom_call.1} parent=1 // pred_check_branch
      %58 = sbr.rel (0) target = $region17
    $region16: #{tpu_custom_call.1} parent=1 // pred_region
      _
    $region17: #{tpu_custom_call.1} parent=1 // pred_fallthru
      _
    // Predicated region
    $region18: #{tpu_custom_call.1} parent=1 // pred_check
      _
    $region19: #{tpu_custom_call.1} parent=1 // pred_check_branch
      %60 = sbr.rel (0) target = $region21
    $region20: #{tpu_custom_call.1} parent=1 // pred_region
      _
    $region21: #{tpu_custom_call.1} parent=1 // pred_fallthru
      _
    // Predicated region
    $region22: #{tpu_custom_call.1} parent=1 // pred_check
      _
    $region23: #{tpu_custom_call.1} parent=1 // pred_check_branch
      %62 = sbr.rel (0) target = $region25
    $region24: #{tpu_custom_call.1} parent=1 // pred_region
      _
    $region25: #{tpu_custom_call.1} parent=1 // pred_fallthru
      _
    // Predicated region
    $region26: #{tpu_custom_call.1} parent=1 // pred_check
      _
    $region27: #{tpu_custom_call.1} parent=1 // pred_check_branch
      %64 = sbr.rel (0) target = $region29
    $region28: #{tpu_custom_call.1} parent=1 // pred_region
      %s66 = ssub.s32 2048, 2048
      %67 = vsyncadd [#allocation10], %s66
      %s68 = sshll.u32 [#allocation9], 4
      %s69 = int_to_ptr.vmem [resolvable:$true] %s68
      %74 = dma.hbm_to_vmem [thread:$0]  %s6, 2048, %s69, [#allocation10], 128, 128, 8
    $region29: #{tpu_custom_call.1} parent=1 // pred_fallthru
      _
    // Predicated region
    $region30: #{tpu_custom_call.1} parent=1 // pred_check
      _
    $region31: #{tpu_custom_call.1} parent=1 // pred_check_branch
      %76 = sbr.rel (0) target = $region33
    $region32: #{tpu_custom_call.1} parent=1 // pred_region
      _
    $region33: #{tpu_custom_call.1} parent=1 // pred_fallthru
      _
    // Predicated region
    $region34: #{tpu_custom_call.1} parent=1 // pred_check
      _
    $region35: #{tpu_custom_call.1} parent=1 // pred_check_branch
      %78 = sbr.rel (0) target = $region37
    $region36: #{tpu_custom_call.1} parent=1 // pred_region
      %s80 = ssub.s32 2048, 2048
      %81 = vsyncadd [#allocation10], %s80
      %s82 = sshll.u32 [#allocation11], 4
      %s83 = int_to_ptr.vmem [resolvable:$true] %s82
      %88 = dma.hbm_to_vmem [thread:$0]  %s8, 2048, %s83, [#allocation10], 64, 64, 4
    $region37: #{tpu_custom_call.1} parent=1 // pred_fallthru
      _
    // Predicated region
    $region38: #{tpu_custom_call.1} parent=1 // pred_check
      _
    $region39: #{tpu_custom_call.1} parent=1 // pred_check_branch
      %90 = sbr.rel (0) target = $region41
    $region40: #{tpu_custom_call.1} parent=1 // pred_region
      _
    $region41: #{tpu_custom_call.1} parent=1 // pred_fallthru
      _
    // Predicated region
    $region42: #{tpu_custom_call.1} parent=1 // pred_check
      _
    $region43: #{tpu_custom_call.1} parent=1 // pred_check_branch
      %92 = sbr.rel (0) target = $region45
    $region44: #{tpu_custom_call.1} parent=1 // pred_region
      _
    $region45: #{tpu_custom_call.1} parent=1 // pred_fallthru
      _
    // Predicated region
    $region46: #{tpu_custom_call.1} parent=1 // pred_check
      _
    $region47: #{tpu_custom_call.1} parent=1 // pred_check_branch
      %94 = sbr.rel (0) target = $region49
    $region48: #{tpu_custom_call.1} parent=1 // pred_region
      _
    $region49: #{tpu_custom_call.1} parent=1 // pred_fallthru
      _
    // Predicated region
    $region50: #{tpu_custom_call.1} parent=1 // pred_check
      _
    $region51: #{tpu_custom_call.1} parent=1 // pred_check_branch
      %96 = sbr.rel (0) target = $region53
    $region52: #{tpu_custom_call.1} parent=1 // pred_region
      %97 = dma.done [#allocation4], 1024
    $region53: #{tpu_custom_call.1} parent=1 // pred_fallthru
      _
    // Predicated region
    $region54: #{tpu_custom_call.1} parent=1 // pred_check
      _
    $region55: #{tpu_custom_call.1} parent=1 // pred_check_branch
      %99 = sbr.rel (0) target = $region57
    $region56: #{tpu_custom_call.1} parent=1 // pred_region
      %100 = dma.done [#allocation7], 3072
    $region57: #{tpu_custom_call.1} parent=1 // pred_fallthru
      _
    // Predicated region
    $region58: #{tpu_custom_call.1} parent=1 // pred_check
      _
    $region59: #{tpu_custom_call.1} parent=1 // pred_check_branch
      %102 = sbr.rel (0) target = $region61
    $region60: #{tpu_custom_call.1} parent=1 // pred_region
      %103 = dma.done [#allocation7], 1024
    $region61: #{tpu_custom_call.1} parent=1 // pred_fallthru
      _
    // Predicated region
    $region62: #{tpu_custom_call.1} parent=1 // pred_check
      _
    $region63: #{tpu_custom_call.1} parent=1 // pred_check_branch
      %105 = sbr.rel (0) target = $region65
    $region64: #{tpu_custom_call.1} parent=1 // pred_region
      %106 = dma.done [#allocation10], 2048
    $region65: #{tpu_custom_call.1} parent=1 // pred_fallthru
      _
    // Predicated region
    $region66: #{tpu_custom_call.1} parent=1 // pred_check
      _
    $region67: #{tpu_custom_call.1} parent=1 // pred_check_branch
      %108 = sbr.rel (0) target = $region69
    $region68: #{tpu_custom_call.1} parent=1 // pred_region
      %109 = dma.done [#allocation10], 2048
    $region69: #{tpu_custom_call.1} parent=1 // pred_fallthru
      _
    %v111 = vld [vmem:[#allocation3] sm:$0xf]
    %v112 = vld [vmem:[#allocation3 + $0x4] sm:$0xf]
    %v113 = vld [vmem:[#allocation3 + $0x8] sm:$0xf]
    %v114 = vld [vmem:[#allocation3 + $0xc] sm:$0xf]
    %v115 = vld [vmem:[#allocation3 + $0x10] sm:$0xf]
    %v116 = vld [vmem:[#allocation3 + $0x14] sm:$0xf]
    %v117 = vld [vmem:[#allocation3 + $0x18] sm:$0xf]
    %v118 = vld [vmem:[#allocation3 + $0x1c] sm:$0xf]
    %v119 = vld [vmem:[#allocation3 + $0x20] sm:$0xf]
    %v120 = vld [vmem:[#allocation3 + $0x24] sm:$0xf]
    %v121 = vld [vmem:[#allocation3 + $0x28] sm:$0xf]
    %v122 = vld [vmem:[#allocation3 + $0x2c] sm:$0xf]
    %v123 = vld [vmem:[#allocation3 + $0x30] sm:$0xf]
    %v124 = vld [vmem:[#allocation3 + $0x34] sm:$0xf]
    %v125 = vld [vmem:[#allocation3 + $0x38] sm:$0xf]
    %v126 = vld [vmem:[#allocation3 + $0x3c] sm:$0xf]
    %v127 = vld [vmem:[#allocation6] sm:$0xff]
    %v128 = vld [vmem:[#allocation6 + $0x8] sm:$0xf]
    %v129 = vld [vmem:[#allocation6 + $0xc] sm:$0xff]
    %v130 = vld [vmem:[#allocation6 + $0x14] sm:$0xf]
    %v131 = vld [vmem:[#allocation6 + $0x18] sm:$0xff]
    %v132 = vld [vmem:[#allocation6 + $0x20] sm:$0xf]
    %v133 = vld [vmem:[#allocation6 + $0x24] sm:$0xff]
    %v134 = vld [vmem:[#allocation6 + $0x2c] sm:$0xf]
    %v135 = vld [vmem:[#allocation6 + $0x30] sm:$0xff]
    %v136 = vld [vmem:[#allocation6 + $0x38] sm:$0xf]
    %v137 = vld [vmem:[#allocation6 + $0x3c] sm:$0xff]
    %v138 = vld [vmem:[#allocation6 + $0x44] sm:$0xf]
    %v139 = vld [vmem:[#allocation6 + $0x48] sm:$0xff]
    %v140 = vld [vmem:[#allocation6 + $0x50] sm:$0xf]
    %v141 = vld [vmem:[#allocation6 + $0x54] sm:$0xff]
    %v142 = vld [vmem:[#allocation6 + $0x5c] sm:$0xf]
    %v143 = vld [vmem:[#allocation6 + $0x60] sm:$0xff]
    %v144 = vld [vmem:[#allocation6 + $0x68] sm:$0xf]
    %v145 = vld [vmem:[#allocation6 + $0x6c] sm:$0xff]
    %v146 = vld [vmem:[#allocation6 + $0x74] sm:$0xf]
    %v147 = vld [vmem:[#allocation6 + $0x78] sm:$0xff]
    %v148 = vld [vmem:[#allocation6 + $0x80] sm:$0xf]
    %v149 = vld [vmem:[#allocation6 + $0x84] sm:$0xff]
    %v150 = vld [vmem:[#allocation6 + $0x8c] sm:$0xf]
    %v151 = vld [vmem:[#allocation6 + $0x90] sm:$0xff]
    %v152 = vld [vmem:[#allocation6 + $0x98] sm:$0xf]
    %v153 = vld [vmem:[#allocation6 + $0x9c] sm:$0xff]
    %v154 = vld [vmem:[#allocation6 + $0xa4] sm:$0xf]
    %v155 = vld [vmem:[#allocation6 + $0xa8] sm:$0xff]
    %v156 = vld [vmem:[#allocation6 + $0xb0] sm:$0xf]
    %v157 = vld [vmem:[#allocation6 + $0xb4] sm:$0xff]
    %v158 = vld [vmem:[#allocation6 + $0xbc] sm:$0xf]
    %v175 = vunpack.c.l.b16 %v111
    %v176 = vunpack.c.l.b16 %v112
    %v177 = vunpack.c.l.b16 %v113
    %v178 = vunpack.c.l.b16 %v114
    %v179 = vunpack.c.l.b16 %v115
    %v180 = vunpack.c.l.b16 %v116
    %v181 = vunpack.c.l.b16 %v117
    %v182 = vunpack.c.l.b16 %v118
    %v183 = vunpack.c.l.b16 %v119
    %v184 = vunpack.c.l.b16 %v120
    %v185 = vunpack.c.l.b16 %v121
    %v186 = vunpack.c.l.b16 %v122
    %v187 = vunpack.c.l.b16 %v123
    %v188 = vunpack.c.l.b16 %v124
    %v189 = vunpack.c.l.b16 %v125
    %v190 = vunpack.c.l.b16 %v126
    %v191 = vpack.c.b16 %v176, %v175
    %v192 = vpack.c.b16 %v178, %v177
    %v193 = vpack.c.b16 %v180, %v179
    %v194 = vpack.c.b16 %v182, %v181
    %v195 = vpack.c.b16 %v184, %v183
    %v196 = vpack.c.b16 %v186, %v185
    %v197 = vpack.c.b16 %v188, %v187
    %v198 = vpack.c.b16 %v190, %v189
    %v239 = vunpack.c.l.b16 %v127
    %v240 = vunpack.c.h.b16 %v127
    %v241 = vunpack.c.l.b16 %v128
    %v242 = vunpack.c.l.b16 %v129
    %v243 = vunpack.c.h.b16 %v129
    %v244 = vunpack.c.l.b16 %v130
    %v245 = vunpack.c.l.b16 %v131
    %v246 = vunpack.c.h.b16 %v131
    %v247 = vunpack.c.l.b16 %v132
    %v248 = vunpack.c.l.b16 %v133
    %v249 = vunpack.c.h.b16 %v133
    %v250 = vunpack.c.l.b16 %v134
    %v251 = vunpack.c.l.b16 %v135
    %v252 = vunpack.c.h.b16 %v135
    %v253 = vunpack.c.l.b16 %v136
    %v254 = vunpack.c.l.b16 %v137
    %v255 = vunpack.c.h.b16 %v137
    %v256 = vunpack.c.l.b16 %v138
    %v257 = vunpack.c.l.b16 %v139
    %v258 = vunpack.c.h.b16 %v139
    %v259 = vunpack.c.l.b16 %v140
    %v260 = vunpack.c.l.b16 %v141
    %v261 = vunpack.c.h.b16 %v141
    %v262 = vunpack.c.l.b16 %v142
    %v263 = vunpack.c.l.b16 %v143
    %v264 = vunpack.c.h.b16 %v143
    %v265 = vunpack.c.l.b16 %v144
    %v266 = vunpack.c.l.b16 %v145
    %v267 = vunpack.c.h.b16 %v145
    %v268 = vunpack.c.l.b16 %v146
    %v269 = vunpack.c.l.b16 %v147
    %v270 = vunpack.c.h.b16 %v147
    %v271 = vunpack.c.l.b16 %v148
    %v272 = vunpack.c.l.b16 %v149
    %v273 = vunpack.c.h.b16 %v149
    %v274 = vunpack.c.l.b16 %v150
    %v275 = vunpack.c.l.b16 %v151
    %v276 = vunpack.c.h.b16 %v151
    %v277 = vunpack.c.l.b16 %v152
    %v278 = vunpack.c.l.b16 %v153
    %v279 = vunpack.c.h.b16 %v153
    %v280 = vunpack.c.l.b16 %v154
    %v281 = vunpack.c.l.b16 %v155
    %v282 = vunpack.c.h.b16 %v155
    %v283 = vunpack.c.l.b16 %v156
    %v284 = vunpack.c.l.b16 %v157
    %v285 = vunpack.c.h.b16 %v157
    %v286 = vunpack.c.l.b16 %v158
    %v287 = vpack.c.b16 %v242, %v239
    %v288 = vpack.c.b16 %v243, %v240
    %v289 = vpack.c.b16 %v244, %v241
    %v290 = vpack.c.b16 %v248, %v245
    %v291 = vpack.c.b16 %v249, %v246
    %v292 = vpack.c.b16 %v250, %v247
    %v293 = vpack.c.b16 %v254, %v251
    %v294 = vpack.c.b16 %v255, %v252
    %v295 = vpack.c.b16 %v256, %v253
    %v296 = vpack.c.b16 %v260, %v257
    %v297 = vpack.c.b16 %v261, %v258
    %v298 = vpack.c.b16 %v262, %v259
    %v299 = vpack.c.b16 %v266, %v263
    %v300 = vpack.c.b16 %v267, %v264
    %v301 = vpack.c.b16 %v268, %v265
    %v302 = vpack.c.b16 %v272, %v269
    %v303 = vpack.c.b16 %v273, %v270
    %v304 = vpack.c.b16 %v274, %v271
    %v305 = vpack.c.b16 %v278, %v275
    %v306 = vpack.c.b16 %v279, %v276
    %v307 = vpack.c.b16 %v280, %v277
    %v308 = vpack.c.b16 %v284, %v281
    %v309 = vpack.c.b16 %v285, %v282
    %v310 = vpack.c.b16 %v286, %v283
    %335 = vmatprep.subr.bf16.mxu0 %v288
    %336 = vmatpush1.bf16.msra.mxu0 %v287
    %337 = vmatprep.subr.bf16.mxu0 %v291
    %338 = vmatpush1.bf16.msra.mxu0 %v290
    %339 = vmatprep.subr.bf16.mxu0 %v294
    %340 = vmatpush1.bf16.msra.mxu0 %v293
    %341 = vmatprep.subr.bf16.mxu0 %v297
    %342 = vmatpush1.bf16.msra.mxu0 %v296
    %343 = vmatprep.subr.bf16.mxu0 %v300
    %344 = vmatpush1.bf16.msra.mxu0 %v299
    %345 = vmatprep.subr.bf16.mxu0 %v303
    %346 = vmatpush1.bf16.msra.mxu0 %v302
    %347 = vmatprep.subr.bf16.mxu0 %v306
    %348 = vmatpush1.bf16.msra.mxu0 %v305
    %349 = vmatprep.subr.bf16.mxu0 %v309
    %350 = vmatpush1.bf16.msra.mxu0 %v308
    %351 = vmatprep.subr.bf16.mxu0 0
    %352 = vmatpush1.bf16.msra.mxu0 0
    %353 = vmatprep.subr.bf16.mxu0 0
    %354 = vmatpush1.bf16.msra.mxu0 0
    %355 = vmatprep.subr.bf16.mxu0 0
    %356 = vmatpush1.bf16.msra.mxu0 0
    %357 = vmatprep.subr.bf16.mxu0 0
    %358 = vmatpush1.bf16.msra.mxu0 0
    %359 = vmatprep.subr.bf16.mxu0 0
    %360 = vmatpush1.bf16.msra.mxu0 0
    %361 = vmatprep.subr.bf16.mxu0 0
    %362 = vmatpush1.bf16.msra.mxu0 0
    %363 = vmatprep.subr.bf16.mxu0 0
    %364 = vmatpush1.bf16.msra.mxu0 0
    %365 = vmatprep.subr.bf16.mxu0 0
    %366 = vmatpush1.bf16.msra.mxu0 0
    %367 = vmatprep.mubr.bf16.mxu0 0
    %368 = vmatmul.mubr.bf16.gmra.mrb[0].mxu0 %v191
    %v369 = vpop.f32.mrb[0].mxu0
    %v370 = vadd.f32 0.0, %v369
    %v371 = vpop.f32.mrb[0].mxu0
    %v372 = vadd.f32 0.0, %v371
    %v373 = vpop.f32.mrb[0].mxu0
    %v374 = vadd.f32 0.0, %v373
    %v375 = vpop.f32.mrb[0].mxu0
    %v376 = vadd.f32 0.0, %v375
    %377 = vmatprep.mubr.bf16.mxu0 0
    %378 = vmatmul.mubr.bf16.gmra.mrb[0].mxu0 %v192
    %v379 = vpop.f32.mrb[0].mxu0
    %v380 = vadd.f32 0.0, %v379
    %v381 = vpop.f32.mrb[0].mxu0
    %v382 = vadd.f32 0.0, %v381
    %v383 = vpop.f32.mrb[0].mxu0
    %v384 = vadd.f32 0.0, %v383
    %v385 = vpop.f32.mrb[0].mxu0
    %v386 = vadd.f32 0.0, %v385
    %387 = vmatprep.mubr.bf16.mxu0 0
    %388 = vmatmul.mubr.bf16.gmra.mrb[0].mxu0 %v193
    %v389 = vpop.f32.mrb[0].mxu0
    %v390 = vadd.f32 0.0, %v389
    %v391 = vpop.f32.mrb[0].mxu0
    %v392 = vadd.f32 0.0, %v391
    %v393 = vpop.f32.mrb[0].mxu0
    %v394 = vadd.f32 0.0, %v393
    %v395 = vpop.f32.mrb[0].mxu0
    %v396 = vadd.f32 0.0, %v395
    %397 = vmatprep.mubr.bf16.mxu0 0
    %398 = vmatmul.mubr.bf16.gmra.mrb[0].mxu0 %v194
    %v399 = vpop.f32.mrb[0].mxu0
    %v400 = vadd.f32 0.0, %v399
    %v401 = vpop.f32.mrb[0].mxu0
    %v402 = vadd.f32 0.0, %v401
    %v403 = vpop.f32.mrb[0].mxu0
    %v404 = vadd.f32 0.0, %v403
    %v405 = vpop.f32.mrb[0].mxu0
    %v406 = vadd.f32 0.0, %v405
    %407 = vmatprep.mubr.bf16.mxu0 0
    %408 = vmatmul.mubr.bf16.gmra.mrb[0].mxu0 %v195
    %v409 = vpop.f32.mrb[0].mxu0
    %v410 = vadd.f32 0.0, %v409
    %v411 = vpop.f32.mrb[0].mxu0
    %v412 = vadd.f32 0.0, %v411
    %v413 = vpop.f32.mrb[0].mxu0
    %v414 = vadd.f32 0.0, %v413
    %v415 = vpop.f32.mrb[0].mxu0
    %v416 = vadd.f32 0.0, %v415
    %417 = vmatprep.mubr.bf16.mxu0 0
    %418 = vmatmul.mubr.bf16.gmra.mrb[0].mxu0 %v196
    %v419 = vpop.f32.mrb[0].mxu0
    %v420 = vadd.f32 0.0, %v419
    %v421 = vpop.f32.mrb[0].mxu0
    %v422 = vadd.f32 0.0, %v421
    %v423 = vpop.f32.mrb[0].mxu0
    %v424 = vadd.f32 0.0, %v423
    %v425 = vpop.f32.mrb[0].mxu0
    %v426 = vadd.f32 0.0, %v425
    %427 = vmatprep.mubr.bf16.mxu0 0
    %428 = vmatmul.mubr.bf16.gmra.mrb[0].mxu0 %v197
    %v429 = vpop.f32.mrb[0].mxu0
    %v430 = vadd.f32 0.0, %v429
    %v431 = vpop.f32.mrb[0].mxu0
    %v432 = vadd.f32 0.0, %v431
    %v433 = vpop.f32.mrb[0].mxu0
    %v434 = vadd.f32 0.0, %v433
    %v435 = vpop.f32.mrb[0].mxu0
    %v436 = vadd.f32 0.0, %v435
    %437 = vmatprep.mubr.bf16.mxu0 0
    %438 = vmatmul.mubr.bf16.gmra.mrb[0].mxu0 %v198
    %v439 = vpop.f32.mrb[0].mxu0
    %v440 = vadd.f32 0.0, %v439
    %v441 = vpop.f32.mrb[0].mxu0
    %v442 = vadd.f32 0.0, %v441
    %v443 = vpop.f32.mrb[0].mxu0
    %v444 = vadd.f32 0.0, %v443
    %v445 = vpop.f32.mrb[0].mxu0
    %v446 = vadd.f32 0.0, %v445
    %447 = vdwg.mxu0
    %448 = vmatprep.subr.bf16.mxu0 0
    %449 = vmatpush1.bf16.msra.mxu0 %v289
    %450 = vmatprep.subr.bf16.mxu0 0
    %451 = vmatpush1.bf16.msra.mxu0 %v292
    %452 = vmatprep.subr.bf16.mxu0 0
    %453 = vmatpush1.bf16.msra.mxu0 %v295
    %454 = vmatprep.subr.bf16.mxu0 0
    %455 = vmatpush1.bf16.msra.mxu0 %v298
    %456 = vmatprep.subr.bf16.mxu0 0
    %457 = vmatpush1.bf16.msra.mxu0 %v301
    %458 = vmatprep.subr.bf16.mxu0 0
    %459 = vmatpush1.bf16.msra.mxu0 %v304
    %460 = vmatprep.subr.bf16.mxu0 0
    %461 = vmatpush1.bf16.msra.mxu0 %v307
    %462 = vmatprep.subr.bf16.mxu0 0
    %463 = vmatpush1.bf16.msra.mxu0 %v310
    %464 = vmatprep.subr.bf16.mxu0 0
    %465 = vmatpush1.bf16.msra.mxu0 0
    %466 = vmatprep.subr.bf16.mxu0 0
    %467 = vmatpush1.bf16.msra.mxu0 0
    %468 = vmatprep.subr.bf16.mxu0 0
    %469 = vmatpush1.bf16.msra.mxu0 0
    %470 = vmatprep.subr.bf16.mxu0 0
    %471 = vmatpush1.bf16.msra.mxu0 0
    %472 = vmatprep.subr.bf16.mxu0 0
    %473 = vmatpush1.bf16.msra.mxu0 0
    %474 = vmatprep.subr.bf16.mxu0 0
    %475 = vmatpush1.bf16.msra.mxu0 0
    %476 = vmatprep.subr.bf16.mxu0 0
    %477 = vmatpush1.bf16.msra.mxu0 0
    %478 = vmatprep.subr.bf16.mxu0 0
    %479 = vmatpush1.bf16.msra.mxu0 0
    %480 = vmatprep.mubr.bf16.mxu0 0
    %481 = vmatmul.mubr.bf16.gmra.mrb[0].mxu0 %v191
    %v482 = vpop.f32.mrb[0].mxu0
    %v483 = vadd.f32 0.0, %v482
    %v484 = vpop.f32.mrb[0].mxu0
    %v485 = vpop.f32.mrb[0].mxu0
    %v486 = vadd.f32 0.0, %v485
    %v487 = vpop.f32.mrb[0].mxu0
    %488 = vmatprep.mubr.bf16.mxu0 0
    %489 = vmatmul.mubr.bf16.gmra.mrb[0].mxu0 %v192
    %v490 = vpop.f32.mrb[0].mxu0
    %v491 = vadd.f32 0.0, %v490
    %v492 = vpop.f32.mrb[0].mxu0
    %v493 = vpop.f32.mrb[0].mxu0
    %v494 = vadd.f32 0.0, %v493
    %v495 = vpop.f32.mrb[0].mxu0
    %496 = vmatprep.mubr.bf16.mxu0 0
    %497 = vmatmul.mubr.bf16.gmra.mrb[0].mxu0 %v193
    %v498 = vpop.f32.mrb[0].mxu0
    %v499 = vadd.f32 0.0, %v498
    %v500 = vpop.f32.mrb[0].mxu0
    %v501 = vpop.f32.mrb[0].mxu0
    %v502 = vadd.f32 0.0, %v501
    %v503 = vpop.f32.mrb[0].mxu0
    %504 = vmatprep.mubr.bf16.mxu0 0
    %505 = vmatmul.mubr.bf16.gmra.mrb[0].mxu0 %v194
    %v506 = vpop.f32.mrb[0].mxu0
    %v507 = vadd.f32 0.0, %v506
    %v508 = vpop.f32.mrb[0].mxu0
    %v509 = vpop.f32.mrb[0].mxu0
    %v510 = vadd.f32 0.0, %v509
    %v511 = vpop.f32.mrb[0].mxu0
    %512 = vmatprep.mubr.bf16.mxu0 0
    %513 = vmatmul.mubr.bf16.gmra.mrb[0].mxu0 %v195
    %v514 = vpop.f32.mrb[0].mxu0
    %v515 = vadd.f32 0.0, %v514
    %v516 = vpop.f32.mrb[0].mxu0
    %v517 = vpop.f32.mrb[0].mxu0
    %v518 = vadd.f32 0.0, %v517
    %v519 = vpop.f32.mrb[0].mxu0
    %520 = vmatprep.mubr.bf16.mxu0 0
    %521 = vmatmul.mubr.bf16.gmra.mrb[0].mxu0 %v196
    %v522 = vpop.f32.mrb[0].mxu0
    %v523 = vadd.f32 0.0, %v522
    %v524 = vpop.f32.mrb[0].mxu0
    %v525 = vpop.f32.mrb[0].mxu0
    %v526 = vadd.f32 0.0, %v525
    %v527 = vpop.f32.mrb[0].mxu0
    %528 = vmatprep.mubr.bf16.mxu0 0
    %529 = vmatmul.mubr.bf16.gmra.mrb[0].mxu0 %v197
    %v530 = vpop.f32.mrb[0].mxu0
    %v531 = vadd.f32 0.0, %v530
    %v532 = vpop.f32.mrb[0].mxu0
    %v533 = vpop.f32.mrb[0].mxu0
    %v534 = vadd.f32 0.0, %v533
    %v535 = vpop.f32.mrb[0].mxu0
    %536 = vmatprep.mubr.bf16.mxu0 0
    %537 = vmatmul.mubr.bf16.gmra.mrb[0].mxu0 %v198
    %v538 = vpop.f32.mrb[0].mxu0
    %v539 = vadd.f32 0.0, %v538
    %v540 = vpop.f32.mrb[0].mxu0
    %v541 = vpop.f32.mrb[0].mxu0
    %v542 = vadd.f32 0.0, %v541
    %v543 = vpop.f32.mrb[0].mxu0
    %544 = vdwg.mxu0
    %v545 = vlaneseq
    %v546 = vshrl.u32 %v545, 7
    %v547 = vadd.s32 %v546, 8
    %v548 = vadd.s32 %v546, 16
    %v549 = vadd.s32 %v546, 24
    %v550 = vlaneseq
    %v551 = vand.u32 %v550, 127
    %vm552 = vcmp.ge.s32.totalorder %v546, %v551
    %vm553 = vcmp.ge.s32.totalorder %v547, %v551
    %vm554 = vcmp.ge.s32.totalorder %v548, %v551
    %vm555 = vcmp.ge.s32.totalorder %v549, %v551
    %v556 = vsel %vm552, 0.0, -1e+30
    %v557 = vsel %vm553, 0.0, -1e+30
    %v558 = vsel %vm554, 0.0, -1e+30
    %v559 = vsel %vm555, 0.0, -1e+30
    %v560 = vpack.c.bf16 %v374, %v370
    %v561 = vpack.c.bf16 %v384, %v380
    %v562 = vpack.c.bf16 %v394, %v390
    %v563 = vpack.c.bf16 %v404, %v400
    %v564 = vpack.c.bf16 %v414, %v410
    %v565 = vpack.c.bf16 %v424, %v420
    %v566 = vpack.c.bf16 %v434, %v430
    %v567 = vpack.c.bf16 %v444, %v440
    %v568 = vpack.c.bf16 %v376, %v372
    %v569 = vpack.c.bf16 %v386, %v382
    %v570 = vpack.c.bf16 %v396, %v392
    %v571 = vpack.c.bf16 %v406, %v402
    %v572 = vpack.c.bf16 %v416, %v412
    %v573 = vpack.c.bf16 %v426, %v422
    %v574 = vpack.c.bf16 %v436, %v432
    %v575 = vpack.c.bf16 %v446, %v442
    %v576 = vpack.c.bf16 %v486, %v483
    %v577 = vpack.c.bf16 %v494, %v491
    %v578 = vpack.c.bf16 %v502, %v499
    %v579 = vpack.c.bf16 %v510, %v507
    %v580 = vpack.c.bf16 %v518, %v515
    %v581 = vpack.c.bf16 %v526, %v523
    %v582 = vpack.c.bf16 %v534, %v531
    %v583 = vpack.c.bf16 %v542, %v539
    %vm584 = vcmask 261120
    %v586 = vsel %vm584, %v560, 0
    %v589 = vsel %vm584, %v561, 0
    %v592 = vsel %vm584, %v568, 0
    %v595 = vsel %vm584, %v569, 0
    %597 = vmatprep.subr.bf16.mxu0 0
    %598 = vmatpush1.bf16.xpose.msra.mxu0 %v592
    %599 = vmatprep.subr.bf16.mxu0 0
    %600 = vmatpush1.bf16.xpose.msra.mxu0 %v595
    %601 = vmatprep.subr.bf16.mxu0 0
    %602 = vmatpush1.bf16.xpose.msra.mxu0 0
    %603 = vmatprep.subr.bf16.mxu0 0
    %604 = vmatpush1.bf16.xpose.msra.mxu0 0
    %605 = vmatprep.subr.bf16.mxu0 0
    %606 = vmatpush1.bf16.xpose.msra.mxu0 0
    %607 = vmatprep.subr.bf16.mxu0 0
    %608 = vmatpush1.bf16.xpose.msra.mxu0 0
    %609 = vmatprep.subr.bf16.mxu0 0
    %610 = vmatpush1.bf16.xpose.msra.mxu0 0
    %611 = vmatprep.subr.bf16.mxu0 0
    %612 = vmatpush1.bf16.xpose.msra.mxu0 0
    %613 = vmatprep.subr.bf16.mxu0 0
    %614 = vmatpush1.bf16.xpose.msra.mxu0 0
    %615 = vmatprep.subr.bf16.mxu0 0
    %616 = vmatpush1.bf16.xpose.msra.mxu0 0
    %617 = vmatprep.subr.bf16.mxu0 0
    %618 = vmatpush1.bf16.xpose.msra.mxu0 0
    %619 = vmatprep.subr.bf16.mxu0 0
    %620 = vmatpush1.bf16.xpose.msra.mxu0 0
    %621 = vmatprep.subr.bf16.mxu0 0
    %622 = vmatpush1.bf16.xpose.msra.mxu0 0
    %623 = vmatprep.subr.bf16.mxu0 0
    %624 = vmatpush1.bf16.xpose.msra.mxu0 0
    %625 = vmatprep.subr.bf16.mxu0 0
    %626 = vmatpush1.bf16.xpose.msra.mxu0 0
    %627 = vmatprep.subr.bf16.mxu0 0
    %628 = vmatpush1.bf16.xpose.msra.mxu0 0
    %629 = vmatprep.mubr.bf16.mxu0 0
    %630 = vmatmul.mubr.bf16.gmra.mrb[0].mxu0 %v586
    %v631 = vpop.f32.mrb[0].mxu0
    %v632 = vadd.f32 0.0, %v631
    %v633 = vpop.f32.mrb[0].mxu0
    %v634 = vpop.f32.mrb[0].mxu0
    %v635 = vadd.f32 0.0, %v634
    %v636 = vpop.f32.mrb[0].mxu0
    %637 = vmatprep.mubr.bf16.mxu0 0
    %638 = vmatmul.mubr.bf16.gmra.mrb[0].mxu0 %v589
    %v639 = vpop.f32.mrb[0].mxu0
    %v640 = vadd.f32 0.0, %v639
    %v641 = vpop.f32.mrb[0].mxu0
    %v642 = vpop.f32.mrb[0].mxu0
    %v643 = vadd.f32 0.0, %v642
    %v644 = vpop.f32.mrb[0].mxu0
    %645 = vdwg.mxu0
    %v647 = vsel %vm584, %v562, 0
    %v650 = vsel %vm584, %v563, 0
    %v653 = vsel %vm584, %v570, 0
    %v656 = vsel %vm584, %v571, 0
    %658 = vmatprep.subr.bf16.mxu0 0
    %659 = vmatpush1.bf16.xpose.msra.mxu0 %v653
    %660 = vmatprep.subr.bf16.mxu0 0
    %661 = vmatpush1.bf16.xpose.msra.mxu0 %v656
    %662 = vmatprep.subr.bf16.mxu0 0
    %663 = vmatpush1.bf16.xpose.msra.mxu0 0
    %664 = vmatprep.subr.bf16.mxu0 0
    %665 = vmatpush1.bf16.xpose.msra.mxu0 0
    %666 = vmatprep.subr.bf16.mxu0 0
    %667 = vmatpush1.bf16.xpose.msra.mxu0 0
    %668 = vmatprep.subr.bf16.mxu0 0
    %669 = vmatpush1.bf16.xpose.msra.mxu0 0
    %670 = vmatprep.subr.bf16.mxu0 0
    %671 = vmatpush1.bf16.xpose.msra.mxu0 0
    %672 = vmatprep.subr.bf16.mxu0 0
    %673 = vmatpush1.bf16.xpose.msra.mxu0 0
    %674 = vmatprep.subr.bf16.mxu0 0
    %675 = vmatpush1.bf16.xpose.msra.mxu0 0
    %676 = vmatprep.subr.bf16.mxu0 0
    %677 = vmatpush1.bf16.xpose.msra.mxu0 0
    %678 = vmatprep.subr.bf16.mxu0 0
    %679 = vmatpush1.bf16.xpose.msra.mxu0 0
    %680 = vmatprep.subr.bf16.mxu0 0
    %681 = vmatpush1.bf16.xpose.msra.mxu0 0
    %682 = vmatprep.subr.bf16.mxu0 0
    %683 = vmatpush1.bf16.xpose.msra.mxu0 0
    %684 = vmatprep.subr.bf16.mxu0 0
    %685 = vmatpush1.bf16.xpose.msra.mxu0 0
    %686 = vmatprep.subr.bf16.mxu0 0
    %687 = vmatpush1.bf16.xpose.msra.mxu0 0
    %688 = vmatprep.subr.bf16.mxu0 0
    %689 = vmatpush1.bf16.xpose.msra.mxu0 0
    %690 = vmatprep.mubr.bf16.mxu0 0
    %691 = vmatmul.mubr.bf16.gmra.mrb[0].mxu0 %v647
    %v692 = vpop.f32.mrb[0].mxu0
    %v693 = vadd.f32 0.0, %v692
    %v694 = vpop.f32.mrb[0].mxu0
    %v695 = vpop.f32.mrb[0].mxu0
    %v696 = vadd.f32 0.0, %v695
    %v697 = vpop.f32.mrb[0].mxu0
    %698 = vmatprep.mubr.bf16.mxu0 0
    %699 = vmatmul.mubr.bf16.gmra.mrb[0].mxu0 %v650
    %v700 = vpop.f32.mrb[0].mxu0
    %v701 = vadd.f32 0.0, %v700
    %v702 = vpop.f32.mrb[0].mxu0
    %v703 = vpop.f32.mrb[0].mxu0
    %v704 = vadd.f32 0.0, %v703
    %v705 = vpop.f32.mrb[0].mxu0
    %706 = vdwg.mxu0
    %v708 = vsel %vm584, %v564, 0
    %v711 = vsel %vm584, %v565, 0
    %v714 = vsel %vm584, %v572, 0
    %v717 = vsel %vm584, %v573, 0
    %719 = vmatprep.subr.bf16.mxu0 0
    %720 = vmatpush1.bf16.xpose.msra.mxu0 %v714
    %721 = vmatprep.subr.bf16.mxu0 0
    %722 = vmatpush1.bf16.xpose.msra.mxu0 %v717
    %723 = vmatprep.subr.bf16.mxu0 0
    %724 = vmatpush1.bf16.xpose.msra.mxu0 0
    %725 = vmatprep.subr.bf16.mxu0 0
    %726 = vmatpush1.bf16.xpose.msra.mxu0 0
    %727 = vmatprep.subr.bf16.mxu0 0
    %728 = vmatpush1.bf16.xpose.msra.mxu0 0
    %729 = vmatprep.subr.bf16.mxu0 0
    %730 = vmatpush1.bf16.xpose.msra.mxu0 0
    %731 = vmatprep.subr.bf16.mxu0 0
    %732 = vmatpush1.bf16.xpose.msra.mxu0 0
    %733 = vmatprep.subr.bf16.mxu0 0
    %734 = vmatpush1.bf16.xpose.msra.mxu0 0
    %735 = vmatprep.subr.bf16.mxu0 0
    %736 = vmatpush1.bf16.xpose.msra.mxu0 0
    %737 = vmatprep.subr.bf16.mxu0 0
    %738 = vmatpush1.bf16.xpose.msra.mxu0 0
    %739 = vmatprep.subr.bf16.mxu0 0
    %740 = vmatpush1.bf16.xpose.msra.mxu0 0
    %741 = vmatprep.subr.bf16.mxu0 0
    %742 = vmatpush1.bf16.xpose.msra.mxu0 0
    %743 = vmatprep.subr.bf16.mxu0 0
    %744 = vmatpush1.bf16.xpose.msra.mxu0 0
    %745 = vmatprep.subr.bf16.mxu0 0
    %746 = vmatpush1.bf16.xpose.msra.mxu0 0
    %747 = vmatprep.subr.bf16.mxu0 0
    %748 = vmatpush1.bf16.xpose.msra.mxu0 0
    %749 = vmatprep.subr.bf16.mxu0 0
    %750 = vmatpush1.bf16.xpose.msra.mxu0 0
    %751 = vmatprep.mubr.bf16.mxu0 0
    %752 = vmatmul.mubr.bf16.gmra.mrb[0].mxu0 %v708
    %v753 = vpop.f32.mrb[0].mxu0
    %v754 = vadd.f32 0.0, %v753
    %v755 = vpop.f32.mrb[0].mxu0
    %v756 = vpop.f32.mrb[0].mxu0
    %v757 = vadd.f32 0.0, %v756
    %v758 = vpop.f32.mrb[0].mxu0
    %759 = vmatprep.mubr.bf16.mxu0 0
    %760 = vmatmul.mubr.bf16.gmra.mrb[0].mxu0 %v711
    %v761 = vpop.f32.mrb[0].mxu0
    %v762 = vadd.f32 0.0, %v761
    %v763 = vpop.f32.mrb[0].mxu0
    %v764 = vpop.f32.mrb[0].mxu0
    %v765 = vadd.f32 0.0, %v764
    %v766 = vpop.f32.mrb[0].mxu0
    %767 = vdwg.mxu0
    %v769 = vsel %vm584, %v566, 0
    %v772 = vsel %vm584, %v567, 0
    %v775 = vsel %vm584, %v574, 0
    %v778 = vsel %vm584, %v575, 0
    %780 = vmatprep.subr.bf16.mxu0 0
    %781 = vmatpush1.bf16.xpose.msra.mxu0 %v775
    %782 = vmatprep.subr.bf16.mxu0 0
    %783 = vmatpush1.bf16.xpose.msra.mxu0 %v778
    %784 = vmatprep.subr.bf16.mxu0 0
    %785 = vmatpush1.bf16.xpose.msra.mxu0 0
    %786 = vmatprep.subr.bf16.mxu0 0
    %787 = vmatpush1.bf16.xpose.msra.mxu0 0
    %788 = vmatprep.subr.bf16.mxu0 0
    %789 = vmatpush1.bf16.xpose.msra.mxu0 0
    %790 = vmatprep.subr.bf16.mxu0 0
    %791 = vmatpush1.bf16.xpose.msra.mxu0 0
    %792 = vmatprep.subr.bf16.mxu0 0
    %793 = vmatpush1.bf16.xpose.msra.mxu0 0
    %794 = vmatprep.subr.bf16.mxu0 0
    %795 = vmatpush1.bf16.xpose.msra.mxu0 0
    %796 = vmatprep.subr.bf16.mxu0 0
    %797 = vmatpush1.bf16.xpose.msra.mxu0 0
    %798 = vmatprep.subr.bf16.mxu0 0
    %799 = vmatpush1.bf16.xpose.msra.mxu0 0
    %800 = vmatprep.subr.bf16.mxu0 0
    %801 = vmatpush1.bf16.xpose.msra.mxu0 0
    %802 = vmatprep.subr.bf16.mxu0 0
    %803 = vmatpush1.bf16.xpose.msra.mxu0 0
    %804 = vmatprep.subr.bf16.mxu0 0
    %805 = vmatpush1.bf16.xpose.msra.mxu0 0
    %806 = vmatprep.subr.bf16.mxu0 0
    %807 = vmatpush1.bf16.xpose.msra.mxu0 0
    %808 = vmatprep.subr.bf16.mxu0 0
    %809 = vmatpush1.bf16.xpose.msra.mxu0 0
    %810 = vmatprep.subr.bf16.mxu0 0
    %811 = vmatpush1.bf16.xpose.msra.mxu0 0
    %812 = vmatprep.mubr.bf16.mxu0 0
    %813 = vmatmul.mubr.bf16.gmra.mrb[0].mxu0 %v769
    %v814 = vpop.f32.mrb[0].mxu0
    %v815 = vadd.f32 0.0, %v814
    %v816 = vpop.f32.mrb[0].mxu0
    %v817 = vpop.f32.mrb[0].mxu0
    %v818 = vadd.f32 0.0, %v817
    %v819 = vpop.f32.mrb[0].mxu0
    %820 = vmatprep.mubr.bf16.mxu0 0
    %821 = vmatmul.mubr.bf16.gmra.mrb[0].mxu0 %v772
    %v822 = vpop.f32.mrb[0].mxu0
    %v823 = vadd.f32 0.0, %v822
    %v824 = vpop.f32.mrb[0].mxu0
    %v825 = vpop.f32.mrb[0].mxu0
    %v826 = vadd.f32 0.0, %v825
    %v827 = vpop.f32.mrb[0].mxu0
    %828 = vdwg.mxu0
    %v829 = vmul.f32 %v632, 0.28867513
    %v830 = vmul.f32 %v635, 0.28867513
    %v831 = vmul.f32 %v640, 0.28867513
    %v832 = vmul.f32 %v643, 0.28867513
    %v833 = vmul.f32 %v693, 0.28867513
    %v834 = vmul.f32 %v696, 0.28867513
    %v835 = vmul.f32 %v701, 0.28867513
    %v836 = vmul.f32 %v704, 0.28867513
    %v837 = vmul.f32 %v754, 0.28867513
    %v838 = vmul.f32 %v757, 0.28867513
    %v839 = vmul.f32 %v762, 0.28867513
    %v840 = vmul.f32 %v765, 0.28867513
    %v841 = vmul.f32 %v815, 0.28867513
    %v842 = vmul.f32 %v818, 0.28867513
    %v843 = vmul.f32 %v823, 0.28867513
    %v844 = vmul.f32 %v826, 0.28867513
    %v845 = vadd.f32 %v829, %v556
    %v846 = vadd.f32 %v830, %v557
    %v847 = vadd.f32 %v831, %v558
    %v848 = vadd.f32 %v832, %v559
    %v849 = vadd.f32 %v833, %v556
    %v850 = vadd.f32 %v834, %v557
    %v851 = vadd.f32 %v835, %v558
    %v852 = vadd.f32 %v836, %v559
    %v853 = vadd.f32 %v837, %v556
    %v854 = vadd.f32 %v838, %v557
    %v855 = vadd.f32 %v839, %v558
    %v856 = vadd.f32 %v840, %v559
    %v857 = vadd.f32 %v841, %v556
    %v858 = vadd.f32 %v842, %v557
    %v859 = vadd.f32 %v843, %v558
    %v860 = vadd.f32 %v844, %v559
    %v861 = vsel %vm584, %v845, -inf
    %862 = vmax.xlane.f32.xlu0 %v861
    %v863 = vpop.xlane.xlu0 %862
    %v864 = vsel %vm584, %v846, -inf
    %865 = vmax.xlane.f32.xlu0 %v864
    %v866 = vpop.xlane.xlu0 %865
    %v867 = vsel %vm584, %v847, -inf
    %868 = vmax.xlane.f32.xlu0 %v867
    %v869 = vpop.xlane.xlu0 %868
    %v870 = vsel %vm584, %v848, -inf
    %871 = vmax.xlane.f32.xlu0 %v870
    %v872 = vpop.xlane.xlu0 %871
    %v873 = vsel %vm584, %v849, -inf
    %874 = vmax.xlane.f32.xlu0 %v873
    %v875 = vpop.xlane.xlu0 %874
    %v876 = vsel %vm584, %v850, -inf
    %877 = vmax.xlane.f32.xlu0 %v876
    %v878 = vpop.xlane.xlu0 %877
    %v879 = vsel %vm584, %v851, -inf
    %880 = vmax.xlane.f32.xlu0 %v879
    %v881 = vpop.xlane.xlu0 %880
    %v882 = vsel %vm584, %v852, -inf
    %883 = vmax.xlane.f32.xlu0 %v882
    %v884 = vpop.xlane.xlu0 %883
    %v885 = vsel %vm584, %v853, -inf
    %886 = vmax.xlane.f32.xlu0 %v885
    %v887 = vpop.xlane.xlu0 %886
    %v888 = vsel %vm584, %v854, -inf
    %889 = vmax.xlane.f32.xlu0 %v888
    %v890 = vpop.xlane.xlu0 %889
    %v891 = vsel %vm584, %v855, -inf
    %892 = vmax.xlane.f32.xlu0 %v891
    %v893 = vpop.xlane.xlu0 %892
    %v894 = vsel %vm584, %v856, -inf
    %895 = vmax.xlane.f32.xlu0 %v894
    %v896 = vpop.xlane.xlu0 %895
    %v897 = vsel %vm584, %v857, -inf
    %898 = vmax.xlane.f32.xlu0 %v897
    %v899 = vpop.xlane.xlu0 %898
    %v900 = vsel %vm584, %v858, -inf
    %901 = vmax.xlane.f32.xlu0 %v900
    %v902 = vpop.xlane.xlu0 %901
    %v903 = vsel %vm584, %v859, -inf
    %904 = vmax.xlane.f32.xlu0 %v903
    %v905 = vpop.xlane.xlu0 %904
    %v906 = vsel %vm584, %v860, -inf
    %907 = vmax.xlane.f32.xlu0 %v906
    %v908 = vpop.xlane.xlu0 %907
    %v909 = vsub.f32 %v845, %v863
    %v910 = vsub.f32 %v846, %v866
    %v911 = vsub.f32 %v847, %v869
    %v912 = vsub.f32 %v848, %v872
    %v913 = vsub.f32 %v849, %v875
    %v914 = vsub.f32 %v850, %v878
    %v915 = vsub.f32 %v851, %v881
    %v916 = vsub.f32 %v852, %v884
    %v917 = vsub.f32 %v853, %v887
    %v918 = vsub.f32 %v854, %v890
    %v919 = vsub.f32 %v855, %v893
    %v920 = vsub.f32 %v856, %v896
    %v921 = vsub.f32 %v857, %v899
    %v922 = vsub.f32 %v858, %v902
    %v923 = vsub.f32 %v859, %v905
    %v924 = vsub.f32 %v860, %v908
    %v925 = vmul.f32 %v909, 1.442695
    %v926 = vpow.pop %v925
    %v927 = vmul.f32 %v910, 1.442695
    %v928 = vpow.pop %v927
    %v929 = vmul.f32 %v911, 1.442695
    %v930 = vpow.pop %v929
    %v931 = vmul.f32 %v912, 1.442695
    %v932 = vpow.pop %v931
    %v933 = vmul.f32 %v913, 1.442695
    %v934 = vpow.pop %v933
    %v935 = vmul.f32 %v914, 1.442695
    %v936 = vpow.pop %v935
    %v937 = vmul.f32 %v915, 1.442695
    %v938 = vpow.pop %v937
    %v939 = vmul.f32 %v916, 1.442695
    %v940 = vpow.pop %v939
    %v941 = vmul.f32 %v917, 1.442695
    %v942 = vpow.pop %v941
    %v943 = vmul.f32 %v918, 1.442695
    %v944 = vpow.pop %v943
    %v945 = vmul.f32 %v919, 1.442695
    %v946 = vpow.pop %v945
    %v947 = vmul.f32 %v920, 1.442695
    %v948 = vpow.pop %v947
    %v949 = vmul.f32 %v921, 1.442695
    %v950 = vpow.pop %v949
    %v951 = vmul.f32 %v922, 1.442695
    %v952 = vpow.pop %v951
    %v953 = vmul.f32 %v923, 1.442695
    %v954 = vpow.pop %v953
    %v955 = vmul.f32 %v924, 1.442695
    %v956 = vpow.pop %v955
    %v957 = vsel %vm584, %v926, 0.0
    %958 = vadd.xlane.f32.xlu0 %v957
    %v959 = vpop.xlane.xlu0 %958
    %v960 = vsel %vm584, %v928, 0.0
    %961 = vadd.xlane.f32.xlu0 %v960
    %v962 = vpop.xlane.xlu0 %961
    %v963 = vsel %vm584, %v930, 0.0
    %964 = vadd.xlane.f32.xlu0 %v963
    %v965 = vpop.xlane.xlu0 %964
    %v966 = vsel %vm584, %v932, 0.0
    %967 = vadd.xlane.f32.xlu0 %v966
    %v968 = vpop.xlane.xlu0 %967
    %v969 = vsel %vm584, %v934, 0.0
    %970 = vadd.xlane.f32.xlu0 %v969
    %v971 = vpop.xlane.xlu0 %970
    %v972 = vsel %vm584, %v936, 0.0
    %973 = vadd.xlane.f32.xlu0 %v972
    %v974 = vpop.xlane.xlu0 %973
    %v975 = vsel %vm584, %v938, 0.0
    %976 = vadd.xlane.f32.xlu0 %v975
    %v977 = vpop.xlane.xlu0 %976
    %v978 = vsel %vm584, %v940, 0.0
    %979 = vadd.xlane.f32.xlu0 %v978
    %v980 = vpop.xlane.xlu0 %979
    %v981 = vsel %vm584, %v942, 0.0
    %982 = vadd.xlane.f32.xlu0 %v981
    %v983 = vpop.xlane.xlu0 %982
    %v984 = vsel %vm584, %v944, 0.0
    %985 = vadd.xlane.f32.xlu0 %v984
    %v986 = vpop.xlane.xlu0 %985
    %v987 = vsel %vm584, %v946, 0.0
    %988 = vadd.xlane.f32.xlu0 %v987
    %v989 = vpop.xlane.xlu0 %988
    %v990 = vsel %vm584, %v948, 0.0
    %991 = vadd.xlane.f32.xlu0 %v990
    %v992 = vpop.xlane.xlu0 %991
    %v993 = vsel %vm584, %v950, 0.0
    %994 = vadd.xlane.f32.xlu0 %v993
    %v995 = vpop.xlane.xlu0 %994
    %v996 = vsel %vm584, %v952, 0.0
    %997 = vadd.xlane.f32.xlu0 %v996
    %v998 = vpop.xlane.xlu0 %997
    %v999 = vsel %vm584, %v954, 0.0
    %1000 = vadd.xlane.f32.xlu0 %v999
    %v1001 = vpop.xlane.xlu0 %1000
    %v1002 = vsel %vm584, %v956, 0.0
    %1003 = vadd.xlane.f32.xlu0 %v1002
    %v1004 = vpop.xlane.xlu0 %1003
    %v1005 = vrcp.pop %v959
    %v1006 = vrcp.pop %v962
    %v1007 = vrcp.pop %v965
    %v1008 = vrcp.pop %v968
    %v1009 = vrcp.pop %v971
    %v1010 = vrcp.pop %v974
    %v1011 = vrcp.pop %v977
    %v1012 = vrcp.pop %v980
    %v1013 = vrcp.pop %v983
    %v1014 = vrcp.pop %v986
    %v1015 = vrcp.pop %v989
    %v1016 = vrcp.pop %v992
    %v1017 = vrcp.pop %v995
    %v1018 = vrcp.pop %v998
    %v1019 = vrcp.pop %v1001
    %v1020 = vrcp.pop %v1004
    %v1021 = vmul.f32 %v926, %v1005
    %v1022 = vmul.f32 %v928, %v1006
    %v1023 = vmul.f32 %v930, %v1007
    %v1024 = vmul.f32 %v932, %v1008
    %v1025 = vmul.f32 %v934, %v1009
    %v1026 = vmul.f32 %v936, %v1010
    %v1027 = vmul.f32 %v938, %v1011
    %v1028 = vmul.f32 %v940, %v1012
    %v1029 = vmul.f32 %v942, %v1013
    %v1030 = vmul.f32 %v944, %v1014
    %v1031 = vmul.f32 %v946, %v1015
    %v1032 = vmul.f32 %v948, %v1016
    %v1033 = vmul.f32 %v950, %v1017
    %v1034 = vmul.f32 %v952, %v1018
    %v1035 = vmul.f32 %v954, %v1019
    %v1036 = vmul.f32 %v956, %v1020
    %v1037 = vpack.c.bf16 %v1022, %v1021
    %v1038 = vpack.c.bf16 %v1024, %v1023
    %v1039 = vpack.c.bf16 %v1026, %v1025
    %v1040 = vpack.c.bf16 %v1028, %v1027
    %v1041 = vpack.c.bf16 %v1030, %v1029
    %v1042 = vpack.c.bf16 %v1032, %v1031
    %v1043 = vpack.c.bf16 %v1034, %v1033
    %v1044 = vpack.c.bf16 %v1036, %v1035
    %v1046 = vsel %vm584, %v1037, 0
    %v1049 = vsel %vm584, %v1038, 0
    %1051 = vmatprep.subr.bf16.mxu0 0
    %1052 = vmatpush1.bf16.msra.mxu0 %v576
    %1053 = vmatprep.subr.bf16.mxu0 0
    %1054 = vmatpush1.bf16.msra.mxu0 %v577
    %1055 = vmatprep.subr.bf16.mxu0 0
    %1056 = vmatpush1.bf16.msra.mxu0 0
    %1057 = vmatprep.subr.bf16.mxu0 0
    %1058 = vmatpush1.bf16.msra.mxu0 0
    %1059 = vmatprep.subr.bf16.mxu0 0
    %1060 = vmatpush1.bf16.msra.mxu0 0
    %1061 = vmatprep.subr.bf16.mxu0 0
    %1062 = vmatpush1.bf16.msra.mxu0 0
    %1063 = vmatprep.subr.bf16.mxu0 0
    %1064 = vmatpush1.bf16.msra.mxu0 0
    %1065 = vmatprep.subr.bf16.mxu0 0
    %1066 = vmatpush1.bf16.msra.mxu0 0
    %1067 = vmatprep.subr.bf16.mxu0 0
    %1068 = vmatpush1.bf16.msra.mxu0 0
    %1069 = vmatprep.subr.bf16.mxu0 0
    %1070 = vmatpush1.bf16.msra.mxu0 0
    %1071 = vmatprep.subr.bf16.mxu0 0
    %1072 = vmatpush1.bf16.msra.mxu0 0
    %1073 = vmatprep.subr.bf16.mxu0 0
    %1074 = vmatpush1.bf16.msra.mxu0 0
    %1075 = vmatprep.subr.bf16.mxu0 0
    %1076 = vmatpush1.bf16.msra.mxu0 0
    %1077 = vmatprep.subr.bf16.mxu0 0
    %1078 = vmatpush1.bf16.msra.mxu0 0
    %1079 = vmatprep.subr.bf16.mxu0 0
    %1080 = vmatpush1.bf16.msra.mxu0 0
    %1081 = vmatprep.subr.bf16.mxu0 0
    %1082 = vmatpush1.bf16.msra.mxu0 0
    %1083 = vmatprep.mubr.bf16.mxu0 0
    %1084 = vmatmul.mubr.bf16.gmra.mrb[0].mxu0 %v1046
    %v1085 = vpop.f32.mrb[0].mxu0
    %v1086 = vadd.f32 0.0, %v1085
    %v1087 = vpop.f32.mrb[0].mxu0
    %v1088 = vpop.f32.mrb[0].mxu0
    %v1089 = vadd.f32 0.0, %v1088
    %v1090 = vpop.f32.mrb[0].mxu0
    %1091 = vmatprep.mubr.bf16.mxu0 0
    %1092 = vmatmul.mubr.bf16.gmra.mrb[0].mxu0 %v1049
    %v1093 = vpop.f32.mrb[0].mxu0
    %v1094 = vadd.f32 0.0, %v1093
    %v1095 = vpop.f32.mrb[0].mxu0
    %v1096 = vpop.f32.mrb[0].mxu0
    %v1097 = vadd.f32 0.0, %v1096
    %v1098 = vpop.f32.mrb[0].mxu0
    %1099 = vdwg.mxu0
    %v1101 = vsel %vm584, %v1039, 0
    %v1104 = vsel %vm584, %v1040, 0
    %1106 = vmatprep.subr.bf16.mxu0 0
    %1107 = vmatpush1.bf16.msra.mxu0 %v578
    %1108 = vmatprep.subr.bf16.mxu0 0
    %1109 = vmatpush1.bf16.msra.mxu0 %v579
    %1110 = vmatprep.subr.bf16.mxu0 0
    %1111 = vmatpush1.bf16.msra.mxu0 0
    %1112 = vmatprep.subr.bf16.mxu0 0
    %1113 = vmatpush1.bf16.msra.mxu0 0
    %1114 = vmatprep.subr.bf16.mxu0 0
    %1115 = vmatpush1.bf16.msra.mxu0 0
    %1116 = vmatprep.subr.bf16.mxu0 0
    %1117 = vmatpush1.bf16.msra.mxu0 0
    %1118 = vmatprep.subr.bf16.mxu0 0
    %1119 = vmatpush1.bf16.msra.mxu0 0
    %1120 = vmatprep.subr.bf16.mxu0 0
    %1121 = vmatpush1.bf16.msra.mxu0 0
    %1122 = vmatprep.subr.bf16.mxu0 0
    %1123 = vmatpush1.bf16.msra.mxu0 0
    %1124 = vmatprep.subr.bf16.mxu0 0
    %1125 = vmatpush1.bf16.msra.mxu0 0
    %1126 = vmatprep.subr.bf16.mxu0 0
    %1127 = vmatpush1.bf16.msra.mxu0 0
    %1128 = vmatprep.subr.bf16.mxu0 0
    %1129 = vmatpush1.bf16.msra.mxu0 0
    %1130 = vmatprep.subr.bf16.mxu0 0
    %1131 = vmatpush1.bf16.msra.mxu0 0
    %1132 = vmatprep.subr.bf16.mxu0 0
    %1133 = vmatpush1.bf16.msra.mxu0 0
    %1134 = vmatprep.subr.bf16.mxu0 0
    %1135 = vmatpush1.bf16.msra.mxu0 0
    %1136 = vmatprep.subr.bf16.mxu0 0
    %1137 = vmatpush1.bf16.msra.mxu0 0
    %1138 = vmatprep.mubr.bf16.mxu0 0
    %1139 = vmatmul.mubr.bf16.gmra.mrb[0].mxu0 %v1101
    %v1140 = vpop.f32.mrb[0].mxu0
    %v1141 = vadd.f32 0.0, %v1140
    %v1142 = vpop.f32.mrb[0].mxu0
    %v1143 = vpop.f32.mrb[0].mxu0
    %v1144 = vadd.f32 0.0, %v1143
    %v1145 = vpop.f32.mrb[0].mxu0
    %1146 = vmatprep.mubr.bf16.mxu0 0
    %1147 = vmatmul.mubr.bf16.gmra.mrb[0].mxu0 %v1104
    %v1148 = vpop.f32.mrb[0].mxu0
    %v1149 = vadd.f32 0.0, %v1148
    %v1150 = vpop.f32.mrb[0].mxu0
    %v1151 = vpop.f32.mrb[0].mxu0
    %v1152 = vadd.f32 0.0, %v1151
    %v1153 = vpop.f32.mrb[0].mxu0
    %1154 = vdwg.mxu0
    %v1156 = vsel %vm584, %v1041, 0
    %v1159 = vsel %vm584, %v1042, 0
    %1161 = vmatprep.subr.bf16.mxu0 0
    %1162 = vmatpush1.bf16.msra.mxu0 %v580
    %1163 = vmatprep.subr.bf16.mxu0 0
    %1164 = vmatpush1.bf16.msra.mxu0 %v581
    %1165 = vmatprep.subr.bf16.mxu0 0
    %1166 = vmatpush1.bf16.msra.mxu0 0
    %1167 = vmatprep.subr.bf16.mxu0 0
    %1168 = vmatpush1.bf16.msra.mxu0 0
    %1169 = vmatprep.subr.bf16.mxu0 0
    %1170 = vmatpush1.bf16.msra.mxu0 0
    %1171 = vmatprep.subr.bf16.mxu0 0
    %1172 = vmatpush1.bf16.msra.mxu0 0
    %1173 = vmatprep.subr.bf16.mxu0 0
    %1174 = vmatpush1.bf16.msra.mxu0 0
    %1175 = vmatprep.subr.bf16.mxu0 0
    %1176 = vmatpush1.bf16.msra.mxu0 0
    %1177 = vmatprep.subr.bf16.mxu0 0
    %1178 = vmatpush1.bf16.msra.mxu0 0
    %1179 = vmatprep.subr.bf16.mxu0 0
    %1180 = vmatpush1.bf16.msra.mxu0 0
    %1181 = vmatprep.subr.bf16.mxu0 0
    %1182 = vmatpush1.bf16.msra.mxu0 0
    %1183 = vmatprep.subr.bf16.mxu0 0
    %1184 = vmatpush1.bf16.msra.mxu0 0
    %1185 = vmatprep.subr.bf16.mxu0 0
    %1186 = vmatpush1.bf16.msra.mxu0 0
    %1187 = vmatprep.subr.bf16.mxu0 0
    %1188 = vmatpush1.bf16.msra.mxu0 0
    %1189 = vmatprep.subr.bf16.mxu0 0
    %1190 = vmatpush1.bf16.msra.mxu0 0
    %1191 = vmatprep.subr.bf16.mxu0 0
    %1192 = vmatpush1.bf16.msra.mxu0 0
    %1193 = vmatprep.mubr.bf16.mxu0 0
    %1194 = vmatmul.mubr.bf16.gmra.mrb[0].mxu0 %v1156
    %v1195 = vpop.f32.mrb[0].mxu0
    %v1196 = vadd.f32 0.0, %v1195
    %v1197 = vpop.f32.mrb[0].mxu0
    %v1198 = vpop.f32.mrb[0].mxu0
    %v1199 = vadd.f32 0.0, %v1198
    %v1200 = vpop.f32.mrb[0].mxu0
    %1201 = vmatprep.mubr.bf16.mxu0 0
    %1202 = vmatmul.mubr.bf16.gmra.mrb[0].mxu0 %v1159
    %v1203 = vpop.f32.mrb[0].mxu0
    %v1204 = vadd.f32 0.0, %v1203
    %v1205 = vpop.f32.mrb[0].mxu0
    %v1206 = vpop.f32.mrb[0].mxu0
    %v1207 = vadd.f32 0.0, %v1206
    %v1208 = vpop.f32.mrb[0].mxu0
    %1209 = vdwg.mxu0
    %v1211 = vsel %vm584, %v1043, 0
    %v1214 = vsel %vm584, %v1044, 0
    %1216 = vmatprep.subr.bf16.mxu0 0
    %1217 = vmatpush1.bf16.msra.mxu0 %v582
    %1218 = vmatprep.subr.bf16.mxu0 0
    %1219 = vmatpush1.bf16.msra.mxu0 %v583
    %1220 = vmatprep.subr.bf16.mxu0 0
    %1221 = vmatpush1.bf16.msra.mxu0 0
    %1222 = vmatprep.subr.bf16.mxu0 0
    %1223 = vmatpush1.bf16.msra.mxu0 0
    %1224 = vmatprep.subr.bf16.mxu0 0
    %1225 = vmatpush1.bf16.msra.mxu0 0
    %1226 = vmatprep.subr.bf16.mxu0 0
    %1227 = vmatpush1.bf16.msra.mxu0 0
    %1228 = vmatprep.subr.bf16.mxu0 0
    %1229 = vmatpush1.bf16.msra.mxu0 0
    %1230 = vmatprep.subr.bf16.mxu0 0
    %1231 = vmatpush1.bf16.msra.mxu0 0
    %1232 = vmatprep.subr.bf16.mxu0 0
    %1233 = vmatpush1.bf16.msra.mxu0 0
    %1234 = vmatprep.subr.bf16.mxu0 0
    %1235 = vmatpush1.bf16.msra.mxu0 0
    %1236 = vmatprep.subr.bf16.mxu0 0
    %1237 = vmatpush1.bf16.msra.mxu0 0
    %1238 = vmatprep.subr.bf16.mxu0 0
    %1239 = vmatpush1.bf16.msra.mxu0 0
    %1240 = vmatprep.subr.bf16.mxu0 0
    %1241 = vmatpush1.bf16.msra.mxu0 0
    %1242 = vmatprep.subr.bf16.mxu0 0
    %1243 = vmatpush1.bf16.msra.mxu0 0
    %1244 = vmatprep.subr.bf16.mxu0 0
    %1245 = vmatpush1.bf16.msra.mxu0 0
    %1246 = vmatprep.subr.bf16.mxu0 0
    %1247 = vmatpush1.bf16.msra.mxu0 0
    %1248 = vmatprep.mubr.bf16.mxu0 0
    %1249 = vmatmul.mubr.bf16.gmra.mrb[0].mxu0 %v1211
    %v1250 = vpop.f32.mrb[0].mxu0
    %v1251 = vadd.f32 0.0, %v1250
    %v1252 = vpop.f32.mrb[0].mxu0
    %v1253 = vpop.f32.mrb[0].mxu0
    %v1254 = vadd.f32 0.0, %v1253
    %v1255 = vpop.f32.mrb[0].mxu0
    %1256 = vmatprep.mubr.bf16.mxu0 0
    %1257 = vmatmul.mubr.bf16.gmra.mrb[0].mxu0 %v1214
    %v1258 = vpop.f32.mrb[0].mxu0
    %v1259 = vadd.f32 0.0, %v1258
    %v1260 = vpop.f32.mrb[0].mxu0
    %v1261 = vpop.f32.mrb[0].mxu0
    %v1262 = vadd.f32 0.0, %v1261
    %v1263 = vpop.f32.mrb[0].mxu0
    %1264 = vdwg.mxu0
    %v1265 = vpack.c.bf16 %v1089, %v1086
    %v1266 = vpack.c.bf16 %v1097, %v1094
    %v1267 = vpack.c.bf16 %v1144, %v1141
    %v1268 = vpack.c.bf16 %v1152, %v1149
    %v1269 = vpack.c.bf16 %v1199, %v1196
    %v1270 = vpack.c.bf16 %v1207, %v1204
    %v1271 = vpack.c.bf16 %v1254, %v1251
    %v1272 = vpack.c.bf16 %v1262, %v1259
    %1273 = vst.msk [vmem:[#allocation2] sm:$0xff] %vm584, %v1265
    %1274 = vst.msk [vmem:[#allocation2 + $0x8] sm:$0xff] %vm584, %v1266
    %1275 = vst.msk [vmem:[#allocation2 + $0x10] sm:$0xff] %vm584, %v1267
    %1276 = vst.msk [vmem:[#allocation2 + $0x18] sm:$0xff] %vm584, %v1268
    %1277 = vst.msk [vmem:[#allocation2 + $0x20] sm:$0xff] %vm584, %v1269
    %1278 = vst.msk [vmem:[#allocation2 + $0x28] sm:$0xff] %vm584, %v1270
    %1279 = vst.msk [vmem:[#allocation2 + $0x30] sm:$0xff] %vm584, %v1271
    %1280 = vst.msk [vmem:[#allocation2 + $0x38] sm:$0xff] %vm584, %v1272
    %1283 = vrot.lane.b32.xlu0 %v560, 96
    %v1284 = vpop.permute.xlu0 %1283
    %1285 = vrot.lane.b32.xlu0 %v561, 96
    %v1286 = vpop.permute.xlu0 %1285
    %1289 = vrot.lane.b32.xlu0 %v568, 96
    %v1290 = vpop.permute.xlu0 %1289
    %1291 = vrot.lane.b32.xlu0 %v569, 96
    %v1292 = vpop.permute.xlu0 %1291
    %v1294 = vsel %vm584, %v1284, 0
    %v1297 = vsel %vm584, %v1286, 0
    %v1300 = vsel %vm584, %v1290, 0
    %v1303 = vsel %vm584, %v1292, 0
    %1305 = vmatprep.subr.bf16.mxu0 0
    %1306 = vmatpush1.bf16.xpose.msra.mxu0 %v1300
    %1307 = vmatprep.subr.bf16.mxu0 0
    %1308 = vmatpush1.bf16.xpose.msra.mxu0 %v1303
    %1309 = vmatprep.subr.bf16.mxu0 0
    %1310 = vmatpush1.bf16.xpose.msra.mxu0 0
    %1311 = vmatprep.subr.bf16.mxu0 0
    %1312 = vmatpush1.bf16.xpose.msra.mxu0 0
    %1313 = vmatprep.subr.bf16.mxu0 0
    %1314 = vmatpush1.bf16.xpose.msra.mxu0 0
    %1315 = vmatprep.subr.bf16.mxu0 0
    %1316 = vmatpush1.bf16.xpose.msra.mxu0 0
    %1317 = vmatprep.subr.bf16.mxu0 0
    %1318 = vmatpush1.bf16.xpose.msra.mxu0 0
    %1319 = vmatprep.subr.bf16.mxu0 0
    %1320 = vmatpush1.bf16.xpose.msra.mxu0 0
    %1321 = vmatprep.subr.bf16.mxu0 0
    %1322 = vmatpush1.bf16.xpose.msra.mxu0 0
    %1323 = vmatprep.subr.bf16.mxu0 0
    %1324 = vmatpush1.bf16.xpose.msra.mxu0 0
    %1325 = vmatprep.subr.bf16.mxu0 0
    %1326 = vmatpush1.bf16.xpose.msra.mxu0 0
    %1327 = vmatprep.subr.bf16.mxu0 0
    %1328 = vmatpush1.bf16.xpose.msra.mxu0 0
    %1329 = vmatprep.subr.bf16.mxu0 0
    %1330 = vmatpush1.bf16.xpose.msra.mxu0 0
    %1331 = vmatprep.subr.bf16.mxu0 0
    %1332 = vmatpush1.bf16.xpose.msra.mxu0 0
    %1333 = vmatprep.subr.bf16.mxu0 0
    %1334 = vmatpush1.bf16.xpose.msra.mxu0 0
    %1335 = vmatprep.subr.bf16.mxu0 0
    %1336 = vmatpush1.bf16.xpose.msra.mxu0 0
    %1337 = vmatprep.mubr.bf16.mxu0 0
    %1338 = vmatmul.mubr.bf16.gmra.mrb[0].mxu0 %v1294
    %v1339 = vpop.f32.mrb[0].mxu0
    %v1340 = vadd.f32 0.0, %v1339
    %v1341 = vpop.f32.mrb[0].mxu0
    %v1342 = vpop.f32.mrb[0].mxu0
    %v1343 = vadd.f32 0.0, %v1342
    %v1344 = vpop.f32.mrb[0].mxu0
    %1345 = vmatprep.mubr.bf16.mxu0 0
    %1346 = vmatmul.mubr.bf16.gmra.mrb[0].mxu0 %v1297
    %v1347 = vpop.f32.mrb[0].mxu0
    %v1348 = vadd.f32 0.0, %v1347
    %v1349 = vpop.f32.mrb[0].mxu0
    %v1350 = vpop.f32.mrb[0].mxu0
    %v1351 = vadd.f32 0.0, %v1350
    %v1352 = vpop.f32.mrb[0].mxu0
    %1353 = vdwg.mxu0
    %1356 = vrot.lane.b32.xlu0 %v562, 96
    %v1357 = vpop.permute.xlu0 %1356
    %1358 = vrot.lane.b32.xlu0 %v563, 96
    %v1359 = vpop.permute.xlu0 %1358
    %1362 = vrot.lane.b32.xlu0 %v570, 96
    %v1363 = vpop.permute.xlu0 %1362
    %1364 = vrot.lane.b32.xlu0 %v571, 96
    %v1365 = vpop.permute.xlu0 %1364
    %v1367 = vsel %vm584, %v1357, 0
    %v1370 = vsel %vm584, %v1359, 0
    %v1373 = vsel %vm584, %v1363, 0
    %v1376 = vsel %vm584, %v1365, 0
    %1378 = vmatprep.subr.bf16.mxu0 0
    %1379 = vmatpush1.bf16.xpose.msra.mxu0 %v1373
    %1380 = vmatprep.subr.bf16.mxu0 0
    %1381 = vmatpush1.bf16.xpose.msra.mxu0 %v1376
    %1382 = vmatprep.subr.bf16.mxu0 0
    %1383 = vmatpush1.bf16.xpose.msra.mxu0 0
    %1384 = vmatprep.subr.bf16.mxu0 0
    %1385 = vmatpush1.bf16.xpose.msra.mxu0 0
    %1386 = vmatprep.subr.bf16.mxu0 0
    %1387 = vmatpush1.bf16.xpose.msra.mxu0 0
    %1388 = vmatprep.subr.bf16.mxu0 0
    %1389 = vmatpush1.bf16.xpose.msra.mxu0 0
    %1390 = vmatprep.subr.bf16.mxu0 0
    %1391 = vmatpush1.bf16.xpose.msra.mxu0 0
    %1392 = vmatprep.subr.bf16.mxu0 0
    %1393 = vmatpush1.bf16.xpose.msra.mxu0 0
    %1394 = vmatprep.subr.bf16.mxu0 0
    %1395 = vmatpush1.bf16.xpose.msra.mxu0 0
    %1396 = vmatprep.subr.bf16.mxu0 0
    %1397 = vmatpush1.bf16.xpose.msra.mxu0 0
    %1398 = vmatprep.subr.bf16.mxu0 0
    %1399 = vmatpush1.bf16.xpose.msra.mxu0 0
    %1400 = vmatprep.subr.bf16.mxu0 0
    %1401 = vmatpush1.bf16.xpose.msra.mxu0 0
    %1402 = vmatprep.subr.bf16.mxu0 0
    %1403 = vmatpush1.bf16.xpose.msra.mxu0 0
    %1404 = vmatprep.subr.bf16.mxu0 0
    %1405 = vmatpush1.bf16.xpose.msra.mxu0 0
    %1406 = vmatprep.subr.bf16.mxu0 0
    %1407 = vmatpush1.bf16.xpose.msra.mxu0 0
    %1408 = vmatprep.subr.bf16.mxu0 0
    %1409 = vmatpush1.bf16.xpose.msra.mxu0 0
    %1410 = vmatprep.mubr.bf16.mxu0 0
    %1411 = vmatmul.mubr.bf16.gmra.mrb[0].mxu0 %v1367
    %v1412 = vpop.f32.mrb[0].mxu0
    %v1413 = vadd.f32 0.0, %v1412
    %v1414 = vpop.f32.mrb[0].mxu0
    %v1415 = vpop.f32.mrb[0].mxu0
    %v1416 = vadd.f32 0.0, %v1415
    %v1417 = vpop.f32.mrb[0].mxu0
    %1418 = vmatprep.mubr.bf16.mxu0 0
    %1419 = vmatmul.mubr.bf16.gmra.mrb[0].mxu0 %v1370
    %v1420 = vpop.f32.mrb[0].mxu0
    %v1421 = vadd.f32 0.0, %v1420
    %v1422 = vpop.f32.mrb[0].mxu0
    %v1423 = vpop.f32.mrb[0].mxu0
    %v1424 = vadd.f32 0.0, %v1423
    %v1425 = vpop.f32.mrb[0].mxu0
    %1426 = vdwg.mxu0
    %1429 = vrot.lane.b32.xlu0 %v564, 96
    %v1430 = vpop.permute.xlu0 %1429
    %1431 = vrot.lane.b32.xlu0 %v565, 96
    %v1432 = vpop.permute.xlu0 %1431
    %1435 = vrot.lane.b32.xlu0 %v572, 96
    %v1436 = vpop.permute.xlu0 %1435
    %1437 = vrot.lane.b32.xlu0 %v573, 96
    %v1438 = vpop.permute.xlu0 %1437
    %v1440 = vsel %vm584, %v1430, 0
    %v1443 = vsel %vm584, %v1432, 0
    %v1446 = vsel %vm584, %v1436, 0
    %v1449 = vsel %vm584, %v1438, 0
    %1451 = vmatprep.subr.bf16.mxu0 0
    %1452 = vmatpush1.bf16.xpose.msra.mxu0 %v1446
    %1453 = vmatprep.subr.bf16.mxu0 0
    %1454 = vmatpush1.bf16.xpose.msra.mxu0 %v1449
    %1455 = vmatprep.subr.bf16.mxu0 0
    %1456 = vmatpush1.bf16.xpose.msra.mxu0 0
    %1457 = vmatprep.subr.bf16.mxu0 0
    %1458 = vmatpush1.bf16.xpose.msra.mxu0 0
    %1459 = vmatprep.subr.bf16.mxu0 0
    %1460 = vmatpush1.bf16.xpose.msra.mxu0 0
    %1461 = vmatprep.subr.bf16.mxu0 0
    %1462 = vmatpush1.bf16.xpose.msra.mxu0 0
    %1463 = vmatprep.subr.bf16.mxu0 0
    %1464 = vmatpush1.bf16.xpose.msra.mxu0 0
    %1465 = vmatprep.subr.bf16.mxu0 0
    %1466 = vmatpush1.bf16.xpose.msra.mxu0 0
    %1467 = vmatprep.subr.bf16.mxu0 0
    %1468 = vmatpush1.bf16.xpose.msra.mxu0 0
    %1469 = vmatprep.subr.bf16.mxu0 0
    %1470 = vmatpush1.bf16.xpose.msra.mxu0 0
    %1471 = vmatprep.subr.bf16.mxu0 0
    %1472 = vmatpush1.bf16.xpose.msra.mxu0 0
    %1473 = vmatprep.subr.bf16.mxu0 0
    %1474 = vmatpush1.bf16.xpose.msra.mxu0 0
    %1475 = vmatprep.subr.bf16.mxu0 0
    %1476 = vmatpush1.bf16.xpose.msra.mxu0 0
    %1477 = vmatprep.subr.bf16.mxu0 0
    %1478 = vmatpush1.bf16.xpose.msra.mxu0 0
    %1479 = vmatprep.subr.bf16.mxu0 0
    %1480 = vmatpush1.bf16.xpose.msra.mxu0 0
    %1481 = vmatprep.subr.bf16.mxu0 0
    %1482 = vmatpush1.bf16.xpose.msra.mxu0 0
    %1483 = vmatprep.mubr.bf16.mxu0 0
    %1484 = vmatmul.mubr.bf16.gmra.mrb[0].mxu0 %v1440
    %v1485 = vpop.f32.mrb[0].mxu0
    %v1486 = vadd.f32 0.0, %v1485
    %v1487 = vpop.f32.mrb[0].mxu0
    %v1488 = vpop.f32.mrb[0].mxu0
    %v1489 = vadd.f32 0.0, %v1488
    %v1490 = vpop.f32.mrb[0].mxu0
    %1491 = vmatprep.mubr.bf16.mxu0 0
    %1492 = vmatmul.mubr.bf16.gmra.mrb[0].mxu0 %v1443
    %v1493 = vpop.f32.mrb[0].mxu0
    %v1494 = vadd.f32 0.0, %v1493
    %v1495 = vpop.f32.mrb[0].mxu0
    %v1496 = vpop.f32.mrb[0].mxu0
    %v1497 = vadd.f32 0.0, %v1496
    %v1498 = vpop.f32.mrb[0].mxu0
    %1499 = vdwg.mxu0
    %1502 = vrot.lane.b32.xlu0 %v566, 96
    %v1503 = vpop.permute.xlu0 %1502
    %1504 = vrot.lane.b32.xlu0 %v567, 96
    %v1505 = vpop.permute.xlu0 %1504
    %1508 = vrot.lane.b32.xlu0 %v574, 96
    %v1509 = vpop.permute.xlu0 %1508
    %1510 = vrot.lane.b32.xlu0 %v575, 96
    %v1511 = vpop.permute.xlu0 %1510
    %v1513 = vsel %vm584, %v1503, 0
    %v1516 = vsel %vm584, %v1505, 0
    %v1519 = vsel %vm584, %v1509, 0
    %v1522 = vsel %vm584, %v1511, 0
    %1524 = vmatprep.subr.bf16.mxu0 0
    %1525 = vmatpush1.bf16.xpose.msra.mxu0 %v1519
    %1526 = vmatprep.subr.bf16.mxu0 0
    %1527 = vmatpush1.bf16.xpose.msra.mxu0 %v1522
    %1528 = vmatprep.subr.bf16.mxu0 0
    %1529 = vmatpush1.bf16.xpose.msra.mxu0 0
    %1530 = vmatprep.subr.bf16.mxu0 0
    %1531 = vmatpush1.bf16.xpose.msra.mxu0 0
    %1532 = vmatprep.subr.bf16.mxu0 0
    %1533 = vmatpush1.bf16.xpose.msra.mxu0 0
    %1534 = vmatprep.subr.bf16.mxu0 0
    %1535 = vmatpush1.bf16.xpose.msra.mxu0 0
    %1536 = vmatprep.subr.bf16.mxu0 0
    %1537 = vmatpush1.bf16.xpose.msra.mxu0 0
    %1538 = vmatprep.subr.bf16.mxu0 0
    %1539 = vmatpush1.bf16.xpose.msra.mxu0 0
    %1540 = vmatprep.subr.bf16.mxu0 0
    %1541 = vmatpush1.bf16.xpose.msra.mxu0 0
    %1542 = vmatprep.subr.bf16.mxu0 0
    %1543 = vmatpush1.bf16.xpose.msra.mxu0 0
    %1544 = vmatprep.subr.bf16.mxu0 0
    %1545 = vmatpush1.bf16.xpose.msra.mxu0 0
    %1546 = vmatprep.subr.bf16.mxu0 0
    %1547 = vmatpush1.bf16.xpose.msra.mxu0 0
    %1548 = vmatprep.subr.bf16.mxu0 0
    %1549 = vmatpush1.bf16.xpose.msra.mxu0 0
    %1550 = vmatprep.subr.bf16.mxu0 0
    %1551 = vmatpush1.bf16.xpose.msra.mxu0 0
    %1552 = vmatprep.subr.bf16.mxu0 0
    %1553 = vmatpush1.bf16.xpose.msra.mxu0 0
    %1554 = vmatprep.subr.bf16.mxu0 0
    %1555 = vmatpush1.bf16.xpose.msra.mxu0 0
    %1556 = vmatprep.mubr.bf16.mxu0 0
    %1557 = vmatmul.mubr.bf16.gmra.mrb[0].mxu0 %v1513
    %v1558 = vpop.f32.mrb[0].mxu0
    %v1559 = vadd.f32 0.0, %v1558
    %v1560 = vpop.f32.mrb[0].mxu0
    %v1561 = vpop.f32.mrb[0].mxu0
    %v1562 = vadd.f32 0.0, %v1561
    %v1563 = vpop.f32.mrb[0].mxu0
    %1564 = vmatprep.mubr.bf16.mxu0 0
    %1565 = vmatmul.mubr.bf16.gmra.mrb[0].mxu0 %v1516
    %v1566 = vpop.f32.mrb[0].mxu0
    %v1567 = vadd.f32 0.0, %v1566
    %v1568 = vpop.f32.mrb[0].mxu0
    %v1569 = vpop.f32.mrb[0].mxu0
    %v1570 = vadd.f32 0.0, %v1569
    %v1571 = vpop.f32.mrb[0].mxu0
    %1572 = vdwg.mxu0
    %v1573 = vmul.f32 %v1340, 0.28867513
    %v1574 = vmul.f32 %v1343, 0.28867513
    %v1575 = vmul.f32 %v1348, 0.28867513
    %v1576 = vmul.f32 %v1351, 0.28867513
    %v1577 = vmul.f32 %v1413, 0.28867513
    %v1578 = vmul.f32 %v1416, 0.28867513
    %v1579 = vmul.f32 %v1421, 0.28867513
    %v1580 = vmul.f32 %v1424, 0.28867513
    %v1581 = vmul.f32 %v1486, 0.28867513
    %v1582 = vmul.f32 %v1489, 0.28867513
    %v1583 = vmul.f32 %v1494, 0.28867513
    %v1584 = vmul.f32 %v1497, 0.28867513
    %v1585 = vmul.f32 %v1559, 0.28867513
    %v1586 = vmul.f32 %v1562, 0.28867513
    %v1587 = vmul.f32 %v1567, 0.28867513
    %v1588 = vmul.f32 %v1570, 0.28867513
    %v1589 = vadd.f32 %v1573, %v556
    %v1590 = vadd.f32 %v1574, %v557
    %v1591 = vadd.f32 %v1575, %v558
    %v1592 = vadd.f32 %v1576, %v559
    %v1593 = vadd.f32 %v1577, %v556
    %v1594 = vadd.f32 %v1578, %v557
    %v1595 = vadd.f32 %v1579, %v558
    %v1596 = vadd.f32 %v1580, %v559
    %v1597 = vadd.f32 %v1581, %v556
    %v1598 = vadd.f32 %v1582, %v557
    %v1599 = vadd.f32 %v1583, %v558
    %v1600 = vadd.f32 %v1584, %v559
    %v1601 = vadd.f32 %v1585, %v556
    %v1602 = vadd.f32 %v1586, %v557
    %v1603 = vadd.f32 %v1587, %v558
    %v1604 = vadd.f32 %v1588, %v559
    %v1605 = vsel %vm584, %v1589, -inf
    %1606 = vmax.xlane.f32.xlu0 %v1605
    %v1607 = vpop.xlane.xlu0 %1606
    %v1608 = vsel %vm584, %v1590, -inf
    %1609 = vmax.xlane.f32.xlu0 %v1608
    %v1610 = vpop.xlane.xlu0 %1609
    %v1611 = vsel %vm584, %v1591, -inf
    %1612 = vmax.xlane.f32.xlu0 %v1611
    %v1613 = vpop.xlane.xlu0 %1612
    %v1614 = vsel %vm584, %v1592, -inf
    %1615 = vmax.xlane.f32.xlu0 %v1614
    %v1616 = vpop.xlane.xlu0 %1615
    %v1617 = vsel %vm584, %v1593, -inf
    %1618 = vmax.xlane.f32.xlu0 %v1617
    %v1619 = vpop.xlane.xlu0 %1618
    %v1620 = vsel %vm584, %v1594, -inf
    %1621 = vmax.xlane.f32.xlu0 %v1620
    %v1622 = vpop.xlane.xlu0 %1621
    %v1623 = vsel %vm584, %v1595, -inf
    %1624 = vmax.xlane.f32.xlu0 %v1623
    %v1625 = vpop.xlane.xlu0 %1624
    %v1626 = vsel %vm584, %v1596, -inf
    %1627 = vmax.xlane.f32.xlu0 %v1626
    %v1628 = vpop.xlane.xlu0 %1627
    %v1629 = vsel %vm584, %v1597, -inf
    %1630 = vmax.xlane.f32.xlu0 %v1629
    %v1631 = vpop.xlane.xlu0 %1630
    %v1632 = vsel %vm584, %v1598, -inf
    %1633 = vmax.xlane.f32.xlu0 %v1632
    %v1634 = vpop.xlane.xlu0 %1633
    %v1635 = vsel %vm584, %v1599, -inf
    %1636 = vmax.xlane.f32.xlu0 %v1635
    %v1637 = vpop.xlane.xlu0 %1636
    %v1638 = vsel %vm584, %v1600, -inf
    %1639 = vmax.xlane.f32.xlu0 %v1638
    %v1640 = vpop.xlane.xlu0 %1639
    %v1641 = vsel %vm584, %v1601, -inf
    %1642 = vmax.xlane.f32.xlu0 %v1641
    %v1643 = vpop.xlane.xlu0 %1642
    %v1644 = vsel %vm584, %v1602, -inf
    %1645 = vmax.xlane.f32.xlu0 %v1644
    %v1646 = vpop.xlane.xlu0 %1645
    %v1647 = vsel %vm584, %v1603, -inf
    %1648 = vmax.xlane.f32.xlu0 %v1647
    %v1649 = vpop.xlane.xlu0 %1648
    %v1650 = vsel %vm584, %v1604, -inf
    %1651 = vmax.xlane.f32.xlu0 %v1650
    %v1652 = vpop.xlane.xlu0 %1651
    %v1653 = vsub.f32 %v1589, %v1607
    %v1654 = vsub.f32 %v1590, %v1610
    %v1655 = vsub.f32 %v1591, %v1613
    %v1656 = vsub.f32 %v1592, %v1616
    %v1657 = vsub.f32 %v1593, %v1619
    %v1658 = vsub.f32 %v1594, %v1622
    %v1659 = vsub.f32 %v1595, %v1625
    %v1660 = vsub.f32 %v1596, %v1628
    %v1661 = vsub.f32 %v1597, %v1631
    %v1662 = vsub.f32 %v1598, %v1634
    %v1663 = vsub.f32 %v1599, %v1637
    %v1664 = vsub.f32 %v1600, %v1640
    %v1665 = vsub.f32 %v1601, %v1643
    %v1666 = vsub.f32 %v1602, %v1646
    %v1667 = vsub.f32 %v1603, %v1649
    %v1668 = vsub.f32 %v1604, %v1652
    %v1669 = vmul.f32 %v1653, 1.442695
    %v1670 = vpow.pop %v1669
    %v1671 = vmul.f32 %v1654, 1.442695
    %v1672 = vpow.pop %v1671
    %v1673 = vmul.f32 %v1655, 1.442695
    %v1674 = vpow.pop %v1673
    %v1675 = vmul.f32 %v1656, 1.442695
    %v1676 = vpow.pop %v1675
    %v1677 = vmul.f32 %v1657, 1.442695
    %v1678 = vpow.pop %v1677
    %v1679 = vmul.f32 %v1658, 1.442695
    %v1680 = vpow.pop %v1679
    %v1681 = vmul.f32 %v1659, 1.442695
    %v1682 = vpow.pop %v1681
    %v1683 = vmul.f32 %v1660, 1.442695
    %v1684 = vpow.pop %v1683
    %v1685 = vmul.f32 %v1661, 1.442695
    %v1686 = vpow.pop %v1685
    %v1687 = vmul.f32 %v1662, 1.442695
    %v1688 = vpow.pop %v1687
    %v1689 = vmul.f32 %v1663, 1.442695
    %v1690 = vpow.pop %v1689
    %v1691 = vmul.f32 %v1664, 1.442695
    %v1692 = vpow.pop %v1691
    %v1693 = vmul.f32 %v1665, 1.442695
    %v1694 = vpow.pop %v1693
    %v1695 = vmul.f32 %v1666, 1.442695
    %v1696 = vpow.pop %v1695
    %v1697 = vmul.f32 %v1667, 1.442695
    %v1698 = vpow.pop %v1697
    %v1699 = vmul.f32 %v1668, 1.442695
    %v1700 = vpow.pop %v1699
    %v1701 = vsel %vm584, %v1670, 0.0
    %1702 = vadd.xlane.f32.xlu0 %v1701
    %v1703 = vpop.xlane.xlu0 %1702
    %v1704 = vsel %vm584, %v1672, 0.0
    %1705 = vadd.xlane.f32.xlu0 %v1704
    %v1706 = vpop.xlane.xlu0 %1705
    %v1707 = vsel %vm584, %v1674, 0.0
    %1708 = vadd.xlane.f32.xlu0 %v1707
    %v1709 = vpop.xlane.xlu0 %1708
    %v1710 = vsel %vm584, %v1676, 0.0
    %1711 = vadd.xlane.f32.xlu0 %v1710
    %v1712 = vpop.xlane.xlu0 %1711
    %v1713 = vsel %vm584, %v1678, 0.0
    %1714 = vadd.xlane.f32.xlu0 %v1713
    %v1715 = vpop.xlane.xlu0 %1714
    %v1716 = vsel %vm584, %v1680, 0.0
    %1717 = vadd.xlane.f32.xlu0 %v1716
    %v1718 = vpop.xlane.xlu0 %1717
    %v1719 = vsel %vm584, %v1682, 0.0
    %1720 = vadd.xlane.f32.xlu0 %v1719
    %v1721 = vpop.xlane.xlu0 %1720
    %v1722 = vsel %vm584, %v1684, 0.0
    %1723 = vadd.xlane.f32.xlu0 %v1722
    %v1724 = vpop.xlane.xlu0 %1723
    %v1725 = vsel %vm584, %v1686, 0.0
    %1726 = vadd.xlane.f32.xlu0 %v1725
    %v1727 = vpop.xlane.xlu0 %1726
    %v1728 = vsel %vm584, %v1688, 0.0
    %1729 = vadd.xlane.f32.xlu0 %v1728
    %v1730 = vpop.xlane.xlu0 %1729
    %v1731 = vsel %vm584, %v1690, 0.0
    %1732 = vadd.xlane.f32.xlu0 %v1731
    %v1733 = vpop.xlane.xlu0 %1732
    %v1734 = vsel %vm584, %v1692, 0.0
    %1735 = vadd.xlane.f32.xlu0 %v1734
    %v1736 = vpop.xlane.xlu0 %1735
    %v1737 = vsel %vm584, %v1694, 0.0
    %1738 = vadd.xlane.f32.xlu0 %v1737
    %v1739 = vpop.xlane.xlu0 %1738
    %v1740 = vsel %vm584, %v1696, 0.0
    %1741 = vadd.xlane.f32.xlu0 %v1740
    %v1742 = vpop.xlane.xlu0 %1741
    %v1743 = vsel %vm584, %v1698, 0.0
    %1744 = vadd.xlane.f32.xlu0 %v1743
    %v1745 = vpop.xlane.xlu0 %1744
    %v1746 = vsel %vm584, %v1700, 0.0
    %1747 = vadd.xlane.f32.xlu0 %v1746
    %v1748 = vpop.xlane.xlu0 %1747
    %v1749 = vrcp.pop %v1703
    %v1750 = vrcp.pop %v1706
    %v1751 = vrcp.pop %v1709
    %v1752 = vrcp.pop %v1712
    %v1753 = vrcp.pop %v1715
    %v1754 = vrcp.pop %v1718
    %v1755 = vrcp.pop %v1721
    %v1756 = vrcp.pop %v1724
    %v1757 = vrcp.pop %v1727
    %v1758 = vrcp.pop %v1730
    %v1759 = vrcp.pop %v1733
    %v1760 = vrcp.pop %v1736
    %v1761 = vrcp.pop %v1739
    %v1762 = vrcp.pop %v1742
    %v1763 = vrcp.pop %v1745
    %v1764 = vrcp.pop %v1748
    %v1765 = vmul.f32 %v1670, %v1749
    %v1766 = vmul.f32 %v1672, %v1750
    %v1767 = vmul.f32 %v1674, %v1751
    %v1768 = vmul.f32 %v1676, %v1752
    %v1769 = vmul.f32 %v1678, %v1753
    %v1770 = vmul.f32 %v1680, %v1754
    %v1771 = vmul.f32 %v1682, %v1755
    %v1772 = vmul.f32 %v1684, %v1756
    %v1773 = vmul.f32 %v1686, %v1757
    %v1774 = vmul.f32 %v1688, %v1758
    %v1775 = vmul.f32 %v1690, %v1759
    %v1776 = vmul.f32 %v1692, %v1760
    %v1777 = vmul.f32 %v1694, %v1761
    %v1778 = vmul.f32 %v1696, %v1762
    %v1779 = vmul.f32 %v1698, %v1763
    %v1780 = vmul.f32 %v1700, %v1764
    %v1781 = vpack.c.bf16 %v1766, %v1765
    %v1782 = vpack.c.bf16 %v1768, %v1767
    %v1783 = vpack.c.bf16 %v1770, %v1769
    %v1784 = vpack.c.bf16 %v1772, %v1771
    %v1785 = vpack.c.bf16 %v1774, %v1773
    %v1786 = vpack.c.bf16 %v1776, %v1775
    %v1787 = vpack.c.bf16 %v1778, %v1777
    %v1788 = vpack.c.bf16 %v1780, %v1779
    %1791 = vrot.lane.b32.xlu0 %v576, 96
    %v1792 = vpop.permute.xlu0 %1791
    %1793 = vrot.lane.b32.xlu0 %v577, 96
    %v1794 = vpop.permute.xlu0 %1793
    %v1798 = vsel %vm584, %v1781, 0
    %v1801 = vsel %vm584, %v1782, 0
    %1803 = vmatprep.subr.bf16.mxu0 0
    %1804 = vmatpush1.bf16.msra.mxu0 %v1792
    %1805 = vmatprep.subr.bf16.mxu0 0
    %1806 = vmatpush1.bf16.msra.mxu0 %v1794
    %1807 = vmatprep.subr.bf16.mxu0 0
    %1808 = vmatpush1.bf16.msra.mxu0 0
    %1809 = vmatprep.subr.bf16.mxu0 0
    %1810 = vmatpush1.bf16.msra.mxu0 0
    %1811 = vmatprep.subr.bf16.mxu0 0
    %1812 = vmatpush1.bf16.msra.mxu0 0
    %1813 = vmatprep.subr.bf16.mxu0 0
    %1814 = vmatpush1.bf16.msra.mxu0 0
    %1815 = vmatprep.subr.bf16.mxu0 0
    %1816 = vmatpush1.bf16.msra.mxu0 0
    %1817 = vmatprep.subr.bf16.mxu0 0
    %1818 = vmatpush1.bf16.msra.mxu0 0
    %1819 = vmatprep.subr.bf16.mxu0 0
    %1820 = vmatpush1.bf16.msra.mxu0 0
    %1821 = vmatprep.subr.bf16.mxu0 0
    %1822 = vmatpush1.bf16.msra.mxu0 0
    %1823 = vmatprep.subr.bf16.mxu0 0
    %1824 = vmatpush1.bf16.msra.mxu0 0
    %1825 = vmatprep.subr.bf16.mxu0 0
    %1826 = vmatpush1.bf16.msra.mxu0 0
    %1827 = vmatprep.subr.bf16.mxu0 0
    %1828 = vmatpush1.bf16.msra.mxu0 0
    %1829 = vmatprep.subr.bf16.mxu0 0
    %1830 = vmatpush1.bf16.msra.mxu0 0
    %1831 = vmatprep.subr.bf16.mxu0 0
    %1832 = vmatpush1.bf16.msra.mxu0 0
    %1833 = vmatprep.subr.bf16.mxu0 0
    %1834 = vmatpush1.bf16.msra.mxu0 0
    %1835 = vmatprep.mubr.bf16.mxu0 0
    %1836 = vmatmul.mubr.bf16.gmra.mrb[0].mxu0 %v1798
    %v1837 = vpop.f32.mrb[0].mxu0
    %v1838 = vadd.f32 0.0, %v1837
    %v1839 = vpop.f32.mrb[0].mxu0
    %v1840 = vpop.f32.mrb[0].mxu0
    %v1841 = vadd.f32 0.0, %v1840
    %v1842 = vpop.f32.mrb[0].mxu0
    %1843 = vmatprep.mubr.bf16.mxu0 0
    %1844 = vmatmul.mubr.bf16.gmra.mrb[0].mxu0 %v1801
    %v1845 = vpop.f32.mrb[0].mxu0
    %v1846 = vadd.f32 0.0, %v1845
    %v1847 = vpop.f32.mrb[0].mxu0
    %v1848 = vpop.f32.mrb[0].mxu0
    %v1849 = vadd.f32 0.0, %v1848
    %v1850 = vpop.f32.mrb[0].mxu0
    %1851 = vdwg.mxu0
    %1854 = vrot.lane.b32.xlu0 %v578, 96
    %v1855 = vpop.permute.xlu0 %1854
    %1856 = vrot.lane.b32.xlu0 %v579, 96
    %v1857 = vpop.permute.xlu0 %1856
    %v1861 = vsel %vm584, %v1783, 0
    %v1864 = vsel %vm584, %v1784, 0
    %1866 = vmatprep.subr.bf16.mxu0 0
    %1867 = vmatpush1.bf16.msra.mxu0 %v1855
    %1868 = vmatprep.subr.bf16.mxu0 0
    %1869 = vmatpush1.bf16.msra.mxu0 %v1857
    %1870 = vmatprep.subr.bf16.mxu0 0
    %1871 = vmatpush1.bf16.msra.mxu0 0
    %1872 = vmatprep.subr.bf16.mxu0 0
    %1873 = vmatpush1.bf16.msra.mxu0 0
    %1874 = vmatprep.subr.bf16.mxu0 0
    %1875 = vmatpush1.bf16.msra.mxu0 0
    %1876 = vmatprep.subr.bf16.mxu0 0
    %1877 = vmatpush1.bf16.msra.mxu0 0
    %1878 = vmatprep.subr.bf16.mxu0 0
    %1879 = vmatpush1.bf16.msra.mxu0 0
    %1880 = vmatprep.subr.bf16.mxu0 0
    %1881 = vmatpush1.bf16.msra.mxu0 0
    %1882 = vmatprep.subr.bf16.mxu0 0
    %1883 = vmatpush1.bf16.msra.mxu0 0
    %1884 = vmatprep.subr.bf16.mxu0 0
    %1885 = vmatpush1.bf16.msra.mxu0 0
    %1886 = vmatprep.subr.bf16.mxu0 0
    %1887 = vmatpush1.bf16.msra.mxu0 0
    %1888 = vmatprep.subr.bf16.mxu0 0
    %1889 = vmatpush1.bf16.msra.mxu0 0
    %1890 = vmatprep.subr.bf16.mxu0 0
    %1891 = vmatpush1.bf16.msra.mxu0 0
    %1892 = vmatprep.subr.bf16.mxu0 0
    %1893 = vmatpush1.bf16.msra.mxu0 0
    %1894 = vmatprep.subr.bf16.mxu0 0
    %1895 = vmatpush1.bf16.msra.mxu0 0
    %1896 = vmatprep.subr.bf16.mxu0 0
    %1897 = vmatpush1.bf16.msra.mxu0 0
    %1898 = vmatprep.mubr.bf16.mxu0 0
    %1899 = vmatmul.mubr.bf16.gmra.mrb[0].mxu0 %v1861
    %v1900 = vpop.f32.mrb[0].mxu0
    %v1901 = vadd.f32 0.0, %v1900
    %v1902 = vpop.f32.mrb[0].mxu0
    %v1903 = vpop.f32.mrb[0].mxu0
    %v1904 = vadd.f32 0.0, %v1903
    %v1905 = vpop.f32.mrb[0].mxu0
    %1906 = vmatprep.mubr.bf16.mxu0 0
    %1907 = vmatmul.mubr.bf16.gmra.mrb[0].mxu0 %v1864
    %v1908 = vpop.f32.mrb[0].mxu0
    %v1909 = vadd.f32 0.0, %v1908
    %v1910 = vpop.f32.mrb[0].mxu0
    %v1911 = vpop.f32.mrb[0].mxu0
    %v1912 = vadd.f32 0.0, %v1911
    %v1913 = vpop.f32.mrb[0].mxu0
    %1914 = vdwg.mxu0
    %1917 = vrot.lane.b32.xlu0 %v580, 96
    %v1918 = vpop.permute.xlu0 %1917
    %1919 = vrot.lane.b32.xlu0 %v581, 96
    %v1920 = vpop.permute.xlu0 %1919
    %v1924 = vsel %vm584, %v1785, 0
    %v1927 = vsel %vm584, %v1786, 0
    %1929 = vmatprep.subr.bf16.mxu0 0
    %1930 = vmatpush1.bf16.msra.mxu0 %v1918
    %1931 = vmatprep.subr.bf16.mxu0 0
    %1932 = vmatpush1.bf16.msra.mxu0 %v1920
    %1933 = vmatprep.subr.bf16.mxu0 0
    %1934 = vmatpush1.bf16.msra.mxu0 0
    %1935 = vmatprep.subr.bf16.mxu0 0
    %1936 = vmatpush1.bf16.msra.mxu0 0
    %1937 = vmatprep.subr.bf16.mxu0 0
    %1938 = vmatpush1.bf16.msra.mxu0 0
    %1939 = vmatprep.subr.bf16.mxu0 0
    %1940 = vmatpush1.bf16.msra.mxu0 0
    %1941 = vmatprep.subr.bf16.mxu0 0
    %1942 = vmatpush1.bf16.msra.mxu0 0
    %1943 = vmatprep.subr.bf16.mxu0 0
    %1944 = vmatpush1.bf16.msra.mxu0 0
    %1945 = vmatprep.subr.bf16.mxu0 0
    %1946 = vmatpush1.bf16.msra.mxu0 0
    %1947 = vmatprep.subr.bf16.mxu0 0
    %1948 = vmatpush1.bf16.msra.mxu0 0
    %1949 = vmatprep.subr.bf16.mxu0 0
    %1950 = vmatpush1.bf16.msra.mxu0 0
    %1951 = vmatprep.subr.bf16.mxu0 0
    %1952 = vmatpush1.bf16.msra.mxu0 0
    %1953 = vmatprep.subr.bf16.mxu0 0
    %1954 = vmatpush1.bf16.msra.mxu0 0
    %1955 = vmatprep.subr.bf16.mxu0 0
    %1956 = vmatpush1.bf16.msra.mxu0 0
    %1957 = vmatprep.subr.bf16.mxu0 0
    %1958 = vmatpush1.bf16.msra.mxu0 0
    %1959 = vmatprep.subr.bf16.mxu0 0
    %1960 = vmatpush1.bf16.msra.mxu0 0
    %1961 = vmatprep.mubr.bf16.mxu0 0
    %1962 = vmatmul.mubr.bf16.gmra.mrb[0].mxu0 %v1924
    %v1963 = vpop.f32.mrb[0].mxu0
    %v1964 = vadd.f32 0.0, %v1963
    %v1965 = vpop.f32.mrb[0].mxu0
    %v1966 = vpop.f32.mrb[0].mxu0
    %v1967 = vadd.f32 0.0, %v1966
    %v1968 = vpop.f32.mrb[0].mxu0
    %1969 = vmatprep.mubr.bf16.mxu0 0
    %1970 = vmatmul.mubr.bf16.gmra.mrb[0].mxu0 %v1927
    %v1971 = vpop.f32.mrb[0].mxu0
    %v1972 = vadd.f32 0.0, %v1971
    %v1973 = vpop.f32.mrb[0].mxu0
    %v1974 = vpop.f32.mrb[0].mxu0
    %v1975 = vadd.f32 0.0, %v1974
    %v1976 = vpop.f32.mrb[0].mxu0
    %1977 = vdwg.mxu0
    %1980 = vrot.lane.b32.xlu0 %v582, 96
    %v1981 = vpop.permute.xlu0 %1980
    %1982 = vrot.lane.b32.xlu0 %v583, 96
    %v1983 = vpop.permute.xlu0 %1982
    %v1987 = vsel %vm584, %v1787, 0
    %v1990 = vsel %vm584, %v1788, 0
    %1992 = vmatprep.subr.bf16.mxu0 0
    %1993 = vmatpush1.bf16.msra.mxu0 %v1981
    %1994 = vmatprep.subr.bf16.mxu0 0
    %1995 = vmatpush1.bf16.msra.mxu0 %v1983
    %1996 = vmatprep.subr.bf16.mxu0 0
    %1997 = vmatpush1.bf16.msra.mxu0 0
    %1998 = vmatprep.subr.bf16.mxu0 0
    %1999 = vmatpush1.bf16.msra.mxu0 0
    %2000 = vmatprep.subr.bf16.mxu0 0
    %2001 = vmatpush1.bf16.msra.mxu0 0
    %2002 = vmatprep.subr.bf16.mxu0 0
    %2003 = vmatpush1.bf16.msra.mxu0 0
    %2004 = vmatprep.subr.bf16.mxu0 0
    %2005 = vmatpush1.bf16.msra.mxu0 0
    %2006 = vmatprep.subr.bf16.mxu0 0
    %2007 = vmatpush1.bf16.msra.mxu0 0
    %2008 = vmatprep.subr.bf16.mxu0 0
    %2009 = vmatpush1.bf16.msra.mxu0 0
    %2010 = vmatprep.subr.bf16.mxu0 0
    %2011 = vmatpush1.bf16.msra.mxu0 0
    %2012 = vmatprep.subr.bf16.mxu0 0
    %2013 = vmatpush1.bf16.msra.mxu0 0
    %2014 = vmatprep.subr.bf16.mxu0 0
    %2015 = vmatpush1.bf16.msra.mxu0 0
    %2016 = vmatprep.subr.bf16.mxu0 0
    %2017 = vmatpush1.bf16.msra.mxu0 0
    %2018 = vmatprep.subr.bf16.mxu0 0
    %2019 = vmatpush1.bf16.msra.mxu0 0
    %2020 = vmatprep.subr.bf16.mxu0 0
    %2021 = vmatpush1.bf16.msra.mxu0 0
    %2022 = vmatprep.subr.bf16.mxu0 0
    %2023 = vmatpush1.bf16.msra.mxu0 0
    %2024 = vmatprep.mubr.bf16.mxu0 0
    %2025 = vmatmul.mubr.bf16.gmra.mrb[0].mxu0 %v1987
    %v2026 = vpop.f32.mrb[0].mxu0
    %v2027 = vadd.f32 0.0, %v2026
    %v2028 = vpop.f32.mrb[0].mxu0
    %v2029 = vpop.f32.mrb[0].mxu0
    %v2030 = vadd.f32 0.0, %v2029
    %v2031 = vpop.f32.mrb[0].mxu0
    %2032 = vmatprep.mubr.bf16.mxu0 0
    %2033 = vmatmul.mubr.bf16.gmra.mrb[0].mxu0 %v1990
    %v2034 = vpop.f32.mrb[0].mxu0
    %v2035 = vadd.f32 0.0, %v2034
    %v2036 = vpop.f32.mrb[0].mxu0
    %v2037 = vpop.f32.mrb[0].mxu0
    %v2038 = vadd.f32 0.0, %v2037
    %v2039 = vpop.f32.mrb[0].mxu0
    %2040 = vdwg.mxu0
    %v2041 = vpack.c.bf16 %v1841, %v1838
    %v2042 = vpack.c.bf16 %v1849, %v1846
    %v2043 = vpack.c.bf16 %v1904, %v1901
    %v2044 = vpack.c.bf16 %v1912, %v1909
    %v2045 = vpack.c.bf16 %v1967, %v1964
    %v2046 = vpack.c.bf16 %v1975, %v1972
    %v2047 = vpack.c.bf16 %v2030, %v2027
    %v2048 = vpack.c.bf16 %v2038, %v2035
    %2057 = vrot.lane.b32.xlu0 %v2041, 32
    %v2058 = vpop.permute.xlu0 %2057
    %2059 = vrot.lane.b32.xlu0 %v2042, 32
    %v2060 = vpop.permute.xlu0 %2059
    %2061 = vrot.lane.b32.xlu0 %v2043, 32
    %v2062 = vpop.permute.xlu0 %2061
    %2063 = vrot.lane.b32.xlu0 %v2044, 32
    %v2064 = vpop.permute.xlu0 %2063
    %2065 = vrot.lane.b32.xlu0 %v2045, 32
    %v2066 = vpop.permute.xlu0 %2065
    %2067 = vrot.lane.b32.xlu0 %v2046, 32
    %v2068 = vpop.permute.xlu0 %2067
    %2069 = vrot.lane.b32.xlu0 %v2047, 32
    %v2070 = vpop.permute.xlu0 %2069
    %2071 = vrot.lane.b32.xlu0 %v2048, 32
    %v2072 = vpop.permute.xlu0 %2071
    %vm2081 = vcmask 523520
    %2082 = vst.msk [vmem:[#allocation2] sm:$0xff] %vm2081, %v2058
    %2083 = vst.msk [vmem:[#allocation2 + $0x8] sm:$0xff] %vm2081, %v2060
    %2084 = vst.msk [vmem:[#allocation2 + $0x10] sm:$0xff] %vm2081, %v2062
    %2085 = vst.msk [vmem:[#allocation2 + $0x18] sm:$0xff] %vm2081, %v2064
    %2086 = vst.msk [vmem:[#allocation2 + $0x20] sm:$0xff] %vm2081, %v2066
    %2087 = vst.msk [vmem:[#allocation2 + $0x28] sm:$0xff] %vm2081, %v2068
    %2088 = vst.msk [vmem:[#allocation2 + $0x30] sm:$0xff] %vm2081, %v2070
    %2089 = vst.msk [vmem:[#allocation2 + $0x38] sm:$0xff] %vm2081, %v2072
    %2090 = vrot.lane.b32.xlu0 %v560, 64
    %v2091 = vpop.permute.xlu0 %2090
    %2092 = vrot.lane.b32.xlu0 %v561, 64
    %v2093 = vpop.permute.xlu0 %2092
    %2094 = vrot.lane.b32.xlu0 %v568, 64
    %v2095 = vpop.permute.xlu0 %2094
    %2096 = vrot.lane.b32.xlu0 %v569, 64
    %v2097 = vpop.permute.xlu0 %2096
    %v2099 = vsel %vm584, %v2091, 0
    %v2102 = vsel %vm584, %v2093, 0
    %v2105 = vsel %vm584, %v2095, 0
    %v2108 = vsel %vm584, %v2097, 0
    %2110 = vmatprep.subr.bf16.mxu0 0
    %2111 = vmatpush1.bf16.xpose.msra.mxu0 %v2105
    %2112 = vmatprep.subr.bf16.mxu0 0
    %2113 = vmatpush1.bf16.xpose.msra.mxu0 %v2108
    %2114 = vmatprep.subr.bf16.mxu0 0
    %2115 = vmatpush1.bf16.xpose.msra.mxu0 0
    %2116 = vmatprep.subr.bf16.mxu0 0
    %2117 = vmatpush1.bf16.xpose.msra.mxu0 0
    %2118 = vmatprep.subr.bf16.mxu0 0
    %2119 = vmatpush1.bf16.xpose.msra.mxu0 0
    %2120 = vmatprep.subr.bf16.mxu0 0
    %2121 = vmatpush1.bf16.xpose.msra.mxu0 0
    %2122 = vmatprep.subr.bf16.mxu0 0
    %2123 = vmatpush1.bf16.xpose.msra.mxu0 0
    %2124 = vmatprep.subr.bf16.mxu0 0
    %2125 = vmatpush1.bf16.xpose.msra.mxu0 0
    %2126 = vmatprep.subr.bf16.mxu0 0
    %2127 = vmatpush1.bf16.xpose.msra.mxu0 0
    %2128 = vmatprep.subr.bf16.mxu0 0
    %2129 = vmatpush1.bf16.xpose.msra.mxu0 0
    %2130 = vmatprep.subr.bf16.mxu0 0
    %2131 = vmatpush1.bf16.xpose.msra.mxu0 0
    %2132 = vmatprep.subr.bf16.mxu0 0
    %2133 = vmatpush1.bf16.xpose.msra.mxu0 0
    %2134 = vmatprep.subr.bf16.mxu0 0
    %2135 = vmatpush1.bf16.xpose.msra.mxu0 0
    %2136 = vmatprep.subr.bf16.mxu0 0
    %2137 = vmatpush1.bf16.xpose.msra.mxu0 0
    %2138 = vmatprep.subr.bf16.mxu0 0
    %2139 = vmatpush1.bf16.xpose.msra.mxu0 0
    %2140 = vmatprep.subr.bf16.mxu0 0
    %2141 = vmatpush1.bf16.xpose.msra.mxu0 0
    %2142 = vmatprep.mubr.bf16.mxu0 0
    %2143 = vmatmul.mubr.bf16.gmra.mrb[0].mxu0 %v2099
    %v2144 = vpop.f32.mrb[0].mxu0
    %v2145 = vadd.f32 0.0, %v2144
    %v2146 = vpop.f32.mrb[0].mxu0
    %v2147 = vpop.f32.mrb[0].mxu0
    %v2148 = vadd.f32 0.0, %v2147
    %v2149 = vpop.f32.mrb[0].mxu0
    %2150 = vmatprep.mubr.bf16.mxu0 0
    %2151 = vmatmul.mubr.bf16.gmra.mrb[0].mxu0 %v2102
    %v2152 = vpop.f32.mrb[0].mxu0
    %v2153 = vadd.f32 0.0, %v2152
    %v2154 = vpop.f32.mrb[0].mxu0
    %v2155 = vpop.f32.mrb[0].mxu0
    %v2156 = vadd.f32 0.0, %v2155
    %v2157 = vpop.f32.mrb[0].mxu0
    %2158 = vdwg.mxu0
    %2159 = vrot.lane.b32.xlu0 %v562, 64
    %v2160 = vpop.permute.xlu0 %2159
    %2161 = vrot.lane.b32.xlu0 %v563, 64
    %v2162 = vpop.permute.xlu0 %2161
    %2163 = vrot.lane.b32.xlu0 %v570, 64
    %v2164 = vpop.permute.xlu0 %2163
    %2165 = vrot.lane.b32.xlu0 %v571, 64
    %v2166 = vpop.permute.xlu0 %2165
    %v2168 = vsel %vm584, %v2160, 0
    %v2171 = vsel %vm584, %v2162, 0
    %v2174 = vsel %vm584, %v2164, 0
    %v2177 = vsel %vm584, %v2166, 0
    %2179 = vmatprep.subr.bf16.mxu0 0
    %2180 = vmatpush1.bf16.xpose.msra.mxu0 %v2174
    %2181 = vmatprep.subr.bf16.mxu0 0
    %2182 = vmatpush1.bf16.xpose.msra.mxu0 %v2177
    %2183 = vmatprep.subr.bf16.mxu0 0
    %2184 = vmatpush1.bf16.xpose.msra.mxu0 0
    %2185 = vmatprep.subr.bf16.mxu0 0
    %2186 = vmatpush1.bf16.xpose.msra.mxu0 0
    %2187 = vmatprep.subr.bf16.mxu0 0
    %2188 = vmatpush1.bf16.xpose.msra.mxu0 0
    %2189 = vmatprep.subr.bf16.mxu0 0
    %2190 = vmatpush1.bf16.xpose.msra.mxu0 0
    %2191 = vmatprep.subr.bf16.mxu0 0
    %2192 = vmatpush1.bf16.xpose.msra.mxu0 0
    %2193 = vmatprep.subr.bf16.mxu0 0
    %2194 = vmatpush1.bf16.xpose.msra.mxu0 0
    %2195 = vmatprep.subr.bf16.mxu0 0
    %2196 = vmatpush1.bf16.xpose.msra.mxu0 0
    %2197 = vmatprep.subr.bf16.mxu0 0
    %2198 = vmatpush1.bf16.xpose.msra.mxu0 0
    %2199 = vmatprep.subr.bf16.mxu0 0
    %2200 = vmatpush1.bf16.xpose.msra.mxu0 0
    %2201 = vmatprep.subr.bf16.mxu0 0
    %2202 = vmatpush1.bf16.xpose.msra.mxu0 0
    %2203 = vmatprep.subr.bf16.mxu0 0
    %2204 = vmatpush1.bf16.xpose.msra.mxu0 0
    %2205 = vmatprep.subr.bf16.mxu0 0
    %2206 = vmatpush1.bf16.xpose.msra.mxu0 0
    %2207 = vmatprep.subr.bf16.mxu0 0
    %2208 = vmatpush1.bf16.xpose.msra.mxu0 0
    %2209 = vmatprep.subr.bf16.mxu0 0
    %2210 = vmatpush1.bf16.xpose.msra.mxu0 0
    %2211 = vmatprep.mubr.bf16.mxu0 0
    %2212 = vmatmul.mubr.bf16.gmra.mrb[0].mxu0 %v2168
    %v2213 = vpop.f32.mrb[0].mxu0
    %v2214 = vadd.f32 0.0, %v2213
    %v2215 = vpop.f32.mrb[0].mxu0
    %v2216 = vpop.f32.mrb[0].mxu0
    %v2217 = vadd.f32 0.0, %v2216
    %v2218 = vpop.f32.mrb[0].mxu0
    %2219 = vmatprep.mubr.bf16.mxu0 0
    %2220 = vmatmul.mubr.bf16.gmra.mrb[0].mxu0 %v2171
    %v2221 = vpop.f32.mrb[0].mxu0
    %v2222 = vadd.f32 0.0, %v2221
    %v2223 = vpop.f32.mrb[0].mxu0
    %v2224 = vpop.f32.mrb[0].mxu0
    %v2225 = vadd.f32 0.0, %v2224
    %v2226 = vpop.f32.mrb[0].mxu0
    %2227 = vdwg.mxu0
    %2228 = vrot.lane.b32.xlu0 %v564, 64
    %v2229 = vpop.permute.xlu0 %2228
    %2230 = vrot.lane.b32.xlu0 %v565, 64
    %v2231 = vpop.permute.xlu0 %2230
    %2232 = vrot.lane.b32.xlu0 %v572, 64
    %v2233 = vpop.permute.xlu0 %2232
    %2234 = vrot.lane.b32.xlu0 %v573, 64
    %v2235 = vpop.permute.xlu0 %2234
    %v2237 = vsel %vm584, %v2229, 0
    %v2240 = vsel %vm584, %v2231, 0
    %v2243 = vsel %vm584, %v2233, 0
    %v2246 = vsel %vm584, %v2235, 0
    %2248 = vmatprep.subr.bf16.mxu0 0
    %2249 = vmatpush1.bf16.xpose.msra.mxu0 %v2243
    %2250 = vmatprep.subr.bf16.mxu0 0
    %2251 = vmatpush1.bf16.xpose.msra.mxu0 %v2246
    %2252 = vmatprep.subr.bf16.mxu0 0
    %2253 = vmatpush1.bf16.xpose.msra.mxu0 0
    %2254 = vmatprep.subr.bf16.mxu0 0
    %2255 = vmatpush1.bf16.xpose.msra.mxu0 0
    %2256 = vmatprep.subr.bf16.mxu0 0
    %2257 = vmatpush1.bf16.xpose.msra.mxu0 0
    %2258 = vmatprep.subr.bf16.mxu0 0
    %2259 = vmatpush1.bf16.xpose.msra.mxu0 0
    %2260 = vmatprep.subr.bf16.mxu0 0
    %2261 = vmatpush1.bf16.xpose.msra.mxu0 0
    %2262 = vmatprep.subr.bf16.mxu0 0
    %2263 = vmatpush1.bf16.xpose.msra.mxu0 0
    %2264 = vmatprep.subr.bf16.mxu0 0
    %2265 = vmatpush1.bf16.xpose.msra.mxu0 0
    %2266 = vmatprep.subr.bf16.mxu0 0
    %2267 = vmatpush1.bf16.xpose.msra.mxu0 0
    %2268 = vmatprep.subr.bf16.mxu0 0
    %2269 = vmatpush1.bf16.xpose.msra.mxu0 0
    %2270 = vmatprep.subr.bf16.mxu0 0
    %2271 = vmatpush1.bf16.xpose.msra.mxu0 0
    %2272 = vmatprep.subr.bf16.mxu0 0
    %2273 = vmatpush1.bf16.xpose.msra.mxu0 0
    %2274 = vmatprep.subr.bf16.mxu0 0
    %2275 = vmatpush1.bf16.xpose.msra.mxu0 0
    %2276 = vmatprep.subr.bf16.mxu0 0
    %2277 = vmatpush1.bf16.xpose.msra.mxu0 0
    %2278 = vmatprep.subr.bf16.mxu0 0
    %2279 = vmatpush1.bf16.xpose.msra.mxu0 0
    %2280 = vmatprep.mubr.bf16.mxu0 0
    %2281 = vmatmul.mubr.bf16.gmra.mrb[0].mxu0 %v2237
    %v2282 = vpop.f32.mrb[0].mxu0
    %v2283 = vadd.f32 0.0, %v2282
    %v2284 = vpop.f32.mrb[0].mxu0
    %v2285 = vpop.f32.mrb[0].mxu0
    %v2286 = vadd.f32 0.0, %v2285
    %v2287 = vpop.f32.mrb[0].mxu0
    %2288 = vmatprep.mubr.bf16.mxu0 0
    %2289 = vmatmul.mubr.bf16.gmra.mrb[0].mxu0 %v2240
    %v2290 = vpop.f32.mrb[0].mxu0
    %v2291 = vadd.f32 0.0, %v2290
    %v2292 = vpop.f32.mrb[0].mxu0
    %v2293 = vpop.f32.mrb[0].mxu0
    %v2294 = vadd.f32 0.0, %v2293
    %v2295 = vpop.f32.mrb[0].mxu0
    %2296 = vdwg.mxu0
    %2297 = vrot.lane.b32.xlu0 %v566, 64
    %v2298 = vpop.permute.xlu0 %2297
    %2299 = vrot.lane.b32.xlu0 %v567, 64
    %v2300 = vpop.permute.xlu0 %2299
    %2301 = vrot.lane.b32.xlu0 %v574, 64
    %v2302 = vpop.permute.xlu0 %2301
    %2303 = vrot.lane.b32.xlu0 %v575, 64
    %v2304 = vpop.permute.xlu0 %2303
    %v2306 = vsel %vm584, %v2298, 0
    %v2309 = vsel %vm584, %v2300, 0
    %v2312 = vsel %vm584, %v2302, 0
    %v2315 = vsel %vm584, %v2304, 0
    %2317 = vmatprep.subr.bf16.mxu0 0
    %2318 = vmatpush1.bf16.xpose.msra.mxu0 %v2312
    %2319 = vmatprep.subr.bf16.mxu0 0
    %2320 = vmatpush1.bf16.xpose.msra.mxu0 %v2315
    %2321 = vmatprep.subr.bf16.mxu0 0
    %2322 = vmatpush1.bf16.xpose.msra.mxu0 0
    %2323 = vmatprep.subr.bf16.mxu0 0
    %2324 = vmatpush1.bf16.xpose.msra.mxu0 0
    %2325 = vmatprep.subr.bf16.mxu0 0
    %2326 = vmatpush1.bf16.xpose.msra.mxu0 0
    %2327 = vmatprep.subr.bf16.mxu0 0
    %2328 = vmatpush1.bf16.xpose.msra.mxu0 0
    %2329 = vmatprep.subr.bf16.mxu0 0
    %2330 = vmatpush1.bf16.xpose.msra.mxu0 0
    %2331 = vmatprep.subr.bf16.mxu0 0
    %2332 = vmatpush1.bf16.xpose.msra.mxu0 0
    %2333 = vmatprep.subr.bf16.mxu0 0
    %2334 = vmatpush1.bf16.xpose.msra.mxu0 0
    %2335 = vmatprep.subr.bf16.mxu0 0
    %2336 = vmatpush1.bf16.xpose.msra.mxu0 0
    %2337 = vmatprep.subr.bf16.mxu0 0
    %2338 = vmatpush1.bf16.xpose.msra.mxu0 0
    %2339 = vmatprep.subr.bf16.mxu0 0
    %2340 = vmatpush1.bf16.xpose.msra.mxu0 0
    %2341 = vmatprep.subr.bf16.mxu0 0
    %2342 = vmatpush1.bf16.xpose.msra.mxu0 0
    %2343 = vmatprep.subr.bf16.mxu0 0
    %2344 = vmatpush1.bf16.xpose.msra.mxu0 0
    %2345 = vmatprep.subr.bf16.mxu0 0
    %2346 = vmatpush1.bf16.xpose.msra.mxu0 0
    %2347 = vmatprep.subr.bf16.mxu0 0
    %2348 = vmatpush1.bf16.xpose.msra.mxu0 0
    %2349 = vmatprep.mubr.bf16.mxu0 0
    %2350 = vmatmul.mubr.bf16.gmra.mrb[0].mxu0 %v2306
    %v2351 = vpop.f32.mrb[0].mxu0
    %v2352 = vadd.f32 0.0, %v2351
    %v2353 = vpop.f32.mrb[0].mxu0
    %v2354 = vpop.f32.mrb[0].mxu0
    %v2355 = vadd.f32 0.0, %v2354
    %v2356 = vpop.f32.mrb[0].mxu0
    %2357 = vmatprep.mubr.bf16.mxu0 0
    %2358 = vmatmul.mubr.bf16.gmra.mrb[0].mxu0 %v2309
    %v2359 = vpop.f32.mrb[0].mxu0
    %v2360 = vadd.f32 0.0, %v2359
    %v2361 = vpop.f32.mrb[0].mxu0
    %v2362 = vpop.f32.mrb[0].mxu0
    %v2363 = vadd.f32 0.0, %v2362
    %v2364 = vpop.f32.mrb[0].mxu0
    %2365 = vdwg.mxu0
    %v2366 = vmul.f32 %v2145, 0.28867513
    %v2367 = vmul.f32 %v2148, 0.28867513
    %v2368 = vmul.f32 %v2153, 0.28867513
    %v2369 = vmul.f32 %v2156, 0.28867513
    %v2370 = vmul.f32 %v2214, 0.28867513
    %v2371 = vmul.f32 %v2217, 0.28867513
    %v2372 = vmul.f32 %v2222, 0.28867513
    %v2373 = vmul.f32 %v2225, 0.28867513
    %v2374 = vmul.f32 %v2283, 0.28867513
    %v2375 = vmul.f32 %v2286, 0.28867513
    %v2376 = vmul.f32 %v2291, 0.28867513
    %v2377 = vmul.f32 %v2294, 0.28867513
    %v2378 = vmul.f32 %v2352, 0.28867513
    %v2379 = vmul.f32 %v2355, 0.28867513
    %v2380 = vmul.f32 %v2360, 0.28867513
    %v2381 = vmul.f32 %v2363, 0.28867513
    %v2382 = vadd.f32 %v2366, %v556
    %v2383 = vadd.f32 %v2367, %v557
    %v2384 = vadd.f32 %v2368, %v558
    %v2385 = vadd.f32 %v2369, %v559
    %v2386 = vadd.f32 %v2370, %v556
    %v2387 = vadd.f32 %v2371, %v557
    %v2388 = vadd.f32 %v2372, %v558
    %v2389 = vadd.f32 %v2373, %v559
    %v2390 = vadd.f32 %v2374, %v556
    %v2391 = vadd.f32 %v2375, %v557
    %v2392 = vadd.f32 %v2376, %v558
    %v2393 = vadd.f32 %v2377, %v559
    %v2394 = vadd.f32 %v2378, %v556
    %v2395 = vadd.f32 %v2379, %v557
    %v2396 = vadd.f32 %v2380, %v558
    %v2397 = vadd.f32 %v2381, %v559
    %v2398 = vsel %vm584, %v2382, -inf
    %2399 = vmax.xlane.f32.xlu0 %v2398
    %v2400 = vpop.xlane.xlu0 %2399
    %v2401 = vsel %vm584, %v2383, -inf
    %2402 = vmax.xlane.f32.xlu0 %v2401
    %v2403 = vpop.xlane.xlu0 %2402
    %v2404 = vsel %vm584, %v2384, -inf
    %2405 = vmax.xlane.f32.xlu0 %v2404
    %v2406 = vpop.xlane.xlu0 %2405
    %v2407 = vsel %vm584, %v2385, -inf
    %2408 = vmax.xlane.f32.xlu0 %v2407
    %v2409 = vpop.xlane.xlu0 %2408
    %v2410 = vsel %vm584, %v2386, -inf
    %2411 = vmax.xlane.f32.xlu0 %v2410
    %v2412 = vpop.xlane.xlu0 %2411
    %v2413 = vsel %vm584, %v2387, -inf
    %2414 = vmax.xlane.f32.xlu0 %v2413
    %v2415 = vpop.xlane.xlu0 %2414
    %v2416 = vsel %vm584, %v2388, -inf
    %2417 = vmax.xlane.f32.xlu0 %v2416
    %v2418 = vpop.xlane.xlu0 %2417
    %v2419 = vsel %vm584, %v2389, -inf
    %2420 = vmax.xlane.f32.xlu0 %v2419
    %v2421 = vpop.xlane.xlu0 %2420
    %v2422 = vsel %vm584, %v2390, -inf
    %2423 = vmax.xlane.f32.xlu0 %v2422
    %v2424 = vpop.xlane.xlu0 %2423
    %v2425 = vsel %vm584, %v2391, -inf
    %2426 = vmax.xlane.f32.xlu0 %v2425
    %v2427 = vpop.xlane.xlu0 %2426
    %v2428 = vsel %vm584, %v2392, -inf
    %2429 = vmax.xlane.f32.xlu0 %v2428
    %v2430 = vpop.xlane.xlu0 %2429
    %v2431 = vsel %vm584, %v2393, -inf
    %2432 = vmax.xlane.f32.xlu0 %v2431
    %v2433 = vpop.xlane.xlu0 %2432
    %v2434 = vsel %vm584, %v2394, -inf
    %2435 = vmax.xlane.f32.xlu0 %v2434
    %v2436 = vpop.xlane.xlu0 %2435
    %v2437 = vsel %vm584, %v2395, -inf
    %2438 = vmax.xlane.f32.xlu0 %v2437
    %v2439 = vpop.xlane.xlu0 %2438
    %v2440 = vsel %vm584, %v2396, -inf
    %2441 = vmax.xlane.f32.xlu0 %v2440
    %v2442 = vpop.xlane.xlu0 %2441
    %v2443 = vsel %vm584, %v2397, -inf
    %2444 = vmax.xlane.f32.xlu0 %v2443
    %v2445 = vpop.xlane.xlu0 %2444
    %v2446 = vsub.f32 %v2382, %v2400
    %v2447 = vsub.f32 %v2383, %v2403
    %v2448 = vsub.f32 %v2384, %v2406
    %v2449 = vsub.f32 %v2385, %v2409
    %v2450 = vsub.f32 %v2386, %v2412
    %v2451 = vsub.f32 %v2387, %v2415
    %v2452 = vsub.f32 %v2388, %v2418
    %v2453 = vsub.f32 %v2389, %v2421
    %v2454 = vsub.f32 %v2390, %v2424
    %v2455 = vsub.f32 %v2391, %v2427
    %v2456 = vsub.f32 %v2392, %v2430
    %v2457 = vsub.f32 %v2393, %v2433
    %v2458 = vsub.f32 %v2394, %v2436
    %v2459 = vsub.f32 %v2395, %v2439
    %v2460 = vsub.f32 %v2396, %v2442
    %v2461 = vsub.f32 %v2397, %v2445
    %v2462 = vmul.f32 %v2446, 1.442695
    %v2463 = vpow.pop %v2462
    %v2464 = vmul.f32 %v2447, 1.442695
    %v2465 = vpow.pop %v2464
    %v2466 = vmul.f32 %v2448, 1.442695
    %v2467 = vpow.pop %v2466
    %v2468 = vmul.f32 %v2449, 1.442695
    %v2469 = vpow.pop %v2468
    %v2470 = vmul.f32 %v2450, 1.442695
    %v2471 = vpow.pop %v2470
    %v2472 = vmul.f32 %v2451, 1.442695
    %v2473 = vpow.pop %v2472
    %v2474 = vmul.f32 %v2452, 1.442695
    %v2475 = vpow.pop %v2474
    %v2476 = vmul.f32 %v2453, 1.442695
    %v2477 = vpow.pop %v2476
    %v2478 = vmul.f32 %v2454, 1.442695
    %v2479 = vpow.pop %v2478
    %v2480 = vmul.f32 %v2455, 1.442695
    %v2481 = vpow.pop %v2480
    %v2482 = vmul.f32 %v2456, 1.442695
    %v2483 = vpow.pop %v2482
    %v2484 = vmul.f32 %v2457, 1.442695
    %v2485 = vpow.pop %v2484
    %v2486 = vmul.f32 %v2458, 1.442695
    %v2487 = vpow.pop %v2486
    %v2488 = vmul.f32 %v2459, 1.442695
    %v2489 = vpow.pop %v2488
    %v2490 = vmul.f32 %v2460, 1.442695
    %v2491 = vpow.pop %v2490
    %v2492 = vmul.f32 %v2461, 1.442695
    %v2493 = vpow.pop %v2492
    %v2494 = vsel %vm584, %v2463, 0.0
    %2495 = vadd.xlane.f32.xlu0 %v2494
    %v2496 = vpop.xlane.xlu0 %2495
    %v2497 = vsel %vm584, %v2465, 0.0
    %2498 = vadd.xlane.f32.xlu0 %v2497
    %v2499 = vpop.xlane.xlu0 %2498
    %v2500 = vsel %vm584, %v2467, 0.0
    %2501 = vadd.xlane.f32.xlu0 %v2500
    %v2502 = vpop.xlane.xlu0 %2501
    %v2503 = vsel %vm584, %v2469, 0.0
    %2504 = vadd.xlane.f32.xlu0 %v2503
    %v2505 = vpop.xlane.xlu0 %2504
    %v2506 = vsel %vm584, %v2471, 0.0
    %2507 = vadd.xlane.f32.xlu0 %v2506
    %v2508 = vpop.xlane.xlu0 %2507
    %v2509 = vsel %vm584, %v2473, 0.0
    %2510 = vadd.xlane.f32.xlu0 %v2509
    %v2511 = vpop.xlane.xlu0 %2510
    %v2512 = vsel %vm584, %v2475, 0.0
    %2513 = vadd.xlane.f32.xlu0 %v2512
    %v2514 = vpop.xlane.xlu0 %2513
    %v2515 = vsel %vm584, %v2477, 0.0
    %2516 = vadd.xlane.f32.xlu0 %v2515
    %v2517 = vpop.xlane.xlu0 %2516
    %v2518 = vsel %vm584, %v2479, 0.0
    %2519 = vadd.xlane.f32.xlu0 %v2518
    %v2520 = vpop.xlane.xlu0 %2519
    %v2521 = vsel %vm584, %v2481, 0.0
    %2522 = vadd.xlane.f32.xlu0 %v2521
    %v2523 = vpop.xlane.xlu0 %2522
    %v2524 = vsel %vm584, %v2483, 0.0
    %2525 = vadd.xlane.f32.xlu0 %v2524
    %v2526 = vpop.xlane.xlu0 %2525
    %v2527 = vsel %vm584, %v2485, 0.0
    %2528 = vadd.xlane.f32.xlu0 %v2527
    %v2529 = vpop.xlane.xlu0 %2528
    %v2530 = vsel %vm584, %v2487, 0.0
    %2531 = vadd.xlane.f32.xlu0 %v2530
    %v2532 = vpop.xlane.xlu0 %2531
    %v2533 = vsel %vm584, %v2489, 0.0
    %2534 = vadd.xlane.f32.xlu0 %v2533
    %v2535 = vpop.xlane.xlu0 %2534
    %v2536 = vsel %vm584, %v2491, 0.0
    %2537 = vadd.xlane.f32.xlu0 %v2536
    %v2538 = vpop.xlane.xlu0 %2537
    %v2539 = vsel %vm584, %v2493, 0.0
    %2540 = vadd.xlane.f32.xlu0 %v2539
    %v2541 = vpop.xlane.xlu0 %2540
    %v2542 = vrcp.pop %v2496
    %v2543 = vrcp.pop %v2499
    %v2544 = vrcp.pop %v2502
    %v2545 = vrcp.pop %v2505
    %v2546 = vrcp.pop %v2508
    %v2547 = vrcp.pop %v2511
    %v2548 = vrcp.pop %v2514
    %v2549 = vrcp.pop %v2517
    %v2550 = vrcp.pop %v2520
    %v2551 = vrcp.pop %v2523
    %v2552 = vrcp.pop %v2526
    %v2553 = vrcp.pop %v2529
    %v2554 = vrcp.pop %v2532
    %v2555 = vrcp.pop %v2535
    %v2556 = vrcp.pop %v2538
    %v2557 = vrcp.pop %v2541
    %v2558 = vmul.f32 %v2463, %v2542
    %v2559 = vmul.f32 %v2465, %v2543
    %v2560 = vmul.f32 %v2467, %v2544
    %v2561 = vmul.f32 %v2469, %v2545
    %v2562 = vmul.f32 %v2471, %v2546
    %v2563 = vmul.f32 %v2473, %v2547
    %v2564 = vmul.f32 %v2475, %v2548
    %v2565 = vmul.f32 %v2477, %v2549
    %v2566 = vmul.f32 %v2479, %v2550
    %v2567 = vmul.f32 %v2481, %v2551
    %v2568 = vmul.f32 %v2483, %v2552
    %v2569 = vmul.f32 %v2485, %v2553
    %v2570 = vmul.f32 %v2487, %v2554
    %v2571 = vmul.f32 %v2489, %v2555
    %v2572 = vmul.f32 %v2491, %v2556
    %v2573 = vmul.f32 %v2493, %v2557
    %v2574 = vpack.c.bf16 %v2559, %v2558
    %v2575 = vpack.c.bf16 %v2561, %v2560
    %v2576 = vpack.c.bf16 %v2563, %v2562
    %v2577 = vpack.c.bf16 %v2565, %v2564
    %v2578 = vpack.c.bf16 %v2567, %v2566
    %v2579 = vpack.c.bf16 %v2569, %v2568
    %v2580 = vpack.c.bf16 %v2571, %v2570
    %v2581 = vpack.c.bf16 %v2573, %v2572
    %2582 = vrot.lane.b32.xlu0 %v576, 64
    %v2583 = vpop.permute.xlu0 %2582
    %2584 = vrot.lane.b32.xlu0 %v577, 64
    %v2585 = vpop.permute.xlu0 %2584
    %v2589 = vsel %vm584, %v2574, 0
    %v2592 = vsel %vm584, %v2575, 0
    %2594 = vmatprep.subr.bf16.mxu0 0
    %2595 = vmatpush1.bf16.msra.mxu0 %v2583
    %2596 = vmatprep.subr.bf16.mxu0 0
    %2597 = vmatpush1.bf16.msra.mxu0 %v2585
    %2598 = vmatprep.subr.bf16.mxu0 0
    %2599 = vmatpush1.bf16.msra.mxu0 0
    %2600 = vmatprep.subr.bf16.mxu0 0
    %2601 = vmatpush1.bf16.msra.mxu0 0
    %2602 = vmatprep.subr.bf16.mxu0 0
    %2603 = vmatpush1.bf16.msra.mxu0 0
    %2604 = vmatprep.subr.bf16.mxu0 0
    %2605 = vmatpush1.bf16.msra.mxu0 0
    %2606 = vmatprep.subr.bf16.mxu0 0
    %2607 = vmatpush1.bf16.msra.mxu0 0
    %2608 = vmatprep.subr.bf16.mxu0 0
    %2609 = vmatpush1.bf16.msra.mxu0 0
    %2610 = vmatprep.subr.bf16.mxu0 0
    %2611 = vmatpush1.bf16.msra.mxu0 0
    %2612 = vmatprep.subr.bf16.mxu0 0
    %2613 = vmatpush1.bf16.msra.mxu0 0
    %2614 = vmatprep.subr.bf16.mxu0 0
    %2615 = vmatpush1.bf16.msra.mxu0 0
    %2616 = vmatprep.subr.bf16.mxu0 0
    %2617 = vmatpush1.bf16.msra.mxu0 0
    %2618 = vmatprep.subr.bf16.mxu0 0
    %2619 = vmatpush1.bf16.msra.mxu0 0
    %2620 = vmatprep.subr.bf16.mxu0 0
    %2621 = vmatpush1.bf16.msra.mxu0 0
    %2622 = vmatprep.subr.bf16.mxu0 0
    %2623 = vmatpush1.bf16.msra.mxu0 0
    %2624 = vmatprep.subr.bf16.mxu0 0
    %2625 = vmatpush1.bf16.msra.mxu0 0
    %2626 = vmatprep.mubr.bf16.mxu0 0
    %2627 = vmatmul.mubr.bf16.gmra.mrb[0].mxu0 %v2589
    %v2628 = vpop.f32.mrb[0].mxu0
    %v2629 = vadd.f32 0.0, %v2628
    %v2630 = vpop.f32.mrb[0].mxu0
    %v2631 = vpop.f32.mrb[0].mxu0
    %v2632 = vadd.f32 0.0, %v2631
    %v2633 = vpop.f32.mrb[0].mxu0
    %2634 = vmatprep.mubr.bf16.mxu0 0
    %2635 = vmatmul.mubr.bf16.gmra.mrb[0].mxu0 %v2592
    %v2636 = vpop.f32.mrb[0].mxu0
    %v2637 = vadd.f32 0.0, %v2636
    %v2638 = vpop.f32.mrb[0].mxu0
    %v2639 = vpop.f32.mrb[0].mxu0
    %v2640 = vadd.f32 0.0, %v2639
    %v2641 = vpop.f32.mrb[0].mxu0
    %2642 = vdwg.mxu0
    %2643 = vrot.lane.b32.xlu0 %v578, 64
    %v2644 = vpop.permute.xlu0 %2643
    %2645 = vrot.lane.b32.xlu0 %v579, 64
    %v2646 = vpop.permute.xlu0 %2645
    %v2650 = vsel %vm584, %v2576, 0
    %v2653 = vsel %vm584, %v2577, 0
    %2655 = vmatprep.subr.bf16.mxu0 0
    %2656 = vmatpush1.bf16.msra.mxu0 %v2644
    %2657 = vmatprep.subr.bf16.mxu0 0
    %2658 = vmatpush1.bf16.msra.mxu0 %v2646
    %2659 = vmatprep.subr.bf16.mxu0 0
    %2660 = vmatpush1.bf16.msra.mxu0 0
    %2661 = vmatprep.subr.bf16.mxu0 0
    %2662 = vmatpush1.bf16.msra.mxu0 0
    %2663 = vmatprep.subr.bf16.mxu0 0
    %2664 = vmatpush1.bf16.msra.mxu0 0
    %2665 = vmatprep.subr.bf16.mxu0 0
    %2666 = vmatpush1.bf16.msra.mxu0 0
    %2667 = vmatprep.subr.bf16.mxu0 0
    %2668 = vmatpush1.bf16.msra.mxu0 0
    %2669 = vmatprep.subr.bf16.mxu0 0
    %2670 = vmatpush1.bf16.msra.mxu0 0
    %2671 = vmatprep.subr.bf16.mxu0 0
    %2672 = vmatpush1.bf16.msra.mxu0 0
    %2673 = vmatprep.subr.bf16.mxu0 0
    %2674 = vmatpush1.bf16.msra.mxu0 0
    %2675 = vmatprep.subr.bf16.mxu0 0
    %2676 = vmatpush1.bf16.msra.mxu0 0
    %2677 = vmatprep.subr.bf16.mxu0 0
    %2678 = vmatpush1.bf16.msra.mxu0 0
    %2679 = vmatprep.subr.bf16.mxu0 0
    %2680 = vmatpush1.bf16.msra.mxu0 0
    %2681 = vmatprep.subr.bf16.mxu0 0
    %2682 = vmatpush1.bf16.msra.mxu0 0
    %2683 = vmatprep.subr.bf16.mxu0 0
    %2684 = vmatpush1.bf16.msra.mxu0 0
    %2685 = vmatprep.subr.bf16.mxu0 0
    %2686 = vmatpush1.bf16.msra.mxu0 0
    %2687 = vmatprep.mubr.bf16.mxu0 0
    %2688 = vmatmul.mubr.bf16.gmra.mrb[0].mxu0 %v2650
    %v2689 = vpop.f32.mrb[0].mxu0
    %v2690 = vadd.f32 0.0, %v2689
    %v2691 = vpop.f32.mrb[0].mxu0
    %v2692 = vpop.f32.mrb[0].mxu0
    %v2693 = vadd.f32 0.0, %v2692
    %v2694 = vpop.f32.mrb[0].mxu0
    %2695 = vmatprep.mubr.bf16.mxu0 0
    %2696 = vmatmul.mubr.bf16.gmra.mrb[0].mxu0 %v2653
    %v2697 = vpop.f32.mrb[0].mxu0
    %v2698 = vadd.f32 0.0, %v2697
    %v2699 = vpop.f32.mrb[0].mxu0
    %v2700 = vpop.f32.mrb[0].mxu0
    %v2701 = vadd.f32 0.0, %v2700
    %v2702 = vpop.f32.mrb[0].mxu0
    %2703 = vdwg.mxu0
    %2704 = vrot.lane.b32.xlu0 %v580, 64
    %v2705 = vpop.permute.xlu0 %2704
    %2706 = vrot.lane.b32.xlu0 %v581, 64
    %v2707 = vpop.permute.xlu0 %2706
    %v2711 = vsel %vm584, %v2578, 0
    %v2714 = vsel %vm584, %v2579, 0
    %2716 = vmatprep.subr.bf16.mxu0 0
    %2717 = vmatpush1.bf16.msra.mxu0 %v2705
    %2718 = vmatprep.subr.bf16.mxu0 0
    %2719 = vmatpush1.bf16.msra.mxu0 %v2707
    %2720 = vmatprep.subr.bf16.mxu0 0
    %2721 = vmatpush1.bf16.msra.mxu0 0
    %2722 = vmatprep.subr.bf16.mxu0 0
    %2723 = vmatpush1.bf16.msra.mxu0 0
    %2724 = vmatprep.subr.bf16.mxu0 0
    %2725 = vmatpush1.bf16.msra.mxu0 0
    %2726 = vmatprep.subr.bf16.mxu0 0
    %2727 = vmatpush1.bf16.msra.mxu0 0
    %2728 = vmatprep.subr.bf16.mxu0 0
    %2729 = vmatpush1.bf16.msra.mxu0 0
    %2730 = vmatprep.subr.bf16.mxu0 0
    %2731 = vmatpush1.bf16.msra.mxu0 0
    %2732 = vmatprep.subr.bf16.mxu0 0
    %2733 = vmatpush1.bf16.msra.mxu0 0
    %2734 = vmatprep.subr.bf16.mxu0 0
    %2735 = vmatpush1.bf16.msra.mxu0 0
    %2736 = vmatprep.subr.bf16.mxu0 0
    %2737 = vmatpush1.bf16.msra.mxu0 0
    %2738 = vmatprep.subr.bf16.mxu0 0
    %2739 = vmatpush1.bf16.msra.mxu0 0
    %2740 = vmatprep.subr.bf16.mxu0 0
    %2741 = vmatpush1.bf16.msra.mxu0 0
    %2742 = vmatprep.subr.bf16.mxu0 0
    %2743 = vmatpush1.bf16.msra.mxu0 0
    %2744 = vmatprep.subr.bf16.mxu0 0
    %2745 = vmatpush1.bf16.msra.mxu0 0
    %2746 = vmatprep.subr.bf16.mxu0 0
    %2747 = vmatpush1.bf16.msra.mxu0 0
    %2748 = vmatprep.mubr.bf16.mxu0 0
    %2749 = vmatmul.mubr.bf16.gmra.mrb[0].mxu0 %v2711
    %v2750 = vpop.f32.mrb[0].mxu0
    %v2751 = vadd.f32 0.0, %v2750
    %v2752 = vpop.f32.mrb[0].mxu0
    %v2753 = vpop.f32.mrb[0].mxu0
    %v2754 = vadd.f32 0.0, %v2753
    %v2755 = vpop.f32.mrb[0].mxu0
    %2756 = vmatprep.mubr.bf16.mxu0 0
    %2757 = vmatmul.mubr.bf16.gmra.mrb[0].mxu0 %v2714
    %v2758 = vpop.f32.mrb[0].mxu0
    %v2759 = vadd.f32 0.0, %v2758
    %v2760 = vpop.f32.mrb[0].mxu0
    %v2761 = vpop.f32.mrb[0].mxu0
    %v2762 = vadd.f32 0.0, %v2761
    %v2763 = vpop.f32.mrb[0].mxu0
    %2764 = vdwg.mxu0
    %2765 = vrot.lane.b32.xlu0 %v582, 64
    %v2766 = vpop.permute.xlu0 %2765
    %2767 = vrot.lane.b32.xlu0 %v583, 64
    %v2768 = vpop.permute.xlu0 %2767
    %v2772 = vsel %vm584, %v2580, 0
    %v2775 = vsel %vm584, %v2581, 0
    %2777 = vmatprep.subr.bf16.mxu0 0
    %2778 = vmatpush1.bf16.msra.mxu0 %v2766
    %2779 = vmatprep.subr.bf16.mxu0 0
    %2780 = vmatpush1.bf16.msra.mxu0 %v2768
    %2781 = vmatprep.subr.bf16.mxu0 0
    %2782 = vmatpush1.bf16.msra.mxu0 0
    %2783 = vmatprep.subr.bf16.mxu0 0
    %2784 = vmatpush1.bf16.msra.mxu0 0
    %2785 = vmatprep.subr.bf16.mxu0 0
    %2786 = vmatpush1.bf16.msra.mxu0 0
    %2787 = vmatprep.subr.bf16.mxu0 0
    %2788 = vmatpush1.bf16.msra.mxu0 0
    %2789 = vmatprep.subr.bf16.mxu0 0
    %2790 = vmatpush1.bf16.msra.mxu0 0
    %2791 = vmatprep.subr.bf16.mxu0 0
    %2792 = vmatpush1.bf16.msra.mxu0 0
    %2793 = vmatprep.subr.bf16.mxu0 0
    %2794 = vmatpush1.bf16.msra.mxu0 0
    %2795 = vmatprep.subr.bf16.mxu0 0
    %2796 = vmatpush1.bf16.msra.mxu0 0
    %2797 = vmatprep.subr.bf16.mxu0 0
    %2798 = vmatpush1.bf16.msra.mxu0 0
    %2799 = vmatprep.subr.bf16.mxu0 0
    %2800 = vmatpush1.bf16.msra.mxu0 0
    %2801 = vmatprep.subr.bf16.mxu0 0
    %2802 = vmatpush1.bf16.msra.mxu0 0
    %2803 = vmatprep.subr.bf16.mxu0 0
    %2804 = vmatpush1.bf16.msra.mxu0 0
    %2805 = vmatprep.subr.bf16.mxu0 0
    %2806 = vmatpush1.bf16.msra.mxu0 0
    %2807 = vmatprep.subr.bf16.mxu0 0
    %2808 = vmatpush1.bf16.msra.mxu0 0
    %2809 = vmatprep.mubr.bf16.mxu0 0
    %2810 = vmatmul.mubr.bf16.gmra.mrb[0].mxu0 %v2772
    %v2811 = vpop.f32.mrb[0].mxu0
    %v2812 = vadd.f32 0.0, %v2811
    %v2813 = vpop.f32.mrb[0].mxu0
    %v2814 = vpop.f32.mrb[0].mxu0
    %v2815 = vadd.f32 0.0, %v2814
    %v2816 = vpop.f32.mrb[0].mxu0
    %2817 = vmatprep.mubr.bf16.mxu0 0
    %2818 = vmatmul.mubr.bf16.gmra.mrb[0].mxu0 %v2775
    %v2819 = vpop.f32.mrb[0].mxu0
    %v2820 = vadd.f32 0.0, %v2819
    %v2821 = vpop.f32.mrb[0].mxu0
    %v2822 = vpop.f32.mrb[0].mxu0
    %v2823 = vadd.f32 0.0, %v2822
    %v2824 = vpop.f32.mrb[0].mxu0
    %2825 = vdwg.mxu0
    %v2826 = vpack.c.bf16 %v2632, %v2629
    %v2827 = vpack.c.bf16 %v2640, %v2637
    %v2828 = vpack.c.bf16 %v2693, %v2690
    %v2829 = vpack.c.bf16 %v2701, %v2698
    %v2830 = vpack.c.bf16 %v2754, %v2751
    %v2831 = vpack.c.bf16 %v2762, %v2759
    %v2832 = vpack.c.bf16 %v2815, %v2812
    %v2833 = vpack.c.bf16 %v2823, %v2820
    %2842 = vrot.lane.b32.xlu0 %v2826, 64
    %v2843 = vpop.permute.xlu0 %2842
    %2844 = vrot.lane.b32.xlu0 %v2827, 64
    %v2845 = vpop.permute.xlu0 %2844
    %2846 = vrot.lane.b32.xlu0 %v2828, 64
    %v2847 = vpop.permute.xlu0 %2846
    %2848 = vrot.lane.b32.xlu0 %v2829, 64
    %v2849 = vpop.permute.xlu0 %2848
    %2850 = vrot.lane.b32.xlu0 %v2830, 64
    %v2851 = vpop.permute.xlu0 %2850
    %2852 = vrot.lane.b32.xlu0 %v2831, 64
    %v2853 = vpop.permute.xlu0 %2852
    %2854 = vrot.lane.b32.xlu0 %v2832, 64
    %v2855 = vpop.permute.xlu0 %2854
    %2856 = vrot.lane.b32.xlu0 %v2833, 64
    %v2857 = vpop.permute.xlu0 %2856
    %vm2866 = vcmask 785920
    %2867 = vst.msk [vmem:[#allocation2] sm:$0xff] %vm2866, %v2843
    %2868 = vst.msk [vmem:[#allocation2 + $0x8] sm:$0xff] %vm2866, %v2845
    %2869 = vst.msk [vmem:[#allocation2 + $0x10] sm:$0xff] %vm2866, %v2847
    %2870 = vst.msk [vmem:[#allocation2 + $0x18] sm:$0xff] %vm2866, %v2849
    %2871 = vst.msk [vmem:[#allocation2 + $0x20] sm:$0xff] %vm2866, %v2851
    %2872 = vst.msk [vmem:[#allocation2 + $0x28] sm:$0xff] %vm2866, %v2853
    %2873 = vst.msk [vmem:[#allocation2 + $0x30] sm:$0xff] %vm2866, %v2855
    %2874 = vst.msk [vmem:[#allocation2 + $0x38] sm:$0xff] %vm2866, %v2857
    %2875 = vrot.lane.b32.xlu0 %v560, 32
    %v2876 = vpop.permute.xlu0 %2875
    %2877 = vrot.lane.b32.xlu0 %v561, 32
    %v2878 = vpop.permute.xlu0 %2877
    %2879 = vrot.lane.b32.xlu0 %v568, 32
    %v2880 = vpop.permute.xlu0 %2879
    %2881 = vrot.lane.b32.xlu0 %v569, 32
    %v2882 = vpop.permute.xlu0 %2881
    %v2884 = vsel %vm584, %v2876, 0
    %v2887 = vsel %vm584, %v2878, 0
    %v2890 = vsel %vm584, %v2880, 0
    %v2893 = vsel %vm584, %v2882, 0
    %2895 = vmatprep.subr.bf16.mxu0 0
    %2896 = vmatpush1.bf16.xpose.msra.mxu0 %v2890
    %2897 = vmatprep.subr.bf16.mxu0 0
    %2898 = vmatpush1.bf16.xpose.msra.mxu0 %v2893
    %2899 = vmatprep.subr.bf16.mxu0 0
    %2900 = vmatpush1.bf16.xpose.msra.mxu0 0
    %2901 = vmatprep.subr.bf16.mxu0 0
    %2902 = vmatpush1.bf16.xpose.msra.mxu0 0
    %2903 = vmatprep.subr.bf16.mxu0 0
    %2904 = vmatpush1.bf16.xpose.msra.mxu0 0
    %2905 = vmatprep.subr.bf16.mxu0 0
    %2906 = vmatpush1.bf16.xpose.msra.mxu0 0
    %2907 = vmatprep.subr.bf16.mxu0 0
    %2908 = vmatpush1.bf16.xpose.msra.mxu0 0
    %2909 = vmatprep.subr.bf16.mxu0 0
    %2910 = vmatpush1.bf16.xpose.msra.mxu0 0
    %2911 = vmatprep.subr.bf16.mxu0 0
    %2912 = vmatpush1.bf16.xpose.msra.mxu0 0
    %2913 = vmatprep.subr.bf16.mxu0 0
    %2914 = vmatpush1.bf16.xpose.msra.mxu0 0
    %2915 = vmatprep.subr.bf16.mxu0 0
    %2916 = vmatpush1.bf16.xpose.msra.mxu0 0
    %2917 = vmatprep.subr.bf16.mxu0 0
    %2918 = vmatpush1.bf16.xpose.msra.mxu0 0
    %2919 = vmatprep.subr.bf16.mxu0 0
    %2920 = vmatpush1.bf16.xpose.msra.mxu0 0
    %2921 = vmatprep.subr.bf16.mxu0 0
    %2922 = vmatpush1.bf16.xpose.msra.mxu0 0
    %2923 = vmatprep.subr.bf16.mxu0 0
    %2924 = vmatpush1.bf16.xpose.msra.mxu0 0
    %2925 = vmatprep.subr.bf16.mxu0 0
    %2926 = vmatpush1.bf16.xpose.msra.mxu0 0
    %2927 = vmatprep.mubr.bf16.mxu0 0
    %2928 = vmatmul.mubr.bf16.gmra.mrb[0].mxu0 %v2884
    %v2929 = vpop.f32.mrb[0].mxu0
    %v2930 = vadd.f32 0.0, %v2929
    %v2931 = vpop.f32.mrb[0].mxu0
    %v2932 = vpop.f32.mrb[0].mxu0
    %v2933 = vadd.f32 0.0, %v2932
    %v2934 = vpop.f32.mrb[0].mxu0
    %2935 = vmatprep.mubr.bf16.mxu0 0
    %2936 = vmatmul.mubr.bf16.gmra.mrb[0].mxu0 %v2887
    %v2937 = vpop.f32.mrb[0].mxu0
    %v2938 = vadd.f32 0.0, %v2937
    %v2939 = vpop.f32.mrb[0].mxu0
    %v2940 = vpop.f32.mrb[0].mxu0
    %v2941 = vadd.f32 0.0, %v2940
    %v2942 = vpop.f32.mrb[0].mxu0
    %2943 = vdwg.mxu0
    %2944 = vrot.lane.b32.xlu0 %v562, 32
    %v2945 = vpop.permute.xlu0 %2944
    %2946 = vrot.lane.b32.xlu0 %v563, 32
    %v2947 = vpop.permute.xlu0 %2946
    %2948 = vrot.lane.b32.xlu0 %v570, 32
    %v2949 = vpop.permute.xlu0 %2948
    %2950 = vrot.lane.b32.xlu0 %v571, 32
    %v2951 = vpop.permute.xlu0 %2950
    %v2953 = vsel %vm584, %v2945, 0
    %v2956 = vsel %vm584, %v2947, 0
    %v2959 = vsel %vm584, %v2949, 0
    %v2962 = vsel %vm584, %v2951, 0
    %2964 = vmatprep.subr.bf16.mxu0 0
    %2965 = vmatpush1.bf16.xpose.msra.mxu0 %v2959
    %2966 = vmatprep.subr.bf16.mxu0 0
    %2967 = vmatpush1.bf16.xpose.msra.mxu0 %v2962
    %2968 = vmatprep.subr.bf16.mxu0 0
    %2969 = vmatpush1.bf16.xpose.msra.mxu0 0
    %2970 = vmatprep.subr.bf16.mxu0 0
    %2971 = vmatpush1.bf16.xpose.msra.mxu0 0
    %2972 = vmatprep.subr.bf16.mxu0 0
    %2973 = vmatpush1.bf16.xpose.msra.mxu0 0
    %2974 = vmatprep.subr.bf16.mxu0 0
    %2975 = vmatpush1.bf16.xpose.msra.mxu0 0
    %2976 = vmatprep.subr.bf16.mxu0 0
    %2977 = vmatpush1.bf16.xpose.msra.mxu0 0
    %2978 = vmatprep.subr.bf16.mxu0 0
    %2979 = vmatpush1.bf16.xpose.msra.mxu0 0
    %2980 = vmatprep.subr.bf16.mxu0 0
    %2981 = vmatpush1.bf16.xpose.msra.mxu0 0
    %2982 = vmatprep.subr.bf16.mxu0 0
    %2983 = vmatpush1.bf16.xpose.msra.mxu0 0
    %2984 = vmatprep.subr.bf16.mxu0 0
    %2985 = vmatpush1.bf16.xpose.msra.mxu0 0
    %2986 = vmatprep.subr.bf16.mxu0 0
    %2987 = vmatpush1.bf16.xpose.msra.mxu0 0
    %2988 = vmatprep.subr.bf16.mxu0 0
    %2989 = vmatpush1.bf16.xpose.msra.mxu0 0
    %2990 = vmatprep.subr.bf16.mxu0 0
    %2991 = vmatpush1.bf16.xpose.msra.mxu0 0
    %2992 = vmatprep.subr.bf16.mxu0 0
    %2993 = vmatpush1.bf16.xpose.msra.mxu0 0
    %2994 = vmatprep.subr.bf16.mxu0 0
    %2995 = vmatpush1.bf16.xpose.msra.mxu0 0
    %2996 = vmatprep.mubr.bf16.mxu0 0
    %2997 = vmatmul.mubr.bf16.gmra.mrb[0].mxu0 %v2953
    %v2998 = vpop.f32.mrb[0].mxu0
    %v2999 = vadd.f32 0.0, %v2998
    %v3000 = vpop.f32.mrb[0].mxu0
    %v3001 = vpop.f32.mrb[0].mxu0
    %v3002 = vadd.f32 0.0, %v3001
    %v3003 = vpop.f32.mrb[0].mxu0
    %3004 = vmatprep.mubr.bf16.mxu0 0
    %3005 = vmatmul.mubr.bf16.gmra.mrb[0].mxu0 %v2956
    %v3006 = vpop.f32.mrb[0].mxu0
    %v3007 = vadd.f32 0.0, %v3006
    %v3008 = vpop.f32.mrb[0].mxu0
    %v3009 = vpop.f32.mrb[0].mxu0
    %v3010 = vadd.f32 0.0, %v3009
    %v3011 = vpop.f32.mrb[0].mxu0
    %3012 = vdwg.mxu0
    %3013 = vrot.lane.b32.xlu0 %v564, 32
    %v3014 = vpop.permute.xlu0 %3013
    %3015 = vrot.lane.b32.xlu0 %v565, 32
    %v3016 = vpop.permute.xlu0 %3015
    %3017 = vrot.lane.b32.xlu0 %v572, 32
    %v3018 = vpop.permute.xlu0 %3017
    %3019 = vrot.lane.b32.xlu0 %v573, 32
    %v3020 = vpop.permute.xlu0 %3019
    %v3022 = vsel %vm584, %v3014, 0
    %v3025 = vsel %vm584, %v3016, 0
    %v3028 = vsel %vm584, %v3018, 0
    %v3031 = vsel %vm584, %v3020, 0
    %3033 = vmatprep.subr.bf16.mxu0 0
    %3034 = vmatpush1.bf16.xpose.msra.mxu0 %v3028
    %3035 = vmatprep.subr.bf16.mxu0 0
    %3036 = vmatpush1.bf16.xpose.msra.mxu0 %v3031
    %3037 = vmatprep.subr.bf16.mxu0 0
    %3038 = vmatpush1.bf16.xpose.msra.mxu0 0
    %3039 = vmatprep.subr.bf16.mxu0 0
    %3040 = vmatpush1.bf16.xpose.msra.mxu0 0
    %3041 = vmatprep.subr.bf16.mxu0 0
    %3042 = vmatpush1.bf16.xpose.msra.mxu0 0
    %3043 = vmatprep.subr.bf16.mxu0 0
    %3044 = vmatpush1.bf16.xpose.msra.mxu0 0
    %3045 = vmatprep.subr.bf16.mxu0 0
    %3046 = vmatpush1.bf16.xpose.msra.mxu0 0
    %3047 = vmatprep.subr.bf16.mxu0 0
    %3048 = vmatpush1.bf16.xpose.msra.mxu0 0
    %3049 = vmatprep.subr.bf16.mxu0 0
    %3050 = vmatpush1.bf16.xpose.msra.mxu0 0
    %3051 = vmatprep.subr.bf16.mxu0 0
    %3052 = vmatpush1.bf16.xpose.msra.mxu0 0
    %3053 = vmatprep.subr.bf16.mxu0 0
    %3054 = vmatpush1.bf16.xpose.msra.mxu0 0
    %3055 = vmatprep.subr.bf16.mxu0 0
    %3056 = vmatpush1.bf16.xpose.msra.mxu0 0
    %3057 = vmatprep.subr.bf16.mxu0 0
    %3058 = vmatpush1.bf16.xpose.msra.mxu0 0
    %3059 = vmatprep.subr.bf16.mxu0 0
    %3060 = vmatpush1.bf16.xpose.msra.mxu0 0
    %3061 = vmatprep.subr.bf16.mxu0 0
    %3062 = vmatpush1.bf16.xpose.msra.mxu0 0
    %3063 = vmatprep.subr.bf16.mxu0 0
    %3064 = vmatpush1.bf16.xpose.msra.mxu0 0
    %3065 = vmatprep.mubr.bf16.mxu0 0
    %3066 = vmatmul.mubr.bf16.gmra.mrb[0].mxu0 %v3022
    %v3067 = vpop.f32.mrb[0].mxu0
    %v3068 = vadd.f32 0.0, %v3067
    %v3069 = vpop.f32.mrb[0].mxu0
    %v3070 = vpop.f32.mrb[0].mxu0
    %v3071 = vadd.f32 0.0, %v3070
    %v3072 = vpop.f32.mrb[0].mxu0
    %3073 = vmatprep.mubr.bf16.mxu0 0
    %3074 = vmatmul.mubr.bf16.gmra.mrb[0].mxu0 %v3025
    %v3075 = vpop.f32.mrb[0].mxu0
    %v3076 = vadd.f32 0.0, %v3075
    %v3077 = vpop.f32.mrb[0].mxu0
    %v3078 = vpop.f32.mrb[0].mxu0
    %v3079 = vadd.f32 0.0, %v3078
    %v3080 = vpop.f32.mrb[0].mxu0
    %3081 = vdwg.mxu0
    %3082 = vrot.lane.b32.xlu0 %v566, 32
    %v3083 = vpop.permute.xlu0 %3082
    %3084 = vrot.lane.b32.xlu0 %v567, 32
    %v3085 = vpop.permute.xlu0 %3084
    %3086 = vrot.lane.b32.xlu0 %v574, 32
    %v3087 = vpop.permute.xlu0 %3086
    %3088 = vrot.lane.b32.xlu0 %v575, 32
    %v3089 = vpop.permute.xlu0 %3088
    %v3091 = vsel %vm584, %v3083, 0
    %v3094 = vsel %vm584, %v3085, 0
    %v3097 = vsel %vm584, %v3087, 0
    %v3100 = vsel %vm584, %v3089, 0
    %3102 = vmatprep.subr.bf16.mxu0 0
    %3103 = vmatpush1.bf16.xpose.msra.mxu0 %v3097
    %3104 = vmatprep.subr.bf16.mxu0 0
    %3105 = vmatpush1.bf16.xpose.msra.mxu0 %v3100
    %3106 = vmatprep.subr.bf16.mxu0 0
    %3107 = vmatpush1.bf16.xpose.msra.mxu0 0
    %3108 = vmatprep.subr.bf16.mxu0 0
    %3109 = vmatpush1.bf16.xpose.msra.mxu0 0
    %3110 = vmatprep.subr.bf16.mxu0 0
    %3111 = vmatpush1.bf16.xpose.msra.mxu0 0
    %3112 = vmatprep.subr.bf16.mxu0 0
    %3113 = vmatpush1.bf16.xpose.msra.mxu0 0
    %3114 = vmatprep.subr.bf16.mxu0 0
    %3115 = vmatpush1.bf16.xpose.msra.mxu0 0
    %3116 = vmatprep.subr.bf16.mxu0 0
    %3117 = vmatpush1.bf16.xpose.msra.mxu0 0
    %3118 = vmatprep.subr.bf16.mxu0 0
    %3119 = vmatpush1.bf16.xpose.msra.mxu0 0
    %3120 = vmatprep.subr.bf16.mxu0 0
    %3121 = vmatpush1.bf16.xpose.msra.mxu0 0
    %3122 = vmatprep.subr.bf16.mxu0 0
    %3123 = vmatpush1.bf16.xpose.msra.mxu0 0
    %3124 = vmatprep.subr.bf16.mxu0 0
    %3125 = vmatpush1.bf16.xpose.msra.mxu0 0
    %3126 = vmatprep.subr.bf16.mxu0 0
    %3127 = vmatpush1.bf16.xpose.msra.mxu0 0
    %3128 = vmatprep.subr.bf16.mxu0 0
    %3129 = vmatpush1.bf16.xpose.msra.mxu0 0
    %3130 = vmatprep.subr.bf16.mxu0 0
    %3131 = vmatpush1.bf16.xpose.msra.mxu0 0
    %3132 = vmatprep.subr.bf16.mxu0 0
    %3133 = vmatpush1.bf16.xpose.msra.mxu0 0
    %3134 = vmatprep.mubr.bf16.mxu0 0
    %3135 = vmatmul.mubr.bf16.gmra.mrb[0].mxu0 %v3091
    %v3136 = vpop.f32.mrb[0].mxu0
    %v3137 = vadd.f32 0.0, %v3136
    %v3138 = vpop.f32.mrb[0].mxu0
    %v3139 = vpop.f32.mrb[0].mxu0
    %v3140 = vadd.f32 0.0, %v3139
    %v3141 = vpop.f32.mrb[0].mxu0
    %3142 = vmatprep.mubr.bf16.mxu0 0
    %3143 = vmatmul.mubr.bf16.gmra.mrb[0].mxu0 %v3094
    %v3144 = vpop.f32.mrb[0].mxu0
    %v3145 = vadd.f32 0.0, %v3144
    %v3146 = vpop.f32.mrb[0].mxu0
    %v3147 = vpop.f32.mrb[0].mxu0
    %v3148 = vadd.f32 0.0, %v3147
    %v3149 = vpop.f32.mrb[0].mxu0
    %3150 = vdwg.mxu0
    %v3151 = vmul.f32 %v2930, 0.28867513
    %v3152 = vmul.f32 %v2933, 0.28867513
    %v3153 = vmul.f32 %v2938, 0.28867513
    %v3154 = vmul.f32 %v2941, 0.28867513
    %v3155 = vmul.f32 %v2999, 0.28867513
    %v3156 = vmul.f32 %v3002, 0.28867513
    %v3157 = vmul.f32 %v3007, 0.28867513
    %v3158 = vmul.f32 %v3010, 0.28867513
    %v3159 = vmul.f32 %v3068, 0.28867513
    %v3160 = vmul.f32 %v3071, 0.28867513
    %v3161 = vmul.f32 %v3076, 0.28867513
    %v3162 = vmul.f32 %v3079, 0.28867513
    %v3163 = vmul.f32 %v3137, 0.28867513
    %v3164 = vmul.f32 %v3140, 0.28867513
    %v3165 = vmul.f32 %v3145, 0.28867513
    %v3166 = vmul.f32 %v3148, 0.28867513
    %v3167 = vadd.f32 %v3151, %v556
    %v3168 = vadd.f32 %v3152, %v557
    %v3169 = vadd.f32 %v3153, %v558
    %v3170 = vadd.f32 %v3154, %v559
    %v3171 = vadd.f32 %v3155, %v556
    %v3172 = vadd.f32 %v3156, %v557
    %v3173 = vadd.f32 %v3157, %v558
    %v3174 = vadd.f32 %v3158, %v559
    %v3175 = vadd.f32 %v3159, %v556
    %v3176 = vadd.f32 %v3160, %v557
    %v3177 = vadd.f32 %v3161, %v558
    %v3178 = vadd.f32 %v3162, %v559
    %v3179 = vadd.f32 %v3163, %v556
    %v3180 = vadd.f32 %v3164, %v557
    %v3181 = vadd.f32 %v3165, %v558
    %v3182 = vadd.f32 %v3166, %v559
    %v3183 = vsel %vm584, %v3167, -inf
    %3184 = vmax.xlane.f32.xlu0 %v3183
    %v3185 = vpop.xlane.xlu0 %3184
    %v3186 = vsel %vm584, %v3168, -inf
    %3187 = vmax.xlane.f32.xlu0 %v3186
    %v3188 = vpop.xlane.xlu0 %3187
    %v3189 = vsel %vm584, %v3169, -inf
    %3190 = vmax.xlane.f32.xlu0 %v3189
    %v3191 = vpop.xlane.xlu0 %3190
    %v3192 = vsel %vm584, %v3170, -inf
    %3193 = vmax.xlane.f32.xlu0 %v3192
    %v3194 = vpop.xlane.xlu0 %3193
    %v3195 = vsel %vm584, %v3171, -inf
    %3196 = vmax.xlane.f32.xlu0 %v3195
    %v3197 = vpop.xlane.xlu0 %3196
    %v3198 = vsel %vm584, %v3172, -inf
    %3199 = vmax.xlane.f32.xlu0 %v3198
    %v3200 = vpop.xlane.xlu0 %3199
    %v3201 = vsel %vm584, %v3173, -inf
    %3202 = vmax.xlane.f32.xlu0 %v3201
    %v3203 = vpop.xlane.xlu0 %3202
    %v3204 = vsel %vm584, %v3174, -inf
    %3205 = vmax.xlane.f32.xlu0 %v3204
    %v3206 = vpop.xlane.xlu0 %3205
    %v3207 = vsel %vm584, %v3175, -inf
    %3208 = vmax.xlane.f32.xlu0 %v3207
    %v3209 = vpop.xlane.xlu0 %3208
    %v3210 = vsel %vm584, %v3176, -inf
    %3211 = vmax.xlane.f32.xlu0 %v3210
    %v3212 = vpop.xlane.xlu0 %3211
    %v3213 = vsel %vm584, %v3177, -inf
    %3214 = vmax.xlane.f32.xlu0 %v3213
    %v3215 = vpop.xlane.xlu0 %3214
    %v3216 = vsel %vm584, %v3178, -inf
    %3217 = vmax.xlane.f32.xlu0 %v3216
    %v3218 = vpop.xlane.xlu0 %3217
    %v3219 = vsel %vm584, %v3179, -inf
    %3220 = vmax.xlane.f32.xlu0 %v3219
    %v3221 = vpop.xlane.xlu0 %3220
    %v3222 = vsel %vm584, %v3180, -inf
    %3223 = vmax.xlane.f32.xlu0 %v3222
    %v3224 = vpop.xlane.xlu0 %3223
    %v3225 = vsel %vm584, %v3181, -inf
    %3226 = vmax.xlane.f32.xlu0 %v3225
    %v3227 = vpop.xlane.xlu0 %3226
    %v3228 = vsel %vm584, %v3182, -inf
    %3229 = vmax.xlane.f32.xlu0 %v3228
    %v3230 = vpop.xlane.xlu0 %3229
    %v3231 = vsub.f32 %v3167, %v3185
    %v3232 = vsub.f32 %v3168, %v3188
    %v3233 = vsub.f32 %v3169, %v3191
    %v3234 = vsub.f32 %v3170, %v3194
    %v3235 = vsub.f32 %v3171, %v3197
    %v3236 = vsub.f32 %v3172, %v3200
    %v3237 = vsub.f32 %v3173, %v3203
    %v3238 = vsub.f32 %v3174, %v3206
    %v3239 = vsub.f32 %v3175, %v3209
    %v3240 = vsub.f32 %v3176, %v3212
    %v3241 = vsub.f32 %v3177, %v3215
    %v3242 = vsub.f32 %v3178, %v3218
    %v3243 = vsub.f32 %v3179, %v3221
    %v3244 = vsub.f32 %v3180, %v3224
    %v3245 = vsub.f32 %v3181, %v3227
    %v3246 = vsub.f32 %v3182, %v3230
    %v3247 = vmul.f32 %v3231, 1.442695
    %v3248 = vpow.pop %v3247
    %v3249 = vmul.f32 %v3232, 1.442695
    %v3250 = vpow.pop %v3249
    %v3251 = vmul.f32 %v3233, 1.442695
    %v3252 = vpow.pop %v3251
    %v3253 = vmul.f32 %v3234, 1.442695
    %v3254 = vpow.pop %v3253
    %v3255 = vmul.f32 %v3235, 1.442695
    %v3256 = vpow.pop %v3255
    %v3257 = vmul.f32 %v3236, 1.442695
    %v3258 = vpow.pop %v3257
    %v3259 = vmul.f32 %v3237, 1.442695
    %v3260 = vpow.pop %v3259
    %v3261 = vmul.f32 %v3238, 1.442695
    %v3262 = vpow.pop %v3261
    %v3263 = vmul.f32 %v3239, 1.442695
    %v3264 = vpow.pop %v3263
    %v3265 = vmul.f32 %v3240, 1.442695
    %v3266 = vpow.pop %v3265
    %v3267 = vmul.f32 %v3241, 1.442695
    %v3268 = vpow.pop %v3267
    %v3269 = vmul.f32 %v3242, 1.442695
    %v3270 = vpow.pop %v3269
    %v3271 = vmul.f32 %v3243, 1.442695
    %v3272 = vpow.pop %v3271
    %v3273 = vmul.f32 %v3244, 1.442695
    %v3274 = vpow.pop %v3273
    %v3275 = vmul.f32 %v3245, 1.442695
    %v3276 = vpow.pop %v3275
    %v3277 = vmul.f32 %v3246, 1.442695
    %v3278 = vpow.pop %v3277
    %v3279 = vsel %vm584, %v3248, 0.0
    %3280 = vadd.xlane.f32.xlu0 %v3279
    %v3281 = vpop.xlane.xlu0 %3280
    %v3282 = vsel %vm584, %v3250, 0.0
    %3283 = vadd.xlane.f32.xlu0 %v3282
    %v3284 = vpop.xlane.xlu0 %3283
    %v3285 = vsel %vm584, %v3252, 0.0
    %3286 = vadd.xlane.f32.xlu0 %v3285
    %v3287 = vpop.xlane.xlu0 %3286
    %v3288 = vsel %vm584, %v3254, 0.0
    %3289 = vadd.xlane.f32.xlu0 %v3288
    %v3290 = vpop.xlane.xlu0 %3289
    %v3291 = vsel %vm584, %v3256, 0.0
    %3292 = vadd.xlane.f32.xlu0 %v3291
    %v3293 = vpop.xlane.xlu0 %3292
    %v3294 = vsel %vm584, %v3258, 0.0
    %3295 = vadd.xlane.f32.xlu0 %v3294
    %v3296 = vpop.xlane.xlu0 %3295
    %v3297 = vsel %vm584, %v3260, 0.0
    %3298 = vadd.xlane.f32.xlu0 %v3297
    %v3299 = vpop.xlane.xlu0 %3298
    %v3300 = vsel %vm584, %v3262, 0.0
    %3301 = vadd.xlane.f32.xlu0 %v3300
    %v3302 = vpop.xlane.xlu0 %3301
    %v3303 = vsel %vm584, %v3264, 0.0
    %3304 = vadd.xlane.f32.xlu0 %v3303
    %v3305 = vpop.xlane.xlu0 %3304
    %v3306 = vsel %vm584, %v3266, 0.0
    %3307 = vadd.xlane.f32.xlu0 %v3306
    %v3308 = vpop.xlane.xlu0 %3307
    %v3309 = vsel %vm584, %v3268, 0.0
    %3310 = vadd.xlane.f32.xlu0 %v3309
    %v3311 = vpop.xlane.xlu0 %3310
    %v3312 = vsel %vm584, %v3270, 0.0
    %3313 = vadd.xlane.f32.xlu0 %v3312
    %v3314 = vpop.xlane.xlu0 %3313
    %v3315 = vsel %vm584, %v3272, 0.0
    %3316 = vadd.xlane.f32.xlu0 %v3315
    %v3317 = vpop.xlane.xlu0 %3316
    %v3318 = vsel %vm584, %v3274, 0.0
    %3319 = vadd.xlane.f32.xlu0 %v3318
    %v3320 = vpop.xlane.xlu0 %3319
    %v3321 = vsel %vm584, %v3276, 0.0
    %3322 = vadd.xlane.f32.xlu0 %v3321
    %v3323 = vpop.xlane.xlu0 %3322
    %v3324 = vsel %vm584, %v3278, 0.0
    %3325 = vadd.xlane.f32.xlu0 %v3324
    %v3326 = vpop.xlane.xlu0 %3325
    %v3327 = vrcp.pop %v3281
    %v3328 = vrcp.pop %v3284
    %v3329 = vrcp.pop %v3287
    %v3330 = vrcp.pop %v3290
    %v3331 = vrcp.pop %v3293
    %v3332 = vrcp.pop %v3296
    %v3333 = vrcp.pop %v3299
    %v3334 = vrcp.pop %v3302
    %v3335 = vrcp.pop %v3305
    %v3336 = vrcp.pop %v3308
    %v3337 = vrcp.pop %v3311
    %v3338 = vrcp.pop %v3314
    %v3339 = vrcp.pop %v3317
    %v3340 = vrcp.pop %v3320
    %v3341 = vrcp.pop %v3323
    %v3342 = vrcp.pop %v3326
    %v3343 = vmul.f32 %v3248, %v3327
    %v3344 = vmul.f32 %v3250, %v3328
    %v3345 = vmul.f32 %v3252, %v3329
    %v3346 = vmul.f32 %v3254, %v3330
    %v3347 = vmul.f32 %v3256, %v3331
    %v3348 = vmul.f32 %v3258, %v3332
    %v3349 = vmul.f32 %v3260, %v3333
    %v3350 = vmul.f32 %v3262, %v3334
    %v3351 = vmul.f32 %v3264, %v3335
    %v3352 = vmul.f32 %v3266, %v3336
    %v3353 = vmul.f32 %v3268, %v3337
    %v3354 = vmul.f32 %v3270, %v3338
    %v3355 = vmul.f32 %v3272, %v3339
    %v3356 = vmul.f32 %v3274, %v3340
    %v3357 = vmul.f32 %v3276, %v3341
    %v3358 = vmul.f32 %v3278, %v3342
    %v3359 = vpack.c.bf16 %v3344, %v3343
    %v3360 = vpack.c.bf16 %v3346, %v3345
    %v3361 = vpack.c.bf16 %v3348, %v3347
    %v3362 = vpack.c.bf16 %v3350, %v3349
    %v3363 = vpack.c.bf16 %v3352, %v3351
    %v3364 = vpack.c.bf16 %v3354, %v3353
    %v3365 = vpack.c.bf16 %v3356, %v3355
    %v3366 = vpack.c.bf16 %v3358, %v3357
    %3367 = vrot.lane.b32.xlu0 %v576, 32
    %v3368 = vpop.permute.xlu0 %3367
    %3369 = vrot.lane.b32.xlu0 %v577, 32
    %v3370 = vpop.permute.xlu0 %3369
    %v3374 = vsel %vm584, %v3359, 0
    %v3377 = vsel %vm584, %v3360, 0
    %3379 = vmatprep.subr.bf16.mxu0 0
    %3380 = vmatpush1.bf16.msra.mxu0 %v3368
    %3381 = vmatprep.subr.bf16.mxu0 0
    %3382 = vmatpush1.bf16.msra.mxu0 %v3370
    %3383 = vmatprep.subr.bf16.mxu0 0
    %3384 = vmatpush1.bf16.msra.mxu0 0
    %3385 = vmatprep.subr.bf16.mxu0 0
    %3386 = vmatpush1.bf16.msra.mxu0 0
    %3387 = vmatprep.subr.bf16.mxu0 0
    %3388 = vmatpush1.bf16.msra.mxu0 0
    %3389 = vmatprep.subr.bf16.mxu0 0
    %3390 = vmatpush1.bf16.msra.mxu0 0
    %3391 = vmatprep.subr.bf16.mxu0 0
    %3392 = vmatpush1.bf16.msra.mxu0 0
    %3393 = vmatprep.subr.bf16.mxu0 0
    %3394 = vmatpush1.bf16.msra.mxu0 0
    %3395 = vmatprep.subr.bf16.mxu0 0
    %3396 = vmatpush1.bf16.msra.mxu0 0
    %3397 = vmatprep.subr.bf16.mxu0 0
    %3398 = vmatpush1.bf16.msra.mxu0 0
    %3399 = vmatprep.subr.bf16.mxu0 0
    %3400 = vmatpush1.bf16.msra.mxu0 0
    %3401 = vmatprep.subr.bf16.mxu0 0
    %3402 = vmatpush1.bf16.msra.mxu0 0
    %3403 = vmatprep.subr.bf16.mxu0 0
    %3404 = vmatpush1.bf16.msra.mxu0 0
    %3405 = vmatprep.subr.bf16.mxu0 0
    %3406 = vmatpush1.bf16.msra.mxu0 0
    %3407 = vmatprep.subr.bf16.mxu0 0
    %3408 = vmatpush1.bf16.msra.mxu0 0
    %3409 = vmatprep.subr.bf16.mxu0 0
    %3410 = vmatpush1.bf16.msra.mxu0 0
    %3411 = vmatprep.mubr.bf16.mxu0 0
    %3412 = vmatmul.mubr.bf16.gmra.mrb[0].mxu0 %v3374
    %v3413 = vpop.f32.mrb[0].mxu0
    %v3414 = vadd.f32 0.0, %v3413
    %v3415 = vpop.f32.mrb[0].mxu0
    %v3416 = vpop.f32.mrb[0].mxu0
    %v3417 = vadd.f32 0.0, %v3416
    %v3418 = vpop.f32.mrb[0].mxu0
    %3419 = vmatprep.mubr.bf16.mxu0 0
    %3420 = vmatmul.mubr.bf16.gmra.mrb[0].mxu0 %v3377
    %v3421 = vpop.f32.mrb[0].mxu0
    %v3422 = vadd.f32 0.0, %v3421
    %v3423 = vpop.f32.mrb[0].mxu0
    %v3424 = vpop.f32.mrb[0].mxu0
    %v3425 = vadd.f32 0.0, %v3424
    %v3426 = vpop.f32.mrb[0].mxu0
    %3427 = vdwg.mxu0
    %3428 = vrot.lane.b32.xlu0 %v578, 32
    %v3429 = vpop.permute.xlu0 %3428
    %3430 = vrot.lane.b32.xlu0 %v579, 32
    %v3431 = vpop.permute.xlu0 %3430
    %v3435 = vsel %vm584, %v3361, 0
    %v3438 = vsel %vm584, %v3362, 0
    %3440 = vmatprep.subr.bf16.mxu0 0
    %3441 = vmatpush1.bf16.msra.mxu0 %v3429
    %3442 = vmatprep.subr.bf16.mxu0 0
    %3443 = vmatpush1.bf16.msra.mxu0 %v3431
    %3444 = vmatprep.subr.bf16.mxu0 0
    %3445 = vmatpush1.bf16.msra.mxu0 0
    %3446 = vmatprep.subr.bf16.mxu0 0
    %3447 = vmatpush1.bf16.msra.mxu0 0
    %3448 = vmatprep.subr.bf16.mxu0 0
    %3449 = vmatpush1.bf16.msra.mxu0 0
    %3450 = vmatprep.subr.bf16.mxu0 0
    %3451 = vmatpush1.bf16.msra.mxu0 0
    %3452 = vmatprep.subr.bf16.mxu0 0
    %3453 = vmatpush1.bf16.msra.mxu0 0
    %3454 = vmatprep.subr.bf16.mxu0 0
    %3455 = vmatpush1.bf16.msra.mxu0 0
    %3456 = vmatprep.subr.bf16.mxu0 0
    %3457 = vmatpush1.bf16.msra.mxu0 0
    %3458 = vmatprep.subr.bf16.mxu0 0
    %3459 = vmatpush1.bf16.msra.mxu0 0
    %3460 = vmatprep.subr.bf16.mxu0 0
    %3461 = vmatpush1.bf16.msra.mxu0 0
    %3462 = vmatprep.subr.bf16.mxu0 0
    %3463 = vmatpush1.bf16.msra.mxu0 0
    %3464 = vmatprep.subr.bf16.mxu0 0
    %3465 = vmatpush1.bf16.msra.mxu0 0
    %3466 = vmatprep.subr.bf16.mxu0 0
    %3467 = vmatpush1.bf16.msra.mxu0 0
    %3468 = vmatprep.subr.bf16.mxu0 0
    %3469 = vmatpush1.bf16.msra.mxu0 0
    %3470 = vmatprep.subr.bf16.mxu0 0
    %3471 = vmatpush1.bf16.msra.mxu0 0
    %3472 = vmatprep.mubr.bf16.mxu0 0
    %3473 = vmatmul.mubr.bf16.gmra.mrb[0].mxu0 %v3435
    %v3474 = vpop.f32.mrb[0].mxu0
    %v3475 = vadd.f32 0.0, %v3474
    %v3476 = vpop.f32.mrb[0].mxu0
    %v3477 = vpop.f32.mrb[0].mxu0
    %v3478 = vadd.f32 0.0, %v3477
    %v3479 = vpop.f32.mrb[0].mxu0
    %3480 = vmatprep.mubr.bf16.mxu0 0
    %3481 = vmatmul.mubr.bf16.gmra.mrb[0].mxu0 %v3438
    %v3482 = vpop.f32.mrb[0].mxu0
    %v3483 = vadd.f32 0.0, %v3482
    %v3484 = vpop.f32.mrb[0].mxu0
    %v3485 = vpop.f32.mrb[0].mxu0
    %v3486 = vadd.f32 0.0, %v3485
    %v3487 = vpop.f32.mrb[0].mxu0
    %3488 = vdwg.mxu0
    %3489 = vrot.lane.b32.xlu0 %v580, 32
    %v3490 = vpop.permute.xlu0 %3489
    %3491 = vrot.lane.b32.xlu0 %v581, 32
    %v3492 = vpop.permute.xlu0 %3491
    %v3496 = vsel %vm584, %v3363, 0
    %v3499 = vsel %vm584, %v3364, 0
    %3501 = vmatprep.subr.bf16.mxu0 0
    %3502 = vmatpush1.bf16.msra.mxu0 %v3490
    %3503 = vmatprep.subr.bf16.mxu0 0
    %3504 = vmatpush1.bf16.msra.mxu0 %v3492
    %3505 = vmatprep.subr.bf16.mxu0 0
    %3506 = vmatpush1.bf16.msra.mxu0 0
    %3507 = vmatprep.subr.bf16.mxu0 0
    %3508 = vmatpush1.bf16.msra.mxu0 0
    %3509 = vmatprep.subr.bf16.mxu0 0
    %3510 = vmatpush1.bf16.msra.mxu0 0
    %3511 = vmatprep.subr.bf16.mxu0 0
    %3512 = vmatpush1.bf16.msra.mxu0 0
    %3513 = vmatprep.subr.bf16.mxu0 0
    %3514 = vmatpush1.bf16.msra.mxu0 0
    %3515 = vmatprep.subr.bf16.mxu0 0
    %3516 = vmatpush1.bf16.msra.mxu0 0
    %3517 = vmatprep.subr.bf16.mxu0 0
    %3518 = vmatpush1.bf16.msra.mxu0 0
    %3519 = vmatprep.subr.bf16.mxu0 0
    %3520 = vmatpush1.bf16.msra.mxu0 0
    %3521 = vmatprep.subr.bf16.mxu0 0
    %3522 = vmatpush1.bf16.msra.mxu0 0
    %3523 = vmatprep.subr.bf16.mxu0 0
    %3524 = vmatpush1.bf16.msra.mxu0 0
    %3525 = vmatprep.subr.bf16.mxu0 0
    %3526 = vmatpush1.bf16.msra.mxu0 0
    %3527 = vmatprep.subr.bf16.mxu0 0
    %3528 = vmatpush1.bf16.msra.mxu0 0
    %3529 = vmatprep.subr.bf16.mxu0 0
    %3530 = vmatpush1.bf16.msra.mxu0 0
    %3531 = vmatprep.subr.bf16.mxu0 0
    %3532 = vmatpush1.bf16.msra.mxu0 0
    %3533 = vmatprep.mubr.bf16.mxu0 0
    %3534 = vmatmul.mubr.bf16.gmra.mrb[0].mxu0 %v3496
    %v3535 = vpop.f32.mrb[0].mxu0
    %v3536 = vadd.f32 0.0, %v3535
    %v3537 = vpop.f32.mrb[0].mxu0
    %v3538 = vpop.f32.mrb[0].mxu0
    %v3539 = vadd.f32 0.0, %v3538
    %v3540 = vpop.f32.mrb[0].mxu0
    %3541 = vmatprep.mubr.bf16.mxu0 0
    %3542 = vmatmul.mubr.bf16.gmra.mrb[0].mxu0 %v3499
    %v3543 = vpop.f32.mrb[0].mxu0
    %v3544 = vadd.f32 0.0, %v3543
    %v3545 = vpop.f32.mrb[0].mxu0
    %v3546 = vpop.f32.mrb[0].mxu0
    %v3547 = vadd.f32 0.0, %v3546
    %v3548 = vpop.f32.mrb[0].mxu0
    %3549 = vdwg.mxu0
    %3550 = vrot.lane.b32.xlu0 %v582, 32
    %v3551 = vpop.permute.xlu0 %3550
    %3552 = vrot.lane.b32.xlu0 %v583, 32
    %v3553 = vpop.permute.xlu0 %3552
    %v3557 = vsel %vm584, %v3365, 0
    %v3560 = vsel %vm584, %v3366, 0
    %3562 = vmatprep.subr.bf16.mxu0 0
    %3563 = vmatpush1.bf16.msra.mxu0 %v3551
    %3564 = vmatprep.subr.bf16.mxu0 0
    %3565 = vmatpush1.bf16.msra.mxu0 %v3553
    %3566 = vmatprep.subr.bf16.mxu0 0
    %3567 = vmatpush1.bf16.msra.mxu0 0
    %3568 = vmatprep.subr.bf16.mxu0 0
    %3569 = vmatpush1.bf16.msra.mxu0 0
    %3570 = vmatprep.subr.bf16.mxu0 0
    %3571 = vmatpush1.bf16.msra.mxu0 0
    %3572 = vmatprep.subr.bf16.mxu0 0
    %3573 = vmatpush1.bf16.msra.mxu0 0
    %3574 = vmatprep.subr.bf16.mxu0 0
    %3575 = vmatpush1.bf16.msra.mxu0 0
    %3576 = vmatprep.subr.bf16.mxu0 0
    %3577 = vmatpush1.bf16.msra.mxu0 0
    %3578 = vmatprep.subr.bf16.mxu0 0
    %3579 = vmatpush1.bf16.msra.mxu0 0
    %3580 = vmatprep.subr.bf16.mxu0 0
    %3581 = vmatpush1.bf16.msra.mxu0 0
    %3582 = vmatprep.subr.bf16.mxu0 0
    %3583 = vmatpush1.bf16.msra.mxu0 0
    %3584 = vmatprep.subr.bf16.mxu0 0
    %3585 = vmatpush1.bf16.msra.mxu0 0
    %3586 = vmatprep.subr.bf16.mxu0 0
    %3587 = vmatpush1.bf16.msra.mxu0 0
    %3588 = vmatprep.subr.bf16.mxu0 0
    %3589 = vmatpush1.bf16.msra.mxu0 0
    %3590 = vmatprep.subr.bf16.mxu0 0
    %3591 = vmatpush1.bf16.msra.mxu0 0
    %3592 = vmatprep.subr.bf16.mxu0 0
    %3593 = vmatpush1.bf16.msra.mxu0 0
    %3594 = vmatprep.mubr.bf16.mxu0 0
    %3595 = vmatmul.mubr.bf16.gmra.mrb[0].mxu0 %v3557
    %v3596 = vpop.f32.mrb[0].mxu0
    %v3597 = vadd.f32 0.0, %v3596
    %v3598 = vpop.f32.mrb[0].mxu0
    %v3599 = vpop.f32.mrb[0].mxu0
    %v3600 = vadd.f32 0.0, %v3599
    %v3601 = vpop.f32.mrb[0].mxu0
    %3602 = vmatprep.mubr.bf16.mxu0 0
    %3603 = vmatmul.mubr.bf16.gmra.mrb[0].mxu0 %v3560
    %v3604 = vpop.f32.mrb[0].mxu0
    %v3605 = vadd.f32 0.0, %v3604
    %v3606 = vpop.f32.mrb[0].mxu0
    %v3607 = vpop.f32.mrb[0].mxu0
    %v3608 = vadd.f32 0.0, %v3607
    %v3609 = vpop.f32.mrb[0].mxu0
    %3610 = vdwg.mxu0
    %v3611 = vpack.c.bf16 %v3417, %v3414
    %v3612 = vpack.c.bf16 %v3425, %v3422
    %v3613 = vpack.c.bf16 %v3478, %v3475
    %v3614 = vpack.c.bf16 %v3486, %v3483
    %v3615 = vpack.c.bf16 %v3539, %v3536
    %v3616 = vpack.c.bf16 %v3547, %v3544
    %v3617 = vpack.c.bf16 %v3600, %v3597
    %v3618 = vpack.c.bf16 %v3608, %v3605
    %3627 = vrot.lane.b32.xlu0 %v3611, 96
    %v3628 = vpop.permute.xlu0 %3627
    %3629 = vrot.lane.b32.xlu0 %v3612, 96
    %v3630 = vpop.permute.xlu0 %3629
    %3631 = vrot.lane.b32.xlu0 %v3613, 96
    %v3632 = vpop.permute.xlu0 %3631
    %3633 = vrot.lane.b32.xlu0 %v3614, 96
    %v3634 = vpop.permute.xlu0 %3633
    %3635 = vrot.lane.b32.xlu0 %v3615, 96
    %v3636 = vpop.permute.xlu0 %3635
    %3637 = vrot.lane.b32.xlu0 %v3616, 96
    %v3638 = vpop.permute.xlu0 %3637
    %3639 = vrot.lane.b32.xlu0 %v3617, 96
    %v3640 = vpop.permute.xlu0 %3639
    %3641 = vrot.lane.b32.xlu0 %v3618, 96
    %v3642 = vpop.permute.xlu0 %3641
    %vm3651 = vcmask 1048320
    %3652 = vst.msk [vmem:[#allocation2] sm:$0xff] %vm3651, %v3628
    %3653 = vst.msk [vmem:[#allocation2 + $0x8] sm:$0xff] %vm3651, %v3630
    %3654 = vst.msk [vmem:[#allocation2 + $0x10] sm:$0xff] %vm3651, %v3632
    %3655 = vst.msk [vmem:[#allocation2 + $0x18] sm:$0xff] %vm3651, %v3634
    %3656 = vst.msk [vmem:[#allocation2 + $0x20] sm:$0xff] %vm3651, %v3636
    %3657 = vst.msk [vmem:[#allocation2 + $0x28] sm:$0xff] %vm3651, %v3638
    %3658 = vst.msk [vmem:[#allocation2 + $0x30] sm:$0xff] %vm3651, %v3640
    %3659 = vst.msk [vmem:[#allocation2 + $0x38] sm:$0xff] %vm3651, %v3642
    %v3660 = vld [vmem:[#allocation2] sm:$0xff]
    %v3661 = vld [vmem:[#allocation2 + $0x8] sm:$0xff]
    %v3662 = vld [vmem:[#allocation2 + $0x10] sm:$0xff]
    %v3663 = vld [vmem:[#allocation2 + $0x18] sm:$0xff]
    %v3664 = vld [vmem:[#allocation2 + $0x20] sm:$0xff]
    %v3665 = vld [vmem:[#allocation2 + $0x28] sm:$0xff]
    %v3666 = vld [vmem:[#allocation2 + $0x30] sm:$0xff]
    %v3667 = vld [vmem:[#allocation2 + $0x38] sm:$0xff]
    %v3668 = vld [vmem:[#allocation8] sm:$0xf]
    %v3669 = vld [vmem:[#allocation8 + $0x4] sm:$0xf]
    %v3670 = vld [vmem:[#allocation8 + $0x8] sm:$0xf]
    %v3671 = vld [vmem:[#allocation8 + $0xc] sm:$0xf]
    %v3672 = vld [vmem:[#allocation8 + $0x10] sm:$0xf]
    %v3673 = vld [vmem:[#allocation8 + $0x14] sm:$0xf]
    %v3674 = vld [vmem:[#allocation8 + $0x18] sm:$0xf]
    %v3675 = vld [vmem:[#allocation8 + $0x1c] sm:$0xf]
    %v3676 = vld [vmem:[#allocation8 + $0x20] sm:$0xf]
    %v3677 = vld [vmem:[#allocation8 + $0x24] sm:$0xf]
    %v3678 = vld [vmem:[#allocation8 + $0x28] sm:$0xf]
    %v3679 = vld [vmem:[#allocation8 + $0x2c] sm:$0xf]
    %v3680 = vld [vmem:[#allocation8 + $0x30] sm:$0xf]
    %v3681 = vld [vmem:[#allocation8 + $0x34] sm:$0xf]
    %v3682 = vld [vmem:[#allocation8 + $0x38] sm:$0xf]
    %v3683 = vld [vmem:[#allocation8 + $0x3c] sm:$0xf]
    %v3684 = vld [vmem:[%s3] sm:$0x1]
    %v3686 = vlaneseq
    %v3687 = vshrl.u32 %v3686, 7
    %v3688 = vsub.s32 0, %v3687
    %v3689 = vrot.slane %v3684, %v3688
    %v3707 = vunpack.c.l.b16 %v3668
    %v3708 = vunpack.c.l.b16 %v3669
    %v3709 = vunpack.c.l.b16 %v3670
    %v3710 = vunpack.c.l.b16 %v3671
    %v3711 = vunpack.c.l.b16 %v3672
    %v3712 = vunpack.c.l.b16 %v3673
    %v3713 = vunpack.c.l.b16 %v3674
    %v3714 = vunpack.c.l.b16 %v3675
    %v3715 = vunpack.c.l.b16 %v3676
    %v3716 = vunpack.c.l.b16 %v3677
    %v3717 = vunpack.c.l.b16 %v3678
    %v3718 = vunpack.c.l.b16 %v3679
    %v3719 = vunpack.c.l.b16 %v3680
    %v3720 = vunpack.c.l.b16 %v3681
    %v3721 = vunpack.c.l.b16 %v3682
    %v3722 = vunpack.c.l.b16 %v3683
    %v3723 = vpack.c.b16 %v3708, %v3707
    %v3724 = vpack.c.b16 %v3710, %v3709
    %v3725 = vpack.c.b16 %v3712, %v3711
    %v3726 = vpack.c.b16 %v3714, %v3713
    %v3727 = vpack.c.b16 %v3716, %v3715
    %v3728 = vpack.c.b16 %v3718, %v3717
    %v3729 = vpack.c.b16 %v3720, %v3719
    %v3730 = vpack.c.b16 %v3722, %v3721
    %3739 = vmatprep.subr.bf16.mxu0 0
    %3740 = vmatpush1.bf16.msra.mxu0 %v3723
    %3741 = vmatprep.subr.bf16.mxu0 0
    %3742 = vmatpush1.bf16.msra.mxu0 %v3724
    %3743 = vmatprep.subr.bf16.mxu0 0
    %3744 = vmatpush1.bf16.msra.mxu0 %v3725
    %3745 = vmatprep.subr.bf16.mxu0 0
    %3746 = vmatpush1.bf16.msra.mxu0 %v3726
    %3747 = vmatprep.subr.bf16.mxu0 0
    %3748 = vmatpush1.bf16.msra.mxu0 %v3727
    %3749 = vmatprep.subr.bf16.mxu0 0
    %3750 = vmatpush1.bf16.msra.mxu0 %v3728
    %3751 = vmatprep.subr.bf16.mxu0 0
    %3752 = vmatpush1.bf16.msra.mxu0 %v3729
    %3753 = vmatprep.subr.bf16.mxu0 0
    %3754 = vmatpush1.bf16.msra.mxu0 %v3730
    %3755 = vmatprep.subr.bf16.mxu0 0
    %3756 = vmatpush1.bf16.msra.mxu0 0
    %3757 = vmatprep.subr.bf16.mxu0 0
    %3758 = vmatpush1.bf16.msra.mxu0 0
    %3759 = vmatprep.subr.bf16.mxu0 0
    %3760 = vmatpush1.bf16.msra.mxu0 0
    %3761 = vmatprep.subr.bf16.mxu0 0
    %3762 = vmatpush1.bf16.msra.mxu0 0
    %3763 = vmatprep.subr.bf16.mxu0 0
    %3764 = vmatpush1.bf16.msra.mxu0 0
    %3765 = vmatprep.subr.bf16.mxu0 0
    %3766 = vmatpush1.bf16.msra.mxu0 0
    %3767 = vmatprep.subr.bf16.mxu0 0
    %3768 = vmatpush1.bf16.msra.mxu0 0
    %3769 = vmatprep.subr.bf16.mxu0 0
    %3770 = vmatpush1.bf16.msra.mxu0 0
    %3771 = vmatprep.mubr.bf16.mxu0 0
    %3772 = vmatmul.mubr.bf16.gmra.mrb[0].mxu0 %v3660
    %v3773 = vpop.f32.mrb[0].mxu0
    %v3774 = vadd.f32 %v3689, %v3773
    %v3775 = vpop.f32.mrb[0].mxu0
    %v3776 = vpop.f32.mrb[0].mxu0
    %v3777 = vadd.f32 %v3689, %v3776
    %v3778 = vpop.f32.mrb[0].mxu0
    %3779 = vmatprep.mubr.bf16.mxu0 0
    %3780 = vmatmul.mubr.bf16.gmra.mrb[0].mxu0 %v3661
    %v3781 = vpop.f32.mrb[0].mxu0
    %v3782 = vadd.f32 %v3689, %v3781
    %v3783 = vpop.f32.mrb[0].mxu0
    %v3784 = vpop.f32.mrb[0].mxu0
    %v3785 = vadd.f32 %v3689, %v3784
    %v3786 = vpop.f32.mrb[0].mxu0
    %3787 = vmatprep.mubr.bf16.mxu0 0
    %3788 = vmatmul.mubr.bf16.gmra.mrb[0].mxu0 %v3662
    %v3789 = vpop.f32.mrb[0].mxu0
    %v3790 = vadd.f32 %v3689, %v3789
    %v3791 = vpop.f32.mrb[0].mxu0
    %v3792 = vpop.f32.mrb[0].mxu0
    %v3793 = vadd.f32 %v3689, %v3792
    %v3794 = vpop.f32.mrb[0].mxu0
    %3795 = vmatprep.mubr.bf16.mxu0 0
    %3796 = vmatmul.mubr.bf16.gmra.mrb[0].mxu0 %v3663
    %v3797 = vpop.f32.mrb[0].mxu0
    %v3798 = vadd.f32 %v3689, %v3797
    %v3799 = vpop.f32.mrb[0].mxu0
    %v3800 = vpop.f32.mrb[0].mxu0
    %v3801 = vadd.f32 %v3689, %v3800
    %v3802 = vpop.f32.mrb[0].mxu0
    %3803 = vmatprep.mubr.bf16.mxu0 0
    %3804 = vmatmul.mubr.bf16.gmra.mrb[0].mxu0 %v3664
    %v3805 = vpop.f32.mrb[0].mxu0
    %v3806 = vadd.f32 %v3689, %v3805
    %v3807 = vpop.f32.mrb[0].mxu0
    %v3808 = vpop.f32.mrb[0].mxu0
    %v3809 = vadd.f32 %v3689, %v3808
    %v3810 = vpop.f32.mrb[0].mxu0
    %3811 = vmatprep.mubr.bf16.mxu0 0
    %3812 = vmatmul.mubr.bf16.gmra.mrb[0].mxu0 %v3665
    %v3813 = vpop.f32.mrb[0].mxu0
    %v3814 = vadd.f32 %v3689, %v3813
    %v3815 = vpop.f32.mrb[0].mxu0
    %v3816 = vpop.f32.mrb[0].mxu0
    %v3817 = vadd.f32 %v3689, %v3816
    %v3818 = vpop.f32.mrb[0].mxu0
    %3819 = vmatprep.mubr.bf16.mxu0 0
    %3820 = vmatmul.mubr.bf16.gmra.mrb[0].mxu0 %v3666
    %v3821 = vpop.f32.mrb[0].mxu0
    %v3822 = vadd.f32 %v3689, %v3821
    %v3823 = vpop.f32.mrb[0].mxu0
    %v3824 = vpop.f32.mrb[0].mxu0
    %v3825 = vadd.f32 %v3689, %v3824
    %v3826 = vpop.f32.mrb[0].mxu0
    %3827 = vmatprep.mubr.bf16.mxu0 0
    %3828 = vmatmul.mubr.bf16.gmra.mrb[0].mxu0 %v3667
    %v3829 = vpop.f32.mrb[0].mxu0
    %v3830 = vadd.f32 %v3689, %v3829
    %v3831 = vpop.f32.mrb[0].mxu0
    %v3832 = vpop.f32.mrb[0].mxu0
    %v3833 = vadd.f32 %v3689, %v3832
    %v3834 = vpop.f32.mrb[0].mxu0
    %3835 = vdwg.mxu0
    %v3836 = vunpack.c.l.bf16 %v111
    %v3837 = vunpack.c.l.bf16 %v112
    %v3838 = vunpack.c.l.bf16 %v113
    %v3839 = vunpack.c.l.bf16 %v114
    %v3840 = vunpack.c.l.bf16 %v115
    %v3841 = vunpack.c.l.bf16 %v116
    %v3842 = vunpack.c.l.bf16 %v117
    %v3843 = vunpack.c.l.bf16 %v118
    %v3844 = vunpack.c.l.bf16 %v119
    %v3845 = vunpack.c.l.bf16 %v120
    %v3846 = vunpack.c.l.bf16 %v121
    %v3847 = vunpack.c.l.bf16 %v122
    %v3848 = vunpack.c.l.bf16 %v123
    %v3849 = vunpack.c.l.bf16 %v124
    %v3850 = vunpack.c.l.bf16 %v125
    %v3851 = vunpack.c.l.bf16 %v126
    %v3852 = vadd.f32 %v3836, %v3774
    %v3853 = vadd.f32 %v3837, %v3777
    %v3854 = vadd.f32 %v3838, %v3782
    %v3855 = vadd.f32 %v3839, %v3785
    %v3856 = vadd.f32 %v3840, %v3790
    %v3857 = vadd.f32 %v3841, %v3793
    %v3858 = vadd.f32 %v3842, %v3798
    %v3859 = vadd.f32 %v3843, %v3801
    %v3860 = vadd.f32 %v3844, %v3806
    %v3861 = vadd.f32 %v3845, %v3809
    %v3862 = vadd.f32 %v3846, %v3814
    %v3863 = vadd.f32 %v3847, %v3817
    %v3864 = vadd.f32 %v3848, %v3822
    %v3865 = vadd.f32 %v3849, %v3825
    %v3866 = vadd.f32 %v3850, %v3830
    %v3867 = vadd.f32 %v3851, %v3833
    %v3868 = vld [vmem:[%s4] sm:$0x1]
    %v3869 = vld [vmem:[%s5] sm:$0x1]
    %3870 = vadd.xlane.f32.xlu0 %v3852
    %v3871 = vpop.xlane.xlu0 %3870
    %3872 = vadd.xlane.f32.xlu0 %v3853
    %v3873 = vpop.xlane.xlu0 %3872
    %3874 = vadd.xlane.f32.xlu0 %v3854
    %v3875 = vpop.xlane.xlu0 %3874
    %3876 = vadd.xlane.f32.xlu0 %v3855
    %v3877 = vpop.xlane.xlu0 %3876
    %3878 = vadd.xlane.f32.xlu0 %v3856
    %v3879 = vpop.xlane.xlu0 %3878
    %3880 = vadd.xlane.f32.xlu0 %v3857
    %v3881 = vpop.xlane.xlu0 %3880
    %3882 = vadd.xlane.f32.xlu0 %v3858
    %v3883 = vpop.xlane.xlu0 %3882
    %3884 = vadd.xlane.f32.xlu0 %v3859
    %v3885 = vpop.xlane.xlu0 %3884
    %3886 = vadd.xlane.f32.xlu0 %v3860
    %v3887 = vpop.xlane.xlu0 %3886
    %3888 = vadd.xlane.f32.xlu0 %v3861
    %v3889 = vpop.xlane.xlu0 %3888
    %3890 = vadd.xlane.f32.xlu0 %v3862
    %v3891 = vpop.xlane.xlu0 %3890
    %3892 = vadd.xlane.f32.xlu0 %v3863
    %v3893 = vpop.xlane.xlu0 %3892
    %3894 = vadd.xlane.f32.xlu0 %v3864
    %v3895 = vpop.xlane.xlu0 %3894
    %3896 = vadd.xlane.f32.xlu0 %v3865
    %v3897 = vpop.xlane.xlu0 %3896
    %3898 = vadd.xlane.f32.xlu0 %v3866
    %v3899 = vpop.xlane.xlu0 %3898
    %3900 = vadd.xlane.f32.xlu0 %v3867
    %v3901 = vpop.xlane.xlu0 %3900
    %v3902 = vmul.f32 %v3871, 0.020833334
    %v3903 = vmul.f32 %v3873, 0.020833334
    %v3904 = vmul.f32 %v3875, 0.020833334
    %v3905 = vmul.f32 %v3877, 0.020833334
    %v3906 = vmul.f32 %v3879, 0.020833334
    %v3907 = vmul.f32 %v3881, 0.020833334
    %v3908 = vmul.f32 %v3883, 0.020833334
    %v3909 = vmul.f32 %v3885, 0.020833334
    %v3910 = vmul.f32 %v3887, 0.020833334
    %v3911 = vmul.f32 %v3889, 0.020833334
    %v3912 = vmul.f32 %v3891, 0.020833334
    %v3913 = vmul.f32 %v3893, 0.020833334
    %v3914 = vmul.f32 %v3895, 0.020833334
    %v3915 = vmul.f32 %v3897, 0.020833334
    %v3916 = vmul.f32 %v3899, 0.020833334
    %v3917 = vmul.f32 %v3901, 0.020833334
    %v3918 = vmul.f32 %v3852, %v3852
    %v3919 = vmul.f32 %v3853, %v3853
    %v3920 = vmul.f32 %v3854, %v3854
    %v3921 = vmul.f32 %v3855, %v3855
    %v3922 = vmul.f32 %v3856, %v3856
    %v3923 = vmul.f32 %v3857, %v3857
    %v3924 = vmul.f32 %v3858, %v3858
    %v3925 = vmul.f32 %v3859, %v3859
    %v3926 = vmul.f32 %v3860, %v3860
    %v3927 = vmul.f32 %v3861, %v3861
    %v3928 = vmul.f32 %v3862, %v3862
    %v3929 = vmul.f32 %v3863, %v3863
    %v3930 = vmul.f32 %v3864, %v3864
    %v3931 = vmul.f32 %v3865, %v3865
    %v3932 = vmul.f32 %v3866, %v3866
    %v3933 = vmul.f32 %v3867, %v3867
    %3934 = vadd.xlane.f32.xlu0 %v3918
    %v3935 = vpop.xlane.xlu0 %3934
    %3936 = vadd.xlane.f32.xlu0 %v3919
    %v3937 = vpop.xlane.xlu0 %3936
    %3938 = vadd.xlane.f32.xlu0 %v3920
    %v3939 = vpop.xlane.xlu0 %3938
    %3940 = vadd.xlane.f32.xlu0 %v3921
    %v3941 = vpop.xlane.xlu0 %3940
    %3942 = vadd.xlane.f32.xlu0 %v3922
    %v3943 = vpop.xlane.xlu0 %3942
    %3944 = vadd.xlane.f32.xlu0 %v3923
    %v3945 = vpop.xlane.xlu0 %3944
    %3946 = vadd.xlane.f32.xlu0 %v3924
    %v3947 = vpop.xlane.xlu0 %3946
    %3948 = vadd.xlane.f32.xlu0 %v3925
    %v3949 = vpop.xlane.xlu0 %3948
    %3950 = vadd.xlane.f32.xlu0 %v3926
    %v3951 = vpop.xlane.xlu0 %3950
    %3952 = vadd.xlane.f32.xlu0 %v3927
    %v3953 = vpop.xlane.xlu0 %3952
    %3954 = vadd.xlane.f32.xlu0 %v3928
    %v3955 = vpop.xlane.xlu0 %3954
    %3956 = vadd.xlane.f32.xlu0 %v3929
    %v3957 = vpop.xlane.xlu0 %3956
    %3958 = vadd.xlane.f32.xlu0 %v3930
    %v3959 = vpop.xlane.xlu0 %3958
    %3960 = vadd.xlane.f32.xlu0 %v3931
    %v3961 = vpop.xlane.xlu0 %3960
    %3962 = vadd.xlane.f32.xlu0 %v3932
    %v3963 = vpop.xlane.xlu0 %3962
    %3964 = vadd.xlane.f32.xlu0 %v3933
    %v3965 = vpop.xlane.xlu0 %3964
    %v3966 = vmul.f32 %v3935, 0.020833334
    %v3967 = vmul.f32 %v3937, 0.020833334
    %v3968 = vmul.f32 %v3939, 0.020833334
    %v3969 = vmul.f32 %v3941, 0.020833334
    %v3970 = vmul.f32 %v3943, 0.020833334
    %v3971 = vmul.f32 %v3945, 0.020833334
    %v3972 = vmul.f32 %v3947, 0.020833334
    %v3973 = vmul.f32 %v3949, 0.020833334
    %v3974 = vmul.f32 %v3951, 0.020833334
    %v3975 = vmul.f32 %v3953, 0.020833334
    %v3976 = vmul.f32 %v3955, 0.020833334
    %v3977 = vmul.f32 %v3957, 0.020833334
    %v3978 = vmul.f32 %v3959, 0.020833334
    %v3979 = vmul.f32 %v3961, 0.020833334
    %v3980 = vmul.f32 %v3963, 0.020833334
    %v3981 = vmul.f32 %v3965, 0.020833334
    %v3982 = vmul.f32 %v3902, %v3902
    %v3983 = vmul.f32 %v3903, %v3903
    %v3984 = vmul.f32 %v3904, %v3904
    %v3985 = vmul.f32 %v3905, %v3905
    %v3986 = vmul.f32 %v3906, %v3906
    %v3987 = vmul.f32 %v3907, %v3907
    %v3988 = vmul.f32 %v3908, %v3908
    %v3989 = vmul.f32 %v3909, %v3909
    %v3990 = vmul.f32 %v3910, %v3910
    %v3991 = vmul.f32 %v3911, %v3911
    %v3992 = vmul.f32 %v3912, %v3912
    %v3993 = vmul.f32 %v3913, %v3913
    %v3994 = vmul.f32 %v3914, %v3914
    %v3995 = vmul.f32 %v3915, %v3915
    %v3996 = vmul.f32 %v3916, %v3916
    %v3997 = vmul.f32 %v3917, %v3917
    %v3998 = vsub.f32 %v3966, %v3982
    %v3999 = vsub.f32 %v3967, %v3983
    %v4000 = vsub.f32 %v3968, %v3984
    %v4001 = vsub.f32 %v3969, %v3985
    %v4002 = vsub.f32 %v3970, %v3986
    %v4003 = vsub.f32 %v3971, %v3987
    %v4004 = vsub.f32 %v3972, %v3988
    %v4005 = vsub.f32 %v3973, %v3989
    %v4006 = vsub.f32 %v3974, %v3990
    %v4007 = vsub.f32 %v3975, %v3991
    %v4008 = vsub.f32 %v3976, %v3992
    %v4009 = vsub.f32 %v3977, %v3993
    %v4010 = vsub.f32 %v3978, %v3994
    %v4011 = vsub.f32 %v3979, %v3995
    %v4012 = vsub.f32 %v3980, %v3996
    %v4013 = vsub.f32 %v3981, %v3997
    %v4014 = vsub.f32 %v3852, %v3902
    %v4015 = vsub.f32 %v3853, %v3903
    %v4016 = vsub.f32 %v3854, %v3904
    %v4017 = vsub.f32 %v3855, %v3905
    %v4018 = vsub.f32 %v3856, %v3906
    %v4019 = vsub.f32 %v3857, %v3907
    %v4020 = vsub.f32 %v3858, %v3908
    %v4021 = vsub.f32 %v3859, %v3909
    %v4022 = vsub.f32 %v3860, %v3910
    %v4023 = vsub.f32 %v3861, %v3911
    %v4024 = vsub.f32 %v3862, %v3912
    %v4025 = vsub.f32 %v3863, %v3913
    %v4026 = vsub.f32 %v3864, %v3914
    %v4027 = vsub.f32 %v3865, %v3915
    %v4028 = vsub.f32 %v3866, %v3916
    %v4029 = vsub.f32 %v3867, %v3917
    %v4030 = vadd.f32 %v3998, 1e-05
    %v4031 = vadd.f32 %v3999, 1e-05
    %v4032 = vadd.f32 %v4000, 1e-05
    %v4033 = vadd.f32 %v4001, 1e-05
    %v4034 = vadd.f32 %v4002, 1e-05
    %v4035 = vadd.f32 %v4003, 1e-05
    %v4036 = vadd.f32 %v4004, 1e-05
    %v4037 = vadd.f32 %v4005, 1e-05
    %v4038 = vadd.f32 %v4006, 1e-05
    %v4039 = vadd.f32 %v4007, 1e-05
    %v4040 = vadd.f32 %v4008, 1e-05
    %v4041 = vadd.f32 %v4009, 1e-05
    %v4042 = vadd.f32 %v4010, 1e-05
    %v4043 = vadd.f32 %v4011, 1e-05
    %v4044 = vadd.f32 %v4012, 1e-05
    %v4045 = vadd.f32 %v4013, 1e-05
    %v4046 = vrsqrt.pop %v4030
    %v4047 = vrsqrt.pop %v4031
    %v4048 = vrsqrt.pop %v4032
    %v4049 = vrsqrt.pop %v4033
    %v4050 = vrsqrt.pop %v4034
    %v4051 = vrsqrt.pop %v4035
    %v4052 = vrsqrt.pop %v4036
    %v4053 = vrsqrt.pop %v4037
    %v4054 = vrsqrt.pop %v4038
    %v4055 = vrsqrt.pop %v4039
    %v4056 = vrsqrt.pop %v4040
    %v4057 = vrsqrt.pop %v4041
    %v4058 = vrsqrt.pop %v4042
    %v4059 = vrsqrt.pop %v4043
    %v4060 = vrsqrt.pop %v4044
    %v4061 = vrsqrt.pop %v4045
    %v4062 = vmul.f32 %v4014, %v4046
    %v4063 = vmul.f32 %v4015, %v4047
    %v4064 = vmul.f32 %v4016, %v4048
    %v4065 = vmul.f32 %v4017, %v4049
    %v4066 = vmul.f32 %v4018, %v4050
    %v4067 = vmul.f32 %v4019, %v4051
    %v4068 = vmul.f32 %v4020, %v4052
    %v4069 = vmul.f32 %v4021, %v4053
    %v4070 = vmul.f32 %v4022, %v4054
    %v4071 = vmul.f32 %v4023, %v4055
    %v4072 = vmul.f32 %v4024, %v4056
    %v4073 = vmul.f32 %v4025, %v4057
    %v4074 = vmul.f32 %v4026, %v4058
    %v4075 = vmul.f32 %v4027, %v4059
    %v4076 = vmul.f32 %v4028, %v4060
    %v4077 = vmul.f32 %v4029, %v4061
    %v4079 = vlaneseq
    %v4080 = vshrl.u32 %v4079, 7
    %v4081 = vsub.s32 0, %v4080
    %v4082 = vrot.slane %v3868, %v4081
    %v4084 = vmul.f32 %v4062, %v4082
    %v4085 = vmul.f32 %v4063, %v4082
    %v4086 = vmul.f32 %v4064, %v4082
    %v4087 = vmul.f32 %v4065, %v4082
    %v4088 = vmul.f32 %v4066, %v4082
    %v4089 = vmul.f32 %v4067, %v4082
    %v4090 = vmul.f32 %v4068, %v4082
    %v4091 = vmul.f32 %v4069, %v4082
    %v4092 = vmul.f32 %v4070, %v4082
    %v4093 = vmul.f32 %v4071, %v4082
    %v4094 = vmul.f32 %v4072, %v4082
    %v4095 = vmul.f32 %v4073, %v4082
    %v4096 = vmul.f32 %v4074, %v4082
    %v4097 = vmul.f32 %v4075, %v4082
    %v4098 = vmul.f32 %v4076, %v4082
    %v4099 = vmul.f32 %v4077, %v4082
    %v4101 = vlaneseq
    %v4102 = vshrl.u32 %v4101, 7
    %v4103 = vsub.s32 0, %v4102
    %v4104 = vrot.slane %v3869, %v4103
    %v4106 = vadd.f32 %v4084, %v4104
    %v4107 = vadd.f32 %v4085, %v4104
    %v4108 = vadd.f32 %v4086, %v4104
    %v4109 = vadd.f32 %v4087, %v4104
    %v4110 = vadd.f32 %v4088, %v4104
    %v4111 = vadd.f32 %v4089, %v4104
    %v4112 = vadd.f32 %v4090, %v4104
    %v4113 = vadd.f32 %v4091, %v4104
    %v4114 = vadd.f32 %v4092, %v4104
    %v4115 = vadd.f32 %v4093, %v4104
    %v4116 = vadd.f32 %v4094, %v4104
    %v4117 = vadd.f32 %v4095, %v4104
    %v4118 = vadd.f32 %v4096, %v4104
    %v4119 = vadd.f32 %v4097, %v4104
    %v4120 = vadd.f32 %v4098, %v4104
    %v4121 = vadd.f32 %v4099, %v4104
    %v4122 = vpack.c.bf16 %v4107, %v4106
    %v4123 = vpack.c.bf16 %v4109, %v4108
    %v4124 = vpack.c.bf16 %v4111, %v4110
    %v4125 = vpack.c.bf16 %v4113, %v4112
    %v4126 = vpack.c.bf16 %v4115, %v4114
    %v4127 = vpack.c.bf16 %v4117, %v4116
    %v4128 = vpack.c.bf16 %v4119, %v4118
    %v4129 = vpack.c.bf16 %v4121, %v4120
    %v4130 = vld [vmem:[#allocation9] sm:$0xff]
    %v4131 = vld [vmem:[#allocation9 + $0x8] sm:$0xff]
    %v4132 = vld [vmem:[#allocation9 + $0x10] sm:$0xff]
    %v4133 = vld [vmem:[#allocation9 + $0x18] sm:$0xff]
    %v4134 = vld [vmem:[#allocation9 + $0x20] sm:$0xff]
    %v4135 = vld [vmem:[#allocation9 + $0x28] sm:$0xff]
    %v4136 = vld [vmem:[#allocation9 + $0x30] sm:$0xff]
    %v4137 = vld [vmem:[#allocation9 + $0x38] sm:$0xff]
    %v4138 = vld [vmem:[#allocation9 + $0x40] sm:$0xff]
    %v4139 = vld [vmem:[#allocation9 + $0x48] sm:$0xff]
    %v4140 = vld [vmem:[#allocation9 + $0x50] sm:$0xff]
    %v4141 = vld [vmem:[#allocation9 + $0x58] sm:$0xff]
    %v4142 = vld [vmem:[#allocation9 + $0x60] sm:$0xff]
    %v4143 = vld [vmem:[#allocation9 + $0x68] sm:$0xff]
    %v4144 = vld [vmem:[#allocation9 + $0x70] sm:$0xff]
    %v4145 = vld [vmem:[#allocation9 + $0x78] sm:$0xff]
    %v4146 = vld [vmem:[%s7] sm:$0x3]
    %v4148 = vlaneseq
    %v4149 = vshrl.u32 %v4148, 7
    %v4150 = vsub.s32 0, %v4149
    %v4151 = vrot.slane %v4146, %v4150
    %v4152 = vlaneseq
    %v4153 = vshrl.u32 %v4152, 7
    %v4154 = vsub.s32 1, %v4153
    %v4155 = vrot.slane %v4146, %v4154
    %v4174 = vunpack.c.l.b16 %v4130
    %v4175 = vunpack.c.h.b16 %v4130
    %v4176 = vunpack.c.l.b16 %v4131
    %v4177 = vunpack.c.h.b16 %v4131
    %v4178 = vunpack.c.l.b16 %v4132
    %v4179 = vunpack.c.h.b16 %v4132
    %v4180 = vunpack.c.l.b16 %v4133
    %v4181 = vunpack.c.h.b16 %v4133
    %v4182 = vunpack.c.l.b16 %v4134
    %v4183 = vunpack.c.h.b16 %v4134
    %v4184 = vunpack.c.l.b16 %v4135
    %v4185 = vunpack.c.h.b16 %v4135
    %v4186 = vunpack.c.l.b16 %v4136
    %v4187 = vunpack.c.h.b16 %v4136
    %v4188 = vunpack.c.l.b16 %v4137
    %v4189 = vunpack.c.h.b16 %v4137
    %v4190 = vunpack.c.l.b16 %v4138
    %v4191 = vunpack.c.h.b16 %v4138
    %v4192 = vunpack.c.l.b16 %v4139
    %v4193 = vunpack.c.h.b16 %v4139
    %v4194 = vunpack.c.l.b16 %v4140
    %v4195 = vunpack.c.h.b16 %v4140
    %v4196 = vunpack.c.l.b16 %v4141
    %v4197 = vunpack.c.h.b16 %v4141
    %v4198 = vunpack.c.l.b16 %v4142
    %v4199 = vunpack.c.h.b16 %v4142
    %v4200 = vunpack.c.l.b16 %v4143
    %v4201 = vunpack.c.h.b16 %v4143
    %v4202 = vunpack.c.l.b16 %v4144
    %v4203 = vunpack.c.h.b16 %v4144
    %v4204 = vunpack.c.l.b16 %v4145
    %v4205 = vunpack.c.h.b16 %v4145
    %v4206 = vpack.c.b16 %v4176, %v4174
    %v4207 = vpack.c.b16 %v4177, %v4175
    %v4208 = vpack.c.b16 %v4180, %v4178
    %v4209 = vpack.c.b16 %v4181, %v4179
    %v4210 = vpack.c.b16 %v4184, %v4182
    %v4211 = vpack.c.b16 %v4185, %v4183
    %v4212 = vpack.c.b16 %v4188, %v4186
    %v4213 = vpack.c.b16 %v4189, %v4187
    %v4214 = vpack.c.b16 %v4192, %v4190
    %v4215 = vpack.c.b16 %v4193, %v4191
    %v4216 = vpack.c.b16 %v4196, %v4194
    %v4217 = vpack.c.b16 %v4197, %v4195
    %v4218 = vpack.c.b16 %v4200, %v4198
    %v4219 = vpack.c.b16 %v4201, %v4199
    %v4220 = vpack.c.b16 %v4204, %v4202
    %v4221 = vpack.c.b16 %v4205, %v4203
    %4238 = vmatprep.subr.bf16.mxu0 %v4207
    %4239 = vmatpush1.bf16.msra.mxu0 %v4206
    %4240 = vmatprep.subr.bf16.mxu0 %v4209
    %4241 = vmatpush1.bf16.msra.mxu0 %v4208
    %4242 = vmatprep.subr.bf16.mxu0 %v4211
    %4243 = vmatpush1.bf16.msra.mxu0 %v4210
    %4244 = vmatprep.subr.bf16.mxu0 %v4213
    %4245 = vmatpush1.bf16.msra.mxu0 %v4212
    %4246 = vmatprep.subr.bf16.mxu0 %v4215
    %4247 = vmatpush1.bf16.msra.mxu0 %v4214
    %4248 = vmatprep.subr.bf16.mxu0 %v4217
    %4249 = vmatpush1.bf16.msra.mxu0 %v4216
    %4250 = vmatprep.subr.bf16.mxu0 %v4219
    %4251 = vmatpush1.bf16.msra.mxu0 %v4218
    %4252 = vmatprep.subr.bf16.mxu0 %v4221
    %4253 = vmatpush1.bf16.msra.mxu0 %v4220
    %4254 = vmatprep.subr.bf16.mxu0 0
    %4255 = vmatpush1.bf16.msra.mxu0 0
    %4256 = vmatprep.subr.bf16.mxu0 0
    %4257 = vmatpush1.bf16.msra.mxu0 0
    %4258 = vmatprep.subr.bf16.mxu0 0
    %4259 = vmatpush1.bf16.msra.mxu0 0
    %4260 = vmatprep.subr.bf16.mxu0 0
    %4261 = vmatpush1.bf16.msra.mxu0 0
    %4262 = vmatprep.subr.bf16.mxu0 0
    %4263 = vmatpush1.bf16.msra.mxu0 0
    %4264 = vmatprep.subr.bf16.mxu0 0
    %4265 = vmatpush1.bf16.msra.mxu0 0
    %4266 = vmatprep.subr.bf16.mxu0 0
    %4267 = vmatpush1.bf16.msra.mxu0 0
    %4268 = vmatprep.subr.bf16.mxu0 0
    %4269 = vmatpush1.bf16.msra.mxu0 0
    %4270 = vmatprep.mubr.bf16.mxu0 0
    %4271 = vmatmul.mubr.bf16.gmra.mrb[0].mxu0 %v4122
    %v4272 = vpop.f32.mrb[0].mxu0
    %v4273 = vadd.f32 %v4151, %v4272
    %v4274 = vpop.f32.mrb[0].mxu0
    %v4275 = vadd.f32 %v4155, %v4274
    %v4276 = vpop.f32.mrb[0].mxu0
    %v4277 = vadd.f32 %v4151, %v4276
    %v4278 = vpop.f32.mrb[0].mxu0
    %v4279 = vadd.f32 %v4155, %v4278
    %4280 = vmatprep.mubr.bf16.mxu0 0
    %4281 = vmatmul.mubr.bf16.gmra.mrb[0].mxu0 %v4123
    %v4282 = vpop.f32.mrb[0].mxu0
    %v4283 = vadd.f32 %v4151, %v4282
    %v4284 = vpop.f32.mrb[0].mxu0
    %v4285 = vadd.f32 %v4155, %v4284
    %v4286 = vpop.f32.mrb[0].mxu0
    %v4287 = vadd.f32 %v4151, %v4286
    %v4288 = vpop.f32.mrb[0].mxu0
    %v4289 = vadd.f32 %v4155, %v4288
    %4290 = vmatprep.mubr.bf16.mxu0 0
    %4291 = vmatmul.mubr.bf16.gmra.mrb[0].mxu0 %v4124
    %v4292 = vpop.f32.mrb[0].mxu0
    %v4293 = vadd.f32 %v4151, %v4292
    %v4294 = vpop.f32.mrb[0].mxu0
    %v4295 = vadd.f32 %v4155, %v4294
    %v4296 = vpop.f32.mrb[0].mxu0
    %v4297 = vadd.f32 %v4151, %v4296
    %v4298 = vpop.f32.mrb[0].mxu0
    %v4299 = vadd.f32 %v4155, %v4298
    %4300 = vmatprep.mubr.bf16.mxu0 0
    %4301 = vmatmul.mubr.bf16.gmra.mrb[0].mxu0 %v4125
    %v4302 = vpop.f32.mrb[0].mxu0
    %v4303 = vadd.f32 %v4151, %v4302
    %v4304 = vpop.f32.mrb[0].mxu0
    %v4305 = vadd.f32 %v4155, %v4304
    %v4306 = vpop.f32.mrb[0].mxu0
    %v4307 = vadd.f32 %v4151, %v4306
    %v4308 = vpop.f32.mrb[0].mxu0
    %v4309 = vadd.f32 %v4155, %v4308
    %4310 = vmatprep.mubr.bf16.mxu0 0
    %4311 = vmatmul.mubr.bf16.gmra.mrb[0].mxu0 %v4126
    %v4312 = vpop.f32.mrb[0].mxu0
    %v4313 = vadd.f32 %v4151, %v4312
    %v4314 = vpop.f32.mrb[0].mxu0
    %v4315 = vadd.f32 %v4155, %v4314
    %v4316 = vpop.f32.mrb[0].mxu0
    %v4317 = vadd.f32 %v4151, %v4316
    %v4318 = vpop.f32.mrb[0].mxu0
    %v4319 = vadd.f32 %v4155, %v4318
    %4320 = vmatprep.mubr.bf16.mxu0 0
    %4321 = vmatmul.mubr.bf16.gmra.mrb[0].mxu0 %v4127
    %v4322 = vpop.f32.mrb[0].mxu0
    %v4323 = vadd.f32 %v4151, %v4322
    %v4324 = vpop.f32.mrb[0].mxu0
    %v4325 = vadd.f32 %v4155, %v4324
    %v4326 = vpop.f32.mrb[0].mxu0
    %v4327 = vadd.f32 %v4151, %v4326
    %v4328 = vpop.f32.mrb[0].mxu0
    %v4329 = vadd.f32 %v4155, %v4328
    %4330 = vmatprep.mubr.bf16.mxu0 0
    %4331 = vmatmul.mubr.bf16.gmra.mrb[0].mxu0 %v4128
    %v4332 = vpop.f32.mrb[0].mxu0
    %v4333 = vadd.f32 %v4151, %v4332
    %v4334 = vpop.f32.mrb[0].mxu0
    %v4335 = vadd.f32 %v4155, %v4334
    %v4336 = vpop.f32.mrb[0].mxu0
    %v4337 = vadd.f32 %v4151, %v4336
    %v4338 = vpop.f32.mrb[0].mxu0
    %v4339 = vadd.f32 %v4155, %v4338
    %4340 = vmatprep.mubr.bf16.mxu0 0
    %4341 = vmatmul.mubr.bf16.gmra.mrb[0].mxu0 %v4129
    %v4342 = vpop.f32.mrb[0].mxu0
    %v4343 = vadd.f32 %v4151, %v4342
    %v4344 = vpop.f32.mrb[0].mxu0
    %v4345 = vadd.f32 %v4155, %v4344
    %v4346 = vpop.f32.mrb[0].mxu0
    %v4347 = vadd.f32 %v4151, %v4346
    %v4348 = vpop.f32.mrb[0].mxu0
    %v4349 = vadd.f32 %v4155, %v4348
    %4350 = vdwg.mxu0
    %v4351 = vmax.f32 %v4273, 0.0
    %v4352 = vmax.f32 %v4275, 0.0
    %v4353 = vmax.f32 %v4277, 0.0
    %v4354 = vmax.f32 %v4279, 0.0
    %v4355 = vmax.f32 %v4283, 0.0
    %v4356 = vmax.f32 %v4285, 0.0
    %v4357 = vmax.f32 %v4287, 0.0
    %v4358 = vmax.f32 %v4289, 0.0
    %v4359 = vmax.f32 %v4293, 0.0
    %v4360 = vmax.f32 %v4295, 0.0
    %v4361 = vmax.f32 %v4297, 0.0
    %v4362 = vmax.f32 %v4299, 0.0
    %v4363 = vmax.f32 %v4303, 0.0
    %v4364 = vmax.f32 %v4305, 0.0
    %v4365 = vmax.f32 %v4307, 0.0
    %v4366 = vmax.f32 %v4309, 0.0
    %v4367 = vmax.f32 %v4313, 0.0
    %v4368 = vmax.f32 %v4315, 0.0
    %v4369 = vmax.f32 %v4317, 0.0
    %v4370 = vmax.f32 %v4319, 0.0
    %v4371 = vmax.f32 %v4323, 0.0
    %v4372 = vmax.f32 %v4325, 0.0
    %v4373 = vmax.f32 %v4327, 0.0
    %v4374 = vmax.f32 %v4329, 0.0
    %v4375 = vmax.f32 %v4333, 0.0
    %v4376 = vmax.f32 %v4335, 0.0
    %v4377 = vmax.f32 %v4337, 0.0
    %v4378 = vmax.f32 %v4339, 0.0
    %v4379 = vmax.f32 %v4343, 0.0
    %v4380 = vmax.f32 %v4345, 0.0
    %v4381 = vmax.f32 %v4347, 0.0
    %v4382 = vmax.f32 %v4349, 0.0
    %v4383 = vpack.c.bf16 %v4353, %v4351
    %v4384 = vpack.c.bf16 %v4354, %v4352
    %v4385 = vpack.c.bf16 %v4357, %v4355
    %v4386 = vpack.c.bf16 %v4358, %v4356
    %v4387 = vpack.c.bf16 %v4361, %v4359
    %v4388 = vpack.c.bf16 %v4362, %v4360
    %v4389 = vpack.c.bf16 %v4365, %v4363
    %v4390 = vpack.c.bf16 %v4366, %v4364
    %v4391 = vpack.c.bf16 %v4369, %v4367
    %v4392 = vpack.c.bf16 %v4370, %v4368
    %v4393 = vpack.c.bf16 %v4373, %v4371
    %v4394 = vpack.c.bf16 %v4374, %v4372
    %v4395 = vpack.c.bf16 %v4377, %v4375
    %v4396 = vpack.c.bf16 %v4378, %v4376
    %v4397 = vpack.c.bf16 %v4381, %v4379
    %v4398 = vpack.c.bf16 %v4382, %v4380
    %v4399 = vld [vmem:[#allocation11] sm:$0xf]
    %v4400 = vld [vmem:[#allocation11 + $0x4] sm:$0xf]
    %v4401 = vld [vmem:[#allocation11 + $0x8] sm:$0xf]
    %v4402 = vld [vmem:[#allocation11 + $0xc] sm:$0xf]
    %v4403 = vld [vmem:[#allocation11 + $0x10] sm:$0xf]
    %v4404 = vld [vmem:[#allocation11 + $0x14] sm:$0xf]
    %v4405 = vld [vmem:[#allocation11 + $0x18] sm:$0xf]
    %v4406 = vld [vmem:[#allocation11 + $0x1c] sm:$0xf]
    %v4407 = vld [vmem:[#allocation11 + $0x20] sm:$0xf]
    %v4408 = vld [vmem:[#allocation11 + $0x24] sm:$0xf]
    %v4409 = vld [vmem:[#allocation11 + $0x28] sm:$0xf]
    %v4410 = vld [vmem:[#allocation11 + $0x2c] sm:$0xf]
    %v4411 = vld [vmem:[#allocation11 + $0x30] sm:$0xf]
    %v4412 = vld [vmem:[#allocation11 + $0x34] sm:$0xf]
    %v4413 = vld [vmem:[#allocation11 + $0x38] sm:$0xf]
    %v4414 = vld [vmem:[#allocation11 + $0x3c] sm:$0xf]
    %v4415 = vld [vmem:[#allocation11 + $0x40] sm:$0xf]
    %v4416 = vld [vmem:[#allocation11 + $0x44] sm:$0xf]
    %v4417 = vld [vmem:[#allocation11 + $0x48] sm:$0xf]
    %v4418 = vld [vmem:[#allocation11 + $0x4c] sm:$0xf]
    %v4419 = vld [vmem:[#allocation11 + $0x50] sm:$0xf]
    %v4420 = vld [vmem:[#allocation11 + $0x54] sm:$0xf]
    %v4421 = vld [vmem:[#allocation11 + $0x58] sm:$0xf]
    %v4422 = vld [vmem:[#allocation11 + $0x5c] sm:$0xf]
    %v4423 = vld [vmem:[#allocation11 + $0x60] sm:$0xf]
    %v4424 = vld [vmem:[#allocation11 + $0x64] sm:$0xf]
    %v4425 = vld [vmem:[#allocation11 + $0x68] sm:$0xf]
    %v4426 = vld [vmem:[#allocation11 + $0x6c] sm:$0xf]
    %v4427 = vld [vmem:[#allocation11 + $0x70] sm:$0xf]
    %v4428 = vld [vmem:[#allocation11 + $0x74] sm:$0xf]
    %v4429 = vld [vmem:[#allocation11 + $0x78] sm:$0xf]
    %v4430 = vld [vmem:[#allocation11 + $0x7c] sm:$0xf]
    %v4431 = vld [vmem:[%s9] sm:$0x1]
    %v4433 = vlaneseq
    %v4434 = vshrl.u32 %v4433, 7
    %v4435 = vsub.s32 0, %v4434
    %v4436 = vrot.slane %v4431, %v4435
    %v4470 = vunpack.c.l.b16 %v4399
    %v4471 = vunpack.c.l.b16 %v4400
    %v4472 = vunpack.c.l.b16 %v4401
    %v4473 = vunpack.c.l.b16 %v4402
    %v4474 = vunpack.c.l.b16 %v4403
    %v4475 = vunpack.c.l.b16 %v4404
    %v4476 = vunpack.c.l.b16 %v4405
    %v4477 = vunpack.c.l.b16 %v4406
    %v4478 = vunpack.c.l.b16 %v4407
    %v4479 = vunpack.c.l.b16 %v4408
    %v4480 = vunpack.c.l.b16 %v4409
    %v4481 = vunpack.c.l.b16 %v4410
    %v4482 = vunpack.c.l.b16 %v4411
    %v4483 = vunpack.c.l.b16 %v4412
    %v4484 = vunpack.c.l.b16 %v4413
    %v4485 = vunpack.c.l.b16 %v4414
    %v4486 = vunpack.c.l.b16 %v4415
    %v4487 = vunpack.c.l.b16 %v4416
    %v4488 = vunpack.c.l.b16 %v4417
    %v4489 = vunpack.c.l.b16 %v4418
    %v4490 = vunpack.c.l.b16 %v4419
    %v4491 = vunpack.c.l.b16 %v4420
    %v4492 = vunpack.c.l.b16 %v4421
    %v4493 = vunpack.c.l.b16 %v4422
    %v4494 = vunpack.c.l.b16 %v4423
    %v4495 = vunpack.c.l.b16 %v4424
    %v4496 = vunpack.c.l.b16 %v4425
    %v4497 = vunpack.c.l.b16 %v4426
    %v4498 = vunpack.c.l.b16 %v4427
    %v4499 = vunpack.c.l.b16 %v4428
    %v4500 = vunpack.c.l.b16 %v4429
    %v4501 = vunpack.c.l.b16 %v4430
    %v4502 = vpack.c.b16 %v4471, %v4470
    %v4503 = vpack.c.b16 %v4473, %v4472
    %v4504 = vpack.c.b16 %v4475, %v4474
    %v4505 = vpack.c.b16 %v4477, %v4476
    %v4506 = vpack.c.b16 %v4479, %v4478
    %v4507 = vpack.c.b16 %v4481, %v4480
    %v4508 = vpack.c.b16 %v4483, %v4482
    %v4509 = vpack.c.b16 %v4485, %v4484
    %v4510 = vpack.c.b16 %v4487, %v4486
    %v4511 = vpack.c.b16 %v4489, %v4488
    %v4512 = vpack.c.b16 %v4491, %v4490
    %v4513 = vpack.c.b16 %v4493, %v4492
    %v4514 = vpack.c.b16 %v4495, %v4494
    %v4515 = vpack.c.b16 %v4497, %v4496
    %v4516 = vpack.c.b16 %v4499, %v4498
    %v4517 = vpack.c.b16 %v4501, %v4500
    %4534 = vmatprep.subr.bf16.mxu0 0
    %4535 = vmatpush1.bf16.msra.mxu0 %v4502
    %4536 = vmatprep.subr.bf16.mxu0 0
    %4537 = vmatpush1.bf16.msra.mxu0 %v4503
    %4538 = vmatprep.subr.bf16.mxu0 0
    %4539 = vmatpush1.bf16.msra.mxu0 %v4504
    %4540 = vmatprep.subr.bf16.mxu0 0
    %4541 = vmatpush1.bf16.msra.mxu0 %v4505
    %4542 = vmatprep.subr.bf16.mxu0 0
    %4543 = vmatpush1.bf16.msra.mxu0 %v4506
    %4544 = vmatprep.subr.bf16.mxu0 0
    %4545 = vmatpush1.bf16.msra.mxu0 %v4507
    %4546 = vmatprep.subr.bf16.mxu0 0
    %4547 = vmatpush1.bf16.msra.mxu0 %v4508
    %4548 = vmatprep.subr.bf16.mxu0 0
    %4549 = vmatpush1.bf16.msra.mxu0 %v4509
    %4550 = vmatprep.subr.bf16.mxu0 0
    %4551 = vmatpush1.bf16.msra.mxu0 %v4510
    %4552 = vmatprep.subr.bf16.mxu0 0
    %4553 = vmatpush1.bf16.msra.mxu0 %v4511
    %4554 = vmatprep.subr.bf16.mxu0 0
    %4555 = vmatpush1.bf16.msra.mxu0 %v4512
    %4556 = vmatprep.subr.bf16.mxu0 0
    %4557 = vmatpush1.bf16.msra.mxu0 %v4513
    %4558 = vmatprep.subr.bf16.mxu0 0
    %4559 = vmatpush1.bf16.msra.mxu0 %v4514
    %4560 = vmatprep.subr.bf16.mxu0 0
    %4561 = vmatpush1.bf16.msra.mxu0 %v4515
    %4562 = vmatprep.subr.bf16.mxu0 0
    %4563 = vmatpush1.bf16.msra.mxu0 %v4516
    %4564 = vmatprep.subr.bf16.mxu0 0
    %4565 = vmatpush1.bf16.msra.mxu0 %v4517
    %4566 = vmatprep.mubr.bf16.mxu0 %v4384
    %4567 = vmatmul.mubr.bf16.gmra.mrb[0].mxu0 %v4383
    %v4568 = vpop.f32.mrb[0].mxu0
    %v4569 = vadd.f32 %v4436, %v4568
    %v4570 = vpop.f32.mrb[0].mxu0
    %v4571 = vpop.f32.mrb[0].mxu0
    %v4572 = vadd.f32 %v4436, %v4571
    %v4573 = vpop.f32.mrb[0].mxu0
    %4574 = vmatprep.mubr.bf16.mxu0 %v4386
    %4575 = vmatmul.mubr.bf16.gmra.mrb[0].mxu0 %v4385
    %v4576 = vpop.f32.mrb[0].mxu0
    %v4577 = vadd.f32 %v4436, %v4576
    %v4578 = vpop.f32.mrb[0].mxu0
    %v4579 = vpop.f32.mrb[0].mxu0
    %v4580 = vadd.f32 %v4436, %v4579
    %v4581 = vpop.f32.mrb[0].mxu0
    %4582 = vmatprep.mubr.bf16.mxu0 %v4388
    %4583 = vmatmul.mubr.bf16.gmra.mrb[0].mxu0 %v4387
    %v4584 = vpop.f32.mrb[0].mxu0
    %v4585 = vadd.f32 %v4436, %v4584
    %v4586 = vpop.f32.mrb[0].mxu0
    %v4587 = vpop.f32.mrb[0].mxu0
    %v4588 = vadd.f32 %v4436, %v4587
    %v4589 = vpop.f32.mrb[0].mxu0
    %4590 = vmatprep.mubr.bf16.mxu0 %v4390
    %4591 = vmatmul.mubr.bf16.gmra.mrb[0].mxu0 %v4389
    %v4592 = vpop.f32.mrb[0].mxu0
    %v4593 = vadd.f32 %v4436, %v4592
    %v4594 = vpop.f32.mrb[0].mxu0
    %v4595 = vpop.f32.mrb[0].mxu0
    %v4596 = vadd.f32 %v4436, %v4595
    %v4597 = vpop.f32.mrb[0].mxu0
    %4598 = vmatprep.mubr.bf16.mxu0 %v4392
    %4599 = vmatmul.mubr.bf16.gmra.mrb[0].mxu0 %v4391
    %v4600 = vpop.f32.mrb[0].mxu0
    %v4601 = vadd.f32 %v4436, %v4600
    %v4602 = vpop.f32.mrb[0].mxu0
    %v4603 = vpop.f32.mrb[0].mxu0
    %v4604 = vadd.f32 %v4436, %v4603
    %v4605 = vpop.f32.mrb[0].mxu0
    %4606 = vmatprep.mubr.bf16.mxu0 %v4394
    %4607 = vmatmul.mubr.bf16.gmra.mrb[0].mxu0 %v4393
    %v4608 = vpop.f32.mrb[0].mxu0
    %v4609 = vadd.f32 %v4436, %v4608
    %v4610 = vpop.f32.mrb[0].mxu0
    %v4611 = vpop.f32.mrb[0].mxu0
    %v4612 = vadd.f32 %v4436, %v4611
    %v4613 = vpop.f32.mrb[0].mxu0
    %4614 = vmatprep.mubr.bf16.mxu0 %v4396
    %4615 = vmatmul.mubr.bf16.gmra.mrb[0].mxu0 %v4395
    %v4616 = vpop.f32.mrb[0].mxu0
    %v4617 = vadd.f32 %v4436, %v4616
    %v4618 = vpop.f32.mrb[0].mxu0
    %v4619 = vpop.f32.mrb[0].mxu0
    %v4620 = vadd.f32 %v4436, %v4619
    %v4621 = vpop.f32.mrb[0].mxu0
    %4622 = vmatprep.mubr.bf16.mxu0 %v4398
    %4623 = vmatmul.mubr.bf16.gmra.mrb[0].mxu0 %v4397
    %v4624 = vpop.f32.mrb[0].mxu0
    %v4625 = vadd.f32 %v4436, %v4624
    %v4626 = vpop.f32.mrb[0].mxu0
    %v4627 = vpop.f32.mrb[0].mxu0
    %v4628 = vadd.f32 %v4436, %v4627
    %v4629 = vpop.f32.mrb[0].mxu0
    %4630 = vdwg.mxu0
    %v4631 = vadd.f32 %v4106, %v4569
    %v4632 = vadd.f32 %v4107, %v4572
    %v4633 = vadd.f32 %v4108, %v4577
    %v4634 = vadd.f32 %v4109, %v4580
    %v4635 = vadd.f32 %v4110, %v4585
    %v4636 = vadd.f32 %v4111, %v4588
    %v4637 = vadd.f32 %v4112, %v4593
    %v4638 = vadd.f32 %v4113, %v4596
    %v4639 = vadd.f32 %v4114, %v4601
    %v4640 = vadd.f32 %v4115, %v4604
    %v4641 = vadd.f32 %v4116, %v4609
    %v4642 = vadd.f32 %v4117, %v4612
    %v4643 = vadd.f32 %v4118, %v4617
    %v4644 = vadd.f32 %v4119, %v4620
    %v4645 = vadd.f32 %v4120, %v4625
    %v4646 = vadd.f32 %v4121, %v4628
    %v4647 = vld [vmem:[%s10] sm:$0x1]
    %v4648 = vld [vmem:[%s11] sm:$0x1]
    %4649 = vadd.xlane.f32.xlu0 %v4631
    %v4650 = vpop.xlane.xlu0 %4649
    %4651 = vadd.xlane.f32.xlu0 %v4632
    %v4652 = vpop.xlane.xlu0 %4651
    %4653 = vadd.xlane.f32.xlu0 %v4633
    %v4654 = vpop.xlane.xlu0 %4653
    %4655 = vadd.xlane.f32.xlu0 %v4634
    %v4656 = vpop.xlane.xlu0 %4655
    %4657 = vadd.xlane.f32.xlu0 %v4635
    %v4658 = vpop.xlane.xlu0 %4657
    %4659 = vadd.xlane.f32.xlu0 %v4636
    %v4660 = vpop.xlane.xlu0 %4659
    %4661 = vadd.xlane.f32.xlu0 %v4637
    %v4662 = vpop.xlane.xlu0 %4661
    %4663 = vadd.xlane.f32.xlu0 %v4638
    %v4664 = vpop.xlane.xlu0 %4663
    %4665 = vadd.xlane.f32.xlu0 %v4639
    %v4666 = vpop.xlane.xlu0 %4665
    %4667 = vadd.xlane.f32.xlu0 %v4640
    %v4668 = vpop.xlane.xlu0 %4667
    %4669 = vadd.xlane.f32.xlu0 %v4641
    %v4670 = vpop.xlane.xlu0 %4669
    %4671 = vadd.xlane.f32.xlu0 %v4642
    %v4672 = vpop.xlane.xlu0 %4671
    %4673 = vadd.xlane.f32.xlu0 %v4643
    %v4674 = vpop.xlane.xlu0 %4673
    %4675 = vadd.xlane.f32.xlu0 %v4644
    %v4676 = vpop.xlane.xlu0 %4675
    %4677 = vadd.xlane.f32.xlu0 %v4645
    %v4678 = vpop.xlane.xlu0 %4677
    %4679 = vadd.xlane.f32.xlu0 %v4646
    %v4680 = vpop.xlane.xlu0 %4679
    %v4681 = vmul.f32 %v4650, 0.020833334
    %v4682 = vmul.f32 %v4652, 0.020833334
    %v4683 = vmul.f32 %v4654, 0.020833334
    %v4684 = vmul.f32 %v4656, 0.020833334
    %v4685 = vmul.f32 %v4658, 0.020833334
    %v4686 = vmul.f32 %v4660, 0.020833334
    %v4687 = vmul.f32 %v4662, 0.020833334
    %v4688 = vmul.f32 %v4664, 0.020833334
    %v4689 = vmul.f32 %v4666, 0.020833334
    %v4690 = vmul.f32 %v4668, 0.020833334
    %v4691 = vmul.f32 %v4670, 0.020833334
    %v4692 = vmul.f32 %v4672, 0.020833334
    %v4693 = vmul.f32 %v4674, 0.020833334
    %v4694 = vmul.f32 %v4676, 0.020833334
    %v4695 = vmul.f32 %v4678, 0.020833334
    %v4696 = vmul.f32 %v4680, 0.020833334
    %v4697 = vmul.f32 %v4631, %v4631
    %v4698 = vmul.f32 %v4632, %v4632
    %v4699 = vmul.f32 %v4633, %v4633
    %v4700 = vmul.f32 %v4634, %v4634
    %v4701 = vmul.f32 %v4635, %v4635
    %v4702 = vmul.f32 %v4636, %v4636
    %v4703 = vmul.f32 %v4637, %v4637
    %v4704 = vmul.f32 %v4638, %v4638
    %v4705 = vmul.f32 %v4639, %v4639
    %v4706 = vmul.f32 %v4640, %v4640
    %v4707 = vmul.f32 %v4641, %v4641
    %v4708 = vmul.f32 %v4642, %v4642
    %v4709 = vmul.f32 %v4643, %v4643
    %v4710 = vmul.f32 %v4644, %v4644
    %v4711 = vmul.f32 %v4645, %v4645
    %v4712 = vmul.f32 %v4646, %v4646
    %4713 = vadd.xlane.f32.xlu0 %v4697
    %v4714 = vpop.xlane.xlu0 %4713
    %4715 = vadd.xlane.f32.xlu0 %v4698
    %v4716 = vpop.xlane.xlu0 %4715
    %4717 = vadd.xlane.f32.xlu0 %v4699
    %v4718 = vpop.xlane.xlu0 %4717
    %4719 = vadd.xlane.f32.xlu0 %v4700
    %v4720 = vpop.xlane.xlu0 %4719
    %4721 = vadd.xlane.f32.xlu0 %v4701
    %v4722 = vpop.xlane.xlu0 %4721
    %4723 = vadd.xlane.f32.xlu0 %v4702
    %v4724 = vpop.xlane.xlu0 %4723
    %4725 = vadd.xlane.f32.xlu0 %v4703
    %v4726 = vpop.xlane.xlu0 %4725
    %4727 = vadd.xlane.f32.xlu0 %v4704
    %v4728 = vpop.xlane.xlu0 %4727
    %4729 = vadd.xlane.f32.xlu0 %v4705
    %v4730 = vpop.xlane.xlu0 %4729
    %4731 = vadd.xlane.f32.xlu0 %v4706
    %v4732 = vpop.xlane.xlu0 %4731
    %4733 = vadd.xlane.f32.xlu0 %v4707
    %v4734 = vpop.xlane.xlu0 %4733
    %4735 = vadd.xlane.f32.xlu0 %v4708
    %v4736 = vpop.xlane.xlu0 %4735
    %4737 = vadd.xlane.f32.xlu0 %v4709
    %v4738 = vpop.xlane.xlu0 %4737
    %4739 = vadd.xlane.f32.xlu0 %v4710
    %v4740 = vpop.xlane.xlu0 %4739
    %4741 = vadd.xlane.f32.xlu0 %v4711
    %v4742 = vpop.xlane.xlu0 %4741
    %4743 = vadd.xlane.f32.xlu0 %v4712
    %v4744 = vpop.xlane.xlu0 %4743
    %v4745 = vmul.f32 %v4714, 0.020833334
    %v4746 = vmul.f32 %v4716, 0.020833334
    %v4747 = vmul.f32 %v4718, 0.020833334
    %v4748 = vmul.f32 %v4720, 0.020833334
    %v4749 = vmul.f32 %v4722, 0.020833334
    %v4750 = vmul.f32 %v4724, 0.020833334
    %v4751 = vmul.f32 %v4726, 0.020833334
    %v4752 = vmul.f32 %v4728, 0.020833334
    %v4753 = vmul.f32 %v4730, 0.020833334
    %v4754 = vmul.f32 %v4732, 0.020833334
    %v4755 = vmul.f32 %v4734, 0.020833334
    %v4756 = vmul.f32 %v4736, 0.020833334
    %v4757 = vmul.f32 %v4738, 0.020833334
    %v4758 = vmul.f32 %v4740, 0.020833334
    %v4759 = vmul.f32 %v4742, 0.020833334
    %v4760 = vmul.f32 %v4744, 0.020833334
    %v4761 = vmul.f32 %v4681, %v4681
    %v4762 = vmul.f32 %v4682, %v4682
    %v4763 = vmul.f32 %v4683, %v4683
    %v4764 = vmul.f32 %v4684, %v4684
    %v4765 = vmul.f32 %v4685, %v4685
    %v4766 = vmul.f32 %v4686, %v4686
    %v4767 = vmul.f32 %v4687, %v4687
    %v4768 = vmul.f32 %v4688, %v4688
    %v4769 = vmul.f32 %v4689, %v4689
    %v4770 = vmul.f32 %v4690, %v4690
    %v4771 = vmul.f32 %v4691, %v4691
    %v4772 = vmul.f32 %v4692, %v4692
    %v4773 = vmul.f32 %v4693, %v4693
    %v4774 = vmul.f32 %v4694, %v4694
    %v4775 = vmul.f32 %v4695, %v4695
    %v4776 = vmul.f32 %v4696, %v4696
    %v4777 = vsub.f32 %v4745, %v4761
    %v4778 = vsub.f32 %v4746, %v4762
    %v4779 = vsub.f32 %v4747, %v4763
    %v4780 = vsub.f32 %v4748, %v4764
    %v4781 = vsub.f32 %v4749, %v4765
    %v4782 = vsub.f32 %v4750, %v4766
    %v4783 = vsub.f32 %v4751, %v4767
    %v4784 = vsub.f32 %v4752, %v4768
    %v4785 = vsub.f32 %v4753, %v4769
    %v4786 = vsub.f32 %v4754, %v4770
    %v4787 = vsub.f32 %v4755, %v4771
    %v4788 = vsub.f32 %v4756, %v4772
    %v4789 = vsub.f32 %v4757, %v4773
    %v4790 = vsub.f32 %v4758, %v4774
    %v4791 = vsub.f32 %v4759, %v4775
    %v4792 = vsub.f32 %v4760, %v4776
    %v4793 = vsub.f32 %v4631, %v4681
    %v4794 = vsub.f32 %v4632, %v4682
    %v4795 = vsub.f32 %v4633, %v4683
    %v4796 = vsub.f32 %v4634, %v4684
    %v4797 = vsub.f32 %v4635, %v4685
    %v4798 = vsub.f32 %v4636, %v4686
    %v4799 = vsub.f32 %v4637, %v4687
    %v4800 = vsub.f32 %v4638, %v4688
    %v4801 = vsub.f32 %v4639, %v4689
    %v4802 = vsub.f32 %v4640, %v4690
    %v4803 = vsub.f32 %v4641, %v4691
    %v4804 = vsub.f32 %v4642, %v4692
    %v4805 = vsub.f32 %v4643, %v4693
    %v4806 = vsub.f32 %v4644, %v4694
    %v4807 = vsub.f32 %v4645, %v4695
    %v4808 = vsub.f32 %v4646, %v4696
    %v4809 = vadd.f32 %v4777, 1e-05
    %v4810 = vadd.f32 %v4778, 1e-05
    %v4811 = vadd.f32 %v4779, 1e-05
    %v4812 = vadd.f32 %v4780, 1e-05
    %v4813 = vadd.f32 %v4781, 1e-05
    %v4814 = vadd.f32 %v4782, 1e-05
    %v4815 = vadd.f32 %v4783, 1e-05
    %v4816 = vadd.f32 %v4784, 1e-05
    %v4817 = vadd.f32 %v4785, 1e-05
    %v4818 = vadd.f32 %v4786, 1e-05
    %v4819 = vadd.f32 %v4787, 1e-05
    %v4820 = vadd.f32 %v4788, 1e-05
    %v4821 = vadd.f32 %v4789, 1e-05
    %v4822 = vadd.f32 %v4790, 1e-05
    %v4823 = vadd.f32 %v4791, 1e-05
    %v4824 = vadd.f32 %v4792, 1e-05
    %v4825 = vrsqrt.pop %v4809
    %v4826 = vrsqrt.pop %v4810
    %v4827 = vrsqrt.pop %v4811
    %v4828 = vrsqrt.pop %v4812
    %v4829 = vrsqrt.pop %v4813
    %v4830 = vrsqrt.pop %v4814
    %v4831 = vrsqrt.pop %v4815
    %v4832 = vrsqrt.pop %v4816
    %v4833 = vrsqrt.pop %v4817
    %v4834 = vrsqrt.pop %v4818
    %v4835 = vrsqrt.pop %v4819
    %v4836 = vrsqrt.pop %v4820
    %v4837 = vrsqrt.pop %v4821
    %v4838 = vrsqrt.pop %v4822
    %v4839 = vrsqrt.pop %v4823
    %v4840 = vrsqrt.pop %v4824
    %v4841 = vmul.f32 %v4793, %v4825
    %v4842 = vmul.f32 %v4794, %v4826
    %v4843 = vmul.f32 %v4795, %v4827
    %v4844 = vmul.f32 %v4796, %v4828
    %v4845 = vmul.f32 %v4797, %v4829
    %v4846 = vmul.f32 %v4798, %v4830
    %v4847 = vmul.f32 %v4799, %v4831
    %v4848 = vmul.f32 %v4800, %v4832
    %v4849 = vmul.f32 %v4801, %v4833
    %v4850 = vmul.f32 %v4802, %v4834
    %v4851 = vmul.f32 %v4803, %v4835
    %v4852 = vmul.f32 %v4804, %v4836
    %v4853 = vmul.f32 %v4805, %v4837
    %v4854 = vmul.f32 %v4806, %v4838
    %v4855 = vmul.f32 %v4807, %v4839
    %v4856 = vmul.f32 %v4808, %v4840
    %v4858 = vlaneseq
    %v4859 = vshrl.u32 %v4858, 7
    %v4860 = vsub.s32 0, %v4859
    %v4861 = vrot.slane %v4647, %v4860
    %v4863 = vmul.f32 %v4841, %v4861
    %v4864 = vmul.f32 %v4842, %v4861
    %v4865 = vmul.f32 %v4843, %v4861
    %v4866 = vmul.f32 %v4844, %v4861
    %v4867 = vmul.f32 %v4845, %v4861
    %v4868 = vmul.f32 %v4846, %v4861
    %v4869 = vmul.f32 %v4847, %v4861
    %v4870 = vmul.f32 %v4848, %v4861
    %v4871 = vmul.f32 %v4849, %v4861
    %v4872 = vmul.f32 %v4850, %v4861
    %v4873 = vmul.f32 %v4851, %v4861
    %v4874 = vmul.f32 %v4852, %v4861
    %v4875 = vmul.f32 %v4853, %v4861
    %v4876 = vmul.f32 %v4854, %v4861
    %v4877 = vmul.f32 %v4855, %v4861
    %v4878 = vmul.f32 %v4856, %v4861
    %v4880 = vlaneseq
    %v4881 = vshrl.u32 %v4880, 7
    %v4882 = vsub.s32 0, %v4881
    %v4883 = vrot.slane %v4648, %v4882
    %v4885 = vadd.f32 %v4863, %v4883
    %v4886 = vadd.f32 %v4864, %v4883
    %v4887 = vadd.f32 %v4865, %v4883
    %v4888 = vadd.f32 %v4866, %v4883
    %v4889 = vadd.f32 %v4867, %v4883
    %v4890 = vadd.f32 %v4868, %v4883
    %v4891 = vadd.f32 %v4869, %v4883
    %v4892 = vadd.f32 %v4870, %v4883
    %v4893 = vadd.f32 %v4871, %v4883
    %v4894 = vadd.f32 %v4872, %v4883
    %v4895 = vadd.f32 %v4873, %v4883
    %v4896 = vadd.f32 %v4874, %v4883
    %v4897 = vadd.f32 %v4875, %v4883
    %v4898 = vadd.f32 %v4876, %v4883
    %v4899 = vadd.f32 %v4877, %v4883
    %v4900 = vadd.f32 %v4878, %v4883
    %4901 = vst [vmem:[#allocation12] sm:$0xff] %v4885
    %4902 = vst [vmem:[#allocation12 + $0x8] sm:$0xff] %v4886
    %4903 = vst [vmem:[#allocation12 + $0x10] sm:$0xff] %v4887
    %4904 = vst [vmem:[#allocation12 + $0x18] sm:$0xff] %v4888
    %4905 = vst [vmem:[#allocation12 + $0x20] sm:$0xff] %v4889
    %4906 = vst [vmem:[#allocation12 + $0x28] sm:$0xff] %v4890
    %4907 = vst [vmem:[#allocation12 + $0x30] sm:$0xff] %v4891
    %4908 = vst [vmem:[#allocation12 + $0x38] sm:$0xff] %v4892
    %4909 = vst [vmem:[#allocation12 + $0x40] sm:$0xff] %v4893
    %4910 = vst [vmem:[#allocation12 + $0x48] sm:$0xff] %v4894
    %4911 = vst [vmem:[#allocation12 + $0x50] sm:$0xff] %v4895
    %4912 = vst [vmem:[#allocation12 + $0x58] sm:$0xff] %v4896
    %4913 = vst [vmem:[#allocation12 + $0x60] sm:$0xff] %v4897
    %4914 = vst [vmem:[#allocation12 + $0x68] sm:$0xff] %v4898
    %4915 = vst [vmem:[#allocation12 + $0x70] sm:$0xff] %v4899
    %4916 = vst [vmem:[#allocation12 + $0x78] sm:$0xff] %v4900
    // Predicated region
    $region70: #{tpu_custom_call.1} parent=1 // pred_check
      _
    $region71: #{tpu_custom_call.1} parent=1 // pred_check_branch
      %4918 = sbr.rel (0) target = $region73
    $region72: #{tpu_custom_call.1} parent=1 // pred_region
      %s4920 = ssub.s32 2048, 2048
      %4921 = vsyncadd [#allocation5], %s4920
      %s4922 = sshll.u32 [#allocation12], 4
      %s4923 = int_to_ptr.vmem [resolvable:$true] %s4922
      %4928 = dma.vmem_to_hbm [thread:$0]  %s4923, 2048, %s12, [#allocation5], 128, 128, 8
    $region73: #{tpu_custom_call.1} parent=1 // pred_fallthru
      _
    // Predicated region
    $region74: #{tpu_custom_call.1} parent=1 // pred_check
      _
    $region75: #{tpu_custom_call.1} parent=1 // pred_check_branch
      %4930 = sbr.rel (0) target = $region77
    $region76: #{tpu_custom_call.1} parent=1 // pred_region
      %4931 = dma.done [#allocation5], 2048
    $region77: #{tpu_custom_call.1} parent=1 // pred_fallthru
      _
    %4932 = vsyncpa [#allocation4], 1
    %4933 = vsyncpa [#allocation7], 1
    %4934 = vsyncpa [#allocation10], 1
    %4935 = vsyncpa [#allocation5], 1

</llo_original>
